<compile_context>
chip_gen: v6e
topology: v6e:2x2x1
jax: 0.10.0
libtpu: 0.0.40
codegen_flags: <defaults>
</compile_context>

<pallas_src>
import math

import jax
import jax.numpy as jnp
from jax import lax
from jax.experimental import pallas as pl
from jax.experimental.pallas import tpu as pltpu


# ----------------------------------------------------------------------------
# Pallas kernel
# ----------------------------------------------------------------------------
def _make_lstm_kernel(num_layers: int, hidden_pad: int, chunk_len: int,
                      seq_len: int, unroll):
    L, Hp, Tc, T = num_layers, hidden_pad, chunk_len, seq_len

    def sigmoid(v):
        # 1 EUP op (tanh) + cheap VPU fma instead of exp + reciprocal.
        return 0.5 * jnp.tanh(0.5 * v) + 0.5

    def pointwise(gates, c_prev):
        # gate order along the (lane-aligned) 4*Hp axis: [i, f, o, c]
        i_g = sigmoid(gates[:, 0 * Hp:1 * Hp])
        f_g = sigmoid(gates[:, 1 * Hp:2 * Hp])
        o_g = sigmoid(gates[:, 2 * Hp:3 * Hp])
        c_t = jnp.tanh(gates[:, 3 * Hp:4 * Hp])
        c_new = f_g * c_prev + i_g * c_t
        h_new = o_g * jnp.tanh(c_new)
        return h_new, c_new

    def kernel(gx_ref, h0_ref, c0_ref, *rest):
        # rest = [Wh_0, (W_fused_1, b_1), ..., (W_fused_{L-1}, b_{L-1}),
        #         out_ref, h_final_ref, c_final_ref, h_scratch, c_scratch]
        n_w = 1 + 2 * (L - 1)
        w_refs = rest[:n_w]
        out_ref, hN_ref, cN_ref, h_sc, c_sc = rest[n_w:]

        chunk = pl.program_id(0)

        # Initialize the recurrent state from the provided initial hidden/cell.
        @pl.when(chunk == 0)
        def _():
            h_sc[...] = h0_ref[...]
            c_sc[...] = c0_ref[...]

        t_base = chunk * Tc

        # Load persistent state into the loop carry (stays in vregs).
        h_init = tuple(h_sc[l] for l in range(L))
        c_init = tuple(c_sc[l] for l in range(L))

        # Hoist bias loads out of the time loop (small, a few vregs each).
        biases = tuple(w_refs[2 + 2 * (layer - 1)][...] for layer in range(1, L))

        def step(lt, carry):
            hs, cs = carry
            hs = list(hs)
            cs = list(cs)

            # Layer 0: input projection precomputed in wrapper (gx already
            # includes x @ Wx0 + b0); only the recurrent matmul remains.
            gates = gx_ref[lt] + jnp.dot(
                hs[0], w_refs[0][...], preferred_element_type=jnp.float32)
            h_new, c_new = pointwise(gates, cs[0])
            hs[0], cs[0] = h_new, c_new
            x_t = h_new

            # Layers >= 1: fused [x_t, h_prev] @ [Wx; Wh] + b.
            for layer in range(1, L):
                w = w_refs[1 + 2 * (layer - 1)]
                xh = jnp.concatenate([x_t, hs[layer]], axis=-1)  # (B, 2Hp)
                gates = jnp.dot(
                    xh, w[...],
                    preferred_element_type=jnp.float32) + biases[layer - 1]
                h_new, c_new = pointwise(gates, cs[layer])
                hs[layer], cs[layer] = h_new, c_new
                x_t = h_new

            # Lane-dense (Hp multiple of 128) write into this chunk's block.
            out_ref[lt] = x_t

            # Capture the final state exactly once, at global timestep T-1
            # (robust to a zero-padded tail in the last chunk).
            @pl.when(t_base + lt == T - 1)
            def _():
                for l in range(L):
                    hN_ref[l] = hs[l]
                    cN_ref[l] = cs[l]

            return (tuple(hs), tuple(cs))

        hs_f, cs_f = lax.fori_loop(0, Tc, step, (h_init, c_init),
                                   unroll=unroll)

        # Persist the recurrent state for the next chunk.
        for l in range(L):
            h_sc[l] = hs_f[l]
            c_sc[l] = cs_f[l]

    return kernel


# ----------------------------------------------------------------------------
# Wrapper: plain-JAX glue around pallas_call
# ----------------------------------------------------------------------------
def _pad_gate_cols(w, H, Hp):
    """(rows, 4H) -> (rows, 4Hp): pad each of the 4 gate column blocks to Hp."""
    rows = w.shape[0]
    w4 = w.reshape(rows, 4, H)
    w4 = jnp.pad(w4, ((0, 0), (0, 0), (0, Hp - H)))
    return w4.reshape(rows, 4 * Hp)


def multilayer_lstm_forward(x, hidden, params, *, max_chunk=64):
    """x: (B, T, input_size); hidden: (h0, c0) each (L, B, H);
    params: list of (Wx (in_dim,4H), Wh (H,4H), b (1,4H)) per layer,
    gate order [i, f, o, c].  Returns (outputs (B, T, H), (h_final, c_final))."""
    B, T, _ = x.shape
    L = len(params)
    H = params[0][1].shape[0]
    Hp = ((H + 127) // 128) * 128           # lane-aligned hidden size
    Tc = min(T, max_chunk)                  # timesteps per grid step
    Tp = ((T + Tc - 1) // Tc) * Tc
    num_chunks = Tp // Tc
    in_dtype = x.dtype
    f32 = jnp.float32

    h0, c0 = hidden
    wx0, wh0, b0 = params[0]

    # --- Hoisted layer-0 input projection: one big matmul over the whole seq.
    gx = jnp.einsum('btd,dg->btg', x.astype(f32), wx0.astype(f32)) + b0.astype(f32)
    gx = gx.reshape(B, T, 4, H)
    gx = jnp.pad(gx, ((0, 0), (0, 0), (0, 0), (0, Hp - H)))
    gx = jnp.transpose(gx.reshape(B, T, 4 * Hp), (1, 0, 2))   # time-major (T,B,4Hp)
    gx = jnp.pad(gx, ((0, Tp - T), (0, 0), (0, 0)))

    # --- Pad / fuse weights (each gate block lane-aligned to Hp).
    wh0_p = jnp.pad(_pad_gate_cols(wh0.astype(f32), H, Hp), ((0, Hp - H), (0, 0)))
    weight_args = [wh0_p]
    for (wx, wh, b) in params[1:]:
        wx_p = jnp.pad(_pad_gate_cols(wx.astype(f32), H, Hp), ((0, Hp - H), (0, 0)))
        wh_p = jnp.pad(_pad_gate_cols(wh.astype(f32), H, Hp), ((0, Hp - H), (0, 0)))
        w_fused = jnp.concatenate([wx_p, wh_p], axis=0)        # (2Hp, 4Hp)
        b_p = _pad_gate_cols(b.astype(f32), H, Hp)             # (1, 4Hp)
        weight_args += [w_fused, b_p]

    h0_p = jnp.pad(h0.astype(f32), ((0, 0), (0, 0), (0, Hp - H)))
    c0_p = jnp.pad(c0.astype(f32), ((0, 0), (0, 0), (0, Hp - H)))

    unroll = True if Tc <= 16 else 4
    kernel = _make_lstm_kernel(L, Hp, Tc, T, unroll)

    in_specs = [
        pl.BlockSpec((Tc, B, 4 * Hp), lambda c: (c, 0, 0)),    # gx (per time chunk)
        pl.BlockSpec((L, B, Hp), lambda c: (0, 0, 0)),         # h0 (resident)
        pl.BlockSpec((L, B, Hp), lambda c: (0, 0, 0)),         # c0 (resident)
        pl.BlockSpec((Hp, 4 * Hp), lambda c: (0, 0)),          # Wh_0 (resident)
    ]
    for _ in range(1, L):
        in_specs.append(pl.BlockSpec((2 * Hp, 4 * Hp), lambda c: (0, 0)))
        in_specs.append(pl.BlockSpec((1, 4 * Hp), lambda c: (0, 0)))

    out_specs = [
        pl.BlockSpec((Tc, B, Hp), lambda c: (c, 0, 0)),        # outputs (time-major)
        pl.BlockSpec((L, B, Hp), lambda c: (0, 0, 0)),         # final h (resident)
        pl.BlockSpec((L, B, Hp), lambda c: (0, 0, 0)),         # final c (resident)
    ]
    out_shape = (
        jax.ShapeDtypeStruct((Tp, B, Hp), f32),
        jax.ShapeDtypeStruct((L, B, Hp), f32),
        jax.ShapeDtypeStruct((L, B, Hp), f32),
    )

    # VMEM budget: resident weights + state + double-buffered gx/out chunks.
    bpf = 4
    w_bytes = (Hp * 4 * Hp + (L - 1) * (2 * Hp * 4 * Hp + 4 * Hp)) * bpf
    io_bytes = 2 * (Tc * B * 4 * Hp + Tc * B * Hp) * bpf
    st_bytes = 6 * L * B * Hp * bpf
    vmem_limit = int(min(max(2 * (w_bytes + io_bytes + st_bytes),
                             32 * 1024 * 1024), 64 * 1024 * 1024))

    grid_spec = pltpu.PrefetchScalarGridSpec(
        num_scalar_prefetch=0,
        grid=(num_chunks,),
        in_specs=in_specs,
        out_specs=out_specs,
        scratch_shapes=[
            pltpu.VMEM((L, B, Hp), f32),   # h state (persists across chunks)
            pltpu.VMEM((L, B, Hp), f32),   # c state
        ],
    )

    out_tm, h_final, c_final = pl.pallas_call(
        kernel,
        grid_spec=grid_spec,
        out_shape=out_shape,
        input_output_aliases={1: 1, 2: 2},   # h0 -> final h, c0 -> final c
        compiler_params=pltpu.CompilerParams(
            dimension_semantics=("arbitrary",),   # time chunks are sequential
            vmem_limit_bytes=vmem_limit,
        ),
    )(gx, h0_p, c0_p, *weight_args)

    outputs = jnp.transpose(out_tm[:T, :, :H], (1, 0, 2)).astype(in_dtype)
    return outputs, (h_final[:, :, :H].astype(in_dtype),
                     c_final[:, :, :H].astype(in_dtype))


# ----------------------------------------------------------------------------
# Deterministic parameter construction (matches NaiveLSTMCell.__init__ shapes)
# ----------------------------------------------------------------------------
def init_params(key, input_size, hidden_size, num_layers, dtype=jnp.float32):
    stdv = 1.0 / math.sqrt(hidden_size)
    params = []
    for layer in range(num_layers):
        in_dim = input_size if layer == 0 else hidden_size
        gate_wx, gate_wh, gate_b = [], [], []
        for _gate in range(4):  # order: [i, f, o, c]
            key, k1, k2, k3 = jax.random.split(key, 4)
            gate_wx.append(
                jax.random.uniform(k1, (in_dim, hidden_size), dtype, -stdv, stdv))
            gate_wh.append(
                jax.random.uniform(k2, (hidden_size, hidden_size), dtype, -stdv, stdv))
            gate_b.append(
                jax.random.uniform(k3, (hidden_size,), dtype, -stdv, stdv))
        wx = jnp.concatenate(gate_wx, axis=1)                 # (in_dim, 4H)
        wh = jnp.concatenate(gate_wh, axis=1)                 # (H, 4H)
        b = jnp.concatenate(gate_b, axis=0)[None, :]          # (1, 4H)
        params.append((wx, wh, b))
    return params


# ----------------------------------------------------------------------------
# Pure-JAX reference (mirrors the PyTorch forward exactly)
# ----------------------------------------------------------------------------
def reference_forward(x, hidden, params, hidden_size):
    B, T, _ = x.shape
    H = hidden_size
    h_x = [hidden[0][l] for l in range(len(params))]
    c_x = [hidden[1][l] for l in range(len(params))]
    outs = []
    for t in range(T):
        x_t = x[:, t, :]
        for layer, (wx, wh, b) in enumerate(params):
            gates = x_t @ wx + h_x[layer] @ wh + b
            i_g = jax.nn.sigmoid(gates[:, 0 * H:1 * H])
            f_g = jax.nn.sigmoid(gates[:, 1 * H:2 * H])
            o_g = jax.nn.sigmoid(gates[:, 2 * H:3 * H])
            c_t = jnp.tanh(gates[:, 3 * H:4 * H])
            c_new = f_g * c_x[layer] + i_g * c_t
            h_new = o_g * jnp.tanh(c_new)
            h_x[layer], c_x[layer] = h_new, c_new
            x_t = h_new
        outs.append(x_t)
    return (jnp.stack(outs, axis=1),
            (jnp.stack(h_x, axis=0), jnp.stack(c_x, axis=0)))


if __name__ == "__main__":
    B, T = 2, 8
    INPUT_SIZE, HIDDEN_SIZE, NUM_LAYERS = 16, 32, 2

    key = jax.random.PRNGKey(0)
    key, kx, kh, kc = jax.random.split(key, 4)
    x = jax.random.normal(kx, (B, T, INPUT_SIZE), dtype=jnp.float32)
    params = init_params(key, INPUT_SIZE, HIDDEN_SIZE, NUM_LAYERS)

    # Non-zero initial state to exercise the hidden=(h0, c0) path.
    h0 = 0.1 * jax.random.normal(kh, (NUM_LAYERS, B, HIDDEN_SIZE), jnp.float32)
    c0 = 0.1 * jax.random.normal(kc, (NUM_LAYERS, B, HIDDEN_SIZE), jnp.float32)

    outputs, (h_f, c_f) = multilayer_lstm_forward(x, (h0, c0), params)
    outputs = jax.block_until_ready(outputs)
    h_f = jax.block_until_ready(h_f)
    c_f = jax.block_until_ready(c_f)

    # Verify against the pure-JAX reference of the PyTorch forward.
    ref_out, (ref_h, ref_c) = reference_forward(x, (h0, c0), params, HIDDEN_SIZE)
    assert outputs.shape == (B, T, HIDDEN_SIZE)
    assert h_f.shape == (NUM_LAYERS, B, HIDDEN_SIZE)
    assert c_f.shape == (NUM_LAYERS, B, HIDDEN_SIZE)
    assert jnp.allclose(outputs, ref_out, atol=1e-4, rtol=1e-4)
    assert jnp.allclose(h_f, ref_h, atol=1e-4, rtol=1e-4)
    assert jnp.allclose(c_f, ref_c, atol=1e-4, rtol=1e-4)

    print("KERNEL_OK")
</pallas_src>

<mosaic_0001>
module attributes {stable_mosaic.version = 11 : i64} {
  func.func @kernel(%arg0: i32, %arg1: memref<8x2x512xf32, #tpu.memory_space<vmem>>, %arg2: memref<2x2x128xf32, #tpu.memory_space<vmem>>, %arg3: memref<2x2x128xf32, #tpu.memory_space<vmem>>, %arg4: memref<128x512xf32, #tpu.memory_space<vmem>>, %arg5: memref<256x512xf32, #tpu.memory_space<vmem>>, %arg6: memref<1x512xf32, #tpu.memory_space<vmem>>, %arg7: memref<8x2x128xf32, #tpu.memory_space<vmem>>, %arg8: memref<2x2x128xf32, #tpu.memory_space<vmem>>, %arg9: memref<2x2x128xf32, #tpu.memory_space<vmem>>, %arg10: memref<2x2x128xf32, #tpu.memory_space<vmem>>, %arg11: memref<2x2x128xf32, #tpu.memory_space<vmem>>) attributes {dimension_semantics = [#tpu.dimension_semantics<arbitrary>], iteration_bounds = array<i64: 1>, scalar_prefetch = 0 : i64, scratch_operands = 2 : i64, tpu.core_type = #tpu.core_type<tc>, window_params = [{transform_indices = @transform_0, window_bounds = array<i64: 8, 2, 512>}, {pipeline_mode = #tpu.pipeline_mode<synchronous>, transform_indices = @transform_1, window_bounds = array<i64: 2, 2, 128>}, {pipeline_mode = #tpu.pipeline_mode<synchronous>, transform_indices = @transform_2, window_bounds = array<i64: 2, 2, 128>}, {pipeline_mode = #tpu.pipeline_mode<synchronous>, transform_indices = @transform_3, window_bounds = array<i64: 128, 512>}, {pipeline_mode = #tpu.pipeline_mode<synchronous>, transform_indices = @transform_4, window_bounds = array<i64: 256, 512>}, {pipeline_mode = #tpu.pipeline_mode<synchronous>, transform_indices = @transform_5, window_bounds = array<i64: 1, 512>}, {transform_indices = @transform_6, window_bounds = array<i64: 8, 2, 128>}, {pipeline_mode = #tpu.pipeline_mode<synchronous>, transform_indices = @transform_7, window_bounds = array<i64: 2, 2, 128>}, {pipeline_mode = #tpu.pipeline_mode<synchronous>, transform_indices = @transform_8, window_bounds = array<i64: 2, 2, 128>}]} {
    %c0_i32 = arith.constant 0 : i32
    %0 = arith.cmpi eq, %arg0, %c0_i32 : i32
    %1 = arith.extui %0 : i1 to i32
    %c0_i32_0 = arith.constant 0 : i32
    %2 = arith.cmpi ne, %1, %c0_i32_0 : i32
    scf.if %2 {
      %c0_266 = arith.constant 0 : index
      %c0_267 = arith.constant 0 : index
      %c0_268 = arith.constant 0 : index
      %673 = vector.load %arg2[%c0_266, %c0_267, %c0_268] : memref<2x2x128xf32, #tpu.memory_space<vmem>>, vector<2x2x128xf32>
      %c0_269 = arith.constant 0 : index
      %c0_270 = arith.constant 0 : index
      %c0_271 = arith.constant 0 : index
      %674 = vector.load %arg10[%c0_269, %c0_270, %c0_271] : memref<2x2x128xf32, #tpu.memory_space<vmem>>, vector<2x2x128xf32>
      tpu.vector_store %arg10[%c0_269, %c0_270, %c0_271], %673 {strides = array<i32>} : memref<2x2x128xf32, #tpu.memory_space<vmem>>, vector<2x2x128xf32>,
      %c0_272 = arith.constant 0 : index
      %c0_273 = arith.constant 0 : index
      %c0_274 = arith.constant 0 : index
      %675 = vector.load %arg3[%c0_272, %c0_273, %c0_274] : memref<2x2x128xf32, #tpu.memory_space<vmem>>, vector<2x2x128xf32>
      %c0_275 = arith.constant 0 : index
      %c0_276 = arith.constant 0 : index
      %c0_277 = arith.constant 0 : index
      %676 = vector.load %arg11[%c0_275, %c0_276, %c0_277] : memref<2x2x128xf32, #tpu.memory_space<vmem>>, vector<2x2x128xf32>
      tpu.vector_store %arg11[%c0_275, %c0_276, %c0_277], %675 {strides = array<i32>} : memref<2x2x128xf32, #tpu.memory_space<vmem>>, vector<2x2x128xf32>,
    } else {
    }
    %c8_i32 = arith.constant 8 : i32
    %3 = arith.muli %arg0, %c8_i32 : i32
    %c0 = arith.constant 0 : index
    %c0_1 = arith.constant 0 : index
    %c0_2 = arith.constant 0 : index
    %4 = vector.load %arg10[%c0, %c0_1, %c0_2] : memref<2x2x128xf32, #tpu.memory_space<vmem>>, vector<1x2x128xf32>
    %5 = vector.shape_cast %4 : vector<1x2x128xf32> to vector<2x128xf32>
    %c1 = arith.constant 1 : index
    %c0_3 = arith.constant 0 : index
    %c0_4 = arith.constant 0 : index
    %6 = vector.load %arg10[%c1, %c0_3, %c0_4] : memref<2x2x128xf32, #tpu.memory_space<vmem>>, vector<1x2x128xf32>
    %7 = vector.shape_cast %6 : vector<1x2x128xf32> to vector<2x128xf32>
    %c0_5 = arith.constant 0 : index
    %c0_6 = arith.constant 0 : index
    %c0_7 = arith.constant 0 : index
    %8 = vector.load %arg11[%c0_5, %c0_6, %c0_7] : memref<2x2x128xf32, #tpu.memory_space<vmem>>, vector<1x2x128xf32>
    %9 = vector.shape_cast %8 : vector<1x2x128xf32> to vector<2x128xf32>
    %c1_8 = arith.constant 1 : index
    %c0_9 = arith.constant 0 : index
    %c0_10 = arith.constant 0 : index
    %10 = vector.load %arg11[%c1_8, %c0_9, %c0_10] : memref<2x2x128xf32, #tpu.memory_space<vmem>>, vector<1x2x128xf32>
    %11 = vector.shape_cast %10 : vector<1x2x128xf32> to vector<2x128xf32>
    %c0_11 = arith.constant 0 : index
    %c0_12 = arith.constant 0 : index
    %12 = vector.load %arg6[%c0_11, %c0_12] : memref<1x512xf32, #tpu.memory_space<vmem>>, vector<1x512xf32>
    %c0_i32_13 = arith.constant 0 : i32
    %13 = arith.index_cast %c0_i32_13 : i32 to index
    %c0_14 = arith.constant 0 : index
    %c0_15 = arith.constant 0 : index
    %14 = vector.load %arg1[%13, %c0_14, %c0_15] : memref<8x2x512xf32, #tpu.memory_space<vmem>>, vector<1x2x512xf32>
    %15 = vector.shape_cast %14 : vector<1x2x512xf32> to vector<2x512xf32>
    %c0_16 = arith.constant 0 : index
    %c0_17 = arith.constant 0 : index
    %16 = vector.load %arg4[%c0_16, %c0_17] : memref<128x512xf32, #tpu.memory_space<vmem>>, vector<128x512xf32>
    %cst = arith.constant dense<0.000000e+00> : vector<2x512xf32>
    %17 = tpu.matmul %5, %16, %cst {dimension_numbers = #tpu.dot_dimension_numbers<[1], [0], [0], [1], [0, 0, 1, 1], [], []>} : vector<2x128xf32>, vector<128x512xf32>, vector<2x512xf32> -> vector<2x512xf32>
    %18 = arith.addf %15, %17 : vector<2x512xf32>
    %19 = vector.extract_strided_slice %18 {offsets = [0, 0], sizes = [2, 128], strides = [1, 1]} : vector<2x512xf32> to vector<2x128xf32>
    %cst_18 = arith.constant 5.000000e-01 : f32
    %20 = vector.broadcast %cst_18 : f32 to vector<2x128xf32>
    %21 = arith.mulf %20, %19 : vector<2x128xf32>
    %22 = math.tanh %21 : vector<2x128xf32>
    %cst_19 = arith.constant 5.000000e-01 : f32
    %23 = vector.broadcast %cst_19 : f32 to vector<2x128xf32>
    %24 = arith.mulf %23, %22 : vector<2x128xf32>
    %cst_20 = arith.constant 5.000000e-01 : f32
    %25 = vector.broadcast %cst_20 : f32 to vector<2x128xf32>
    %26 = arith.addf %24, %25 : vector<2x128xf32>
    %27 = vector.extract_strided_slice %18 {offsets = [0, 128], sizes = [2, 128], strides = [1, 1]} : vector<2x512xf32> to vector<2x128xf32>
    %cst_21 = arith.constant 5.000000e-01 : f32
    %28 = vector.broadcast %cst_21 : f32 to vector<2x128xf32>
    %29 = arith.mulf %28, %27 : vector<2x128xf32>
    %30 = math.tanh %29 : vector<2x128xf32>
    %cst_22 = arith.constant 5.000000e-01 : f32
    %31 = vector.broadcast %cst_22 : f32 to vector<2x128xf32>
    %32 = arith.mulf %31, %30 : vector<2x128xf32>
    %cst_23 = arith.constant 5.000000e-01 : f32
    %33 = vector.broadcast %cst_23 : f32 to vector<2x128xf32>
    %34 = arith.addf %32, %33 : vector<2x128xf32>
    %35 = vector.extract_strided_slice %18 {offsets = [0, 256], sizes = [2, 128], strides = [1, 1]} : vector<2x512xf32> to vector<2x128xf32>
    %cst_24 = arith.constant 5.000000e-01 : f32
    %36 = vector.broadcast %cst_24 : f32 to vector<2x128xf32>
    %37 = arith.mulf %36, %35 : vector<2x128xf32>
    %38 = math.tanh %37 : vector<2x128xf32>
    %cst_25 = arith.constant 5.000000e-01 : f32
    %39 = vector.broadcast %cst_25 : f32 to vector<2x128xf32>
    %40 = arith.mulf %39, %38 : vector<2x128xf32>
    %cst_26 = arith.constant 5.000000e-01 : f32
    %41 = vector.broadcast %cst_26 : f32 to vector<2x128xf32>
    %42 = arith.addf %40, %41 : vector<2x128xf32>
    %43 = vector.extract_strided_slice %18 {offsets = [0, 384], sizes = [2, 128], strides = [1, 1]} : vector<2x512xf32> to vector<2x128xf32>
    %44 = math.tanh %43 : vector<2x128xf32>
    %45 = arith.mulf %34, %9 : vector<2x128xf32>
    %46 = arith.mulf %26, %44 : vector<2x128xf32>
    %47 = arith.addf %45, %46 : vector<2x128xf32>
    %48 = math.tanh %47 : vector<2x128xf32>
    %49 = arith.mulf %42, %48 : vector<2x128xf32>
    %50 = tpu.concatenate %49, %7 in 1 : vector<2x128xf32>, vector<2x128xf32> -> vector<2x256xf32>
    %c0_27 = arith.constant 0 : index
    %c0_28 = arith.constant 0 : index
    %51 = vector.load %arg5[%c0_27, %c0_28] : memref<256x512xf32, #tpu.memory_space<vmem>>, vector<256x512xf32>
    %cst_29 = arith.constant dense<0.000000e+00> : vector<2x512xf32>
    %52 = tpu.matmul %50, %51, %cst_29 {dimension_numbers = #tpu.dot_dimension_numbers<[1], [0], [0], [1], [0, 0, 1, 1], [], []>} : vector<2x256xf32>, vector<256x512xf32>, vector<2x512xf32> -> vector<2x512xf32>
    %53 = vector.broadcast %12 : vector<1x512xf32> to vector<2x512xf32>
    %54 = arith.addf %52, %53 : vector<2x512xf32>
    %55 = vector.extract_strided_slice %54 {offsets = [0, 0], sizes = [2, 128], strides = [1, 1]} : vector<2x512xf32> to vector<2x128xf32>
    %cst_30 = arith.constant 5.000000e-01 : f32
    %56 = vector.broadcast %cst_30 : f32 to vector<2x128xf32>
    %57 = arith.mulf %56, %55 : vector<2x128xf32>
    %58 = math.tanh %57 : vector<2x128xf32>
    %cst_31 = arith.constant 5.000000e-01 : f32
    %59 = vector.broadcast %cst_31 : f32 to vector<2x128xf32>
    %60 = arith.mulf %59, %58 : vector<2x128xf32>
    %cst_32 = arith.constant 5.000000e-01 : f32
    %61 = vector.broadcast %cst_32 : f32 to vector<2x128xf32>
    %62 = arith.addf %60, %61 : vector<2x128xf32>
    %63 = vector.extract_strided_slice %54 {offsets = [0, 128], sizes = [2, 128], strides = [1, 1]} : vector<2x512xf32> to vector<2x128xf32>
    %cst_33 = arith.constant 5.000000e-01 : f32
    %64 = vector.broadcast %cst_33 : f32 to vector<2x128xf32>
    %65 = arith.mulf %64, %63 : vector<2x128xf32>
    %66 = math.tanh %65 : vector<2x128xf32>
    %cst_34 = arith.constant 5.000000e-01 : f32
    %67 = vector.broadcast %cst_34 : f32 to vector<2x128xf32>
    %68 = arith.mulf %67, %66 : vector<2x128xf32>
    %cst_35 = arith.constant 5.000000e-01 : f32
    %69 = vector.broadcast %cst_35 : f32 to vector<2x128xf32>
    %70 = arith.addf %68, %69 : vector<2x128xf32>
    %71 = vector.extract_strided_slice %54 {offsets = [0, 256], sizes = [2, 128], strides = [1, 1]} : vector<2x512xf32> to vector<2x128xf32>
    %cst_36 = arith.constant 5.000000e-01 : f32
    %72 = vector.broadcast %cst_36 : f32 to vector<2x128xf32>
    %73 = arith.mulf %72, %71 : vector<2x128xf32>
    %74 = math.tanh %73 : vector<2x128xf32>
    %cst_37 = arith.constant 5.000000e-01 : f32
    %75 = vector.broadcast %cst_37 : f32 to vector<2x128xf32>
    %76 = arith.mulf %75, %74 : vector<2x128xf32>
    %cst_38 = arith.constant 5.000000e-01 : f32
    %77 = vector.broadcast %cst_38 : f32 to vector<2x128xf32>
    %78 = arith.addf %76, %77 : vector<2x128xf32>
    %79 = vector.extract_strided_slice %54 {offsets = [0, 384], sizes = [2, 128], strides = [1, 1]} : vector<2x512xf32> to vector<2x128xf32>
    %80 = math.tanh %79 : vector<2x128xf32>
    %81 = arith.mulf %70, %11 : vector<2x128xf32>
    %82 = arith.mulf %62, %80 : vector<2x128xf32>
    %83 = arith.addf %81, %82 : vector<2x128xf32>
    %84 = math.tanh %83 : vector<2x128xf32>
    %85 = arith.mulf %78, %84 : vector<2x128xf32>
    %86 = arith.index_cast %c0_i32_13 : i32 to index
    %c0_39 = arith.constant 0 : index
    %c0_40 = arith.constant 0 : index
    %87 = vector.load %arg7[%86, %c0_39, %c0_40] : memref<8x2x128xf32, #tpu.memory_space<vmem>>, vector<1x2x128xf32>
    %88 = vector.shape_cast %87 : vector<1x2x128xf32> to vector<2x128xf32>
    %89 = vector.shape_cast %85 : vector<2x128xf32> to vector<1x2x128xf32>
    tpu.vector_store %arg7[%86, %c0_39, %c0_40], %89 {strides = array<i32>} : memref<8x2x128xf32, #tpu.memory_space<vmem>>, vector<1x2x128xf32>,
    %90 = arith.addi %3, %c0_i32_13 : i32
    %c7_i32 = arith.constant 7 : i32
    %91 = arith.cmpi eq, %90, %c7_i32 : i32
    %92 = arith.extui %91 : i1 to i32
    %c0_i32_41 = arith.constant 0 : i32
    %93 = arith.cmpi ne, %92, %c0_i32_41 : i32
    scf.if %93 {
      %c0_266 = arith.constant 0 : index
      %c0_267 = arith.constant 0 : index
      %c0_268 = arith.constant 0 : index
      %673 = vector.load %arg8[%c0_266, %c0_267, %c0_268] : memref<2x2x128xf32, #tpu.memory_space<vmem>>, vector<1x2x128xf32>
      %674 = vector.shape_cast %673 : vector<1x2x128xf32> to vector<2x128xf32>
      %675 = vector.shape_cast %49 : vector<2x128xf32> to vector<1x2x128xf32>
      tpu.vector_store %arg8[%c0_266, %c0_267, %c0_268], %675 {strides = array<i32>} : memref<2x2x128xf32, #tpu.memory_space<vmem>>, vector<1x2x128xf32>,
      %c0_269 = arith.constant 0 : index
      %c0_270 = arith.constant 0 : index
      %c0_271 = arith.constant 0 : index
      %676 = vector.load %arg9[%c0_269, %c0_270, %c0_271] : memref<2x2x128xf32, #tpu.memory_space<vmem>>, vector<1x2x128xf32>
      %677 = vector.shape_cast %676 : vector<1x2x128xf32> to vector<2x128xf32>
      %678 = vector.shape_cast %47 : vector<2x128xf32> to vector<1x2x128xf32>
      tpu.vector_store %arg9[%c0_269, %c0_270, %c0_271], %678 {strides = array<i32>} : memref<2x2x128xf32, #tpu.memory_space<vmem>>, vector<1x2x128xf32>,
      %c1_272 = arith.constant 1 : index
      %c0_273 = arith.constant 0 : index
      %c0_274 = arith.constant 0 : index
      %679 = vector.load %arg8[%c1_272, %c0_273, %c0_274] : memref<2x2x128xf32, #tpu.memory_space<vmem>>, vector<1x2x128xf32>
      %680 = vector.shape_cast %679 : vector<1x2x128xf32> to vector<2x128xf32>
      %681 = vector.shape_cast %85 : vector<2x128xf32> to vector<1x2x128xf32>
      tpu.vector_store %arg8[%c1_272, %c0_273, %c0_274], %681 {strides = array<i32>} : memref<2x2x128xf32, #tpu.memory_space<vmem>>, vector<1x2x128xf32>,
      %c1_275 = arith.constant 1 : index
      %c0_276 = arith.constant 0 : index
      %c0_277 = arith.constant 0 : index
      %682 = vector.load %arg9[%c1_275, %c0_276, %c0_277] : memref<2x2x128xf32, #tpu.memory_space<vmem>>, vector<1x2x128xf32>
      %683 = vector.shape_cast %682 : vector<1x2x128xf32> to vector<2x128xf32>
      %684 = vector.shape_cast %83 : vector<2x128xf32> to vector<1x2x128xf32>
      tpu.vector_store %arg9[%c1_275, %c0_276, %c0_277], %684 {strides = array<i32>} : memref<2x2x128xf32, #tpu.memory_space<vmem>>, vector<1x2x128xf32>,
    } else {
    }
    %c1_i32 = arith.constant 1 : i32
    %94 = arith.index_cast %c1_i32 : i32 to index
    %c0_42 = arith.constant 0 : index
    %c0_43 = arith.constant 0 : index
    %95 = vector.load %arg1[%94, %c0_42, %c0_43] : memref<8x2x512xf32, #tpu.memory_space<vmem>>, vector<1x2x512xf32>
    %96 = vector.shape_cast %95 : vector<1x2x512xf32> to vector<2x512xf32>
    %c0_44 = arith.constant 0 : index
    %c0_45 = arith.constant 0 : index
    %97 = vector.load %arg4[%c0_44, %c0_45] : memref<128x512xf32, #tpu.memory_space<vmem>>, vector<128x512xf32>
    %cst_46 = arith.constant dense<0.000000e+00> : vector<2x512xf32>
    %98 = tpu.matmul %49, %97, %cst_46 {dimension_numbers = #tpu.dot_dimension_numbers<[1], [0], [0], [1], [0, 0, 1, 1], [], []>} : vector<2x128xf32>, vector<128x512xf32>, vector<2x512xf32> -> vector<2x512xf32>
    %99 = arith.addf %96, %98 : vector<2x512xf32>
    %100 = vector.extract_strided_slice %99 {offsets = [0, 0], sizes = [2, 128], strides = [1, 1]} : vector<2x512xf32> to vector<2x128xf32>
    %cst_47 = arith.constant 5.000000e-01 : f32
    %101 = vector.broadcast %cst_47 : f32 to vector<2x128xf32>
    %102 = arith.mulf %101, %100 : vector<2x128xf32>
    %103 = math.tanh %102 : vector<2x128xf32>
    %cst_48 = arith.constant 5.000000e-01 : f32
    %104 = vector.broadcast %cst_48 : f32 to vector<2x128xf32>
    %105 = arith.mulf %104, %103 : vector<2x128xf32>
    %cst_49 = arith.constant 5.000000e-01 : f32
    %106 = vector.broadcast %cst_49 : f32 to vector<2x128xf32>
    %107 = arith.addf %105, %106 : vector<2x128xf32>
    %108 = vector.extract_strided_slice %99 {offsets = [0, 128], sizes = [2, 128], strides = [1, 1]} : vector<2x512xf32> to vector<2x128xf32>
    %cst_50 = arith.constant 5.000000e-01 : f32
    %109 = vector.broadcast %cst_50 : f32 to vector<2x128xf32>
    %110 = arith.mulf %109, %108 : vector<2x128xf32>
    %111 = math.tanh %110 : vector<2x128xf32>
    %cst_51 = arith.constant 5.000000e-01 : f32
    %112 = vector.broadcast %cst_51 : f32 to vector<2x128xf32>
    %113 = arith.mulf %112, %111 : vector<2x128xf32>
    %cst_52 = arith.constant 5.000000e-01 : f32
    %114 = vector.broadcast %cst_52 : f32 to vector<2x128xf32>
    %115 = arith.addf %113, %114 : vector<2x128xf32>
    %116 = vector.extract_strided_slice %99 {offsets = [0, 256], sizes = [2, 128], strides = [1, 1]} : vector<2x512xf32> to vector<2x128xf32>
    %cst_53 = arith.constant 5.000000e-01 : f32
    %117 = vector.broadcast %cst_53 : f32 to vector<2x128xf32>
    %118 = arith.mulf %117, %116 : vector<2x128xf32>
    %119 = math.tanh %118 : vector<2x128xf32>
    %cst_54 = arith.constant 5.000000e-01 : f32
    %120 = vector.broadcast %cst_54 : f32 to vector<2x128xf32>
    %121 = arith.mulf %120, %119 : vector<2x128xf32>
    %cst_55 = arith.constant 5.000000e-01 : f32
    %122 = vector.broadcast %cst_55 : f32 to vector<2x128xf32>
    %123 = arith.addf %121, %122 : vector<2x128xf32>
    %124 = vector.extract_strided_slice %99 {offsets = [0, 384], sizes = [2, 128], strides = [1, 1]} : vector<2x512xf32> to vector<2x128xf32>
    %125 = math.tanh %124 : vector<2x128xf32>
    %126 = arith.mulf %115, %47 : vector<2x128xf32>
    %127 = arith.mulf %107, %125 : vector<2x128xf32>
    %128 = arith.addf %126, %127 : vector<2x128xf32>
    %129 = math.tanh %128 : vector<2x128xf32>
    %130 = arith.mulf %123, %129 : vector<2x128xf32>
    %131 = tpu.concatenate %130, %85 in 1 : vector<2x128xf32>, vector<2x128xf32> -> vector<2x256xf32>
    %c0_56 = arith.constant 0 : index
    %c0_57 = arith.constant 0 : index
    %132 = vector.load %arg5[%c0_56, %c0_57] : memref<256x512xf32, #tpu.memory_space<vmem>>, vector<256x512xf32>
    %cst_58 = arith.constant dense<0.000000e+00> : vector<2x512xf32>
    %133 = tpu.matmul %131, %132, %cst_58 {dimension_numbers = #tpu.dot_dimension_numbers<[1], [0], [0], [1], [0, 0, 1, 1], [], []>} : vector<2x256xf32>, vector<256x512xf32>, vector<2x512xf32> -> vector<2x512xf32>
    %134 = vector.broadcast %12 : vector<1x512xf32> to vector<2x512xf32>
    %135 = arith.addf %133, %134 : vector<2x512xf32>
    %136 = vector.extract_strided_slice %135 {offsets = [0, 0], sizes = [2, 128], strides = [1, 1]} : vector<2x512xf32> to vector<2x128xf32>
    %cst_59 = arith.constant 5.000000e-01 : f32
    %137 = vector.broadcast %cst_59 : f32 to vector<2x128xf32>
    %138 = arith.mulf %137, %136 : vector<2x128xf32>
    %139 = math.tanh %138 : vector<2x128xf32>
    %cst_60 = arith.constant 5.000000e-01 : f32
    %140 = vector.broadcast %cst_60 : f32 to vector<2x128xf32>
    %141 = arith.mulf %140, %139 : vector<2x128xf32>
    %cst_61 = arith.constant 5.000000e-01 : f32
    %142 = vector.broadcast %cst_61 : f32 to vector<2x128xf32>
    %143 = arith.addf %141, %142 : vector<2x128xf32>
    %144 = vector.extract_strided_slice %135 {offsets = [0, 128], sizes = [2, 128], strides = [1, 1]} : vector<2x512xf32> to vector<2x128xf32>
    %cst_62 = arith.constant 5.000000e-01 : f32
    %145 = vector.broadcast %cst_62 : f32 to vector<2x128xf32>
    %146 = arith.mulf %145, %144 : vector<2x128xf32>
    %147 = math.tanh %146 : vector<2x128xf32>
    %cst_63 = arith.constant 5.000000e-01 : f32
    %148 = vector.broadcast %cst_63 : f32 to vector<2x128xf32>
    %149 = arith.mulf %148, %147 : vector<2x128xf32>
    %cst_64 = arith.constant 5.000000e-01 : f32
    %150 = vector.broadcast %cst_64 : f32 to vector<2x128xf32>
    %151 = arith.addf %149, %150 : vector<2x128xf32>
    %152 = vector.extract_strided_slice %135 {offsets = [0, 256], sizes = [2, 128], strides = [1, 1]} : vector<2x512xf32> to vector<2x128xf32>
    %cst_65 = arith.constant 5.000000e-01 : f32
    %153 = vector.broadcast %cst_65 : f32 to vector<2x128xf32>
    %154 = arith.mulf %153, %152 : vector<2x128xf32>
    %155 = math.tanh %154 : vector<2x128xf32>
    %cst_66 = arith.constant 5.000000e-01 : f32
    %156 = vector.broadcast %cst_66 : f32 to vector<2x128xf32>
    %157 = arith.mulf %156, %155 : vector<2x128xf32>
    %cst_67 = arith.constant 5.000000e-01 : f32
    %158 = vector.broadcast %cst_67 : f32 to vector<2x128xf32>
    %159 = arith.addf %157, %158 : vector<2x128xf32>
    %160 = vector.extract_strided_slice %135 {offsets = [0, 384], sizes = [2, 128], strides = [1, 1]} : vector<2x512xf32> to vector<2x128xf32>
    %161 = math.tanh %160 : vector<2x128xf32>
    %162 = arith.mulf %151, %83 : vector<2x128xf32>
    %163 = arith.mulf %143, %161 : vector<2x128xf32>
    %164 = arith.addf %162, %163 : vector<2x128xf32>
    %165 = math.tanh %164 : vector<2x128xf32>
    %166 = arith.mulf %159, %165 : vector<2x128xf32>
    %167 = arith.index_cast %c1_i32 : i32 to index
    %c0_68 = arith.constant 0 : index
    %c0_69 = arith.constant 0 : index
    %168 = vector.load %arg7[%167, %c0_68, %c0_69] : memref<8x2x128xf32, #tpu.memory_space<vmem>>, vector<1x2x128xf32>
    %169 = vector.shape_cast %168 : vector<1x2x128xf32> to vector<2x128xf32>
    %170 = vector.shape_cast %166 : vector<2x128xf32> to vector<1x2x128xf32>
    tpu.vector_store %arg7[%167, %c0_68, %c0_69], %170 {strides = array<i32>} : memref<8x2x128xf32, #tpu.memory_space<vmem>>, vector<1x2x128xf32>,
    %171 = arith.addi %3, %c1_i32 : i32
    %c7_i32_70 = arith.constant 7 : i32
    %172 = arith.cmpi eq, %171, %c7_i32_70 : i32
    %173 = arith.extui %172 : i1 to i32
    %c0_i32_71 = arith.constant 0 : i32
    %174 = arith.cmpi ne, %173, %c0_i32_71 : i32
    scf.if %174 {
      %c0_266 = arith.constant 0 : index
      %c0_267 = arith.constant 0 : index
      %c0_268 = arith.constant 0 : index
      %673 = vector.load %arg8[%c0_266, %c0_267, %c0_268] : memref<2x2x128xf32, #tpu.memory_space<vmem>>, vector<1x2x128xf32>
      %674 = vector.shape_cast %673 : vector<1x2x128xf32> to vector<2x128xf32>
      %675 = vector.shape_cast %130 : vector<2x128xf32> to vector<1x2x128xf32>
      tpu.vector_store %arg8[%c0_266, %c0_267, %c0_268], %675 {strides = array<i32>} : memref<2x2x128xf32, #tpu.memory_space<vmem>>, vector<1x2x128xf32>,
      %c0_269 = arith.constant 0 : index
      %c0_270 = arith.constant 0 : index
      %c0_271 = arith.constant 0 : index
      %676 = vector.load %arg9[%c0_269, %c0_270, %c0_271] : memref<2x2x128xf32, #tpu.memory_space<vmem>>, vector<1x2x128xf32>
      %677 = vector.shape_cast %676 : vector<1x2x128xf32> to vector<2x128xf32>
      %678 = vector.shape_cast %128 : vector<2x128xf32> to vector<1x2x128xf32>
      tpu.vector_store %arg9[%c0_269, %c0_270, %c0_271], %678 {strides = array<i32>} : memref<2x2x128xf32, #tpu.memory_space<vmem>>, vector<1x2x128xf32>,
      %c1_272 = arith.constant 1 : index
      %c0_273 = arith.constant 0 : index
      %c0_274 = arith.constant 0 : index
      %679 = vector.load %arg8[%c1_272, %c0_273, %c0_274] : memref<2x2x128xf32, #tpu.memory_space<vmem>>, vector<1x2x128xf32>
      %680 = vector.shape_cast %679 : vector<1x2x128xf32> to vector<2x128xf32>
      %681 = vector.shape_cast %166 : vector<2x128xf32> to vector<1x2x128xf32>
      tpu.vector_store %arg8[%c1_272, %c0_273, %c0_274], %681 {strides = array<i32>} : memref<2x2x128xf32, #tpu.memory_space<vmem>>, vector<1x2x128xf32>,
      %c1_275 = arith.constant 1 : index
      %c0_276 = arith.constant 0 : index
      %c0_277 = arith.constant 0 : index
      %682 = vector.load %arg9[%c1_275, %c0_276, %c0_277] : memref<2x2x128xf32, #tpu.memory_space<vmem>>, vector<1x2x128xf32>
      %683 = vector.shape_cast %682 : vector<1x2x128xf32> to vector<2x128xf32>
      %684 = vector.shape_cast %164 : vector<2x128xf32> to vector<1x2x128xf32>
      tpu.vector_store %arg9[%c1_275, %c0_276, %c0_277], %684 {strides = array<i32>} : memref<2x2x128xf32, #tpu.memory_space<vmem>>, vector<1x2x128xf32>,
    } else {
    }
    %c2_i32 = arith.constant 2 : i32
    %175 = arith.index_cast %c2_i32 : i32 to index
    %c0_72 = arith.constant 0 : index
    %c0_73 = arith.constant 0 : index
    %176 = vector.load %arg1[%175, %c0_72, %c0_73] : memref<8x2x512xf32, #tpu.memory_space<vmem>>, vector<1x2x512xf32>
    %177 = vector.shape_cast %176 : vector<1x2x512xf32> to vector<2x512xf32>
    %c0_74 = arith.constant 0 : index
    %c0_75 = arith.constant 0 : index
    %178 = vector.load %arg4[%c0_74, %c0_75] : memref<128x512xf32, #tpu.memory_space<vmem>>, vector<128x512xf32>
    %cst_76 = arith.constant dense<0.000000e+00> : vector<2x512xf32>
    %179 = tpu.matmul %130, %178, %cst_76 {dimension_numbers = #tpu.dot_dimension_numbers<[1], [0], [0], [1], [0, 0, 1, 1], [], []>} : vector<2x128xf32>, vector<128x512xf32>, vector<2x512xf32> -> vector<2x512xf32>
    %180 = arith.addf %177, %179 : vector<2x512xf32>
    %181 = vector.extract_strided_slice %180 {offsets = [0, 0], sizes = [2, 128], strides = [1, 1]} : vector<2x512xf32> to vector<2x128xf32>
    %cst_77 = arith.constant 5.000000e-01 : f32
    %182 = vector.broadcast %cst_77 : f32 to vector<2x128xf32>
    %183 = arith.mulf %182, %181 : vector<2x128xf32>
    %184 = math.tanh %183 : vector<2x128xf32>
    %cst_78 = arith.constant 5.000000e-01 : f32
    %185 = vector.broadcast %cst_78 : f32 to vector<2x128xf32>
    %186 = arith.mulf %185, %184 : vector<2x128xf32>
    %cst_79 = arith.constant 5.000000e-01 : f32
    %187 = vector.broadcast %cst_79 : f32 to vector<2x128xf32>
    %188 = arith.addf %186, %187 : vector<2x128xf32>
    %189 = vector.extract_strided_slice %180 {offsets = [0, 128], sizes = [2, 128], strides = [1, 1]} : vector<2x512xf32> to vector<2x128xf32>
    %cst_80 = arith.constant 5.000000e-01 : f32
    %190 = vector.broadcast %cst_80 : f32 to vector<2x128xf32>
    %191 = arith.mulf %190, %189 : vector<2x128xf32>
    %192 = math.tanh %191 : vector<2x128xf32>
    %cst_81 = arith.constant 5.000000e-01 : f32
    %193 = vector.broadcast %cst_81 : f32 to vector<2x128xf32>
    %194 = arith.mulf %193, %192 : vector<2x128xf32>
    %cst_82 = arith.constant 5.000000e-01 : f32
    %195 = vector.broadcast %cst_82 : f32 to vector<2x128xf32>
    %196 = arith.addf %194, %195 : vector<2x128xf32>
    %197 = vector.extract_strided_slice %180 {offsets = [0, 256], sizes = [2, 128], strides = [1, 1]} : vector<2x512xf32> to vector<2x128xf32>
    %cst_83 = arith.constant 5.000000e-01 : f32
    %198 = vector.broadcast %cst_83 : f32 to vector<2x128xf32>
    %199 = arith.mulf %198, %197 : vector<2x128xf32>
    %200 = math.tanh %199 : vector<2x128xf32>
    %cst_84 = arith.constant 5.000000e-01 : f32
    %201 = vector.broadcast %cst_84 : f32 to vector<2x128xf32>
    %202 = arith.mulf %201, %200 : vector<2x128xf32>
    %cst_85 = arith.constant 5.000000e-01 : f32
    %203 = vector.broadcast %cst_85 : f32 to vector<2x128xf32>
    %204 = arith.addf %202, %203 : vector<2x128xf32>
    %205 = vector.extract_strided_slice %180 {offsets = [0, 384], sizes = [2, 128], strides = [1, 1]} : vector<2x512xf32> to vector<2x128xf32>
    %206 = math.tanh %205 : vector<2x128xf32>
    %207 = arith.mulf %196, %128 : vector<2x128xf32>
    %208 = arith.mulf %188, %206 : vector<2x128xf32>
    %209 = arith.addf %207, %208 : vector<2x128xf32>
    %210 = math.tanh %209 : vector<2x128xf32>
    %211 = arith.mulf %204, %210 : vector<2x128xf32>
    %212 = tpu.concatenate %211, %166 in 1 : vector<2x128xf32>, vector<2x128xf32> -> vector<2x256xf32>
    %c0_86 = arith.constant 0 : index
    %c0_87 = arith.constant 0 : index
    %213 = vector.load %arg5[%c0_86, %c0_87] : memref<256x512xf32, #tpu.memory_space<vmem>>, vector<256x512xf32>
    %cst_88 = arith.constant dense<0.000000e+00> : vector<2x512xf32>
    %214 = tpu.matmul %212, %213, %cst_88 {dimension_numbers = #tpu.dot_dimension_numbers<[1], [0], [0], [1], [0, 0, 1, 1], [], []>} : vector<2x256xf32>, vector<256x512xf32>, vector<2x512xf32> -> vector<2x512xf32>
    %215 = vector.broadcast %12 : vector<1x512xf32> to vector<2x512xf32>
    %216 = arith.addf %214, %215 : vector<2x512xf32>
    %217 = vector.extract_strided_slice %216 {offsets = [0, 0], sizes = [2, 128], strides = [1, 1]} : vector<2x512xf32> to vector<2x128xf32>
    %cst_89 = arith.constant 5.000000e-01 : f32
    %218 = vector.broadcast %cst_89 : f32 to vector<2x128xf32>
    %219 = arith.mulf %218, %217 : vector<2x128xf32>
    %220 = math.tanh %219 : vector<2x128xf32>
    %cst_90 = arith.constant 5.000000e-01 : f32
    %221 = vector.broadcast %cst_90 : f32 to vector<2x128xf32>
    %222 = arith.mulf %221, %220 : vector<2x128xf32>
    %cst_91 = arith.constant 5.000000e-01 : f32
    %223 = vector.broadcast %cst_91 : f32 to vector<2x128xf32>
    %224 = arith.addf %222, %223 : vector<2x128xf32>
    %225 = vector.extract_strided_slice %216 {offsets = [0, 128], sizes = [2, 128], strides = [1, 1]} : vector<2x512xf32> to vector<2x128xf32>
    %cst_92 = arith.constant 5.000000e-01 : f32
    %226 = vector.broadcast %cst_92 : f32 to vector<2x128xf32>
    %227 = arith.mulf %226, %225 : vector<2x128xf32>
    %228 = math.tanh %227 : vector<2x128xf32>
    %cst_93 = arith.constant 5.000000e-01 : f32
    %229 = vector.broadcast %cst_93 : f32 to vector<2x128xf32>
    %230 = arith.mulf %229, %228 : vector<2x128xf32>
    %cst_94 = arith.constant 5.000000e-01 : f32
    %231 = vector.broadcast %cst_94 : f32 to vector<2x128xf32>
    %232 = arith.addf %230, %231 : vector<2x128xf32>
    %233 = vector.extract_strided_slice %216 {offsets = [0, 256], sizes = [2, 128], strides = [1, 1]} : vector<2x512xf32> to vector<2x128xf32>
    %cst_95 = arith.constant 5.000000e-01 : f32
    %234 = vector.broadcast %cst_95 : f32 to vector<2x128xf32>
    %235 = arith.mulf %234, %233 : vector<2x128xf32>
    %236 = math.tanh %235 : vector<2x128xf32>
    %cst_96 = arith.constant 5.000000e-01 : f32
    %237 = vector.broadcast %cst_96 : f32 to vector<2x128xf32>
    %238 = arith.mulf %237, %236 : vector<2x128xf32>
    %cst_97 = arith.constant 5.000000e-01 : f32
    %239 = vector.broadcast %cst_97 : f32 to vector<2x128xf32>
    %240 = arith.addf %238, %239 : vector<2x128xf32>
    %241 = vector.extract_strided_slice %216 {offsets = [0, 384], sizes = [2, 128], strides = [1, 1]} : vector<2x512xf32> to vector<2x128xf32>
    %242 = math.tanh %241 : vector<2x128xf32>
    %243 = arith.mulf %232, %164 : vector<2x128xf32>
    %244 = arith.mulf %224, %242 : vector<2x128xf32>
    %245 = arith.addf %243, %244 : vector<2x128xf32>
    %246 = math.tanh %245 : vector<2x128xf32>
    %247 = arith.mulf %240, %246 : vector<2x128xf32>
    %248 = arith.index_cast %c2_i32 : i32 to index
    %c0_98 = arith.constant 0 : index
    %c0_99 = arith.constant 0 : index
    %249 = vector.load %arg7[%248, %c0_98, %c0_99] : memref<8x2x128xf32, #tpu.memory_space<vmem>>, vector<1x2x128xf32>
    %250 = vector.shape_cast %249 : vector<1x2x128xf32> to vector<2x128xf32>
    %251 = vector.shape_cast %247 : vector<2x128xf32> to vector<1x2x128xf32>
    tpu.vector_store %arg7[%248, %c0_98, %c0_99], %251 {strides = array<i32>} : memref<8x2x128xf32, #tpu.memory_space<vmem>>, vector<1x2x128xf32>,
    %252 = arith.addi %3, %c2_i32 : i32
    %c7_i32_100 = arith.constant 7 : i32
    %253 = arith.cmpi eq, %252, %c7_i32_100 : i32
    %254 = arith.extui %253 : i1 to i32
    %c0_i32_101 = arith.constant 0 : i32
    %255 = arith.cmpi ne, %254, %c0_i32_101 : i32
    scf.if %255 {
      %c0_266 = arith.constant 0 : index
      %c0_267 = arith.constant 0 : index
      %c0_268 = arith.constant 0 : index
      %673 = vector.load %arg8[%c0_266, %c0_267, %c0_268] : memref<2x2x128xf32, #tpu.memory_space<vmem>>, vector<1x2x128xf32>
      %674 = vector.shape_cast %673 : vector<1x2x128xf32> to vector<2x128xf32>
      %675 = vector.shape_cast %211 : vector<2x128xf32> to vector<1x2x128xf32>
      tpu.vector_store %arg8[%c0_266, %c0_267, %c0_268], %675 {strides = array<i32>} : memref<2x2x128xf32, #tpu.memory_space<vmem>>, vector<1x2x128xf32>,
      %c0_269 = arith.constant 0 : index
      %c0_270 = arith.constant 0 : index
      %c0_271 = arith.constant 0 : index
      %676 = vector.load %arg9[%c0_269, %c0_270, %c0_271] : memref<2x2x128xf32, #tpu.memory_space<vmem>>, vector<1x2x128xf32>
      %677 = vector.shape_cast %676 : vector<1x2x128xf32> to vector<2x128xf32>
      %678 = vector.shape_cast %209 : vector<2x128xf32> to vector<1x2x128xf32>
      tpu.vector_store %arg9[%c0_269, %c0_270, %c0_271], %678 {strides = array<i32>} : memref<2x2x128xf32, #tpu.memory_space<vmem>>, vector<1x2x128xf32>,
      %c1_272 = arith.constant 1 : index
      %c0_273 = arith.constant 0 : index
      %c0_274 = arith.constant 0 : index
      %679 = vector.load %arg8[%c1_272, %c0_273, %c0_274] : memref<2x2x128xf32, #tpu.memory_space<vmem>>, vector<1x2x128xf32>
      %680 = vector.shape_cast %679 : vector<1x2x128xf32> to vector<2x128xf32>
      %681 = vector.shape_cast %247 : vector<2x128xf32> to vector<1x2x128xf32>
      tpu.vector_store %arg8[%c1_272, %c0_273, %c0_274], %681 {strides = array<i32>} : memref<2x2x128xf32, #tpu.memory_space<vmem>>, vector<1x2x128xf32>,
      %c1_275 = arith.constant 1 : index
      %c0_276 = arith.constant 0 : index
      %c0_277 = arith.constant 0 : index
      %682 = vector.load %arg9[%c1_275, %c0_276, %c0_277] : memref<2x2x128xf32, #tpu.memory_space<vmem>>, vector<1x2x128xf32>
      %683 = vector.shape_cast %682 : vector<1x2x128xf32> to vector<2x128xf32>
      %684 = vector.shape_cast %245 : vector<2x128xf32> to vector<1x2x128xf32>
      tpu.vector_store %arg9[%c1_275, %c0_276, %c0_277], %684 {strides = array<i32>} : memref<2x2x128xf32, #tpu.memory_space<vmem>>, vector<1x2x128xf32>,
    } else {
    }
    %c3_i32 = arith.constant 3 : i32
    %256 = arith.index_cast %c3_i32 : i32 to index
    %c0_102 = arith.constant 0 : index
    %c0_103 = arith.constant 0 : index
    %257 = vector.load %arg1[%256, %c0_102, %c0_103] : memref<8x2x512xf32, #tpu.memory_space<vmem>>, vector<1x2x512xf32>
    %258 = vector.shape_cast %257 : vector<1x2x512xf32> to vector<2x512xf32>
    %c0_104 = arith.constant 0 : index
    %c0_105 = arith.constant 0 : index
    %259 = vector.load %arg4[%c0_104, %c0_105] : memref<128x512xf32, #tpu.memory_space<vmem>>, vector<128x512xf32>
    %cst_106 = arith.constant dense<0.000000e+00> : vector<2x512xf32>
    %260 = tpu.matmul %211, %259, %cst_106 {dimension_numbers = #tpu.dot_dimension_numbers<[1], [0], [0], [1], [0, 0, 1, 1], [], []>} : vector<2x128xf32>, vector<128x512xf32>, vector<2x512xf32> -> vector<2x512xf32>
    %261 = arith.addf %258, %260 : vector<2x512xf32>
    %262 = vector.extract_strided_slice %261 {offsets = [0, 0], sizes = [2, 128], strides = [1, 1]} : vector<2x512xf32> to vector<2x128xf32>
    %cst_107 = arith.constant 5.000000e-01 : f32
    %263 = vector.broadcast %cst_107 : f32 to vector<2x128xf32>
    %264 = arith.mulf %263, %262 : vector<2x128xf32>
    %265 = math.tanh %264 : vector<2x128xf32>
    %cst_108 = arith.constant 5.000000e-01 : f32
    %266 = vector.broadcast %cst_108 : f32 to vector<2x128xf32>
    %267 = arith.mulf %266, %265 : vector<2x128xf32>
    %cst_109 = arith.constant 5.000000e-01 : f32
    %268 = vector.broadcast %cst_109 : f32 to vector<2x128xf32>
    %269 = arith.addf %267, %268 : vector<2x128xf32>
    %270 = vector.extract_strided_slice %261 {offsets = [0, 128], sizes = [2, 128], strides = [1, 1]} : vector<2x512xf32> to vector<2x128xf32>
    %cst_110 = arith.constant 5.000000e-01 : f32
    %271 = vector.broadcast %cst_110 : f32 to vector<2x128xf32>
    %272 = arith.mulf %271, %270 : vector<2x128xf32>
    %273 = math.tanh %272 : vector<2x128xf32>
    %cst_111 = arith.constant 5.000000e-01 : f32
    %274 = vector.broadcast %cst_111 : f32 to vector<2x128xf32>
    %275 = arith.mulf %274, %273 : vector<2x128xf32>
    %cst_112 = arith.constant 5.000000e-01 : f32
    %276 = vector.broadcast %cst_112 : f32 to vector<2x128xf32>
    %277 = arith.addf %275, %276 : vector<2x128xf32>
    %278 = vector.extract_strided_slice %261 {offsets = [0, 256], sizes = [2, 128], strides = [1, 1]} : vector<2x512xf32> to vector<2x128xf32>
    %cst_113 = arith.constant 5.000000e-01 : f32
    %279 = vector.broadcast %cst_113 : f32 to vector<2x128xf32>
    %280 = arith.mulf %279, %278 : vector<2x128xf32>
    %281 = math.tanh %280 : vector<2x128xf32>
    %cst_114 = arith.constant 5.000000e-01 : f32
    %282 = vector.broadcast %cst_114 : f32 to vector<2x128xf32>
    %283 = arith.mulf %282, %281 : vector<2x128xf32>
    %cst_115 = arith.constant 5.000000e-01 : f32
    %284 = vector.broadcast %cst_115 : f32 to vector<2x128xf32>
    %285 = arith.addf %283, %284 : vector<2x128xf32>
    %286 = vector.extract_strided_slice %261 {offsets = [0, 384], sizes = [2, 128], strides = [1, 1]} : vector<2x512xf32> to vector<2x128xf32>
    %287 = math.tanh %286 : vector<2x128xf32>
    %288 = arith.mulf %277, %209 : vector<2x128xf32>
    %289 = arith.mulf %269, %287 : vector<2x128xf32>
    %290 = arith.addf %288, %289 : vector<2x128xf32>
    %291 = math.tanh %290 : vector<2x128xf32>
    %292 = arith.mulf %285, %291 : vector<2x128xf32>
    %293 = tpu.concatenate %292, %247 in 1 : vector<2x128xf32>, vector<2x128xf32> -> vector<2x256xf32>
    %c0_116 = arith.constant 0 : index
    %c0_117 = arith.constant 0 : index
    %294 = vector.load %arg5[%c0_116, %c0_117] : memref<256x512xf32, #tpu.memory_space<vmem>>, vector<256x512xf32>
    %cst_118 = arith.constant dense<0.000000e+00> : vector<2x512xf32>
    %295 = tpu.matmul %293, %294, %cst_118 {dimension_numbers = #tpu.dot_dimension_numbers<[1], [0], [0], [1], [0, 0, 1, 1], [], []>} : vector<2x256xf32>, vector<256x512xf32>, vector<2x512xf32> -> vector<2x512xf32>
    %296 = vector.broadcast %12 : vector<1x512xf32> to vector<2x512xf32>
    %297 = arith.addf %295, %296 : vector<2x512xf32>
    %298 = vector.extract_strided_slice %297 {offsets = [0, 0], sizes = [2, 128], strides = [1, 1]} : vector<2x512xf32> to vector<2x128xf32>
    %cst_119 = arith.constant 5.000000e-01 : f32
    %299 = vector.broadcast %cst_119 : f32 to vector<2x128xf32>
    %300 = arith.mulf %299, %298 : vector<2x128xf32>
    %301 = math.tanh %300 : vector<2x128xf32>
    %cst_120 = arith.constant 5.000000e-01 : f32
    %302 = vector.broadcast %cst_120 : f32 to vector<2x128xf32>
    %303 = arith.mulf %302, %301 : vector<2x128xf32>
    %cst_121 = arith.constant 5.000000e-01 : f32
    %304 = vector.broadcast %cst_121 : f32 to vector<2x128xf32>
    %305 = arith.addf %303, %304 : vector<2x128xf32>
    %306 = vector.extract_strided_slice %297 {offsets = [0, 128], sizes = [2, 128], strides = [1, 1]} : vector<2x512xf32> to vector<2x128xf32>
    %cst_122 = arith.constant 5.000000e-01 : f32
    %307 = vector.broadcast %cst_122 : f32 to vector<2x128xf32>
    %308 = arith.mulf %307, %306 : vector<2x128xf32>
    %309 = math.tanh %308 : vector<2x128xf32>
    %cst_123 = arith.constant 5.000000e-01 : f32
    %310 = vector.broadcast %cst_123 : f32 to vector<2x128xf32>
    %311 = arith.mulf %310, %309 : vector<2x128xf32>
    %cst_124 = arith.constant 5.000000e-01 : f32
    %312 = vector.broadcast %cst_124 : f32 to vector<2x128xf32>
    %313 = arith.addf %311, %312 : vector<2x128xf32>
    %314 = vector.extract_strided_slice %297 {offsets = [0, 256], sizes = [2, 128], strides = [1, 1]} : vector<2x512xf32> to vector<2x128xf32>
    %cst_125 = arith.constant 5.000000e-01 : f32
    %315 = vector.broadcast %cst_125 : f32 to vector<2x128xf32>
    %316 = arith.mulf %315, %314 : vector<2x128xf32>
    %317 = math.tanh %316 : vector<2x128xf32>
    %cst_126 = arith.constant 5.000000e-01 : f32
    %318 = vector.broadcast %cst_126 : f32 to vector<2x128xf32>
    %319 = arith.mulf %318, %317 : vector<2x128xf32>
    %cst_127 = arith.constant 5.000000e-01 : f32
    %320 = vector.broadcast %cst_127 : f32 to vector<2x128xf32>
    %321 = arith.addf %319, %320 : vector<2x128xf32>
    %322 = vector.extract_strided_slice %297 {offsets = [0, 384], sizes = [2, 128], strides = [1, 1]} : vector<2x512xf32> to vector<2x128xf32>
    %323 = math.tanh %322 : vector<2x128xf32>
    %324 = arith.mulf %313, %245 : vector<2x128xf32>
    %325 = arith.mulf %305, %323 : vector<2x128xf32>
    %326 = arith.addf %324, %325 : vector<2x128xf32>
    %327 = math.tanh %326 : vector<2x128xf32>
    %328 = arith.mulf %321, %327 : vector<2x128xf32>
    %329 = arith.index_cast %c3_i32 : i32 to index
    %c0_128 = arith.constant 0 : index
    %c0_129 = arith.constant 0 : index
    %330 = vector.load %arg7[%329, %c0_128, %c0_129] : memref<8x2x128xf32, #tpu.memory_space<vmem>>, vector<1x2x128xf32>
    %331 = vector.shape_cast %330 : vector<1x2x128xf32> to vector<2x128xf32>
    %332 = vector.shape_cast %328 : vector<2x128xf32> to vector<1x2x128xf32>
    tpu.vector_store %arg7[%329, %c0_128, %c0_129], %332 {strides = array<i32>} : memref<8x2x128xf32, #tpu.memory_space<vmem>>, vector<1x2x128xf32>,
    %333 = arith.addi %3, %c3_i32 : i32
    %c7_i32_130 = arith.constant 7 : i32
    %334 = arith.cmpi eq, %333, %c7_i32_130 : i32
    %335 = arith.extui %334 : i1 to i32
    %c0_i32_131 = arith.constant 0 : i32
    %336 = arith.cmpi ne, %335, %c0_i32_131 : i32
    scf.if %336 {
      %c0_266 = arith.constant 0 : index
      %c0_267 = arith.constant 0 : index
      %c0_268 = arith.constant 0 : index
      %673 = vector.load %arg8[%c0_266, %c0_267, %c0_268] : memref<2x2x128xf32, #tpu.memory_space<vmem>>, vector<1x2x128xf32>
      %674 = vector.shape_cast %673 : vector<1x2x128xf32> to vector<2x128xf32>
      %675 = vector.shape_cast %292 : vector<2x128xf32> to vector<1x2x128xf32>
      tpu.vector_store %arg8[%c0_266, %c0_267, %c0_268], %675 {strides = array<i32>} : memref<2x2x128xf32, #tpu.memory_space<vmem>>, vector<1x2x128xf32>,
      %c0_269 = arith.constant 0 : index
      %c0_270 = arith.constant 0 : index
      %c0_271 = arith.constant 0 : index
      %676 = vector.load %arg9[%c0_269, %c0_270, %c0_271] : memref<2x2x128xf32, #tpu.memory_space<vmem>>, vector<1x2x128xf32>
      %677 = vector.shape_cast %676 : vector<1x2x128xf32> to vector<2x128xf32>
      %678 = vector.shape_cast %290 : vector<2x128xf32> to vector<1x2x128xf32>
      tpu.vector_store %arg9[%c0_269, %c0_270, %c0_271], %678 {strides = array<i32>} : memref<2x2x128xf32, #tpu.memory_space<vmem>>, vector<1x2x128xf32>,
      %c1_272 = arith.constant 1 : index
      %c0_273 = arith.constant 0 : index
      %c0_274 = arith.constant 0 : index
      %679 = vector.load %arg8[%c1_272, %c0_273, %c0_274] : memref<2x2x128xf32, #tpu.memory_space<vmem>>, vector<1x2x128xf32>
      %680 = vector.shape_cast %679 : vector<1x2x128xf32> to vector<2x128xf32>
      %681 = vector.shape_cast %328 : vector<2x128xf32> to vector<1x2x128xf32>
      tpu.vector_store %arg8[%c1_272, %c0_273, %c0_274], %681 {strides = array<i32>} : memref<2x2x128xf32, #tpu.memory_space<vmem>>, vector<1x2x128xf32>,
      %c1_275 = arith.constant 1 : index
      %c0_276 = arith.constant 0 : index
      %c0_277 = arith.constant 0 : index
      %682 = vector.load %arg9[%c1_275, %c0_276, %c0_277] : memref<2x2x128xf32, #tpu.memory_space<vmem>>, vector<1x2x128xf32>
      %683 = vector.shape_cast %682 : vector<1x2x128xf32> to vector<2x128xf32>
      %684 = vector.shape_cast %326 : vector<2x128xf32> to vector<1x2x128xf32>
      tpu.vector_store %arg9[%c1_275, %c0_276, %c0_277], %684 {strides = array<i32>} : memref<2x2x128xf32, #tpu.memory_space<vmem>>, vector<1x2x128xf32>,
    } else {
    }
    %c4_i32 = arith.constant 4 : i32
    %337 = arith.index_cast %c4_i32 : i32 to index
    %c0_132 = arith.constant 0 : index
    %c0_133 = arith.constant 0 : index
    %338 = vector.load %arg1[%337, %c0_132, %c0_133] : memref<8x2x512xf32, #tpu.memory_space<vmem>>, vector<1x2x512xf32>
    %339 = vector.shape_cast %338 : vector<1x2x512xf32> to vector<2x512xf32>
    %c0_134 = arith.constant 0 : index
    %c0_135 = arith.constant 0 : index
    %340 = vector.load %arg4[%c0_134, %c0_135] : memref<128x512xf32, #tpu.memory_space<vmem>>, vector<128x512xf32>
    %cst_136 = arith.constant dense<0.000000e+00> : vector<2x512xf32>
    %341 = tpu.matmul %292, %340, %cst_136 {dimension_numbers = #tpu.dot_dimension_numbers<[1], [0], [0], [1], [0, 0, 1, 1], [], []>} : vector<2x128xf32>, vector<128x512xf32>, vector<2x512xf32> -> vector<2x512xf32>
    %342 = arith.addf %339, %341 : vector<2x512xf32>
    %343 = vector.extract_strided_slice %342 {offsets = [0, 0], sizes = [2, 128], strides = [1, 1]} : vector<2x512xf32> to vector<2x128xf32>
    %cst_137 = arith.constant 5.000000e-01 : f32
    %344 = vector.broadcast %cst_137 : f32 to vector<2x128xf32>
    %345 = arith.mulf %344, %343 : vector<2x128xf32>
    %346 = math.tanh %345 : vector<2x128xf32>
    %cst_138 = arith.constant 5.000000e-01 : f32
    %347 = vector.broadcast %cst_138 : f32 to vector<2x128xf32>
    %348 = arith.mulf %347, %346 : vector<2x128xf32>
    %cst_139 = arith.constant 5.000000e-01 : f32
    %349 = vector.broadcast %cst_139 : f32 to vector<2x128xf32>
    %350 = arith.addf %348, %349 : vector<2x128xf32>
    %351 = vector.extract_strided_slice %342 {offsets = [0, 128], sizes = [2, 128], strides = [1, 1]} : vector<2x512xf32> to vector<2x128xf32>
    %cst_140 = arith.constant 5.000000e-01 : f32
    %352 = vector.broadcast %cst_140 : f32 to vector<2x128xf32>
    %353 = arith.mulf %352, %351 : vector<2x128xf32>
    %354 = math.tanh %353 : vector<2x128xf32>
    %cst_141 = arith.constant 5.000000e-01 : f32
    %355 = vector.broadcast %cst_141 : f32 to vector<2x128xf32>
    %356 = arith.mulf %355, %354 : vector<2x128xf32>
    %cst_142 = arith.constant 5.000000e-01 : f32
    %357 = vector.broadcast %cst_142 : f32 to vector<2x128xf32>
    %358 = arith.addf %356, %357 : vector<2x128xf32>
    %359 = vector.extract_strided_slice %342 {offsets = [0, 256], sizes = [2, 128], strides = [1, 1]} : vector<2x512xf32> to vector<2x128xf32>
    %cst_143 = arith.constant 5.000000e-01 : f32
    %360 = vector.broadcast %cst_143 : f32 to vector<2x128xf32>
    %361 = arith.mulf %360, %359 : vector<2x128xf32>
    %362 = math.tanh %361 : vector<2x128xf32>
    %cst_144 = arith.constant 5.000000e-01 : f32
    %363 = vector.broadcast %cst_144 : f32 to vector<2x128xf32>
    %364 = arith.mulf %363, %362 : vector<2x128xf32>
    %cst_145 = arith.constant 5.000000e-01 : f32
    %365 = vector.broadcast %cst_145 : f32 to vector<2x128xf32>
    %366 = arith.addf %364, %365 : vector<2x128xf32>
    %367 = vector.extract_strided_slice %342 {offsets = [0, 384], sizes = [2, 128], strides = [1, 1]} : vector<2x512xf32> to vector<2x128xf32>
    %368 = math.tanh %367 : vector<2x128xf32>
    %369 = arith.mulf %358, %290 : vector<2x128xf32>
    %370 = arith.mulf %350, %368 : vector<2x128xf32>
    %371 = arith.addf %369, %370 : vector<2x128xf32>
    %372 = math.tanh %371 : vector<2x128xf32>
    %373 = arith.mulf %366, %372 : vector<2x128xf32>
    %374 = tpu.concatenate %373, %328 in 1 : vector<2x128xf32>, vector<2x128xf32> -> vector<2x256xf32>
    %c0_146 = arith.constant 0 : index
    %c0_147 = arith.constant 0 : index
    %375 = vector.load %arg5[%c0_146, %c0_147] : memref<256x512xf32, #tpu.memory_space<vmem>>, vector<256x512xf32>
    %cst_148 = arith.constant dense<0.000000e+00> : vector<2x512xf32>
    %376 = tpu.matmul %374, %375, %cst_148 {dimension_numbers = #tpu.dot_dimension_numbers<[1], [0], [0], [1], [0, 0, 1, 1], [], []>} : vector<2x256xf32>, vector<256x512xf32>, vector<2x512xf32> -> vector<2x512xf32>
    %377 = vector.broadcast %12 : vector<1x512xf32> to vector<2x512xf32>
    %378 = arith.addf %376, %377 : vector<2x512xf32>
    %379 = vector.extract_strided_slice %378 {offsets = [0, 0], sizes = [2, 128], strides = [1, 1]} : vector<2x512xf32> to vector<2x128xf32>
    %cst_149 = arith.constant 5.000000e-01 : f32
    %380 = vector.broadcast %cst_149 : f32 to vector<2x128xf32>
    %381 = arith.mulf %380, %379 : vector<2x128xf32>
    %382 = math.tanh %381 : vector<2x128xf32>
    %cst_150 = arith.constant 5.000000e-01 : f32
    %383 = vector.broadcast %cst_150 : f32 to vector<2x128xf32>
    %384 = arith.mulf %383, %382 : vector<2x128xf32>
    %cst_151 = arith.constant 5.000000e-01 : f32
    %385 = vector.broadcast %cst_151 : f32 to vector<2x128xf32>
    %386 = arith.addf %384, %385 : vector<2x128xf32>
    %387 = vector.extract_strided_slice %378 {offsets = [0, 128], sizes = [2, 128], strides = [1, 1]} : vector<2x512xf32> to vector<2x128xf32>
    %cst_152 = arith.constant 5.000000e-01 : f32
    %388 = vector.broadcast %cst_152 : f32 to vector<2x128xf32>
    %389 = arith.mulf %388, %387 : vector<2x128xf32>
    %390 = math.tanh %389 : vector<2x128xf32>
    %cst_153 = arith.constant 5.000000e-01 : f32
    %391 = vector.broadcast %cst_153 : f32 to vector<2x128xf32>
    %392 = arith.mulf %391, %390 : vector<2x128xf32>
    %cst_154 = arith.constant 5.000000e-01 : f32
    %393 = vector.broadcast %cst_154 : f32 to vector<2x128xf32>
    %394 = arith.addf %392, %393 : vector<2x128xf32>
    %395 = vector.extract_strided_slice %378 {offsets = [0, 256], sizes = [2, 128], strides = [1, 1]} : vector<2x512xf32> to vector<2x128xf32>
    %cst_155 = arith.constant 5.000000e-01 : f32
    %396 = vector.broadcast %cst_155 : f32 to vector<2x128xf32>
    %397 = arith.mulf %396, %395 : vector<2x128xf32>
    %398 = math.tanh %397 : vector<2x128xf32>
    %cst_156 = arith.constant 5.000000e-01 : f32
    %399 = vector.broadcast %cst_156 : f32 to vector<2x128xf32>
    %400 = arith.mulf %399, %398 : vector<2x128xf32>
    %cst_157 = arith.constant 5.000000e-01 : f32
    %401 = vector.broadcast %cst_157 : f32 to vector<2x128xf32>
    %402 = arith.addf %400, %401 : vector<2x128xf32>
    %403 = vector.extract_strided_slice %378 {offsets = [0, 384], sizes = [2, 128], strides = [1, 1]} : vector<2x512xf32> to vector<2x128xf32>
    %404 = math.tanh %403 : vector<2x128xf32>
    %405 = arith.mulf %394, %326 : vector<2x128xf32>
    %406 = arith.mulf %386, %404 : vector<2x128xf32>
    %407 = arith.addf %405, %406 : vector<2x128xf32>
    %408 = math.tanh %407 : vector<2x128xf32>
    %409 = arith.mulf %402, %408 : vector<2x128xf32>
    %410 = arith.index_cast %c4_i32 : i32 to index
    %c0_158 = arith.constant 0 : index
    %c0_159 = arith.constant 0 : index
    %411 = vector.load %arg7[%410, %c0_158, %c0_159] : memref<8x2x128xf32, #tpu.memory_space<vmem>>, vector<1x2x128xf32>
    %412 = vector.shape_cast %411 : vector<1x2x128xf32> to vector<2x128xf32>
    %413 = vector.shape_cast %409 : vector<2x128xf32> to vector<1x2x128xf32>
    tpu.vector_store %arg7[%410, %c0_158, %c0_159], %413 {strides = array<i32>} : memref<8x2x128xf32, #tpu.memory_space<vmem>>, vector<1x2x128xf32>,
    %414 = arith.addi %3, %c4_i32 : i32
    %c7_i32_160 = arith.constant 7 : i32
    %415 = arith.cmpi eq, %414, %c7_i32_160 : i32
    %416 = arith.extui %415 : i1 to i32
    %c0_i32_161 = arith.constant 0 : i32
    %417 = arith.cmpi ne, %416, %c0_i32_161 : i32
    scf.if %417 {
      %c0_266 = arith.constant 0 : index
      %c0_267 = arith.constant 0 : index
      %c0_268 = arith.constant 0 : index
      %673 = vector.load %arg8[%c0_266, %c0_267, %c0_268] : memref<2x2x128xf32, #tpu.memory_space<vmem>>, vector<1x2x128xf32>
      %674 = vector.shape_cast %673 : vector<1x2x128xf32> to vector<2x128xf32>
      %675 = vector.shape_cast %373 : vector<2x128xf32> to vector<1x2x128xf32>
      tpu.vector_store %arg8[%c0_266, %c0_267, %c0_268], %675 {strides = array<i32>} : memref<2x2x128xf32, #tpu.memory_space<vmem>>, vector<1x2x128xf32>,
      %c0_269 = arith.constant 0 : index
      %c0_270 = arith.constant 0 : index
      %c0_271 = arith.constant 0 : index
      %676 = vector.load %arg9[%c0_269, %c0_270, %c0_271] : memref<2x2x128xf32, #tpu.memory_space<vmem>>, vector<1x2x128xf32>
      %677 = vector.shape_cast %676 : vector<1x2x128xf32> to vector<2x128xf32>
      %678 = vector.shape_cast %371 : vector<2x128xf32> to vector<1x2x128xf32>
      tpu.vector_store %arg9[%c0_269, %c0_270, %c0_271], %678 {strides = array<i32>} : memref<2x2x128xf32, #tpu.memory_space<vmem>>, vector<1x2x128xf32>,
      %c1_272 = arith.constant 1 : index
      %c0_273 = arith.constant 0 : index
      %c0_274 = arith.constant 0 : index
      %679 = vector.load %arg8[%c1_272, %c0_273, %c0_274] : memref<2x2x128xf32, #tpu.memory_space<vmem>>, vector<1x2x128xf32>
      %680 = vector.shape_cast %679 : vector<1x2x128xf32> to vector<2x128xf32>
      %681 = vector.shape_cast %409 : vector<2x128xf32> to vector<1x2x128xf32>
      tpu.vector_store %arg8[%c1_272, %c0_273, %c0_274], %681 {strides = array<i32>} : memref<2x2x128xf32, #tpu.memory_space<vmem>>, vector<1x2x128xf32>,
      %c1_275 = arith.constant 1 : index
      %c0_276 = arith.constant 0 : index
      %c0_277 = arith.constant 0 : index
      %682 = vector.load %arg9[%c1_275, %c0_276, %c0_277] : memref<2x2x128xf32, #tpu.memory_space<vmem>>, vector<1x2x128xf32>
      %683 = vector.shape_cast %682 : vector<1x2x128xf32> to vector<2x128xf32>
      %684 = vector.shape_cast %407 : vector<2x128xf32> to vector<1x2x128xf32>
      tpu.vector_store %arg9[%c1_275, %c0_276, %c0_277], %684 {strides = array<i32>} : memref<2x2x128xf32, #tpu.memory_space<vmem>>, vector<1x2x128xf32>,
    } else {
    }
    %c5_i32 = arith.constant 5 : i32
    %418 = arith.index_cast %c5_i32 : i32 to index
    %c0_162 = arith.constant 0 : index
    %c0_163 = arith.constant 0 : index
    %419 = vector.load %arg1[%418, %c0_162, %c0_163] : memref<8x2x512xf32, #tpu.memory_space<vmem>>, vector<1x2x512xf32>
    %420 = vector.shape_cast %419 : vector<1x2x512xf32> to vector<2x512xf32>
    %c0_164 = arith.constant 0 : index
    %c0_165 = arith.constant 0 : index
    %421 = vector.load %arg4[%c0_164, %c0_165] : memref<128x512xf32, #tpu.memory_space<vmem>>, vector<128x512xf32>
    %cst_166 = arith.constant dense<0.000000e+00> : vector<2x512xf32>
    %422 = tpu.matmul %373, %421, %cst_166 {dimension_numbers = #tpu.dot_dimension_numbers<[1], [0], [0], [1], [0, 0, 1, 1], [], []>} : vector<2x128xf32>, vector<128x512xf32>, vector<2x512xf32> -> vector<2x512xf32>
    %423 = arith.addf %420, %422 : vector<2x512xf32>
    %424 = vector.extract_strided_slice %423 {offsets = [0, 0], sizes = [2, 128], strides = [1, 1]} : vector<2x512xf32> to vector<2x128xf32>
    %cst_167 = arith.constant 5.000000e-01 : f32
    %425 = vector.broadcast %cst_167 : f32 to vector<2x128xf32>
    %426 = arith.mulf %425, %424 : vector<2x128xf32>
    %427 = math.tanh %426 : vector<2x128xf32>
    %cst_168 = arith.constant 5.000000e-01 : f32
    %428 = vector.broadcast %cst_168 : f32 to vector<2x128xf32>
    %429 = arith.mulf %428, %427 : vector<2x128xf32>
    %cst_169 = arith.constant 5.000000e-01 : f32
    %430 = vector.broadcast %cst_169 : f32 to vector<2x128xf32>
    %431 = arith.addf %429, %430 : vector<2x128xf32>
    %432 = vector.extract_strided_slice %423 {offsets = [0, 128], sizes = [2, 128], strides = [1, 1]} : vector<2x512xf32> to vector<2x128xf32>
    %cst_170 = arith.constant 5.000000e-01 : f32
    %433 = vector.broadcast %cst_170 : f32 to vector<2x128xf32>
    %434 = arith.mulf %433, %432 : vector<2x128xf32>
    %435 = math.tanh %434 : vector<2x128xf32>
    %cst_171 = arith.constant 5.000000e-01 : f32
    %436 = vector.broadcast %cst_171 : f32 to vector<2x128xf32>
    %437 = arith.mulf %436, %435 : vector<2x128xf32>
    %cst_172 = arith.constant 5.000000e-01 : f32
    %438 = vector.broadcast %cst_172 : f32 to vector<2x128xf32>
    %439 = arith.addf %437, %438 : vector<2x128xf32>
    %440 = vector.extract_strided_slice %423 {offsets = [0, 256], sizes = [2, 128], strides = [1, 1]} : vector<2x512xf32> to vector<2x128xf32>
    %cst_173 = arith.constant 5.000000e-01 : f32
    %441 = vector.broadcast %cst_173 : f32 to vector<2x128xf32>
    %442 = arith.mulf %441, %440 : vector<2x128xf32>
    %443 = math.tanh %442 : vector<2x128xf32>
    %cst_174 = arith.constant 5.000000e-01 : f32
    %444 = vector.broadcast %cst_174 : f32 to vector<2x128xf32>
    %445 = arith.mulf %444, %443 : vector<2x128xf32>
    %cst_175 = arith.constant 5.000000e-01 : f32
    %446 = vector.broadcast %cst_175 : f32 to vector<2x128xf32>
    %447 = arith.addf %445, %446 : vector<2x128xf32>
    %448 = vector.extract_strided_slice %423 {offsets = [0, 384], sizes = [2, 128], strides = [1, 1]} : vector<2x512xf32> to vector<2x128xf32>
    %449 = math.tanh %448 : vector<2x128xf32>
    %450 = arith.mulf %439, %371 : vector<2x128xf32>
    %451 = arith.mulf %431, %449 : vector<2x128xf32>
    %452 = arith.addf %450, %451 : vector<2x128xf32>
    %453 = math.tanh %452 : vector<2x128xf32>
    %454 = arith.mulf %447, %453 : vector<2x128xf32>
    %455 = tpu.concatenate %454, %409 in 1 : vector<2x128xf32>, vector<2x128xf32> -> vector<2x256xf32>
    %c0_176 = arith.constant 0 : index
    %c0_177 = arith.constant 0 : index
    %456 = vector.load %arg5[%c0_176, %c0_177] : memref<256x512xf32, #tpu.memory_space<vmem>>, vector<256x512xf32>
    %cst_178 = arith.constant dense<0.000000e+00> : vector<2x512xf32>
    %457 = tpu.matmul %455, %456, %cst_178 {dimension_numbers = #tpu.dot_dimension_numbers<[1], [0], [0], [1], [0, 0, 1, 1], [], []>} : vector<2x256xf32>, vector<256x512xf32>, vector<2x512xf32> -> vector<2x512xf32>
    %458 = vector.broadcast %12 : vector<1x512xf32> to vector<2x512xf32>
    %459 = arith.addf %457, %458 : vector<2x512xf32>
    %460 = vector.extract_strided_slice %459 {offsets = [0, 0], sizes = [2, 128], strides = [1, 1]} : vector<2x512xf32> to vector<2x128xf32>
    %cst_179 = arith.constant 5.000000e-01 : f32
    %461 = vector.broadcast %cst_179 : f32 to vector<2x128xf32>
    %462 = arith.mulf %461, %460 : vector<2x128xf32>
    %463 = math.tanh %462 : vector<2x128xf32>
    %cst_180 = arith.constant 5.000000e-01 : f32
    %464 = vector.broadcast %cst_180 : f32 to vector<2x128xf32>
    %465 = arith.mulf %464, %463 : vector<2x128xf32>
    %cst_181 = arith.constant 5.000000e-01 : f32
    %466 = vector.broadcast %cst_181 : f32 to vector<2x128xf32>
    %467 = arith.addf %465, %466 : vector<2x128xf32>
    %468 = vector.extract_strided_slice %459 {offsets = [0, 128], sizes = [2, 128], strides = [1, 1]} : vector<2x512xf32> to vector<2x128xf32>
    %cst_182 = arith.constant 5.000000e-01 : f32
    %469 = vector.broadcast %cst_182 : f32 to vector<2x128xf32>
    %470 = arith.mulf %469, %468 : vector<2x128xf32>
    %471 = math.tanh %470 : vector<2x128xf32>
    %cst_183 = arith.constant 5.000000e-01 : f32
    %472 = vector.broadcast %cst_183 : f32 to vector<2x128xf32>
    %473 = arith.mulf %472, %471 : vector<2x128xf32>
    %cst_184 = arith.constant 5.000000e-01 : f32
    %474 = vector.broadcast %cst_184 : f32 to vector<2x128xf32>
    %475 = arith.addf %473, %474 : vector<2x128xf32>
    %476 = vector.extract_strided_slice %459 {offsets = [0, 256], sizes = [2, 128], strides = [1, 1]} : vector<2x512xf32> to vector<2x128xf32>
    %cst_185 = arith.constant 5.000000e-01 : f32
    %477 = vector.broadcast %cst_185 : f32 to vector<2x128xf32>
    %478 = arith.mulf %477, %476 : vector<2x128xf32>
    %479 = math.tanh %478 : vector<2x128xf32>
    %cst_186 = arith.constant 5.000000e-01 : f32
    %480 = vector.broadcast %cst_186 : f32 to vector<2x128xf32>
    %481 = arith.mulf %480, %479 : vector<2x128xf32>
    %cst_187 = arith.constant 5.000000e-01 : f32
    %482 = vector.broadcast %cst_187 : f32 to vector<2x128xf32>
    %483 = arith.addf %481, %482 : vector<2x128xf32>
    %484 = vector.extract_strided_slice %459 {offsets = [0, 384], sizes = [2, 128], strides = [1, 1]} : vector<2x512xf32> to vector<2x128xf32>
    %485 = math.tanh %484 : vector<2x128xf32>
    %486 = arith.mulf %475, %407 : vector<2x128xf32>
    %487 = arith.mulf %467, %485 : vector<2x128xf32>
    %488 = arith.addf %486, %487 : vector<2x128xf32>
    %489 = math.tanh %488 : vector<2x128xf32>
    %490 = arith.mulf %483, %489 : vector<2x128xf32>
    %491 = arith.index_cast %c5_i32 : i32 to index
    %c0_188 = arith.constant 0 : index
    %c0_189 = arith.constant 0 : index
    %492 = vector.load %arg7[%491, %c0_188, %c0_189] : memref<8x2x128xf32, #tpu.memory_space<vmem>>, vector<1x2x128xf32>
    %493 = vector.shape_cast %492 : vector<1x2x128xf32> to vector<2x128xf32>
    %494 = vector.shape_cast %490 : vector<2x128xf32> to vector<1x2x128xf32>
    tpu.vector_store %arg7[%491, %c0_188, %c0_189], %494 {strides = array<i32>} : memref<8x2x128xf32, #tpu.memory_space<vmem>>, vector<1x2x128xf32>,
    %495 = arith.addi %3, %c5_i32 : i32
    %c7_i32_190 = arith.constant 7 : i32
    %496 = arith.cmpi eq, %495, %c7_i32_190 : i32
    %497 = arith.extui %496 : i1 to i32
    %c0_i32_191 = arith.constant 0 : i32
    %498 = arith.cmpi ne, %497, %c0_i32_191 : i32
    scf.if %498 {
      %c0_266 = arith.constant 0 : index
      %c0_267 = arith.constant 0 : index
      %c0_268 = arith.constant 0 : index
      %673 = vector.load %arg8[%c0_266, %c0_267, %c0_268] : memref<2x2x128xf32, #tpu.memory_space<vmem>>, vector<1x2x128xf32>
      %674 = vector.shape_cast %673 : vector<1x2x128xf32> to vector<2x128xf32>
      %675 = vector.shape_cast %454 : vector<2x128xf32> to vector<1x2x128xf32>
      tpu.vector_store %arg8[%c0_266, %c0_267, %c0_268], %675 {strides = array<i32>} : memref<2x2x128xf32, #tpu.memory_space<vmem>>, vector<1x2x128xf32>,
      %c0_269 = arith.constant 0 : index
      %c0_270 = arith.constant 0 : index
      %c0_271 = arith.constant 0 : index
      %676 = vector.load %arg9[%c0_269, %c0_270, %c0_271] : memref<2x2x128xf32, #tpu.memory_space<vmem>>, vector<1x2x128xf32>
      %677 = vector.shape_cast %676 : vector<1x2x128xf32> to vector<2x128xf32>
      %678 = vector.shape_cast %452 : vector<2x128xf32> to vector<1x2x128xf32>
      tpu.vector_store %arg9[%c0_269, %c0_270, %c0_271], %678 {strides = array<i32>} : memref<2x2x128xf32, #tpu.memory_space<vmem>>, vector<1x2x128xf32>,
      %c1_272 = arith.constant 1 : index
      %c0_273 = arith.constant 0 : index
      %c0_274 = arith.constant 0 : index
      %679 = vector.load %arg8[%c1_272, %c0_273, %c0_274] : memref<2x2x128xf32, #tpu.memory_space<vmem>>, vector<1x2x128xf32>
      %680 = vector.shape_cast %679 : vector<1x2x128xf32> to vector<2x128xf32>
      %681 = vector.shape_cast %490 : vector<2x128xf32> to vector<1x2x128xf32>
      tpu.vector_store %arg8[%c1_272, %c0_273, %c0_274], %681 {strides = array<i32>} : memref<2x2x128xf32, #tpu.memory_space<vmem>>, vector<1x2x128xf32>,
      %c1_275 = arith.constant 1 : index
      %c0_276 = arith.constant 0 : index
      %c0_277 = arith.constant 0 : index
      %682 = vector.load %arg9[%c1_275, %c0_276, %c0_277] : memref<2x2x128xf32, #tpu.memory_space<vmem>>, vector<1x2x128xf32>
      %683 = vector.shape_cast %682 : vector<1x2x128xf32> to vector<2x128xf32>
      %684 = vector.shape_cast %488 : vector<2x128xf32> to vector<1x2x128xf32>
      tpu.vector_store %arg9[%c1_275, %c0_276, %c0_277], %684 {strides = array<i32>} : memref<2x2x128xf32, #tpu.memory_space<vmem>>, vector<1x2x128xf32>,
    } else {
    }
    %c6_i32 = arith.constant 6 : i32
    %499 = arith.index_cast %c6_i32 : i32 to index
    %c0_192 = arith.constant 0 : index
    %c0_193 = arith.constant 0 : index
    %500 = vector.load %arg1[%499, %c0_192, %c0_193] : memref<8x2x512xf32, #tpu.memory_space<vmem>>, vector<1x2x512xf32>
    %501 = vector.shape_cast %500 : vector<1x2x512xf32> to vector<2x512xf32>
    %c0_194 = arith.constant 0 : index
    %c0_195 = arith.constant 0 : index
    %502 = vector.load %arg4[%c0_194, %c0_195] : memref<128x512xf32, #tpu.memory_space<vmem>>, vector<128x512xf32>
    %cst_196 = arith.constant dense<0.000000e+00> : vector<2x512xf32>
    %503 = tpu.matmul %454, %502, %cst_196 {dimension_numbers = #tpu.dot_dimension_numbers<[1], [0], [0], [1], [0, 0, 1, 1], [], []>} : vector<2x128xf32>, vector<128x512xf32>, vector<2x512xf32> -> vector<2x512xf32>
    %504 = arith.addf %501, %503 : vector<2x512xf32>
    %505 = vector.extract_strided_slice %504 {offsets = [0, 0], sizes = [2, 128], strides = [1, 1]} : vector<2x512xf32> to vector<2x128xf32>
    %cst_197 = arith.constant 5.000000e-01 : f32
    %506 = vector.broadcast %cst_197 : f32 to vector<2x128xf32>
    %507 = arith.mulf %506, %505 : vector<2x128xf32>
    %508 = math.tanh %507 : vector<2x128xf32>
    %cst_198 = arith.constant 5.000000e-01 : f32
    %509 = vector.broadcast %cst_198 : f32 to vector<2x128xf32>
    %510 = arith.mulf %509, %508 : vector<2x128xf32>
    %cst_199 = arith.constant 5.000000e-01 : f32
    %511 = vector.broadcast %cst_199 : f32 to vector<2x128xf32>
    %512 = arith.addf %510, %511 : vector<2x128xf32>
    %513 = vector.extract_strided_slice %504 {offsets = [0, 128], sizes = [2, 128], strides = [1, 1]} : vector<2x512xf32> to vector<2x128xf32>
    %cst_200 = arith.constant 5.000000e-01 : f32
    %514 = vector.broadcast %cst_200 : f32 to vector<2x128xf32>
    %515 = arith.mulf %514, %513 : vector<2x128xf32>
    %516 = math.tanh %515 : vector<2x128xf32>
    %cst_201 = arith.constant 5.000000e-01 : f32
    %517 = vector.broadcast %cst_201 : f32 to vector<2x128xf32>
    %518 = arith.mulf %517, %516 : vector<2x128xf32>
    %cst_202 = arith.constant 5.000000e-01 : f32
    %519 = vector.broadcast %cst_202 : f32 to vector<2x128xf32>
    %520 = arith.addf %518, %519 : vector<2x128xf32>
    %521 = vector.extract_strided_slice %504 {offsets = [0, 256], sizes = [2, 128], strides = [1, 1]} : vector<2x512xf32> to vector<2x128xf32>
    %cst_203 = arith.constant 5.000000e-01 : f32
    %522 = vector.broadcast %cst_203 : f32 to vector<2x128xf32>
    %523 = arith.mulf %522, %521 : vector<2x128xf32>
    %524 = math.tanh %523 : vector<2x128xf32>
    %cst_204 = arith.constant 5.000000e-01 : f32
    %525 = vector.broadcast %cst_204 : f32 to vector<2x128xf32>
    %526 = arith.mulf %525, %524 : vector<2x128xf32>
    %cst_205 = arith.constant 5.000000e-01 : f32
    %527 = vector.broadcast %cst_205 : f32 to vector<2x128xf32>
    %528 = arith.addf %526, %527 : vector<2x128xf32>
    %529 = vector.extract_strided_slice %504 {offsets = [0, 384], sizes = [2, 128], strides = [1, 1]} : vector<2x512xf32> to vector<2x128xf32>
    %530 = math.tanh %529 : vector<2x128xf32>
    %531 = arith.mulf %520, %452 : vector<2x128xf32>
    %532 = arith.mulf %512, %530 : vector<2x128xf32>
    %533 = arith.addf %531, %532 : vector<2x128xf32>
    %534 = math.tanh %533 : vector<2x128xf32>
    %535 = arith.mulf %528, %534 : vector<2x128xf32>
    %536 = tpu.concatenate %535, %490 in 1 : vector<2x128xf32>, vector<2x128xf32> -> vector<2x256xf32>
    %c0_206 = arith.constant 0 : index
    %c0_207 = arith.constant 0 : index
    %537 = vector.load %arg5[%c0_206, %c0_207] : memref<256x512xf32, #tpu.memory_space<vmem>>, vector<256x512xf32>
    %cst_208 = arith.constant dense<0.000000e+00> : vector<2x512xf32>
    %538 = tpu.matmul %536, %537, %cst_208 {dimension_numbers = #tpu.dot_dimension_numbers<[1], [0], [0], [1], [0, 0, 1, 1], [], []>} : vector<2x256xf32>, vector<256x512xf32>, vector<2x512xf32> -> vector<2x512xf32>
    %539 = vector.broadcast %12 : vector<1x512xf32> to vector<2x512xf32>
    %540 = arith.addf %538, %539 : vector<2x512xf32>
    %541 = vector.extract_strided_slice %540 {offsets = [0, 0], sizes = [2, 128], strides = [1, 1]} : vector<2x512xf32> to vector<2x128xf32>
    %cst_209 = arith.constant 5.000000e-01 : f32
    %542 = vector.broadcast %cst_209 : f32 to vector<2x128xf32>
    %543 = arith.mulf %542, %541 : vector<2x128xf32>
    %544 = math.tanh %543 : vector<2x128xf32>
    %cst_210 = arith.constant 5.000000e-01 : f32
    %545 = vector.broadcast %cst_210 : f32 to vector<2x128xf32>
    %546 = arith.mulf %545, %544 : vector<2x128xf32>
    %cst_211 = arith.constant 5.000000e-01 : f32
    %547 = vector.broadcast %cst_211 : f32 to vector<2x128xf32>
    %548 = arith.addf %546, %547 : vector<2x128xf32>
    %549 = vector.extract_strided_slice %540 {offsets = [0, 128], sizes = [2, 128], strides = [1, 1]} : vector<2x512xf32> to vector<2x128xf32>
    %cst_212 = arith.constant 5.000000e-01 : f32
    %550 = vector.broadcast %cst_212 : f32 to vector<2x128xf32>
    %551 = arith.mulf %550, %549 : vector<2x128xf32>
    %552 = math.tanh %551 : vector<2x128xf32>
    %cst_213 = arith.constant 5.000000e-01 : f32
    %553 = vector.broadcast %cst_213 : f32 to vector<2x128xf32>
    %554 = arith.mulf %553, %552 : vector<2x128xf32>
    %cst_214 = arith.constant 5.000000e-01 : f32
    %555 = vector.broadcast %cst_214 : f32 to vector<2x128xf32>
    %556 = arith.addf %554, %555 : vector<2x128xf32>
    %557 = vector.extract_strided_slice %540 {offsets = [0, 256], sizes = [2, 128], strides = [1, 1]} : vector<2x512xf32> to vector<2x128xf32>
    %cst_215 = arith.constant 5.000000e-01 : f32
    %558 = vector.broadcast %cst_215 : f32 to vector<2x128xf32>
    %559 = arith.mulf %558, %557 : vector<2x128xf32>
    %560 = math.tanh %559 : vector<2x128xf32>
    %cst_216 = arith.constant 5.000000e-01 : f32
    %561 = vector.broadcast %cst_216 : f32 to vector<2x128xf32>
    %562 = arith.mulf %561, %560 : vector<2x128xf32>
    %cst_217 = arith.constant 5.000000e-01 : f32
    %563 = vector.broadcast %cst_217 : f32 to vector<2x128xf32>
    %564 = arith.addf %562, %563 : vector<2x128xf32>
    %565 = vector.extract_strided_slice %540 {offsets = [0, 384], sizes = [2, 128], strides = [1, 1]} : vector<2x512xf32> to vector<2x128xf32>
    %566 = math.tanh %565 : vector<2x128xf32>
    %567 = arith.mulf %556, %488 : vector<2x128xf32>
    %568 = arith.mulf %548, %566 : vector<2x128xf32>
    %569 = arith.addf %567, %568 : vector<2x128xf32>
    %570 = math.tanh %569 : vector<2x128xf32>
    %571 = arith.mulf %564, %570 : vector<2x128xf32>
    %572 = arith.index_cast %c6_i32 : i32 to index
    %c0_218 = arith.constant 0 : index
    %c0_219 = arith.constant 0 : index
    %573 = vector.load %arg7[%572, %c0_218, %c0_219] : memref<8x2x128xf32, #tpu.memory_space<vmem>>, vector<1x2x128xf32>
    %574 = vector.shape_cast %573 : vector<1x2x128xf32> to vector<2x128xf32>
    %575 = vector.shape_cast %571 : vector<2x128xf32> to vector<1x2x128xf32>
    tpu.vector_store %arg7[%572, %c0_218, %c0_219], %575 {strides = array<i32>} : memref<8x2x128xf32, #tpu.memory_space<vmem>>, vector<1x2x128xf32>,
    %576 = arith.addi %3, %c6_i32 : i32
    %c7_i32_220 = arith.constant 7 : i32
    %577 = arith.cmpi eq, %576, %c7_i32_220 : i32
    %578 = arith.extui %577 : i1 to i32
    %c0_i32_221 = arith.constant 0 : i32
    %579 = arith.cmpi ne, %578, %c0_i32_221 : i32
    scf.if %579 {
      %c0_266 = arith.constant 0 : index
      %c0_267 = arith.constant 0 : index
      %c0_268 = arith.constant 0 : index
      %673 = vector.load %arg8[%c0_266, %c0_267, %c0_268] : memref<2x2x128xf32, #tpu.memory_space<vmem>>, vector<1x2x128xf32>
      %674 = vector.shape_cast %673 : vector<1x2x128xf32> to vector<2x128xf32>
      %675 = vector.shape_cast %535 : vector<2x128xf32> to vector<1x2x128xf32>
      tpu.vector_store %arg8[%c0_266, %c0_267, %c0_268], %675 {strides = array<i32>} : memref<2x2x128xf32, #tpu.memory_space<vmem>>, vector<1x2x128xf32>,
      %c0_269 = arith.constant 0 : index
      %c0_270 = arith.constant 0 : index
      %c0_271 = arith.constant 0 : index
      %676 = vector.load %arg9[%c0_269, %c0_270, %c0_271] : memref<2x2x128xf32, #tpu.memory_space<vmem>>, vector<1x2x128xf32>
      %677 = vector.shape_cast %676 : vector<1x2x128xf32> to vector<2x128xf32>
      %678 = vector.shape_cast %533 : vector<2x128xf32> to vector<1x2x128xf32>
      tpu.vector_store %arg9[%c0_269, %c0_270, %c0_271], %678 {strides = array<i32>} : memref<2x2x128xf32, #tpu.memory_space<vmem>>, vector<1x2x128xf32>,
      %c1_272 = arith.constant 1 : index
      %c0_273 = arith.constant 0 : index
      %c0_274 = arith.constant 0 : index
      %679 = vector.load %arg8[%c1_272, %c0_273, %c0_274] : memref<2x2x128xf32, #tpu.memory_space<vmem>>, vector<1x2x128xf32>
      %680 = vector.shape_cast %679 : vector<1x2x128xf32> to vector<2x128xf32>
      %681 = vector.shape_cast %571 : vector<2x128xf32> to vector<1x2x128xf32>
      tpu.vector_store %arg8[%c1_272, %c0_273, %c0_274], %681 {strides = array<i32>} : memref<2x2x128xf32, #tpu.memory_space<vmem>>, vector<1x2x128xf32>,
      %c1_275 = arith.constant 1 : index
      %c0_276 = arith.constant 0 : index
      %c0_277 = arith.constant 0 : index
      %682 = vector.load %arg9[%c1_275, %c0_276, %c0_277] : memref<2x2x128xf32, #tpu.memory_space<vmem>>, vector<1x2x128xf32>
      %683 = vector.shape_cast %682 : vector<1x2x128xf32> to vector<2x128xf32>
      %684 = vector.shape_cast %569 : vector<2x128xf32> to vector<1x2x128xf32>
      tpu.vector_store %arg9[%c1_275, %c0_276, %c0_277], %684 {strides = array<i32>} : memref<2x2x128xf32, #tpu.memory_space<vmem>>, vector<1x2x128xf32>,
    } else {
    }
    %c7_i32_222 = arith.constant 7 : i32
    %580 = arith.index_cast %c7_i32_222 : i32 to index
    %c0_223 = arith.constant 0 : index
    %c0_224 = arith.constant 0 : index
    %581 = vector.load %arg1[%580, %c0_223, %c0_224] : memref<8x2x512xf32, #tpu.memory_space<vmem>>, vector<1x2x512xf32>
    %582 = vector.shape_cast %581 : vector<1x2x512xf32> to vector<2x512xf32>
    %c0_225 = arith.constant 0 : index
    %c0_226 = arith.constant 0 : index
    %583 = vector.load %arg4[%c0_225, %c0_226] : memref<128x512xf32, #tpu.memory_space<vmem>>, vector<128x512xf32>
    %cst_227 = arith.constant dense<0.000000e+00> : vector<2x512xf32>
    %584 = tpu.matmul %535, %583, %cst_227 {dimension_numbers = #tpu.dot_dimension_numbers<[1], [0], [0], [1], [0, 0, 1, 1], [], []>} : vector<2x128xf32>, vector<128x512xf32>, vector<2x512xf32> -> vector<2x512xf32>
    %585 = arith.addf %582, %584 : vector<2x512xf32>
    %586 = vector.extract_strided_slice %585 {offsets = [0, 0], sizes = [2, 128], strides = [1, 1]} : vector<2x512xf32> to vector<2x128xf32>
    %cst_228 = arith.constant 5.000000e-01 : f32
    %587 = vector.broadcast %cst_228 : f32 to vector<2x128xf32>
    %588 = arith.mulf %587, %586 : vector<2x128xf32>
    %589 = math.tanh %588 : vector<2x128xf32>
    %cst_229 = arith.constant 5.000000e-01 : f32
    %590 = vector.broadcast %cst_229 : f32 to vector<2x128xf32>
    %591 = arith.mulf %590, %589 : vector<2x128xf32>
    %cst_230 = arith.constant 5.000000e-01 : f32
    %592 = vector.broadcast %cst_230 : f32 to vector<2x128xf32>
    %593 = arith.addf %591, %592 : vector<2x128xf32>
    %594 = vector.extract_strided_slice %585 {offsets = [0, 128], sizes = [2, 128], strides = [1, 1]} : vector<2x512xf32> to vector<2x128xf32>
    %cst_231 = arith.constant 5.000000e-01 : f32
    %595 = vector.broadcast %cst_231 : f32 to vector<2x128xf32>
    %596 = arith.mulf %595, %594 : vector<2x128xf32>
    %597 = math.tanh %596 : vector<2x128xf32>
    %cst_232 = arith.constant 5.000000e-01 : f32
    %598 = vector.broadcast %cst_232 : f32 to vector<2x128xf32>
    %599 = arith.mulf %598, %597 : vector<2x128xf32>
    %cst_233 = arith.constant 5.000000e-01 : f32
    %600 = vector.broadcast %cst_233 : f32 to vector<2x128xf32>
    %601 = arith.addf %599, %600 : vector<2x128xf32>
    %602 = vector.extract_strided_slice %585 {offsets = [0, 256], sizes = [2, 128], strides = [1, 1]} : vector<2x512xf32> to vector<2x128xf32>
    %cst_234 = arith.constant 5.000000e-01 : f32
    %603 = vector.broadcast %cst_234 : f32 to vector<2x128xf32>
    %604 = arith.mulf %603, %602 : vector<2x128xf32>
    %605 = math.tanh %604 : vector<2x128xf32>
    %cst_235 = arith.constant 5.000000e-01 : f32
    %606 = vector.broadcast %cst_235 : f32 to vector<2x128xf32>
    %607 = arith.mulf %606, %605 : vector<2x128xf32>
    %cst_236 = arith.constant 5.000000e-01 : f32
    %608 = vector.broadcast %cst_236 : f32 to vector<2x128xf32>
    %609 = arith.addf %607, %608 : vector<2x128xf32>
    %610 = vector.extract_strided_slice %585 {offsets = [0, 384], sizes = [2, 128], strides = [1, 1]} : vector<2x512xf32> to vector<2x128xf32>
    %611 = math.tanh %610 : vector<2x128xf32>
    %612 = arith.mulf %601, %533 : vector<2x128xf32>
    %613 = arith.mulf %593, %611 : vector<2x128xf32>
    %614 = arith.addf %612, %613 : vector<2x128xf32>
    %615 = math.tanh %614 : vector<2x128xf32>
    %616 = arith.mulf %609, %615 : vector<2x128xf32>
    %617 = tpu.concatenate %616, %571 in 1 : vector<2x128xf32>, vector<2x128xf32> -> vector<2x256xf32>
    %c0_237 = arith.constant 0 : index
    %c0_238 = arith.constant 0 : index
    %618 = vector.load %arg5[%c0_237, %c0_238] : memref<256x512xf32, #tpu.memory_space<vmem>>, vector<256x512xf32>
    %cst_239 = arith.constant dense<0.000000e+00> : vector<2x512xf32>
    %619 = tpu.matmul %617, %618, %cst_239 {dimension_numbers = #tpu.dot_dimension_numbers<[1], [0], [0], [1], [0, 0, 1, 1], [], []>} : vector<2x256xf32>, vector<256x512xf32>, vector<2x512xf32> -> vector<2x512xf32>
    %620 = vector.broadcast %12 : vector<1x512xf32> to vector<2x512xf32>
    %621 = arith.addf %619, %620 : vector<2x512xf32>
    %622 = vector.extract_strided_slice %621 {offsets = [0, 0], sizes = [2, 128], strides = [1, 1]} : vector<2x512xf32> to vector<2x128xf32>
    %cst_240 = arith.constant 5.000000e-01 : f32
    %623 = vector.broadcast %cst_240 : f32 to vector<2x128xf32>
    %624 = arith.mulf %623, %622 : vector<2x128xf32>
    %625 = math.tanh %624 : vector<2x128xf32>
    %cst_241 = arith.constant 5.000000e-01 : f32
    %626 = vector.broadcast %cst_241 : f32 to vector<2x128xf32>
    %627 = arith.mulf %626, %625 : vector<2x128xf32>
    %cst_242 = arith.constant 5.000000e-01 : f32
    %628 = vector.broadcast %cst_242 : f32 to vector<2x128xf32>
    %629 = arith.addf %627, %628 : vector<2x128xf32>
    %630 = vector.extract_strided_slice %621 {offsets = [0, 128], sizes = [2, 128], strides = [1, 1]} : vector<2x512xf32> to vector<2x128xf32>
    %cst_243 = arith.constant 5.000000e-01 : f32
    %631 = vector.broadcast %cst_243 : f32 to vector<2x128xf32>
    %632 = arith.mulf %631, %630 : vector<2x128xf32>
    %633 = math.tanh %632 : vector<2x128xf32>
    %cst_244 = arith.constant 5.000000e-01 : f32
    %634 = vector.broadcast %cst_244 : f32 to vector<2x128xf32>
    %635 = arith.mulf %634, %633 : vector<2x128xf32>
    %cst_245 = arith.constant 5.000000e-01 : f32
    %636 = vector.broadcast %cst_245 : f32 to vector<2x128xf32>
    %637 = arith.addf %635, %636 : vector<2x128xf32>
    %638 = vector.extract_strided_slice %621 {offsets = [0, 256], sizes = [2, 128], strides = [1, 1]} : vector<2x512xf32> to vector<2x128xf32>
    %cst_246 = arith.constant 5.000000e-01 : f32
    %639 = vector.broadcast %cst_246 : f32 to vector<2x128xf32>
    %640 = arith.mulf %639, %638 : vector<2x128xf32>
    %641 = math.tanh %640 : vector<2x128xf32>
    %cst_247 = arith.constant 5.000000e-01 : f32
    %642 = vector.broadcast %cst_247 : f32 to vector<2x128xf32>
    %643 = arith.mulf %642, %641 : vector<2x128xf32>
    %cst_248 = arith.constant 5.000000e-01 : f32
    %644 = vector.broadcast %cst_248 : f32 to vector<2x128xf32>
    %645 = arith.addf %643, %644 : vector<2x128xf32>
    %646 = vector.extract_strided_slice %621 {offsets = [0, 384], sizes = [2, 128], strides = [1, 1]} : vector<2x512xf32> to vector<2x128xf32>
    %647 = math.tanh %646 : vector<2x128xf32>
    %648 = arith.mulf %637, %569 : vector<2x128xf32>
    %649 = arith.mulf %629, %647 : vector<2x128xf32>
    %650 = arith.addf %648, %649 : vector<2x128xf32>
    %651 = math.tanh %650 : vector<2x128xf32>
    %652 = arith.mulf %645, %651 : vector<2x128xf32>
    %653 = arith.index_cast %c7_i32_222 : i32 to index
    %c0_249 = arith.constant 0 : index
    %c0_250 = arith.constant 0 : index
    %654 = vector.load %arg7[%653, %c0_249, %c0_250] : memref<8x2x128xf32, #tpu.memory_space<vmem>>, vector<1x2x128xf32>
    %655 = vector.shape_cast %654 : vector<1x2x128xf32> to vector<2x128xf32>
    %656 = vector.shape_cast %652 : vector<2x128xf32> to vector<1x2x128xf32>
    tpu.vector_store %arg7[%653, %c0_249, %c0_250], %656 {strides = array<i32>} : memref<8x2x128xf32, #tpu.memory_space<vmem>>, vector<1x2x128xf32>,
    %657 = arith.addi %3, %c7_i32_222 : i32
    %c7_i32_251 = arith.constant 7 : i32
    %658 = arith.cmpi eq, %657, %c7_i32_251 : i32
    %659 = arith.extui %658 : i1 to i32
    %c0_i32_252 = arith.constant 0 : i32
    %660 = arith.cmpi ne, %659, %c0_i32_252 : i32
    scf.if %660 {
      %c0_266 = arith.constant 0 : index
      %c0_267 = arith.constant 0 : index
      %c0_268 = arith.constant 0 : index
      %673 = vector.load %arg8[%c0_266, %c0_267, %c0_268] : memref<2x2x128xf32, #tpu.memory_space<vmem>>, vector<1x2x128xf32>
      %674 = vector.shape_cast %673 : vector<1x2x128xf32> to vector<2x128xf32>
      %675 = vector.shape_cast %616 : vector<2x128xf32> to vector<1x2x128xf32>
      tpu.vector_store %arg8[%c0_266, %c0_267, %c0_268], %675 {strides = array<i32>} : memref<2x2x128xf32, #tpu.memory_space<vmem>>, vector<1x2x128xf32>,
      %c0_269 = arith.constant 0 : index
      %c0_270 = arith.constant 0 : index
      %c0_271 = arith.constant 0 : index
      %676 = vector.load %arg9[%c0_269, %c0_270, %c0_271] : memref<2x2x128xf32, #tpu.memory_space<vmem>>, vector<1x2x128xf32>
      %677 = vector.shape_cast %676 : vector<1x2x128xf32> to vector<2x128xf32>
      %678 = vector.shape_cast %614 : vector<2x128xf32> to vector<1x2x128xf32>
      tpu.vector_store %arg9[%c0_269, %c0_270, %c0_271], %678 {strides = array<i32>} : memref<2x2x128xf32, #tpu.memory_space<vmem>>, vector<1x2x128xf32>,
      %c1_272 = arith.constant 1 : index
      %c0_273 = arith.constant 0 : index
      %c0_274 = arith.constant 0 : index
      %679 = vector.load %arg8[%c1_272, %c0_273, %c0_274] : memref<2x2x128xf32, #tpu.memory_space<vmem>>, vector<1x2x128xf32>
      %680 = vector.shape_cast %679 : vector<1x2x128xf32> to vector<2x128xf32>
      %681 = vector.shape_cast %652 : vector<2x128xf32> to vector<1x2x128xf32>
      tpu.vector_store %arg8[%c1_272, %c0_273, %c0_274], %681 {strides = array<i32>} : memref<2x2x128xf32, #tpu.memory_space<vmem>>, vector<1x2x128xf32>,
      %c1_275 = arith.constant 1 : index
      %c0_276 = arith.constant 0 : index
      %c0_277 = arith.constant 0 : index
      %682 = vector.load %arg9[%c1_275, %c0_276, %c0_277] : memref<2x2x128xf32, #tpu.memory_space<vmem>>, vector<1x2x128xf32>
      %683 = vector.shape_cast %682 : vector<1x2x128xf32> to vector<2x128xf32>
      %684 = vector.shape_cast %650 : vector<2x128xf32> to vector<1x2x128xf32>
      tpu.vector_store %arg9[%c1_275, %c0_276, %c0_277], %684 {strides = array<i32>} : memref<2x2x128xf32, #tpu.memory_space<vmem>>, vector<1x2x128xf32>,
    } else {
    }
    %c8_i32_253 = arith.constant 8 : i32
    %c0_254 = arith.constant 0 : index
    %c0_255 = arith.constant 0 : index
    %c0_256 = arith.constant 0 : index
    %661 = vector.load %arg10[%c0_254, %c0_255, %c0_256] : memref<2x2x128xf32, #tpu.memory_space<vmem>>, vector<1x2x128xf32>
    %662 = vector.shape_cast %661 : vector<1x2x128xf32> to vector<2x128xf32>
    %663 = vector.shape_cast %616 : vector<2x128xf32> to vector<1x2x128xf32>
    tpu.vector_store %arg10[%c0_254, %c0_255, %c0_256], %663 {strides = array<i32>} : memref<2x2x128xf32, #tpu.memory_space<vmem>>, vector<1x2x128xf32>,
    %c0_257 = arith.constant 0 : index
    %c0_258 = arith.constant 0 : index
    %c0_259 = arith.constant 0 : index
    %664 = vector.load %arg11[%c0_257, %c0_258, %c0_259] : memref<2x2x128xf32, #tpu.memory_space<vmem>>, vector<1x2x128xf32>
    %665 = vector.shape_cast %664 : vector<1x2x128xf32> to vector<2x128xf32>
    %666 = vector.shape_cast %614 : vector<2x128xf32> to vector<1x2x128xf32>
    tpu.vector_store %arg11[%c0_257, %c0_258, %c0_259], %666 {strides = array<i32>} : memref<2x2x128xf32, #tpu.memory_space<vmem>>, vector<1x2x128xf32>,
    %c1_260 = arith.constant 1 : index
    %c0_261 = arith.constant 0 : index
    %c0_262 = arith.constant 0 : index
    %667 = vector.load %arg10[%c1_260, %c0_261, %c0_262] : memref<2x2x128xf32, #tpu.memory_space<vmem>>, vector<1x2x128xf32>
    %668 = vector.shape_cast %667 : vector<1x2x128xf32> to vector<2x128xf32>
    %669 = vector.shape_cast %652 : vector<2x128xf32> to vector<1x2x128xf32>
    tpu.vector_store %arg10[%c1_260, %c0_261, %c0_262], %669 {strides = array<i32>} : memref<2x2x128xf32, #tpu.memory_space<vmem>>, vector<1x2x128xf32>,
    %c1_263 = arith.constant 1 : index
    %c0_264 = arith.constant 0 : index
    %c0_265 = arith.constant 0 : index
    %670 = vector.load %arg11[%c1_263, %c0_264, %c0_265] : memref<2x2x128xf32, #tpu.memory_space<vmem>>, vector<1x2x128xf32>
    %671 = vector.shape_cast %670 : vector<1x2x128xf32> to vector<2x128xf32>
    %672 = vector.shape_cast %650 : vector<2x128xf32> to vector<1x2x128xf32>
    tpu.vector_store %arg11[%c1_263, %c0_264, %c0_265], %672 {strides = array<i32>} : memref<2x2x128xf32, #tpu.memory_space<vmem>>, vector<1x2x128xf32>,
    return
  }
  func.func @transform_0(%arg0: i32) -> (i32, i32, i32) {
    %c0_i32 = arith.constant 0 : i32
    %c0_i32_0 = arith.constant 0 : i32
    %c0_i32_1 = arith.constant 0 : i32
    return %arg0, %c0_i32, %c0_i32_0 : i32, i32, i32
  }
  func.func @transform_1(%arg0: i32) -> (i32, i32, i32) {
    %c0_i32 = arith.constant 0 : i32
    %c0_i32_0 = arith.constant 0 : i32
    %c0_i32_1 = arith.constant 0 : i32
    %c0_i32_2 = arith.constant 0 : i32
    return %c0_i32, %c0_i32_0, %c0_i32_1 : i32, i32, i32
  }
  func.func @transform_2(%arg0: i32) -> (i32, i32, i32) {
    %c0_i32 = arith.constant 0 : i32
    %c0_i32_0 = arith.constant 0 : i32
    %c0_i32_1 = arith.constant 0 : i32
    %c0_i32_2 = arith.constant 0 : i32
    return %c0_i32, %c0_i32_0, %c0_i32_1 : i32, i32, i32
  }
  func.func @transform_3(%arg0: i32) -> (i32, i32) {
    %c0_i32 = arith.constant 0 : i32
    %c0_i32_0 = arith.constant 0 : i32
    %c0_i32_1 = arith.constant 0 : i32
    return %c0_i32, %c0_i32_0 : i32, i32
  }
  func.func @transform_4(%arg0: i32) -> (i32, i32) {
    %c0_i32 = arith.constant 0 : i32
    %c0_i32_0 = arith.constant 0 : i32
    %c0_i32_1 = arith.constant 0 : i32
    return %c0_i32, %c0_i32_0 : i32, i32
  }
  func.func @transform_5(%arg0: i32) -> (i32, i32) {
    %c0_i32 = arith.constant 0 : i32
    %c0_i32_0 = arith.constant 0 : i32
    %c0_i32_1 = arith.constant 0 : i32
    return %c0_i32, %c0_i32_0 : i32, i32
  }
  func.func @transform_6(%arg0: i32) -> (i32, i32, i32) {
    %c0_i32 = arith.constant 0 : i32
    %c0_i32_0 = arith.constant 0 : i32
    %c0_i32_1 = arith.constant 0 : i32
    return %arg0, %c0_i32, %c0_i32_0 : i32, i32, i32
  }
  func.func @transform_7(%arg0: i32) -> (i32, i32, i32) {
    %c0_i32 = arith.constant 0 : i32
    %c0_i32_0 = arith.constant 0 : i32
    %c0_i32_1 = arith.constant 0 : i32
    %c0_i32_2 = arith.constant 0 : i32
    return %c0_i32, %c0_i32_0, %c0_i32_1 : i32, i32, i32
  }
  func.func @transform_8(%arg0: i32) -> (i32, i32, i32) {
    %c0_i32 = arith.constant 0 : i32
    %c0_i32_0 = arith.constant 0 : i32
    %c0_i32_1 = arith.constant 0 : i32
    %c0_i32_2 = arith.constant 0 : i32
    return %c0_i32, %c0_i32_0, %c0_i32_1 : i32, i32, i32
  }
}

</mosaic_0001>

<llo_original>
// kernel: tpu_custom_call.1
$region0: #{tpu_custom_call.1}
  #allocation0 [shape = 'u32[]', space=smem, size = 0x4, offset = 0x4, fixed_abs, tag = 'smem constant byte address 0x4 - core index']
  #allocation1 [shape = 'u32[144,128]{1,0:T(1,128)}', space=vmem, size = 0x12000, scoped, tag = 'internal scratch']
  #allocation2 [shape = 'f32[2,2,128]{2,1,0:T(2,128)}', space=vmem, size = 0x800, scoped, tag = 'scratch operand']
  #allocation3 [shape = 'f32[2,2,128]{2,1,0:T(2,128)}', space=vmem, size = 0x800, scoped, tag = 'scratch operand']
  %s0 = inlined_call_operand.hbm [shape: f32[8,2,512], index: 0, kind: input, shape index: {}]
  %s1 = inlined_call_operand.hbm [shape: f32[2,2,128], index: 1, kind: input, shape index: {}, may-alias: {1,7}]
  %s2 = inlined_call_operand.hbm [shape: f32[2,2,128], index: 2, kind: input, shape index: {}, may-alias: {2,8}]
  %s3 = inlined_call_operand.hbm [shape: f32[128,512], index: 3, kind: input, shape index: {}]
  %s4 = inlined_call_operand.hbm [shape: f32[256,512], index: 4, kind: input, shape index: {}]
  %s5 = inlined_call_operand.vmem [shape: f32[1,512], index: 5, kind: input, shape index: {}]
  %s6 = inlined_call_operand.hbm [shape: f32[8,2,128], index: 6, kind: output, shape index: {0}]
  %s7 = inlined_call_operand.hbm [shape: f32[2,2,128], index: 7, kind: output, shape index: {1}, may-alias: {1,7}]
  %s8 = inlined_call_operand.hbm [shape: f32[2,2,128], index: 8, kind: output, shape index: {2}, may-alias: {2,8}]
  %9 = xla_tuple %s6, %s7, %s8
  %s10 = sld [smem:[#allocation0]]
  $region106: #{tpu_custom_call.1} parent=0
    _
  %s12 = ssub.s32 1, %s10
  %s13 = scalar_select 0, %s12, %s10
  $region1: #{tpu_custom_call.1} parent=0
    #allocation4 [shape = 'u8[32768]{0}', space=vmem, size = 0x8000, scoped, tag = 'input window, operand 0, single buffered']
    #allocation5 [shape = 's32[1]{0}', space=sflag, size = 0x4, scoped, tag = 'scoped memory for tpu_custom_call.1']
    #allocation6 [shape = 's32[1]{0}', space=sflag, size = 0x4, scoped, tag = 'scoped memory for tpu_custom_call.1']
    #allocation7 [shape = 'u8[2048]{0}', space=vmem, size = 0x800, scoped, tag = 'input window, operand 1, single buffered']
    #allocation8 [shape = 's32[1]{0}', space=sflag, size = 0x4, scoped, tag = 'scoped memory for tpu_custom_call.1']
    #allocation9 [shape = 'u8[2048]{0}', space=vmem, size = 0x800, scoped, tag = 'input window, operand 2, single buffered']
    #allocation10 [shape = 'u8[262144]{0}', space=vmem, size = 0x40000, scoped, tag = 'input window, operand 3, single buffered']
    #allocation11 [shape = 's32[1]{0}', space=sflag, size = 0x4, scoped, tag = 'scoped memory for tpu_custom_call.1']
    #allocation12 [shape = 'u8[524288]{0}', space=vmem, size = 0x80000, scoped, tag = 'input window, operand 4, single buffered']
    #allocation13 [shape = 'u8[8192]{0}', space=vmem, size = 0x2000, scoped, tag = 'output window, operand 0, single buffered']
    #allocation14 [shape = 'u8[2048]{0}', space=vmem, size = 0x800, scoped, tag = 'output window, operand 1, single buffered']
    #allocation15 [shape = 's32[1]{0}', space=sflag, size = 0x4, scoped, tag = 'scoped memory for tpu_custom_call.1']
    #allocation16 [shape = 'u8[2048]{0}', space=vmem, size = 0x800, scoped, tag = 'output window, operand 2, single buffered']
    %14 = vsyncpa [#allocation5], 0
    %15 = vsyncpa [#allocation8], 0
    %16 = vsyncpa [#allocation11], 0
    %17 = vsyncpa [#allocation6], 0
    %18 = vsyncpa [#allocation15], 0
    // Predicated region
    $region2: #{tpu_custom_call.1} parent=1 // pred_check
      _
    $region3: #{tpu_custom_call.1} parent=1 // pred_check_branch
      %20 = sbr.rel (0) target = $region5
    $region4: #{tpu_custom_call.1} parent=1 // pred_region
      %s22 = ssub.s32 1024, 1024
      %23 = vsyncadd [#allocation5], %s22
      %s24 = sshll.u32 [#allocation4], 4
      %s25 = int_to_ptr.vmem [resolvable:$true] %s24
      %30 = dma.hbm_to_vmem [thread:$0]  %s0, 1024, %s25, [#allocation5], 128, 128, 8
    $region5: #{tpu_custom_call.1} parent=1 // pred_fallthru
      _
    // Predicated region
    $region6: #{tpu_custom_call.1} parent=1 // pred_check
      _
    $region7: #{tpu_custom_call.1} parent=1 // pred_check_branch
      %32 = sbr.rel (0) target = $region9
    $region8: #{tpu_custom_call.1} parent=1 // pred_region
      %s34 = ssub.s32 64, 64
      %35 = vsyncadd [#allocation8], %s34
      %s36 = sshll.u32 [#allocation7], 4
      %s37 = int_to_ptr.vmem [resolvable:$true] %s36
      %42 = dma.hbm_to_vmem [thread:$0]  %s1, 64, %s37, [#allocation8], 32, 32, 2
    $region9: #{tpu_custom_call.1} parent=1 // pred_fallthru
      _
    // Predicated region
    $region10: #{tpu_custom_call.1} parent=1 // pred_check
      _
    $region11: #{tpu_custom_call.1} parent=1 // pred_check_branch
      %44 = sbr.rel (0) target = $region13
    $region12: #{tpu_custom_call.1} parent=1 // pred_region
      %s46 = ssub.s32 64, 64
      %47 = vsyncadd [#allocation8], %s46
      %s48 = sshll.u32 [#allocation9], 4
      %s49 = int_to_ptr.vmem [resolvable:$true] %s48
      %54 = dma.hbm_to_vmem [thread:$0]  %s2, 64, %s49, [#allocation8], 32, 32, 2
    $region13: #{tpu_custom_call.1} parent=1 // pred_fallthru
      _
    // Predicated region
    $region14: #{tpu_custom_call.1} parent=1 // pred_check
      _
    $region15: #{tpu_custom_call.1} parent=1 // pred_check_branch
      %56 = sbr.rel (0) target = $region17
    $region16: #{tpu_custom_call.1} parent=1 // pred_region
      %s58 = ssub.s32 8192, 8192
      %59 = vsyncadd [#allocation11], %s58
      %s60 = sshll.u32 [#allocation10], 4
      %s61 = int_to_ptr.vmem [resolvable:$true] %s60
      %66 = dma.hbm_to_vmem [thread:$0]  %s3, 8192, %s61, [#allocation11], 512, 512, 32
    $region17: #{tpu_custom_call.1} parent=1 // pred_fallthru
      _
    // Predicated region
    $region18: #{tpu_custom_call.1} parent=1 // pred_check
      _
    $region19: #{tpu_custom_call.1} parent=1 // pred_check_branch
      %68 = sbr.rel (0) target = $region21
    $region20: #{tpu_custom_call.1} parent=1 // pred_region
      %s70 = ssub.s32 16384, 16384
      %71 = vsyncadd [#allocation11], %s70
      %s72 = sshll.u32 [#allocation12], 4
      %s73 = int_to_ptr.vmem [resolvable:$true] %s72
      %78 = dma.hbm_to_vmem [thread:$0]  %s4, 16384, %s73, [#allocation11], 512, 512, 32
    $region21: #{tpu_custom_call.1} parent=1 // pred_fallthru
      _
    // Predicated region
    $region22: #{tpu_custom_call.1} parent=1 // pred_check
      _
    $region23: #{tpu_custom_call.1} parent=1 // pred_check_branch
      %80 = sbr.rel (0) target = $region25
    $region24: #{tpu_custom_call.1} parent=1 // pred_region
      _
    $region25: #{tpu_custom_call.1} parent=1 // pred_fallthru
      _
    // Predicated region
    $region26: #{tpu_custom_call.1} parent=1 // pred_check
      _
    $region27: #{tpu_custom_call.1} parent=1 // pred_check_branch
      %82 = sbr.rel (0) target = $region29
    $region28: #{tpu_custom_call.1} parent=1 // pred_region
      %83 = dma.done [#allocation5], 1024
    $region29: #{tpu_custom_call.1} parent=1 // pred_fallthru
      _
    // Predicated region
    $region30: #{tpu_custom_call.1} parent=1 // pred_check
      _
    $region31: #{tpu_custom_call.1} parent=1 // pred_check_branch
      %85 = sbr.rel (0) target = $region33
    $region32: #{tpu_custom_call.1} parent=1 // pred_region
      %86 = dma.done [#allocation8], 64
    $region33: #{tpu_custom_call.1} parent=1 // pred_fallthru
      _
    // Predicated region
    $region34: #{tpu_custom_call.1} parent=1 // pred_check
      _
    $region35: #{tpu_custom_call.1} parent=1 // pred_check_branch
      %88 = sbr.rel (0) target = $region37
    $region36: #{tpu_custom_call.1} parent=1 // pred_region
      %89 = dma.done [#allocation8], 64
    $region37: #{tpu_custom_call.1} parent=1 // pred_fallthru
      _
    // Predicated region
    $region38: #{tpu_custom_call.1} parent=1 // pred_check
      _
    $region39: #{tpu_custom_call.1} parent=1 // pred_check_branch
      %91 = sbr.rel (0) target = $region41
    $region40: #{tpu_custom_call.1} parent=1 // pred_region
      %92 = dma.done [#allocation11], 8192
    $region41: #{tpu_custom_call.1} parent=1 // pred_fallthru
      _
    // Predicated region
    $region42: #{tpu_custom_call.1} parent=1 // pred_check
      _
    $region43: #{tpu_custom_call.1} parent=1 // pred_check_branch
      %94 = sbr.rel (0) target = $region45
    $region44: #{tpu_custom_call.1} parent=1 // pred_region
      %95 = dma.done [#allocation11], 16384
    $region45: #{tpu_custom_call.1} parent=1 // pred_fallthru
      _
    %p96 = scmp.eq.s32.totalorder 0, 0
    // Predicated region
    $region46: #{tpu_custom_call.1} parent=1 // pred_check
      %p97 = pneg %p96
    $region47: #{tpu_custom_call.1} parent=1 // pred_check_branch
      %99 = sbr.rel (%p97) target = $region49
    $region48: #{tpu_custom_call.1} parent=1 // pred_region
      %v100 = vld [vmem:[#allocation7] sm:$0x3]
      %v101 = vld [vmem:[#allocation7 + $0x2] sm:$0x3]
      %102 = vst [vmem:[#allocation2] sm:$0x3] %v100
      %103 = vst [vmem:[#allocation2 + $0x2] sm:$0x3] %v101
      %v104 = vld [vmem:[#allocation9] sm:$0x3]
      %v105 = vld [vmem:[#allocation9 + $0x2] sm:$0x3]
      %106 = vst [vmem:[#allocation3] sm:$0x3] %v104
      %107 = vst [vmem:[#allocation3 + $0x2] sm:$0x3] %v105
    $region49: #{tpu_custom_call.1} parent=1 // pred_fallthru
      _
    %s108 = smul.u32 0, 8
    %v109 = vld [vmem:[#allocation2] sm:$0x3]
    %s110 = scalar_lea.vmem [#allocation2], 2
    %v111 = vld [vmem:[%s110] sm:$0x3]
    %v112 = vld [vmem:[#allocation3] sm:$0x3]
    %s113 = scalar_lea.vmem [#allocation3], 2
    %v114 = vld [vmem:[%s113] sm:$0x3]
    %v115 = vld [vmem:[%s5] sm:$0xf]
    %v116 = vld [vmem:[#allocation4] sm:$0xff]
    %v117 = vld [vmem:[#allocation10] sm:$0xff]
    %v118 = vld [vmem:[#allocation10 + $0x8] sm:$0xff]
    %v119 = vld [vmem:[#allocation10 + $0x10] sm:$0xff]
    %v120 = vld [vmem:[#allocation10 + $0x18] sm:$0xff]
    %v121 = vld [vmem:[#allocation10 + $0x20] sm:$0xff]
    %v122 = vld [vmem:[#allocation10 + $0x28] sm:$0xff]
    %v123 = vld [vmem:[#allocation10 + $0x30] sm:$0xff]
    %v124 = vld [vmem:[#allocation10 + $0x38] sm:$0xff]
    %v125 = vld [vmem:[#allocation10 + $0x40] sm:$0xff]
    %v126 = vld [vmem:[#allocation10 + $0x48] sm:$0xff]
    %v127 = vld [vmem:[#allocation10 + $0x50] sm:$0xff]
    %v128 = vld [vmem:[#allocation10 + $0x58] sm:$0xff]
    %v129 = vld [vmem:[#allocation10 + $0x60] sm:$0xff]
    %v130 = vld [vmem:[#allocation10 + $0x68] sm:$0xff]
    %v131 = vld [vmem:[#allocation10 + $0x70] sm:$0xff]
    %v132 = vld [vmem:[#allocation10 + $0x78] sm:$0xff]
    %v133 = vld [vmem:[#allocation10 + $0x80] sm:$0xff]
    %v134 = vld [vmem:[#allocation10 + $0x88] sm:$0xff]
    %v135 = vld [vmem:[#allocation10 + $0x90] sm:$0xff]
    %v136 = vld [vmem:[#allocation10 + $0x98] sm:$0xff]
    %v137 = vld [vmem:[#allocation10 + $0xa0] sm:$0xff]
    %v138 = vld [vmem:[#allocation10 + $0xa8] sm:$0xff]
    %v139 = vld [vmem:[#allocation10 + $0xb0] sm:$0xff]
    %v140 = vld [vmem:[#allocation10 + $0xb8] sm:$0xff]
    %v141 = vld [vmem:[#allocation10 + $0xc0] sm:$0xff]
    %v142 = vld [vmem:[#allocation10 + $0xc8] sm:$0xff]
    %v143 = vld [vmem:[#allocation10 + $0xd0] sm:$0xff]
    %v144 = vld [vmem:[#allocation10 + $0xd8] sm:$0xff]
    %v145 = vld [vmem:[#allocation10 + $0xe0] sm:$0xff]
    %v146 = vld [vmem:[#allocation10 + $0xe8] sm:$0xff]
    %v147 = vld [vmem:[#allocation10 + $0xf0] sm:$0xff]
    %v148 = vld [vmem:[#allocation10 + $0xf8] sm:$0xff]
    %v149 = vld [vmem:[#allocation10 + $0x100] sm:$0xff]
    %v150 = vld [vmem:[#allocation10 + $0x108] sm:$0xff]
    %v151 = vld [vmem:[#allocation10 + $0x110] sm:$0xff]
    %v152 = vld [vmem:[#allocation10 + $0x118] sm:$0xff]
    %v153 = vld [vmem:[#allocation10 + $0x120] sm:$0xff]
    %v154 = vld [vmem:[#allocation10 + $0x128] sm:$0xff]
    %v155 = vld [vmem:[#allocation10 + $0x130] sm:$0xff]
    %v156 = vld [vmem:[#allocation10 + $0x138] sm:$0xff]
    %v157 = vld [vmem:[#allocation10 + $0x140] sm:$0xff]
    %v158 = vld [vmem:[#allocation10 + $0x148] sm:$0xff]
    %v159 = vld [vmem:[#allocation10 + $0x150] sm:$0xff]
    %v160 = vld [vmem:[#allocation10 + $0x158] sm:$0xff]
    %v161 = vld [vmem:[#allocation10 + $0x160] sm:$0xff]
    %v162 = vld [vmem:[#allocation10 + $0x168] sm:$0xff]
    %v163 = vld [vmem:[#allocation10 + $0x170] sm:$0xff]
    %v164 = vld [vmem:[#allocation10 + $0x178] sm:$0xff]
    %v165 = vld [vmem:[#allocation10 + $0x180] sm:$0xff]
    %v166 = vld [vmem:[#allocation10 + $0x188] sm:$0xff]
    %v167 = vld [vmem:[#allocation10 + $0x190] sm:$0xff]
    %v168 = vld [vmem:[#allocation10 + $0x198] sm:$0xff]
    %v169 = vld [vmem:[#allocation10 + $0x1a0] sm:$0xff]
    %v170 = vld [vmem:[#allocation10 + $0x1a8] sm:$0xff]
    %v171 = vld [vmem:[#allocation10 + $0x1b0] sm:$0xff]
    %v172 = vld [vmem:[#allocation10 + $0x1b8] sm:$0xff]
    %v173 = vld [vmem:[#allocation10 + $0x1c0] sm:$0xff]
    %v174 = vld [vmem:[#allocation10 + $0x1c8] sm:$0xff]
    %v175 = vld [vmem:[#allocation10 + $0x1d0] sm:$0xff]
    %v176 = vld [vmem:[#allocation10 + $0x1d8] sm:$0xff]
    %v177 = vld [vmem:[#allocation10 + $0x1e0] sm:$0xff]
    %v178 = vld [vmem:[#allocation10 + $0x1e8] sm:$0xff]
    %v179 = vld [vmem:[#allocation10 + $0x1f0] sm:$0xff]
    %v180 = vld [vmem:[#allocation10 + $0x1f8] sm:$0xff]
    %181 = vmatprep.subr.mxu0 %v178
    %182 = vmatpush1.msra.mxu0 %v177
    %183 = vmatprep.subr.mxu0 %v174
    %184 = vmatpush1.msra.mxu0 %v173
    %185 = vmatprep.subr.mxu0 %v170
    %186 = vmatpush1.msra.mxu0 %v169
    %187 = vmatprep.subr.mxu0 %v166
    %188 = vmatpush1.msra.mxu0 %v165
    %189 = vmatprep.subr.mxu0 %v162
    %190 = vmatpush1.msra.mxu0 %v161
    %191 = vmatprep.subr.mxu0 %v158
    %192 = vmatpush1.msra.mxu0 %v157
    %193 = vmatprep.subr.mxu0 %v154
    %194 = vmatpush1.msra.mxu0 %v153
    %195 = vmatprep.subr.mxu0 %v150
    %196 = vmatpush1.msra.mxu0 %v149
    %197 = vmatprep.subr.mxu0 %v146
    %198 = vmatpush1.msra.mxu0 %v145
    %199 = vmatprep.subr.mxu0 %v142
    %200 = vmatpush1.msra.mxu0 %v141
    %201 = vmatprep.subr.mxu0 %v138
    %202 = vmatpush1.msra.mxu0 %v137
    %203 = vmatprep.subr.mxu0 %v134
    %204 = vmatpush1.msra.mxu0 %v133
    %205 = vmatprep.subr.mxu0 %v130
    %206 = vmatpush1.msra.mxu0 %v129
    %207 = vmatprep.subr.mxu0 %v126
    %208 = vmatpush1.msra.mxu0 %v125
    %209 = vmatprep.subr.mxu0 %v122
    %210 = vmatpush1.msra.mxu0 %v121
    %211 = vmatprep.subr.mxu0 %v118
    %212 = vmatpush1.msra.mxu0 %v117
    %213 = vmatprep.subr.mxu0 0.0
    %214 = vmatpush2.msra.mxu0 0.0
    %215 = vmatprep.subr.mxu0 0.0
    %216 = vmatpush2.msra.mxu0 0.0
    %217 = vmatprep.subr.mxu0 0.0
    %218 = vmatpush2.msra.mxu0 0.0
    %219 = vmatprep.subr.mxu0 0.0
    %220 = vmatpush2.msra.mxu0 0.0
    %221 = vmatprep.subr.mxu0 0.0
    %222 = vmatpush2.msra.mxu0 0.0
    %223 = vmatprep.subr.mxu0 0.0
    %224 = vmatpush2.msra.mxu0 0.0
    %225 = vmatprep.subr.mxu0 0.0
    %226 = vmatpush2.msra.mxu0 0.0
    %227 = vmatprep.subr.mxu0 0.0
    %228 = vmatpush2.msra.mxu0 0.0
    %229 = vmatprep.subr.mxu0 0.0
    %230 = vmatpush2.msra.mxu0 0.0
    %231 = vmatprep.subr.mxu0 0.0
    %232 = vmatpush2.msra.mxu0 0.0
    %233 = vmatprep.subr.mxu0 0.0
    %234 = vmatpush2.msra.mxu0 0.0
    %235 = vmatprep.subr.mxu0 0.0
    %236 = vmatpush2.msra.mxu0 0.0
    %237 = vmatprep.subr.mxu0 0.0
    %238 = vmatpush2.msra.mxu0 0.0
    %239 = vmatprep.subr.mxu0 0.0
    %240 = vmatpush2.msra.mxu0 0.0
    %241 = vmatprep.subr.mxu0 0.0
    %242 = vmatpush2.msra.mxu0 0.0
    %243 = vmatprep.subr.mxu0 0.0
    %244 = vmatpush2.msra.mxu0 0.0
    %245 = vmatprep.mubr.f32.mxu0 0.0
    %246 = vmatmul.mubr.f32.gmra.mxu0 %v109
    %v247 = vpop.f32.mrf.mxu0
    %v248 = vadd.f32 0.0, %v247
    %v249 = vpop.f32.mrf.mxu0
    %v250 = vadd.f32 0.0, %v249
    %251 = vdwg.mxu0
    %252 = vmatprep.subr.mxu0 %v180
    %253 = vmatpush1.msra.mxu0 %v179
    %254 = vmatprep.subr.mxu0 %v176
    %255 = vmatpush1.msra.mxu0 %v175
    %256 = vmatprep.subr.mxu0 %v172
    %257 = vmatpush1.msra.mxu0 %v171
    %258 = vmatprep.subr.mxu0 %v168
    %259 = vmatpush1.msra.mxu0 %v167
    %260 = vmatprep.subr.mxu0 %v164
    %261 = vmatpush1.msra.mxu0 %v163
    %262 = vmatprep.subr.mxu0 %v160
    %263 = vmatpush1.msra.mxu0 %v159
    %264 = vmatprep.subr.mxu0 %v156
    %265 = vmatpush1.msra.mxu0 %v155
    %266 = vmatprep.subr.mxu0 %v152
    %267 = vmatpush1.msra.mxu0 %v151
    %268 = vmatprep.subr.mxu0 %v148
    %269 = vmatpush1.msra.mxu0 %v147
    %270 = vmatprep.subr.mxu0 %v144
    %271 = vmatpush1.msra.mxu0 %v143
    %272 = vmatprep.subr.mxu0 %v140
    %273 = vmatpush1.msra.mxu0 %v139
    %274 = vmatprep.subr.mxu0 %v136
    %275 = vmatpush1.msra.mxu0 %v135
    %276 = vmatprep.subr.mxu0 %v132
    %277 = vmatpush1.msra.mxu0 %v131
    %278 = vmatprep.subr.mxu0 %v128
    %279 = vmatpush1.msra.mxu0 %v127
    %280 = vmatprep.subr.mxu0 %v124
    %281 = vmatpush1.msra.mxu0 %v123
    %282 = vmatprep.subr.mxu0 %v120
    %283 = vmatpush1.msra.mxu0 %v119
    %284 = vmatprep.subr.mxu0 0.0
    %285 = vmatpush2.msra.mxu0 0.0
    %286 = vmatprep.subr.mxu0 0.0
    %287 = vmatpush2.msra.mxu0 0.0
    %288 = vmatprep.subr.mxu0 0.0
    %289 = vmatpush2.msra.mxu0 0.0
    %290 = vmatprep.subr.mxu0 0.0
    %291 = vmatpush2.msra.mxu0 0.0
    %292 = vmatprep.subr.mxu0 0.0
    %293 = vmatpush2.msra.mxu0 0.0
    %294 = vmatprep.subr.mxu0 0.0
    %295 = vmatpush2.msra.mxu0 0.0
    %296 = vmatprep.subr.mxu0 0.0
    %297 = vmatpush2.msra.mxu0 0.0
    %298 = vmatprep.subr.mxu0 0.0
    %299 = vmatpush2.msra.mxu0 0.0
    %300 = vmatprep.subr.mxu0 0.0
    %301 = vmatpush2.msra.mxu0 0.0
    %302 = vmatprep.subr.mxu0 0.0
    %303 = vmatpush2.msra.mxu0 0.0
    %304 = vmatprep.subr.mxu0 0.0
    %305 = vmatpush2.msra.mxu0 0.0
    %306 = vmatprep.subr.mxu0 0.0
    %307 = vmatpush2.msra.mxu0 0.0
    %308 = vmatprep.subr.mxu0 0.0
    %309 = vmatpush2.msra.mxu0 0.0
    %310 = vmatprep.subr.mxu0 0.0
    %311 = vmatpush2.msra.mxu0 0.0
    %312 = vmatprep.subr.mxu0 0.0
    %313 = vmatpush2.msra.mxu0 0.0
    %314 = vmatprep.subr.mxu0 0.0
    %315 = vmatpush2.msra.mxu0 0.0
    %316 = vmatprep.mubr.f32.mxu0 0.0
    %317 = vmatmul.mubr.f32.gmra.mxu0 %v109
    %v318 = vpop.f32.mrf.mxu0
    %v319 = vadd.f32 0.0, %v318
    %v320 = vpop.f32.mrf.mxu0
    %v321 = vadd.f32 0.0, %v320
    %322 = vdwg.mxu0
    %v327 = vcombine.low %v248, %v250
    %v328 = vcombine.low %v319, %v321
    %v330 = vunpack.c.l.s4 1983009808
    %v331 = vunpack.c.0.s8 %v330
    %v332 = vlaneseq
    %v333 = vshrl.u32 %v332, 7
    %v334 = vsub.s32 %v331, %v333
    %v335 = vrot.slane %v327, %v334
    %v337 = vunpack.c.l.s4 1983009808
    %v338 = vunpack.c.0.s8 %v337
    %v339 = vlaneseq
    %v340 = vshrl.u32 %v339, 7
    %v341 = vsub.s32 %v338, %v340
    %v342 = vrot.slane %v328, %v341
    %v343 = vcombine.low %v335, %v342
    %v345 = vadd.f32 %v116, %v343
    %v346 = vmul.f32 %v345, 0.5
    %v347 = vtanh.pop %v346
    %v348 = vmul.f32 %v347, 0.5
    %v349 = vadd.f32 %v348, 0.5
    %v351 = vrot.slane %v345, 2
    %v353 = vmul.f32 %v351, 0.5
    %v354 = vtanh.pop %v353
    %v355 = vmul.f32 %v354, 0.5
    %v356 = vadd.f32 %v355, 0.5
    %v357 = vrot.slane %v345, 4
    %v359 = vmul.f32 %v357, 0.5
    %v360 = vtanh.pop %v359
    %v361 = vmul.f32 %v360, 0.5
    %v362 = vadd.f32 %v361, 0.5
    %v363 = vrot.slane %v345, 6
    %v365 = vtanh.pop %v363
    %v366 = vmul.f32 %v356, %v112
    %v367 = vmul.f32 %v349, %v365
    %v368 = vadd.f32 %v366, %v367
    %v369 = vtanh.pop %v368
    %v370 = vmul.f32 %v362, %v369
    %v371 = vld [vmem:[#allocation12] sm:$0xff]
    %v372 = vld [vmem:[#allocation12 + $0x8] sm:$0xff]
    %v373 = vld [vmem:[#allocation12 + $0x10] sm:$0xff]
    %v374 = vld [vmem:[#allocation12 + $0x18] sm:$0xff]
    %v375 = vld [vmem:[#allocation12 + $0x20] sm:$0xff]
    %v376 = vld [vmem:[#allocation12 + $0x28] sm:$0xff]
    %v377 = vld [vmem:[#allocation12 + $0x30] sm:$0xff]
    %v378 = vld [vmem:[#allocation12 + $0x38] sm:$0xff]
    %v379 = vld [vmem:[#allocation12 + $0x40] sm:$0xff]
    %v380 = vld [vmem:[#allocation12 + $0x48] sm:$0xff]
    %v381 = vld [vmem:[#allocation12 + $0x50] sm:$0xff]
    %v382 = vld [vmem:[#allocation12 + $0x58] sm:$0xff]
    %v383 = vld [vmem:[#allocation12 + $0x60] sm:$0xff]
    %v384 = vld [vmem:[#allocation12 + $0x68] sm:$0xff]
    %v385 = vld [vmem:[#allocation12 + $0x70] sm:$0xff]
    %v386 = vld [vmem:[#allocation12 + $0x78] sm:$0xff]
    %v387 = vld [vmem:[#allocation12 + $0x80] sm:$0xff]
    %v388 = vld [vmem:[#allocation12 + $0x88] sm:$0xff]
    %v389 = vld [vmem:[#allocation12 + $0x90] sm:$0xff]
    %v390 = vld [vmem:[#allocation12 + $0x98] sm:$0xff]
    %v391 = vld [vmem:[#allocation12 + $0xa0] sm:$0xff]
    %v392 = vld [vmem:[#allocation12 + $0xa8] sm:$0xff]
    %v393 = vld [vmem:[#allocation12 + $0xb0] sm:$0xff]
    %v394 = vld [vmem:[#allocation12 + $0xb8] sm:$0xff]
    %v395 = vld [vmem:[#allocation12 + $0xc0] sm:$0xff]
    %v396 = vld [vmem:[#allocation12 + $0xc8] sm:$0xff]
    %v397 = vld [vmem:[#allocation12 + $0xd0] sm:$0xff]
    %v398 = vld [vmem:[#allocation12 + $0xd8] sm:$0xff]
    %v399 = vld [vmem:[#allocation12 + $0xe0] sm:$0xff]
    %v400 = vld [vmem:[#allocation12 + $0xe8] sm:$0xff]
    %v401 = vld [vmem:[#allocation12 + $0xf0] sm:$0xff]
    %v402 = vld [vmem:[#allocation12 + $0xf8] sm:$0xff]
    %v403 = vld [vmem:[#allocation12 + $0x100] sm:$0xff]
    %v404 = vld [vmem:[#allocation12 + $0x108] sm:$0xff]
    %v405 = vld [vmem:[#allocation12 + $0x110] sm:$0xff]
    %v406 = vld [vmem:[#allocation12 + $0x118] sm:$0xff]
    %v407 = vld [vmem:[#allocation12 + $0x120] sm:$0xff]
    %v408 = vld [vmem:[#allocation12 + $0x128] sm:$0xff]
    %v409 = vld [vmem:[#allocation12 + $0x130] sm:$0xff]
    %v410 = vld [vmem:[#allocation12 + $0x138] sm:$0xff]
    %v411 = vld [vmem:[#allocation12 + $0x140] sm:$0xff]
    %v412 = vld [vmem:[#allocation12 + $0x148] sm:$0xff]
    %v413 = vld [vmem:[#allocation12 + $0x150] sm:$0xff]
    %v414 = vld [vmem:[#allocation12 + $0x158] sm:$0xff]
    %v415 = vld [vmem:[#allocation12 + $0x160] sm:$0xff]
    %v416 = vld [vmem:[#allocation12 + $0x168] sm:$0xff]
    %v417 = vld [vmem:[#allocation12 + $0x170] sm:$0xff]
    %v418 = vld [vmem:[#allocation12 + $0x178] sm:$0xff]
    %v419 = vld [vmem:[#allocation12 + $0x180] sm:$0xff]
    %v420 = vld [vmem:[#allocation12 + $0x188] sm:$0xff]
    %v421 = vld [vmem:[#allocation12 + $0x190] sm:$0xff]
    %v422 = vld [vmem:[#allocation12 + $0x198] sm:$0xff]
    %v423 = vld [vmem:[#allocation12 + $0x1a0] sm:$0xff]
    %v424 = vld [vmem:[#allocation12 + $0x1a8] sm:$0xff]
    %v425 = vld [vmem:[#allocation12 + $0x1b0] sm:$0xff]
    %v426 = vld [vmem:[#allocation12 + $0x1b8] sm:$0xff]
    %v427 = vld [vmem:[#allocation12 + $0x1c0] sm:$0xff]
    %v428 = vld [vmem:[#allocation12 + $0x1c8] sm:$0xff]
    %v429 = vld [vmem:[#allocation12 + $0x1d0] sm:$0xff]
    %v430 = vld [vmem:[#allocation12 + $0x1d8] sm:$0xff]
    %v431 = vld [vmem:[#allocation12 + $0x1e0] sm:$0xff]
    %v432 = vld [vmem:[#allocation12 + $0x1e8] sm:$0xff]
    %v433 = vld [vmem:[#allocation12 + $0x1f0] sm:$0xff]
    %v434 = vld [vmem:[#allocation12 + $0x1f8] sm:$0xff]
    %v435 = vld [vmem:[#allocation12 + $0x200] sm:$0xff]
    %v436 = vld [vmem:[#allocation12 + $0x208] sm:$0xff]
    %v437 = vld [vmem:[#allocation12 + $0x210] sm:$0xff]
    %v438 = vld [vmem:[#allocation12 + $0x218] sm:$0xff]
    %v439 = vld [vmem:[#allocation12 + $0x220] sm:$0xff]
    %v440 = vld [vmem:[#allocation12 + $0x228] sm:$0xff]
    %v441 = vld [vmem:[#allocation12 + $0x230] sm:$0xff]
    %v442 = vld [vmem:[#allocation12 + $0x238] sm:$0xff]
    %v443 = vld [vmem:[#allocation12 + $0x240] sm:$0xff]
    %v444 = vld [vmem:[#allocation12 + $0x248] sm:$0xff]
    %v445 = vld [vmem:[#allocation12 + $0x250] sm:$0xff]
    %v446 = vld [vmem:[#allocation12 + $0x258] sm:$0xff]
    %v447 = vld [vmem:[#allocation12 + $0x260] sm:$0xff]
    %v448 = vld [vmem:[#allocation12 + $0x268] sm:$0xff]
    %v449 = vld [vmem:[#allocation12 + $0x270] sm:$0xff]
    %v450 = vld [vmem:[#allocation12 + $0x278] sm:$0xff]
    %v451 = vld [vmem:[#allocation12 + $0x280] sm:$0xff]
    %v452 = vld [vmem:[#allocation12 + $0x288] sm:$0xff]
    %v453 = vld [vmem:[#allocation12 + $0x290] sm:$0xff]
    %v454 = vld [vmem:[#allocation12 + $0x298] sm:$0xff]
    %v455 = vld [vmem:[#allocation12 + $0x2a0] sm:$0xff]
    %v456 = vld [vmem:[#allocation12 + $0x2a8] sm:$0xff]
    %v457 = vld [vmem:[#allocation12 + $0x2b0] sm:$0xff]
    %v458 = vld [vmem:[#allocation12 + $0x2b8] sm:$0xff]
    %v459 = vld [vmem:[#allocation12 + $0x2c0] sm:$0xff]
    %v460 = vld [vmem:[#allocation12 + $0x2c8] sm:$0xff]
    %v461 = vld [vmem:[#allocation12 + $0x2d0] sm:$0xff]
    %v462 = vld [vmem:[#allocation12 + $0x2d8] sm:$0xff]
    %v463 = vld [vmem:[#allocation12 + $0x2e0] sm:$0xff]
    %v464 = vld [vmem:[#allocation12 + $0x2e8] sm:$0xff]
    %v465 = vld [vmem:[#allocation12 + $0x2f0] sm:$0xff]
    %v466 = vld [vmem:[#allocation12 + $0x2f8] sm:$0xff]
    %v467 = vld [vmem:[#allocation12 + $0x300] sm:$0xff]
    %v468 = vld [vmem:[#allocation12 + $0x308] sm:$0xff]
    %v469 = vld [vmem:[#allocation12 + $0x310] sm:$0xff]
    %v470 = vld [vmem:[#allocation12 + $0x318] sm:$0xff]
    %v471 = vld [vmem:[#allocation12 + $0x320] sm:$0xff]
    %v472 = vld [vmem:[#allocation12 + $0x328] sm:$0xff]
    %v473 = vld [vmem:[#allocation12 + $0x330] sm:$0xff]
    %v474 = vld [vmem:[#allocation12 + $0x338] sm:$0xff]
    %v475 = vld [vmem:[#allocation12 + $0x340] sm:$0xff]
    %v476 = vld [vmem:[#allocation12 + $0x348] sm:$0xff]
    %v477 = vld [vmem:[#allocation12 + $0x350] sm:$0xff]
    %v478 = vld [vmem:[#allocation12 + $0x358] sm:$0xff]
    %v479 = vld [vmem:[#allocation12 + $0x360] sm:$0xff]
    %v480 = vld [vmem:[#allocation12 + $0x368] sm:$0xff]
    %v481 = vld [vmem:[#allocation12 + $0x370] sm:$0xff]
    %v482 = vld [vmem:[#allocation12 + $0x378] sm:$0xff]
    %v483 = vld [vmem:[#allocation12 + $0x380] sm:$0xff]
    %v484 = vld [vmem:[#allocation12 + $0x388] sm:$0xff]
    %v485 = vld [vmem:[#allocation12 + $0x390] sm:$0xff]
    %v486 = vld [vmem:[#allocation12 + $0x398] sm:$0xff]
    %v487 = vld [vmem:[#allocation12 + $0x3a0] sm:$0xff]
    %v488 = vld [vmem:[#allocation12 + $0x3a8] sm:$0xff]
    %v489 = vld [vmem:[#allocation12 + $0x3b0] sm:$0xff]
    %v490 = vld [vmem:[#allocation12 + $0x3b8] sm:$0xff]
    %v491 = vld [vmem:[#allocation12 + $0x3c0] sm:$0xff]
    %v492 = vld [vmem:[#allocation12 + $0x3c8] sm:$0xff]
    %v493 = vld [vmem:[#allocation12 + $0x3d0] sm:$0xff]
    %v494 = vld [vmem:[#allocation12 + $0x3d8] sm:$0xff]
    %v495 = vld [vmem:[#allocation12 + $0x3e0] sm:$0xff]
    %v496 = vld [vmem:[#allocation12 + $0x3e8] sm:$0xff]
    %v497 = vld [vmem:[#allocation12 + $0x3f0] sm:$0xff]
    %v498 = vld [vmem:[#allocation12 + $0x3f8] sm:$0xff]
    %v500 = vlaneseq
    %v501 = vshrl.u32 %v500, 7
    %v502 = vsub.s32 0, %v501
    %v503 = vrot.slane %v115, %v502
    %v504 = vlaneseq
    %v505 = vshrl.u32 %v504, 7
    %v506 = vsub.s32 1, %v505
    %v507 = vrot.slane %v115, %v506
    %v508 = vlaneseq
    %v509 = vshrl.u32 %v508, 7
    %v510 = vsub.s32 2, %v509
    %v511 = vrot.slane %v115, %v510
    %v512 = vlaneseq
    %v513 = vshrl.u32 %v512, 7
    %v514 = vsub.s32 3, %v513
    %v515 = vrot.slane %v115, %v514
    %520 = vmatprep.subr.mxu0 %v432
    %521 = vmatpush1.msra.mxu0 %v431
    %522 = vmatprep.subr.mxu0 %v428
    %523 = vmatpush1.msra.mxu0 %v427
    %524 = vmatprep.subr.mxu0 %v424
    %525 = vmatpush1.msra.mxu0 %v423
    %526 = vmatprep.subr.mxu0 %v420
    %527 = vmatpush1.msra.mxu0 %v419
    %528 = vmatprep.subr.mxu0 %v416
    %529 = vmatpush1.msra.mxu0 %v415
    %530 = vmatprep.subr.mxu0 %v412
    %531 = vmatpush1.msra.mxu0 %v411
    %532 = vmatprep.subr.mxu0 %v408
    %533 = vmatpush1.msra.mxu0 %v407
    %534 = vmatprep.subr.mxu0 %v404
    %535 = vmatpush1.msra.mxu0 %v403
    %536 = vmatprep.subr.mxu0 %v400
    %537 = vmatpush1.msra.mxu0 %v399
    %538 = vmatprep.subr.mxu0 %v396
    %539 = vmatpush1.msra.mxu0 %v395
    %540 = vmatprep.subr.mxu0 %v392
    %541 = vmatpush1.msra.mxu0 %v391
    %542 = vmatprep.subr.mxu0 %v388
    %543 = vmatpush1.msra.mxu0 %v387
    %544 = vmatprep.subr.mxu0 %v384
    %545 = vmatpush1.msra.mxu0 %v383
    %546 = vmatprep.subr.mxu0 %v380
    %547 = vmatpush1.msra.mxu0 %v379
    %548 = vmatprep.subr.mxu0 %v376
    %549 = vmatpush1.msra.mxu0 %v375
    %550 = vmatprep.subr.mxu0 %v372
    %551 = vmatpush1.msra.mxu0 %v371
    %552 = vmatprep.subr.mxu0 %v496
    %553 = vmatpush2.msra.mxu0 %v495
    %554 = vmatprep.subr.mxu0 %v492
    %555 = vmatpush2.msra.mxu0 %v491
    %556 = vmatprep.subr.mxu0 %v488
    %557 = vmatpush2.msra.mxu0 %v487
    %558 = vmatprep.subr.mxu0 %v484
    %559 = vmatpush2.msra.mxu0 %v483
    %560 = vmatprep.subr.mxu0 %v480
    %561 = vmatpush2.msra.mxu0 %v479
    %562 = vmatprep.subr.mxu0 %v476
    %563 = vmatpush2.msra.mxu0 %v475
    %564 = vmatprep.subr.mxu0 %v472
    %565 = vmatpush2.msra.mxu0 %v471
    %566 = vmatprep.subr.mxu0 %v468
    %567 = vmatpush2.msra.mxu0 %v467
    %568 = vmatprep.subr.mxu0 %v464
    %569 = vmatpush2.msra.mxu0 %v463
    %570 = vmatprep.subr.mxu0 %v460
    %571 = vmatpush2.msra.mxu0 %v459
    %572 = vmatprep.subr.mxu0 %v456
    %573 = vmatpush2.msra.mxu0 %v455
    %574 = vmatprep.subr.mxu0 %v452
    %575 = vmatpush2.msra.mxu0 %v451
    %576 = vmatprep.subr.mxu0 %v448
    %577 = vmatpush2.msra.mxu0 %v447
    %578 = vmatprep.subr.mxu0 %v444
    %579 = vmatpush2.msra.mxu0 %v443
    %580 = vmatprep.subr.mxu0 %v440
    %581 = vmatpush2.msra.mxu0 %v439
    %582 = vmatprep.subr.mxu0 %v436
    %583 = vmatpush2.msra.mxu0 %v435
    %584 = vmatprep.mubr.f32.mxu0 %v111
    %585 = vmatmul.mubr.f32.gmra.mxu0 %v370
    %v586 = vpop.f32.mrf.mxu0
    %v587 = vadd.f32 %v503, %v586
    %v588 = vpop.f32.mrf.mxu0
    %v589 = vadd.f32 %v507, %v588
    %590 = vdwg.mxu0
    %591 = vmatprep.subr.mxu0 %v434
    %592 = vmatpush1.msra.mxu0 %v433
    %593 = vmatprep.subr.mxu0 %v430
    %594 = vmatpush1.msra.mxu0 %v429
    %595 = vmatprep.subr.mxu0 %v426
    %596 = vmatpush1.msra.mxu0 %v425
    %597 = vmatprep.subr.mxu0 %v422
    %598 = vmatpush1.msra.mxu0 %v421
    %599 = vmatprep.subr.mxu0 %v418
    %600 = vmatpush1.msra.mxu0 %v417
    %601 = vmatprep.subr.mxu0 %v414
    %602 = vmatpush1.msra.mxu0 %v413
    %603 = vmatprep.subr.mxu0 %v410
    %604 = vmatpush1.msra.mxu0 %v409
    %605 = vmatprep.subr.mxu0 %v406
    %606 = vmatpush1.msra.mxu0 %v405
    %607 = vmatprep.subr.mxu0 %v402
    %608 = vmatpush1.msra.mxu0 %v401
    %609 = vmatprep.subr.mxu0 %v398
    %610 = vmatpush1.msra.mxu0 %v397
    %611 = vmatprep.subr.mxu0 %v394
    %612 = vmatpush1.msra.mxu0 %v393
    %613 = vmatprep.subr.mxu0 %v390
    %614 = vmatpush1.msra.mxu0 %v389
    %615 = vmatprep.subr.mxu0 %v386
    %616 = vmatpush1.msra.mxu0 %v385
    %617 = vmatprep.subr.mxu0 %v382
    %618 = vmatpush1.msra.mxu0 %v381
    %619 = vmatprep.subr.mxu0 %v378
    %620 = vmatpush1.msra.mxu0 %v377
    %621 = vmatprep.subr.mxu0 %v374
    %622 = vmatpush1.msra.mxu0 %v373
    %623 = vmatprep.subr.mxu0 %v498
    %624 = vmatpush2.msra.mxu0 %v497
    %625 = vmatprep.subr.mxu0 %v494
    %626 = vmatpush2.msra.mxu0 %v493
    %627 = vmatprep.subr.mxu0 %v490
    %628 = vmatpush2.msra.mxu0 %v489
    %629 = vmatprep.subr.mxu0 %v486
    %630 = vmatpush2.msra.mxu0 %v485
    %631 = vmatprep.subr.mxu0 %v482
    %632 = vmatpush2.msra.mxu0 %v481
    %633 = vmatprep.subr.mxu0 %v478
    %634 = vmatpush2.msra.mxu0 %v477
    %635 = vmatprep.subr.mxu0 %v474
    %636 = vmatpush2.msra.mxu0 %v473
    %637 = vmatprep.subr.mxu0 %v470
    %638 = vmatpush2.msra.mxu0 %v469
    %639 = vmatprep.subr.mxu0 %v466
    %640 = vmatpush2.msra.mxu0 %v465
    %641 = vmatprep.subr.mxu0 %v462
    %642 = vmatpush2.msra.mxu0 %v461
    %643 = vmatprep.subr.mxu0 %v458
    %644 = vmatpush2.msra.mxu0 %v457
    %645 = vmatprep.subr.mxu0 %v454
    %646 = vmatpush2.msra.mxu0 %v453
    %647 = vmatprep.subr.mxu0 %v450
    %648 = vmatpush2.msra.mxu0 %v449
    %649 = vmatprep.subr.mxu0 %v446
    %650 = vmatpush2.msra.mxu0 %v445
    %651 = vmatprep.subr.mxu0 %v442
    %652 = vmatpush2.msra.mxu0 %v441
    %653 = vmatprep.subr.mxu0 %v438
    %654 = vmatpush2.msra.mxu0 %v437
    %655 = vmatprep.mubr.f32.mxu0 %v111
    %656 = vmatmul.mubr.f32.gmra.mxu0 %v370
    %v657 = vpop.f32.mrf.mxu0
    %v658 = vadd.f32 %v511, %v657
    %v659 = vpop.f32.mrf.mxu0
    %v660 = vadd.f32 %v515, %v659
    %661 = vdwg.mxu0
    %v662 = vmul.f32 %v587, 0.5
    %v663 = vtanh.pop %v662
    %v664 = vmul.f32 %v663, 0.5
    %v665 = vadd.f32 %v664, 0.5
    %v666 = vmul.f32 %v589, 0.5
    %v667 = vtanh.pop %v666
    %v668 = vmul.f32 %v667, 0.5
    %v669 = vadd.f32 %v668, 0.5
    %v670 = vmul.f32 %v658, 0.5
    %v671 = vtanh.pop %v670
    %v672 = vmul.f32 %v671, 0.5
    %v673 = vadd.f32 %v672, 0.5
    %v674 = vtanh.pop %v660
    %v675 = vmul.f32 %v669, %v114
    %v676 = vmul.f32 %v665, %v674
    %v677 = vadd.f32 %v675, %v676
    %v678 = vtanh.pop %v677
    %v679 = vmul.f32 %v673, %v678
    %680 = vst [vmem:[#allocation13] sm:$0x3] %v679
    %p681 = scmp.eq.s32.totalorder %s108, 7
    // Predicated region
    $region50: #{tpu_custom_call.1} parent=1 // pred_check
      %p682 = pneg %p681
    $region51: #{tpu_custom_call.1} parent=1 // pred_check_branch
      %684 = sbr.rel (%p682) target = $region53
    $region52: #{tpu_custom_call.1} parent=1 // pred_region
      %685 = vst [vmem:[#allocation14] sm:$0x3] %v370
      %686 = vst [vmem:[#allocation16] sm:$0x3] %v368
      %s687 = scalar_lea.vmem [#allocation14], 2
      %688 = vst [vmem:[%s687] sm:$0x3] %v679
      %s689 = scalar_lea.vmem [#allocation16], 2
      %690 = vst [vmem:[%s689] sm:$0x3] %v677
    $region53: #{tpu_custom_call.1} parent=1 // pred_fallthru
      _
    %s691 = scalar_lea.vmem [#allocation4], 8
    %v692 = vld [vmem:[%s691] sm:$0xff]
    %v693 = vld [vmem:[#allocation10] sm:$0xff]
    %v694 = vld [vmem:[#allocation10 + $0x8] sm:$0xff]
    %v695 = vld [vmem:[#allocation10 + $0x10] sm:$0xff]
    %v696 = vld [vmem:[#allocation10 + $0x18] sm:$0xff]
    %v697 = vld [vmem:[#allocation10 + $0x20] sm:$0xff]
    %v698 = vld [vmem:[#allocation10 + $0x28] sm:$0xff]
    %v699 = vld [vmem:[#allocation10 + $0x30] sm:$0xff]
    %v700 = vld [vmem:[#allocation10 + $0x38] sm:$0xff]
    %v701 = vld [vmem:[#allocation10 + $0x40] sm:$0xff]
    %v702 = vld [vmem:[#allocation10 + $0x48] sm:$0xff]
    %v703 = vld [vmem:[#allocation10 + $0x50] sm:$0xff]
    %v704 = vld [vmem:[#allocation10 + $0x58] sm:$0xff]
    %v705 = vld [vmem:[#allocation10 + $0x60] sm:$0xff]
    %v706 = vld [vmem:[#allocation10 + $0x68] sm:$0xff]
    %v707 = vld [vmem:[#allocation10 + $0x70] sm:$0xff]
    %v708 = vld [vmem:[#allocation10 + $0x78] sm:$0xff]
    %v709 = vld [vmem:[#allocation10 + $0x80] sm:$0xff]
    %v710 = vld [vmem:[#allocation10 + $0x88] sm:$0xff]
    %v711 = vld [vmem:[#allocation10 + $0x90] sm:$0xff]
    %v712 = vld [vmem:[#allocation10 + $0x98] sm:$0xff]
    %v713 = vld [vmem:[#allocation10 + $0xa0] sm:$0xff]
    %v714 = vld [vmem:[#allocation10 + $0xa8] sm:$0xff]
    %v715 = vld [vmem:[#allocation10 + $0xb0] sm:$0xff]
    %v716 = vld [vmem:[#allocation10 + $0xb8] sm:$0xff]
    %v717 = vld [vmem:[#allocation10 + $0xc0] sm:$0xff]
    %v718 = vld [vmem:[#allocation10 + $0xc8] sm:$0xff]
    %v719 = vld [vmem:[#allocation10 + $0xd0] sm:$0xff]
    %v720 = vld [vmem:[#allocation10 + $0xd8] sm:$0xff]
    %v721 = vld [vmem:[#allocation10 + $0xe0] sm:$0xff]
    %v722 = vld [vmem:[#allocation10 + $0xe8] sm:$0xff]
    %v723 = vld [vmem:[#allocation10 + $0xf0] sm:$0xff]
    %v724 = vld [vmem:[#allocation10 + $0xf8] sm:$0xff]
    %v725 = vld [vmem:[#allocation10 + $0x100] sm:$0xff]
    %v726 = vld [vmem:[#allocation10 + $0x108] sm:$0xff]
    %v727 = vld [vmem:[#allocation10 + $0x110] sm:$0xff]
    %v728 = vld [vmem:[#allocation10 + $0x118] sm:$0xff]
    %v729 = vld [vmem:[#allocation10 + $0x120] sm:$0xff]
    %v730 = vld [vmem:[#allocation10 + $0x128] sm:$0xff]
    %v731 = vld [vmem:[#allocation10 + $0x130] sm:$0xff]
    %v732 = vld [vmem:[#allocation10 + $0x138] sm:$0xff]
    %v733 = vld [vmem:[#allocation10 + $0x140] sm:$0xff]
    %v734 = vld [vmem:[#allocation10 + $0x148] sm:$0xff]
    %v735 = vld [vmem:[#allocation10 + $0x150] sm:$0xff]
    %v736 = vld [vmem:[#allocation10 + $0x158] sm:$0xff]
    %v737 = vld [vmem:[#allocation10 + $0x160] sm:$0xff]
    %v738 = vld [vmem:[#allocation10 + $0x168] sm:$0xff]
    %v739 = vld [vmem:[#allocation10 + $0x170] sm:$0xff]
    %v740 = vld [vmem:[#allocation10 + $0x178] sm:$0xff]
    %v741 = vld [vmem:[#allocation10 + $0x180] sm:$0xff]
    %v742 = vld [vmem:[#allocation10 + $0x188] sm:$0xff]
    %v743 = vld [vmem:[#allocation10 + $0x190] sm:$0xff]
    %v744 = vld [vmem:[#allocation10 + $0x198] sm:$0xff]
    %v745 = vld [vmem:[#allocation10 + $0x1a0] sm:$0xff]
    %v746 = vld [vmem:[#allocation10 + $0x1a8] sm:$0xff]
    %v747 = vld [vmem:[#allocation10 + $0x1b0] sm:$0xff]
    %v748 = vld [vmem:[#allocation10 + $0x1b8] sm:$0xff]
    %v749 = vld [vmem:[#allocation10 + $0x1c0] sm:$0xff]
    %v750 = vld [vmem:[#allocation10 + $0x1c8] sm:$0xff]
    %v751 = vld [vmem:[#allocation10 + $0x1d0] sm:$0xff]
    %v752 = vld [vmem:[#allocation10 + $0x1d8] sm:$0xff]
    %v753 = vld [vmem:[#allocation10 + $0x1e0] sm:$0xff]
    %v754 = vld [vmem:[#allocation10 + $0x1e8] sm:$0xff]
    %v755 = vld [vmem:[#allocation10 + $0x1f0] sm:$0xff]
    %v756 = vld [vmem:[#allocation10 + $0x1f8] sm:$0xff]
    %757 = vmatprep.subr.mxu0 %v754
    %758 = vmatpush1.msra.mxu0 %v753
    %759 = vmatprep.subr.mxu0 %v750
    %760 = vmatpush1.msra.mxu0 %v749
    %761 = vmatprep.subr.mxu0 %v746
    %762 = vmatpush1.msra.mxu0 %v745
    %763 = vmatprep.subr.mxu0 %v742
    %764 = vmatpush1.msra.mxu0 %v741
    %765 = vmatprep.subr.mxu0 %v738
    %766 = vmatpush1.msra.mxu0 %v737
    %767 = vmatprep.subr.mxu0 %v734
    %768 = vmatpush1.msra.mxu0 %v733
    %769 = vmatprep.subr.mxu0 %v730
    %770 = vmatpush1.msra.mxu0 %v729
    %771 = vmatprep.subr.mxu0 %v726
    %772 = vmatpush1.msra.mxu0 %v725
    %773 = vmatprep.subr.mxu0 %v722
    %774 = vmatpush1.msra.mxu0 %v721
    %775 = vmatprep.subr.mxu0 %v718
    %776 = vmatpush1.msra.mxu0 %v717
    %777 = vmatprep.subr.mxu0 %v714
    %778 = vmatpush1.msra.mxu0 %v713
    %779 = vmatprep.subr.mxu0 %v710
    %780 = vmatpush1.msra.mxu0 %v709
    %781 = vmatprep.subr.mxu0 %v706
    %782 = vmatpush1.msra.mxu0 %v705
    %783 = vmatprep.subr.mxu0 %v702
    %784 = vmatpush1.msra.mxu0 %v701
    %785 = vmatprep.subr.mxu0 %v698
    %786 = vmatpush1.msra.mxu0 %v697
    %787 = vmatprep.subr.mxu0 %v694
    %788 = vmatpush1.msra.mxu0 %v693
    %789 = vmatprep.subr.mxu0 0.0
    %790 = vmatpush2.msra.mxu0 0.0
    %791 = vmatprep.subr.mxu0 0.0
    %792 = vmatpush2.msra.mxu0 0.0
    %793 = vmatprep.subr.mxu0 0.0
    %794 = vmatpush2.msra.mxu0 0.0
    %795 = vmatprep.subr.mxu0 0.0
    %796 = vmatpush2.msra.mxu0 0.0
    %797 = vmatprep.subr.mxu0 0.0
    %798 = vmatpush2.msra.mxu0 0.0
    %799 = vmatprep.subr.mxu0 0.0
    %800 = vmatpush2.msra.mxu0 0.0
    %801 = vmatprep.subr.mxu0 0.0
    %802 = vmatpush2.msra.mxu0 0.0
    %803 = vmatprep.subr.mxu0 0.0
    %804 = vmatpush2.msra.mxu0 0.0
    %805 = vmatprep.subr.mxu0 0.0
    %806 = vmatpush2.msra.mxu0 0.0
    %807 = vmatprep.subr.mxu0 0.0
    %808 = vmatpush2.msra.mxu0 0.0
    %809 = vmatprep.subr.mxu0 0.0
    %810 = vmatpush2.msra.mxu0 0.0
    %811 = vmatprep.subr.mxu0 0.0
    %812 = vmatpush2.msra.mxu0 0.0
    %813 = vmatprep.subr.mxu0 0.0
    %814 = vmatpush2.msra.mxu0 0.0
    %815 = vmatprep.subr.mxu0 0.0
    %816 = vmatpush2.msra.mxu0 0.0
    %817 = vmatprep.subr.mxu0 0.0
    %818 = vmatpush2.msra.mxu0 0.0
    %819 = vmatprep.subr.mxu0 0.0
    %820 = vmatpush2.msra.mxu0 0.0
    %821 = vmatprep.mubr.f32.mxu0 0.0
    %822 = vmatmul.mubr.f32.gmra.mxu0 %v370
    %v823 = vpop.f32.mrf.mxu0
    %v824 = vadd.f32 0.0, %v823
    %v825 = vpop.f32.mrf.mxu0
    %v826 = vadd.f32 0.0, %v825
    %827 = vdwg.mxu0
    %828 = vmatprep.subr.mxu0 %v756
    %829 = vmatpush1.msra.mxu0 %v755
    %830 = vmatprep.subr.mxu0 %v752
    %831 = vmatpush1.msra.mxu0 %v751
    %832 = vmatprep.subr.mxu0 %v748
    %833 = vmatpush1.msra.mxu0 %v747
    %834 = vmatprep.subr.mxu0 %v744
    %835 = vmatpush1.msra.mxu0 %v743
    %836 = vmatprep.subr.mxu0 %v740
    %837 = vmatpush1.msra.mxu0 %v739
    %838 = vmatprep.subr.mxu0 %v736
    %839 = vmatpush1.msra.mxu0 %v735
    %840 = vmatprep.subr.mxu0 %v732
    %841 = vmatpush1.msra.mxu0 %v731
    %842 = vmatprep.subr.mxu0 %v728
    %843 = vmatpush1.msra.mxu0 %v727
    %844 = vmatprep.subr.mxu0 %v724
    %845 = vmatpush1.msra.mxu0 %v723
    %846 = vmatprep.subr.mxu0 %v720
    %847 = vmatpush1.msra.mxu0 %v719
    %848 = vmatprep.subr.mxu0 %v716
    %849 = vmatpush1.msra.mxu0 %v715
    %850 = vmatprep.subr.mxu0 %v712
    %851 = vmatpush1.msra.mxu0 %v711
    %852 = vmatprep.subr.mxu0 %v708
    %853 = vmatpush1.msra.mxu0 %v707
    %854 = vmatprep.subr.mxu0 %v704
    %855 = vmatpush1.msra.mxu0 %v703
    %856 = vmatprep.subr.mxu0 %v700
    %857 = vmatpush1.msra.mxu0 %v699
    %858 = vmatprep.subr.mxu0 %v696
    %859 = vmatpush1.msra.mxu0 %v695
    %860 = vmatprep.subr.mxu0 0.0
    %861 = vmatpush2.msra.mxu0 0.0
    %862 = vmatprep.subr.mxu0 0.0
    %863 = vmatpush2.msra.mxu0 0.0
    %864 = vmatprep.subr.mxu0 0.0
    %865 = vmatpush2.msra.mxu0 0.0
    %866 = vmatprep.subr.mxu0 0.0
    %867 = vmatpush2.msra.mxu0 0.0
    %868 = vmatprep.subr.mxu0 0.0
    %869 = vmatpush2.msra.mxu0 0.0
    %870 = vmatprep.subr.mxu0 0.0
    %871 = vmatpush2.msra.mxu0 0.0
    %872 = vmatprep.subr.mxu0 0.0
    %873 = vmatpush2.msra.mxu0 0.0
    %874 = vmatprep.subr.mxu0 0.0
    %875 = vmatpush2.msra.mxu0 0.0
    %876 = vmatprep.subr.mxu0 0.0
    %877 = vmatpush2.msra.mxu0 0.0
    %878 = vmatprep.subr.mxu0 0.0
    %879 = vmatpush2.msra.mxu0 0.0
    %880 = vmatprep.subr.mxu0 0.0
    %881 = vmatpush2.msra.mxu0 0.0
    %882 = vmatprep.subr.mxu0 0.0
    %883 = vmatpush2.msra.mxu0 0.0
    %884 = vmatprep.subr.mxu0 0.0
    %885 = vmatpush2.msra.mxu0 0.0
    %886 = vmatprep.subr.mxu0 0.0
    %887 = vmatpush2.msra.mxu0 0.0
    %888 = vmatprep.subr.mxu0 0.0
    %889 = vmatpush2.msra.mxu0 0.0
    %890 = vmatprep.subr.mxu0 0.0
    %891 = vmatpush2.msra.mxu0 0.0
    %892 = vmatprep.mubr.f32.mxu0 0.0
    %893 = vmatmul.mubr.f32.gmra.mxu0 %v370
    %v894 = vpop.f32.mrf.mxu0
    %v895 = vadd.f32 0.0, %v894
    %v896 = vpop.f32.mrf.mxu0
    %v897 = vadd.f32 0.0, %v896
    %898 = vdwg.mxu0
    %v903 = vcombine.low %v824, %v826
    %v904 = vcombine.low %v895, %v897
    %v906 = vunpack.c.l.s4 1983009808
    %v907 = vunpack.c.0.s8 %v906
    %v908 = vlaneseq
    %v909 = vshrl.u32 %v908, 7
    %v910 = vsub.s32 %v907, %v909
    %v911 = vrot.slane %v903, %v910
    %v913 = vunpack.c.l.s4 1983009808
    %v914 = vunpack.c.0.s8 %v913
    %v915 = vlaneseq
    %v916 = vshrl.u32 %v915, 7
    %v917 = vsub.s32 %v914, %v916
    %v918 = vrot.slane %v904, %v917
    %v919 = vcombine.low %v911, %v918
    %v921 = vadd.f32 %v692, %v919
    %v922 = vmul.f32 %v921, 0.5
    %v923 = vtanh.pop %v922
    %v924 = vmul.f32 %v923, 0.5
    %v925 = vadd.f32 %v924, 0.5
    %v927 = vrot.slane %v921, 2
    %v929 = vmul.f32 %v927, 0.5
    %v930 = vtanh.pop %v929
    %v931 = vmul.f32 %v930, 0.5
    %v932 = vadd.f32 %v931, 0.5
    %v933 = vrot.slane %v921, 4
    %v935 = vmul.f32 %v933, 0.5
    %v936 = vtanh.pop %v935
    %v937 = vmul.f32 %v936, 0.5
    %v938 = vadd.f32 %v937, 0.5
    %v939 = vrot.slane %v921, 6
    %v941 = vtanh.pop %v939
    %v942 = vmul.f32 %v932, %v368
    %v943 = vmul.f32 %v925, %v941
    %v944 = vadd.f32 %v942, %v943
    %v945 = vtanh.pop %v944
    %v946 = vmul.f32 %v938, %v945
    %v947 = vld [vmem:[#allocation12] sm:$0xff]
    %v948 = vld [vmem:[#allocation12 + $0x8] sm:$0xff]
    %v949 = vld [vmem:[#allocation12 + $0x10] sm:$0xff]
    %v950 = vld [vmem:[#allocation12 + $0x18] sm:$0xff]
    %v951 = vld [vmem:[#allocation12 + $0x20] sm:$0xff]
    %v952 = vld [vmem:[#allocation12 + $0x28] sm:$0xff]
    %v953 = vld [vmem:[#allocation12 + $0x30] sm:$0xff]
    %v954 = vld [vmem:[#allocation12 + $0x38] sm:$0xff]
    %v955 = vld [vmem:[#allocation12 + $0x40] sm:$0xff]
    %v956 = vld [vmem:[#allocation12 + $0x48] sm:$0xff]
    %v957 = vld [vmem:[#allocation12 + $0x50] sm:$0xff]
    %v958 = vld [vmem:[#allocation12 + $0x58] sm:$0xff]
    %v959 = vld [vmem:[#allocation12 + $0x60] sm:$0xff]
    %v960 = vld [vmem:[#allocation12 + $0x68] sm:$0xff]
    %v961 = vld [vmem:[#allocation12 + $0x70] sm:$0xff]
    %v962 = vld [vmem:[#allocation12 + $0x78] sm:$0xff]
    %v963 = vld [vmem:[#allocation12 + $0x80] sm:$0xff]
    %v964 = vld [vmem:[#allocation12 + $0x88] sm:$0xff]
    %v965 = vld [vmem:[#allocation12 + $0x90] sm:$0xff]
    %v966 = vld [vmem:[#allocation12 + $0x98] sm:$0xff]
    %v967 = vld [vmem:[#allocation12 + $0xa0] sm:$0xff]
    %v968 = vld [vmem:[#allocation12 + $0xa8] sm:$0xff]
    %v969 = vld [vmem:[#allocation12 + $0xb0] sm:$0xff]
    %v970 = vld [vmem:[#allocation12 + $0xb8] sm:$0xff]
    %v971 = vld [vmem:[#allocation12 + $0xc0] sm:$0xff]
    %v972 = vld [vmem:[#allocation12 + $0xc8] sm:$0xff]
    %v973 = vld [vmem:[#allocation12 + $0xd0] sm:$0xff]
    %v974 = vld [vmem:[#allocation12 + $0xd8] sm:$0xff]
    %v975 = vld [vmem:[#allocation12 + $0xe0] sm:$0xff]
    %v976 = vld [vmem:[#allocation12 + $0xe8] sm:$0xff]
    %v977 = vld [vmem:[#allocation12 + $0xf0] sm:$0xff]
    %v978 = vld [vmem:[#allocation12 + $0xf8] sm:$0xff]
    %v979 = vld [vmem:[#allocation12 + $0x100] sm:$0xff]
    %v980 = vld [vmem:[#allocation12 + $0x108] sm:$0xff]
    %v981 = vld [vmem:[#allocation12 + $0x110] sm:$0xff]
    %v982 = vld [vmem:[#allocation12 + $0x118] sm:$0xff]
    %v983 = vld [vmem:[#allocation12 + $0x120] sm:$0xff]
    %v984 = vld [vmem:[#allocation12 + $0x128] sm:$0xff]
    %v985 = vld [vmem:[#allocation12 + $0x130] sm:$0xff]
    %v986 = vld [vmem:[#allocation12 + $0x138] sm:$0xff]
    %v987 = vld [vmem:[#allocation12 + $0x140] sm:$0xff]
    %v988 = vld [vmem:[#allocation12 + $0x148] sm:$0xff]
    %v989 = vld [vmem:[#allocation12 + $0x150] sm:$0xff]
    %v990 = vld [vmem:[#allocation12 + $0x158] sm:$0xff]
    %v991 = vld [vmem:[#allocation12 + $0x160] sm:$0xff]
    %v992 = vld [vmem:[#allocation12 + $0x168] sm:$0xff]
    %v993 = vld [vmem:[#allocation12 + $0x170] sm:$0xff]
    %v994 = vld [vmem:[#allocation12 + $0x178] sm:$0xff]
    %v995 = vld [vmem:[#allocation12 + $0x180] sm:$0xff]
    %v996 = vld [vmem:[#allocation12 + $0x188] sm:$0xff]
    %v997 = vld [vmem:[#allocation12 + $0x190] sm:$0xff]
    %v998 = vld [vmem:[#allocation12 + $0x198] sm:$0xff]
    %v999 = vld [vmem:[#allocation12 + $0x1a0] sm:$0xff]
    %v1000 = vld [vmem:[#allocation12 + $0x1a8] sm:$0xff]
    %v1001 = vld [vmem:[#allocation12 + $0x1b0] sm:$0xff]
    %v1002 = vld [vmem:[#allocation12 + $0x1b8] sm:$0xff]
    %v1003 = vld [vmem:[#allocation12 + $0x1c0] sm:$0xff]
    %v1004 = vld [vmem:[#allocation12 + $0x1c8] sm:$0xff]
    %v1005 = vld [vmem:[#allocation12 + $0x1d0] sm:$0xff]
    %v1006 = vld [vmem:[#allocation12 + $0x1d8] sm:$0xff]
    %v1007 = vld [vmem:[#allocation12 + $0x1e0] sm:$0xff]
    %v1008 = vld [vmem:[#allocation12 + $0x1e8] sm:$0xff]
    %v1009 = vld [vmem:[#allocation12 + $0x1f0] sm:$0xff]
    %v1010 = vld [vmem:[#allocation12 + $0x1f8] sm:$0xff]
    %v1011 = vld [vmem:[#allocation12 + $0x200] sm:$0xff]
    %v1012 = vld [vmem:[#allocation12 + $0x208] sm:$0xff]
    %v1013 = vld [vmem:[#allocation12 + $0x210] sm:$0xff]
    %v1014 = vld [vmem:[#allocation12 + $0x218] sm:$0xff]
    %v1015 = vld [vmem:[#allocation12 + $0x220] sm:$0xff]
    %v1016 = vld [vmem:[#allocation12 + $0x228] sm:$0xff]
    %v1017 = vld [vmem:[#allocation12 + $0x230] sm:$0xff]
    %v1018 = vld [vmem:[#allocation12 + $0x238] sm:$0xff]
    %v1019 = vld [vmem:[#allocation12 + $0x240] sm:$0xff]
    %v1020 = vld [vmem:[#allocation12 + $0x248] sm:$0xff]
    %v1021 = vld [vmem:[#allocation12 + $0x250] sm:$0xff]
    %v1022 = vld [vmem:[#allocation12 + $0x258] sm:$0xff]
    %v1023 = vld [vmem:[#allocation12 + $0x260] sm:$0xff]
    %v1024 = vld [vmem:[#allocation12 + $0x268] sm:$0xff]
    %v1025 = vld [vmem:[#allocation12 + $0x270] sm:$0xff]
    %v1026 = vld [vmem:[#allocation12 + $0x278] sm:$0xff]
    %v1027 = vld [vmem:[#allocation12 + $0x280] sm:$0xff]
    %v1028 = vld [vmem:[#allocation12 + $0x288] sm:$0xff]
    %v1029 = vld [vmem:[#allocation12 + $0x290] sm:$0xff]
    %v1030 = vld [vmem:[#allocation12 + $0x298] sm:$0xff]
    %v1031 = vld [vmem:[#allocation12 + $0x2a0] sm:$0xff]
    %v1032 = vld [vmem:[#allocation12 + $0x2a8] sm:$0xff]
    %v1033 = vld [vmem:[#allocation12 + $0x2b0] sm:$0xff]
    %v1034 = vld [vmem:[#allocation12 + $0x2b8] sm:$0xff]
    %v1035 = vld [vmem:[#allocation12 + $0x2c0] sm:$0xff]
    %v1036 = vld [vmem:[#allocation12 + $0x2c8] sm:$0xff]
    %v1037 = vld [vmem:[#allocation12 + $0x2d0] sm:$0xff]
    %v1038 = vld [vmem:[#allocation12 + $0x2d8] sm:$0xff]
    %v1039 = vld [vmem:[#allocation12 + $0x2e0] sm:$0xff]
    %v1040 = vld [vmem:[#allocation12 + $0x2e8] sm:$0xff]
    %v1041 = vld [vmem:[#allocation12 + $0x2f0] sm:$0xff]
    %v1042 = vld [vmem:[#allocation12 + $0x2f8] sm:$0xff]
    %v1043 = vld [vmem:[#allocation12 + $0x300] sm:$0xff]
    %v1044 = vld [vmem:[#allocation12 + $0x308] sm:$0xff]
    %v1045 = vld [vmem:[#allocation12 + $0x310] sm:$0xff]
    %v1046 = vld [vmem:[#allocation12 + $0x318] sm:$0xff]
    %v1047 = vld [vmem:[#allocation12 + $0x320] sm:$0xff]
    %v1048 = vld [vmem:[#allocation12 + $0x328] sm:$0xff]
    %v1049 = vld [vmem:[#allocation12 + $0x330] sm:$0xff]
    %v1050 = vld [vmem:[#allocation12 + $0x338] sm:$0xff]
    %v1051 = vld [vmem:[#allocation12 + $0x340] sm:$0xff]
    %v1052 = vld [vmem:[#allocation12 + $0x348] sm:$0xff]
    %v1053 = vld [vmem:[#allocation12 + $0x350] sm:$0xff]
    %v1054 = vld [vmem:[#allocation12 + $0x358] sm:$0xff]
    %v1055 = vld [vmem:[#allocation12 + $0x360] sm:$0xff]
    %v1056 = vld [vmem:[#allocation12 + $0x368] sm:$0xff]
    %v1057 = vld [vmem:[#allocation12 + $0x370] sm:$0xff]
    %v1058 = vld [vmem:[#allocation12 + $0x378] sm:$0xff]
    %v1059 = vld [vmem:[#allocation12 + $0x380] sm:$0xff]
    %v1060 = vld [vmem:[#allocation12 + $0x388] sm:$0xff]
    %v1061 = vld [vmem:[#allocation12 + $0x390] sm:$0xff]
    %v1062 = vld [vmem:[#allocation12 + $0x398] sm:$0xff]
    %v1063 = vld [vmem:[#allocation12 + $0x3a0] sm:$0xff]
    %v1064 = vld [vmem:[#allocation12 + $0x3a8] sm:$0xff]
    %v1065 = vld [vmem:[#allocation12 + $0x3b0] sm:$0xff]
    %v1066 = vld [vmem:[#allocation12 + $0x3b8] sm:$0xff]
    %v1067 = vld [vmem:[#allocation12 + $0x3c0] sm:$0xff]
    %v1068 = vld [vmem:[#allocation12 + $0x3c8] sm:$0xff]
    %v1069 = vld [vmem:[#allocation12 + $0x3d0] sm:$0xff]
    %v1070 = vld [vmem:[#allocation12 + $0x3d8] sm:$0xff]
    %v1071 = vld [vmem:[#allocation12 + $0x3e0] sm:$0xff]
    %v1072 = vld [vmem:[#allocation12 + $0x3e8] sm:$0xff]
    %v1073 = vld [vmem:[#allocation12 + $0x3f0] sm:$0xff]
    %v1074 = vld [vmem:[#allocation12 + $0x3f8] sm:$0xff]
    %1075 = vmatprep.subr.mxu0 %v1008
    %1076 = vmatpush1.msra.mxu0 %v1007
    %1077 = vmatprep.subr.mxu0 %v1004
    %1078 = vmatpush1.msra.mxu0 %v1003
    %1079 = vmatprep.subr.mxu0 %v1000
    %1080 = vmatpush1.msra.mxu0 %v999
    %1081 = vmatprep.subr.mxu0 %v996
    %1082 = vmatpush1.msra.mxu0 %v995
    %1083 = vmatprep.subr.mxu0 %v992
    %1084 = vmatpush1.msra.mxu0 %v991
    %1085 = vmatprep.subr.mxu0 %v988
    %1086 = vmatpush1.msra.mxu0 %v987
    %1087 = vmatprep.subr.mxu0 %v984
    %1088 = vmatpush1.msra.mxu0 %v983
    %1089 = vmatprep.subr.mxu0 %v980
    %1090 = vmatpush1.msra.mxu0 %v979
    %1091 = vmatprep.subr.mxu0 %v976
    %1092 = vmatpush1.msra.mxu0 %v975
    %1093 = vmatprep.subr.mxu0 %v972
    %1094 = vmatpush1.msra.mxu0 %v971
    %1095 = vmatprep.subr.mxu0 %v968
    %1096 = vmatpush1.msra.mxu0 %v967
    %1097 = vmatprep.subr.mxu0 %v964
    %1098 = vmatpush1.msra.mxu0 %v963
    %1099 = vmatprep.subr.mxu0 %v960
    %1100 = vmatpush1.msra.mxu0 %v959
    %1101 = vmatprep.subr.mxu0 %v956
    %1102 = vmatpush1.msra.mxu0 %v955
    %1103 = vmatprep.subr.mxu0 %v952
    %1104 = vmatpush1.msra.mxu0 %v951
    %1105 = vmatprep.subr.mxu0 %v948
    %1106 = vmatpush1.msra.mxu0 %v947
    %1107 = vmatprep.subr.mxu0 %v1072
    %1108 = vmatpush2.msra.mxu0 %v1071
    %1109 = vmatprep.subr.mxu0 %v1068
    %1110 = vmatpush2.msra.mxu0 %v1067
    %1111 = vmatprep.subr.mxu0 %v1064
    %1112 = vmatpush2.msra.mxu0 %v1063
    %1113 = vmatprep.subr.mxu0 %v1060
    %1114 = vmatpush2.msra.mxu0 %v1059
    %1115 = vmatprep.subr.mxu0 %v1056
    %1116 = vmatpush2.msra.mxu0 %v1055
    %1117 = vmatprep.subr.mxu0 %v1052
    %1118 = vmatpush2.msra.mxu0 %v1051
    %1119 = vmatprep.subr.mxu0 %v1048
    %1120 = vmatpush2.msra.mxu0 %v1047
    %1121 = vmatprep.subr.mxu0 %v1044
    %1122 = vmatpush2.msra.mxu0 %v1043
    %1123 = vmatprep.subr.mxu0 %v1040
    %1124 = vmatpush2.msra.mxu0 %v1039
    %1125 = vmatprep.subr.mxu0 %v1036
    %1126 = vmatpush2.msra.mxu0 %v1035
    %1127 = vmatprep.subr.mxu0 %v1032
    %1128 = vmatpush2.msra.mxu0 %v1031
    %1129 = vmatprep.subr.mxu0 %v1028
    %1130 = vmatpush2.msra.mxu0 %v1027
    %1131 = vmatprep.subr.mxu0 %v1024
    %1132 = vmatpush2.msra.mxu0 %v1023
    %1133 = vmatprep.subr.mxu0 %v1020
    %1134 = vmatpush2.msra.mxu0 %v1019
    %1135 = vmatprep.subr.mxu0 %v1016
    %1136 = vmatpush2.msra.mxu0 %v1015
    %1137 = vmatprep.subr.mxu0 %v1012
    %1138 = vmatpush2.msra.mxu0 %v1011
    %1139 = vmatprep.mubr.f32.mxu0 %v679
    %1140 = vmatmul.mubr.f32.gmra.mxu0 %v946
    %v1141 = vpop.f32.mrf.mxu0
    %v1142 = vadd.f32 %v503, %v1141
    %v1143 = vpop.f32.mrf.mxu0
    %v1144 = vadd.f32 %v507, %v1143
    %1145 = vdwg.mxu0
    %1146 = vmatprep.subr.mxu0 %v1010
    %1147 = vmatpush1.msra.mxu0 %v1009
    %1148 = vmatprep.subr.mxu0 %v1006
    %1149 = vmatpush1.msra.mxu0 %v1005
    %1150 = vmatprep.subr.mxu0 %v1002
    %1151 = vmatpush1.msra.mxu0 %v1001
    %1152 = vmatprep.subr.mxu0 %v998
    %1153 = vmatpush1.msra.mxu0 %v997
    %1154 = vmatprep.subr.mxu0 %v994
    %1155 = vmatpush1.msra.mxu0 %v993
    %1156 = vmatprep.subr.mxu0 %v990
    %1157 = vmatpush1.msra.mxu0 %v989
    %1158 = vmatprep.subr.mxu0 %v986
    %1159 = vmatpush1.msra.mxu0 %v985
    %1160 = vmatprep.subr.mxu0 %v982
    %1161 = vmatpush1.msra.mxu0 %v981
    %1162 = vmatprep.subr.mxu0 %v978
    %1163 = vmatpush1.msra.mxu0 %v977
    %1164 = vmatprep.subr.mxu0 %v974
    %1165 = vmatpush1.msra.mxu0 %v973
    %1166 = vmatprep.subr.mxu0 %v970
    %1167 = vmatpush1.msra.mxu0 %v969
    %1168 = vmatprep.subr.mxu0 %v966
    %1169 = vmatpush1.msra.mxu0 %v965
    %1170 = vmatprep.subr.mxu0 %v962
    %1171 = vmatpush1.msra.mxu0 %v961
    %1172 = vmatprep.subr.mxu0 %v958
    %1173 = vmatpush1.msra.mxu0 %v957
    %1174 = vmatprep.subr.mxu0 %v954
    %1175 = vmatpush1.msra.mxu0 %v953
    %1176 = vmatprep.subr.mxu0 %v950
    %1177 = vmatpush1.msra.mxu0 %v949
    %1178 = vmatprep.subr.mxu0 %v1074
    %1179 = vmatpush2.msra.mxu0 %v1073
    %1180 = vmatprep.subr.mxu0 %v1070
    %1181 = vmatpush2.msra.mxu0 %v1069
    %1182 = vmatprep.subr.mxu0 %v1066
    %1183 = vmatpush2.msra.mxu0 %v1065
    %1184 = vmatprep.subr.mxu0 %v1062
    %1185 = vmatpush2.msra.mxu0 %v1061
    %1186 = vmatprep.subr.mxu0 %v1058
    %1187 = vmatpush2.msra.mxu0 %v1057
    %1188 = vmatprep.subr.mxu0 %v1054
    %1189 = vmatpush2.msra.mxu0 %v1053
    %1190 = vmatprep.subr.mxu0 %v1050
    %1191 = vmatpush2.msra.mxu0 %v1049
    %1192 = vmatprep.subr.mxu0 %v1046
    %1193 = vmatpush2.msra.mxu0 %v1045
    %1194 = vmatprep.subr.mxu0 %v1042
    %1195 = vmatpush2.msra.mxu0 %v1041
    %1196 = vmatprep.subr.mxu0 %v1038
    %1197 = vmatpush2.msra.mxu0 %v1037
    %1198 = vmatprep.subr.mxu0 %v1034
    %1199 = vmatpush2.msra.mxu0 %v1033
    %1200 = vmatprep.subr.mxu0 %v1030
    %1201 = vmatpush2.msra.mxu0 %v1029
    %1202 = vmatprep.subr.mxu0 %v1026
    %1203 = vmatpush2.msra.mxu0 %v1025
    %1204 = vmatprep.subr.mxu0 %v1022
    %1205 = vmatpush2.msra.mxu0 %v1021
    %1206 = vmatprep.subr.mxu0 %v1018
    %1207 = vmatpush2.msra.mxu0 %v1017
    %1208 = vmatprep.subr.mxu0 %v1014
    %1209 = vmatpush2.msra.mxu0 %v1013
    %1210 = vmatprep.mubr.f32.mxu0 %v679
    %1211 = vmatmul.mubr.f32.gmra.mxu0 %v946
    %v1212 = vpop.f32.mrf.mxu0
    %v1213 = vadd.f32 %v511, %v1212
    %v1214 = vpop.f32.mrf.mxu0
    %v1215 = vadd.f32 %v515, %v1214
    %1216 = vdwg.mxu0
    %v1217 = vmul.f32 %v1142, 0.5
    %v1218 = vtanh.pop %v1217
    %v1219 = vmul.f32 %v1218, 0.5
    %v1220 = vadd.f32 %v1219, 0.5
    %v1221 = vmul.f32 %v1144, 0.5
    %v1222 = vtanh.pop %v1221
    %v1223 = vmul.f32 %v1222, 0.5
    %v1224 = vadd.f32 %v1223, 0.5
    %v1225 = vmul.f32 %v1213, 0.5
    %v1226 = vtanh.pop %v1225
    %v1227 = vmul.f32 %v1226, 0.5
    %v1228 = vadd.f32 %v1227, 0.5
    %v1229 = vtanh.pop %v1215
    %v1230 = vmul.f32 %v1224, %v677
    %v1231 = vmul.f32 %v1220, %v1229
    %v1232 = vadd.f32 %v1230, %v1231
    %v1233 = vtanh.pop %v1232
    %v1234 = vmul.f32 %v1228, %v1233
    %s1235 = scalar_lea.vmem [#allocation13], 2
    %1236 = vst [vmem:[%s1235] sm:$0x3] %v1234
    %s1237 = sadd.s32 %s108, 1
    %p1238 = scmp.eq.s32.totalorder %s1237, 7
    // Predicated region
    $region54: #{tpu_custom_call.1} parent=1 // pred_check
      %p1239 = pneg %p1238
    $region55: #{tpu_custom_call.1} parent=1 // pred_check_branch
      %1241 = sbr.rel (%p1239) target = $region57
    $region56: #{tpu_custom_call.1} parent=1 // pred_region
      %1242 = vst [vmem:[#allocation14] sm:$0x3] %v946
      %1243 = vst [vmem:[#allocation16] sm:$0x3] %v944
      %s1244 = scalar_lea.vmem [#allocation14], 2
      %1245 = vst [vmem:[%s1244] sm:$0x3] %v1234
      %s1246 = scalar_lea.vmem [#allocation16], 2
      %1247 = vst [vmem:[%s1246] sm:$0x3] %v1232
    $region57: #{tpu_custom_call.1} parent=1 // pred_fallthru
      _
    %s1248 = scalar_lea.vmem [#allocation4], 16
    %v1249 = vld [vmem:[%s1248] sm:$0xff]
    %v1250 = vld [vmem:[#allocation10] sm:$0xff]
    %v1251 = vld [vmem:[#allocation10 + $0x8] sm:$0xff]
    %v1252 = vld [vmem:[#allocation10 + $0x10] sm:$0xff]
    %v1253 = vld [vmem:[#allocation10 + $0x18] sm:$0xff]
    %v1254 = vld [vmem:[#allocation10 + $0x20] sm:$0xff]
    %v1255 = vld [vmem:[#allocation10 + $0x28] sm:$0xff]
    %v1256 = vld [vmem:[#allocation10 + $0x30] sm:$0xff]
    %v1257 = vld [vmem:[#allocation10 + $0x38] sm:$0xff]
    %v1258 = vld [vmem:[#allocation10 + $0x40] sm:$0xff]
    %v1259 = vld [vmem:[#allocation10 + $0x48] sm:$0xff]
    %v1260 = vld [vmem:[#allocation10 + $0x50] sm:$0xff]
    %v1261 = vld [vmem:[#allocation10 + $0x58] sm:$0xff]
    %v1262 = vld [vmem:[#allocation10 + $0x60] sm:$0xff]
    %v1263 = vld [vmem:[#allocation10 + $0x68] sm:$0xff]
    %v1264 = vld [vmem:[#allocation10 + $0x70] sm:$0xff]
    %v1265 = vld [vmem:[#allocation10 + $0x78] sm:$0xff]
    %v1266 = vld [vmem:[#allocation10 + $0x80] sm:$0xff]
    %v1267 = vld [vmem:[#allocation10 + $0x88] sm:$0xff]
    %v1268 = vld [vmem:[#allocation10 + $0x90] sm:$0xff]
    %v1269 = vld [vmem:[#allocation10 + $0x98] sm:$0xff]
    %v1270 = vld [vmem:[#allocation10 + $0xa0] sm:$0xff]
    %v1271 = vld [vmem:[#allocation10 + $0xa8] sm:$0xff]
    %v1272 = vld [vmem:[#allocation10 + $0xb0] sm:$0xff]
    %v1273 = vld [vmem:[#allocation10 + $0xb8] sm:$0xff]
    %v1274 = vld [vmem:[#allocation10 + $0xc0] sm:$0xff]
    %v1275 = vld [vmem:[#allocation10 + $0xc8] sm:$0xff]
    %v1276 = vld [vmem:[#allocation10 + $0xd0] sm:$0xff]
    %v1277 = vld [vmem:[#allocation10 + $0xd8] sm:$0xff]
    %v1278 = vld [vmem:[#allocation10 + $0xe0] sm:$0xff]
    %v1279 = vld [vmem:[#allocation10 + $0xe8] sm:$0xff]
    %v1280 = vld [vmem:[#allocation10 + $0xf0] sm:$0xff]
    %v1281 = vld [vmem:[#allocation10 + $0xf8] sm:$0xff]
    %v1282 = vld [vmem:[#allocation10 + $0x100] sm:$0xff]
    %v1283 = vld [vmem:[#allocation10 + $0x108] sm:$0xff]
    %v1284 = vld [vmem:[#allocation10 + $0x110] sm:$0xff]
    %v1285 = vld [vmem:[#allocation10 + $0x118] sm:$0xff]
    %v1286 = vld [vmem:[#allocation10 + $0x120] sm:$0xff]
    %v1287 = vld [vmem:[#allocation10 + $0x128] sm:$0xff]
    %v1288 = vld [vmem:[#allocation10 + $0x130] sm:$0xff]
    %v1289 = vld [vmem:[#allocation10 + $0x138] sm:$0xff]
    %v1290 = vld [vmem:[#allocation10 + $0x140] sm:$0xff]
    %v1291 = vld [vmem:[#allocation10 + $0x148] sm:$0xff]
    %v1292 = vld [vmem:[#allocation10 + $0x150] sm:$0xff]
    %v1293 = vld [vmem:[#allocation10 + $0x158] sm:$0xff]
    %v1294 = vld [vmem:[#allocation10 + $0x160] sm:$0xff]
    %v1295 = vld [vmem:[#allocation10 + $0x168] sm:$0xff]
    %v1296 = vld [vmem:[#allocation10 + $0x170] sm:$0xff]
    %v1297 = vld [vmem:[#allocation10 + $0x178] sm:$0xff]
    %v1298 = vld [vmem:[#allocation10 + $0x180] sm:$0xff]
    %v1299 = vld [vmem:[#allocation10 + $0x188] sm:$0xff]
    %v1300 = vld [vmem:[#allocation10 + $0x190] sm:$0xff]
    %v1301 = vld [vmem:[#allocation10 + $0x198] sm:$0xff]
    %v1302 = vld [vmem:[#allocation10 + $0x1a0] sm:$0xff]
    %v1303 = vld [vmem:[#allocation10 + $0x1a8] sm:$0xff]
    %v1304 = vld [vmem:[#allocation10 + $0x1b0] sm:$0xff]
    %v1305 = vld [vmem:[#allocation10 + $0x1b8] sm:$0xff]
    %v1306 = vld [vmem:[#allocation10 + $0x1c0] sm:$0xff]
    %v1307 = vld [vmem:[#allocation10 + $0x1c8] sm:$0xff]
    %v1308 = vld [vmem:[#allocation10 + $0x1d0] sm:$0xff]
    %v1309 = vld [vmem:[#allocation10 + $0x1d8] sm:$0xff]
    %v1310 = vld [vmem:[#allocation10 + $0x1e0] sm:$0xff]
    %v1311 = vld [vmem:[#allocation10 + $0x1e8] sm:$0xff]
    %v1312 = vld [vmem:[#allocation10 + $0x1f0] sm:$0xff]
    %v1313 = vld [vmem:[#allocation10 + $0x1f8] sm:$0xff]
    %1314 = vmatprep.subr.mxu0 %v1311
    %1315 = vmatpush1.msra.mxu0 %v1310
    %1316 = vmatprep.subr.mxu0 %v1307
    %1317 = vmatpush1.msra.mxu0 %v1306
    %1318 = vmatprep.subr.mxu0 %v1303
    %1319 = vmatpush1.msra.mxu0 %v1302
    %1320 = vmatprep.subr.mxu0 %v1299
    %1321 = vmatpush1.msra.mxu0 %v1298
    %1322 = vmatprep.subr.mxu0 %v1295
    %1323 = vmatpush1.msra.mxu0 %v1294
    %1324 = vmatprep.subr.mxu0 %v1291
    %1325 = vmatpush1.msra.mxu0 %v1290
    %1326 = vmatprep.subr.mxu0 %v1287
    %1327 = vmatpush1.msra.mxu0 %v1286
    %1328 = vmatprep.subr.mxu0 %v1283
    %1329 = vmatpush1.msra.mxu0 %v1282
    %1330 = vmatprep.subr.mxu0 %v1279
    %1331 = vmatpush1.msra.mxu0 %v1278
    %1332 = vmatprep.subr.mxu0 %v1275
    %1333 = vmatpush1.msra.mxu0 %v1274
    %1334 = vmatprep.subr.mxu0 %v1271
    %1335 = vmatpush1.msra.mxu0 %v1270
    %1336 = vmatprep.subr.mxu0 %v1267
    %1337 = vmatpush1.msra.mxu0 %v1266
    %1338 = vmatprep.subr.mxu0 %v1263
    %1339 = vmatpush1.msra.mxu0 %v1262
    %1340 = vmatprep.subr.mxu0 %v1259
    %1341 = vmatpush1.msra.mxu0 %v1258
    %1342 = vmatprep.subr.mxu0 %v1255
    %1343 = vmatpush1.msra.mxu0 %v1254
    %1344 = vmatprep.subr.mxu0 %v1251
    %1345 = vmatpush1.msra.mxu0 %v1250
    %1346 = vmatprep.subr.mxu0 0.0
    %1347 = vmatpush2.msra.mxu0 0.0
    %1348 = vmatprep.subr.mxu0 0.0
    %1349 = vmatpush2.msra.mxu0 0.0
    %1350 = vmatprep.subr.mxu0 0.0
    %1351 = vmatpush2.msra.mxu0 0.0
    %1352 = vmatprep.subr.mxu0 0.0
    %1353 = vmatpush2.msra.mxu0 0.0
    %1354 = vmatprep.subr.mxu0 0.0
    %1355 = vmatpush2.msra.mxu0 0.0
    %1356 = vmatprep.subr.mxu0 0.0
    %1357 = vmatpush2.msra.mxu0 0.0
    %1358 = vmatprep.subr.mxu0 0.0
    %1359 = vmatpush2.msra.mxu0 0.0
    %1360 = vmatprep.subr.mxu0 0.0
    %1361 = vmatpush2.msra.mxu0 0.0
    %1362 = vmatprep.subr.mxu0 0.0
    %1363 = vmatpush2.msra.mxu0 0.0
    %1364 = vmatprep.subr.mxu0 0.0
    %1365 = vmatpush2.msra.mxu0 0.0
    %1366 = vmatprep.subr.mxu0 0.0
    %1367 = vmatpush2.msra.mxu0 0.0
    %1368 = vmatprep.subr.mxu0 0.0
    %1369 = vmatpush2.msra.mxu0 0.0
    %1370 = vmatprep.subr.mxu0 0.0
    %1371 = vmatpush2.msra.mxu0 0.0
    %1372 = vmatprep.subr.mxu0 0.0
    %1373 = vmatpush2.msra.mxu0 0.0
    %1374 = vmatprep.subr.mxu0 0.0
    %1375 = vmatpush2.msra.mxu0 0.0
    %1376 = vmatprep.subr.mxu0 0.0
    %1377 = vmatpush2.msra.mxu0 0.0
    %1378 = vmatprep.mubr.f32.mxu0 0.0
    %1379 = vmatmul.mubr.f32.gmra.mxu0 %v946
    %v1380 = vpop.f32.mrf.mxu0
    %v1381 = vadd.f32 0.0, %v1380
    %v1382 = vpop.f32.mrf.mxu0
    %v1383 = vadd.f32 0.0, %v1382
    %1384 = vdwg.mxu0
    %1385 = vmatprep.subr.mxu0 %v1313
    %1386 = vmatpush1.msra.mxu0 %v1312
    %1387 = vmatprep.subr.mxu0 %v1309
    %1388 = vmatpush1.msra.mxu0 %v1308
    %1389 = vmatprep.subr.mxu0 %v1305
    %1390 = vmatpush1.msra.mxu0 %v1304
    %1391 = vmatprep.subr.mxu0 %v1301
    %1392 = vmatpush1.msra.mxu0 %v1300
    %1393 = vmatprep.subr.mxu0 %v1297
    %1394 = vmatpush1.msra.mxu0 %v1296
    %1395 = vmatprep.subr.mxu0 %v1293
    %1396 = vmatpush1.msra.mxu0 %v1292
    %1397 = vmatprep.subr.mxu0 %v1289
    %1398 = vmatpush1.msra.mxu0 %v1288
    %1399 = vmatprep.subr.mxu0 %v1285
    %1400 = vmatpush1.msra.mxu0 %v1284
    %1401 = vmatprep.subr.mxu0 %v1281
    %1402 = vmatpush1.msra.mxu0 %v1280
    %1403 = vmatprep.subr.mxu0 %v1277
    %1404 = vmatpush1.msra.mxu0 %v1276
    %1405 = vmatprep.subr.mxu0 %v1273
    %1406 = vmatpush1.msra.mxu0 %v1272
    %1407 = vmatprep.subr.mxu0 %v1269
    %1408 = vmatpush1.msra.mxu0 %v1268
    %1409 = vmatprep.subr.mxu0 %v1265
    %1410 = vmatpush1.msra.mxu0 %v1264
    %1411 = vmatprep.subr.mxu0 %v1261
    %1412 = vmatpush1.msra.mxu0 %v1260
    %1413 = vmatprep.subr.mxu0 %v1257
    %1414 = vmatpush1.msra.mxu0 %v1256
    %1415 = vmatprep.subr.mxu0 %v1253
    %1416 = vmatpush1.msra.mxu0 %v1252
    %1417 = vmatprep.subr.mxu0 0.0
    %1418 = vmatpush2.msra.mxu0 0.0
    %1419 = vmatprep.subr.mxu0 0.0
    %1420 = vmatpush2.msra.mxu0 0.0
    %1421 = vmatprep.subr.mxu0 0.0
    %1422 = vmatpush2.msra.mxu0 0.0
    %1423 = vmatprep.subr.mxu0 0.0
    %1424 = vmatpush2.msra.mxu0 0.0
    %1425 = vmatprep.subr.mxu0 0.0
    %1426 = vmatpush2.msra.mxu0 0.0
    %1427 = vmatprep.subr.mxu0 0.0
    %1428 = vmatpush2.msra.mxu0 0.0
    %1429 = vmatprep.subr.mxu0 0.0
    %1430 = vmatpush2.msra.mxu0 0.0
    %1431 = vmatprep.subr.mxu0 0.0
    %1432 = vmatpush2.msra.mxu0 0.0
    %1433 = vmatprep.subr.mxu0 0.0
    %1434 = vmatpush2.msra.mxu0 0.0
    %1435 = vmatprep.subr.mxu0 0.0
    %1436 = vmatpush2.msra.mxu0 0.0
    %1437 = vmatprep.subr.mxu0 0.0
    %1438 = vmatpush2.msra.mxu0 0.0
    %1439 = vmatprep.subr.mxu0 0.0
    %1440 = vmatpush2.msra.mxu0 0.0
    %1441 = vmatprep.subr.mxu0 0.0
    %1442 = vmatpush2.msra.mxu0 0.0
    %1443 = vmatprep.subr.mxu0 0.0
    %1444 = vmatpush2.msra.mxu0 0.0
    %1445 = vmatprep.subr.mxu0 0.0
    %1446 = vmatpush2.msra.mxu0 0.0
    %1447 = vmatprep.subr.mxu0 0.0
    %1448 = vmatpush2.msra.mxu0 0.0
    %1449 = vmatprep.mubr.f32.mxu0 0.0
    %1450 = vmatmul.mubr.f32.gmra.mxu0 %v946
    %v1451 = vpop.f32.mrf.mxu0
    %v1452 = vadd.f32 0.0, %v1451
    %v1453 = vpop.f32.mrf.mxu0
    %v1454 = vadd.f32 0.0, %v1453
    %1455 = vdwg.mxu0
    %v1460 = vcombine.low %v1381, %v1383
    %v1461 = vcombine.low %v1452, %v1454
    %v1463 = vunpack.c.l.s4 1983009808
    %v1464 = vunpack.c.0.s8 %v1463
    %v1465 = vlaneseq
    %v1466 = vshrl.u32 %v1465, 7
    %v1467 = vsub.s32 %v1464, %v1466
    %v1468 = vrot.slane %v1460, %v1467
    %v1470 = vunpack.c.l.s4 1983009808
    %v1471 = vunpack.c.0.s8 %v1470
    %v1472 = vlaneseq
    %v1473 = vshrl.u32 %v1472, 7
    %v1474 = vsub.s32 %v1471, %v1473
    %v1475 = vrot.slane %v1461, %v1474
    %v1476 = vcombine.low %v1468, %v1475
    %v1478 = vadd.f32 %v1249, %v1476
    %v1479 = vmul.f32 %v1478, 0.5
    %v1480 = vtanh.pop %v1479
    %v1481 = vmul.f32 %v1480, 0.5
    %v1482 = vadd.f32 %v1481, 0.5
    %v1484 = vrot.slane %v1478, 2
    %v1486 = vmul.f32 %v1484, 0.5
    %v1487 = vtanh.pop %v1486
    %v1488 = vmul.f32 %v1487, 0.5
    %v1489 = vadd.f32 %v1488, 0.5
    %v1490 = vrot.slane %v1478, 4
    %v1492 = vmul.f32 %v1490, 0.5
    %v1493 = vtanh.pop %v1492
    %v1494 = vmul.f32 %v1493, 0.5
    %v1495 = vadd.f32 %v1494, 0.5
    %v1496 = vrot.slane %v1478, 6
    %v1498 = vtanh.pop %v1496
    %v1499 = vmul.f32 %v1489, %v944
    %v1500 = vmul.f32 %v1482, %v1498
    %v1501 = vadd.f32 %v1499, %v1500
    %v1502 = vtanh.pop %v1501
    %v1503 = vmul.f32 %v1495, %v1502
    %v1504 = vld [vmem:[#allocation12] sm:$0xff]
    %v1505 = vld [vmem:[#allocation12 + $0x8] sm:$0xff]
    %v1506 = vld [vmem:[#allocation12 + $0x10] sm:$0xff]
    %v1507 = vld [vmem:[#allocation12 + $0x18] sm:$0xff]
    %v1508 = vld [vmem:[#allocation12 + $0x20] sm:$0xff]
    %v1509 = vld [vmem:[#allocation12 + $0x28] sm:$0xff]
    %v1510 = vld [vmem:[#allocation12 + $0x30] sm:$0xff]
    %v1511 = vld [vmem:[#allocation12 + $0x38] sm:$0xff]
    %v1512 = vld [vmem:[#allocation12 + $0x40] sm:$0xff]
    %v1513 = vld [vmem:[#allocation12 + $0x48] sm:$0xff]
    %v1514 = vld [vmem:[#allocation12 + $0x50] sm:$0xff]
    %v1515 = vld [vmem:[#allocation12 + $0x58] sm:$0xff]
    %v1516 = vld [vmem:[#allocation12 + $0x60] sm:$0xff]
    %v1517 = vld [vmem:[#allocation12 + $0x68] sm:$0xff]
    %v1518 = vld [vmem:[#allocation12 + $0x70] sm:$0xff]
    %v1519 = vld [vmem:[#allocation12 + $0x78] sm:$0xff]
    %v1520 = vld [vmem:[#allocation12 + $0x80] sm:$0xff]
    %v1521 = vld [vmem:[#allocation12 + $0x88] sm:$0xff]
    %v1522 = vld [vmem:[#allocation12 + $0x90] sm:$0xff]
    %v1523 = vld [vmem:[#allocation12 + $0x98] sm:$0xff]
    %v1524 = vld [vmem:[#allocation12 + $0xa0] sm:$0xff]
    %v1525 = vld [vmem:[#allocation12 + $0xa8] sm:$0xff]
    %v1526 = vld [vmem:[#allocation12 + $0xb0] sm:$0xff]
    %v1527 = vld [vmem:[#allocation12 + $0xb8] sm:$0xff]
    %v1528 = vld [vmem:[#allocation12 + $0xc0] sm:$0xff]
    %v1529 = vld [vmem:[#allocation12 + $0xc8] sm:$0xff]
    %v1530 = vld [vmem:[#allocation12 + $0xd0] sm:$0xff]
    %v1531 = vld [vmem:[#allocation12 + $0xd8] sm:$0xff]
    %v1532 = vld [vmem:[#allocation12 + $0xe0] sm:$0xff]
    %v1533 = vld [vmem:[#allocation12 + $0xe8] sm:$0xff]
    %v1534 = vld [vmem:[#allocation12 + $0xf0] sm:$0xff]
    %v1535 = vld [vmem:[#allocation12 + $0xf8] sm:$0xff]
    %v1536 = vld [vmem:[#allocation12 + $0x100] sm:$0xff]
    %v1537 = vld [vmem:[#allocation12 + $0x108] sm:$0xff]
    %v1538 = vld [vmem:[#allocation12 + $0x110] sm:$0xff]
    %v1539 = vld [vmem:[#allocation12 + $0x118] sm:$0xff]
    %v1540 = vld [vmem:[#allocation12 + $0x120] sm:$0xff]
    %v1541 = vld [vmem:[#allocation12 + $0x128] sm:$0xff]
    %v1542 = vld [vmem:[#allocation12 + $0x130] sm:$0xff]
    %v1543 = vld [vmem:[#allocation12 + $0x138] sm:$0xff]
    %v1544 = vld [vmem:[#allocation12 + $0x140] sm:$0xff]
    %v1545 = vld [vmem:[#allocation12 + $0x148] sm:$0xff]
    %v1546 = vld [vmem:[#allocation12 + $0x150] sm:$0xff]
    %v1547 = vld [vmem:[#allocation12 + $0x158] sm:$0xff]
    %v1548 = vld [vmem:[#allocation12 + $0x160] sm:$0xff]
    %v1549 = vld [vmem:[#allocation12 + $0x168] sm:$0xff]
    %v1550 = vld [vmem:[#allocation12 + $0x170] sm:$0xff]
    %v1551 = vld [vmem:[#allocation12 + $0x178] sm:$0xff]
    %v1552 = vld [vmem:[#allocation12 + $0x180] sm:$0xff]
    %v1553 = vld [vmem:[#allocation12 + $0x188] sm:$0xff]
    %v1554 = vld [vmem:[#allocation12 + $0x190] sm:$0xff]
    %v1555 = vld [vmem:[#allocation12 + $0x198] sm:$0xff]
    %v1556 = vld [vmem:[#allocation12 + $0x1a0] sm:$0xff]
    %v1557 = vld [vmem:[#allocation12 + $0x1a8] sm:$0xff]
    %v1558 = vld [vmem:[#allocation12 + $0x1b0] sm:$0xff]
    %v1559 = vld [vmem:[#allocation12 + $0x1b8] sm:$0xff]
    %v1560 = vld [vmem:[#allocation12 + $0x1c0] sm:$0xff]
    %v1561 = vld [vmem:[#allocation12 + $0x1c8] sm:$0xff]
    %v1562 = vld [vmem:[#allocation12 + $0x1d0] sm:$0xff]
    %v1563 = vld [vmem:[#allocation12 + $0x1d8] sm:$0xff]
    %v1564 = vld [vmem:[#allocation12 + $0x1e0] sm:$0xff]
    %v1565 = vld [vmem:[#allocation12 + $0x1e8] sm:$0xff]
    %v1566 = vld [vmem:[#allocation12 + $0x1f0] sm:$0xff]
    %v1567 = vld [vmem:[#allocation12 + $0x1f8] sm:$0xff]
    %v1568 = vld [vmem:[#allocation12 + $0x200] sm:$0xff]
    %v1569 = vld [vmem:[#allocation12 + $0x208] sm:$0xff]
    %v1570 = vld [vmem:[#allocation12 + $0x210] sm:$0xff]
    %v1571 = vld [vmem:[#allocation12 + $0x218] sm:$0xff]
    %v1572 = vld [vmem:[#allocation12 + $0x220] sm:$0xff]
    %v1573 = vld [vmem:[#allocation12 + $0x228] sm:$0xff]
    %v1574 = vld [vmem:[#allocation12 + $0x230] sm:$0xff]
    %v1575 = vld [vmem:[#allocation12 + $0x238] sm:$0xff]
    %v1576 = vld [vmem:[#allocation12 + $0x240] sm:$0xff]
    %v1577 = vld [vmem:[#allocation12 + $0x248] sm:$0xff]
    %v1578 = vld [vmem:[#allocation12 + $0x250] sm:$0xff]
    %v1579 = vld [vmem:[#allocation12 + $0x258] sm:$0xff]
    %v1580 = vld [vmem:[#allocation12 + $0x260] sm:$0xff]
    %v1581 = vld [vmem:[#allocation12 + $0x268] sm:$0xff]
    %v1582 = vld [vmem:[#allocation12 + $0x270] sm:$0xff]
    %v1583 = vld [vmem:[#allocation12 + $0x278] sm:$0xff]
    %v1584 = vld [vmem:[#allocation12 + $0x280] sm:$0xff]
    %v1585 = vld [vmem:[#allocation12 + $0x288] sm:$0xff]
    %v1586 = vld [vmem:[#allocation12 + $0x290] sm:$0xff]
    %v1587 = vld [vmem:[#allocation12 + $0x298] sm:$0xff]
    %v1588 = vld [vmem:[#allocation12 + $0x2a0] sm:$0xff]
    %v1589 = vld [vmem:[#allocation12 + $0x2a8] sm:$0xff]
    %v1590 = vld [vmem:[#allocation12 + $0x2b0] sm:$0xff]
    %v1591 = vld [vmem:[#allocation12 + $0x2b8] sm:$0xff]
    %v1592 = vld [vmem:[#allocation12 + $0x2c0] sm:$0xff]
    %v1593 = vld [vmem:[#allocation12 + $0x2c8] sm:$0xff]
    %v1594 = vld [vmem:[#allocation12 + $0x2d0] sm:$0xff]
    %v1595 = vld [vmem:[#allocation12 + $0x2d8] sm:$0xff]
    %v1596 = vld [vmem:[#allocation12 + $0x2e0] sm:$0xff]
    %v1597 = vld [vmem:[#allocation12 + $0x2e8] sm:$0xff]
    %v1598 = vld [vmem:[#allocation12 + $0x2f0] sm:$0xff]
    %v1599 = vld [vmem:[#allocation12 + $0x2f8] sm:$0xff]
    %v1600 = vld [vmem:[#allocation12 + $0x300] sm:$0xff]
    %v1601 = vld [vmem:[#allocation12 + $0x308] sm:$0xff]
    %v1602 = vld [vmem:[#allocation12 + $0x310] sm:$0xff]
    %v1603 = vld [vmem:[#allocation12 + $0x318] sm:$0xff]
    %v1604 = vld [vmem:[#allocation12 + $0x320] sm:$0xff]
    %v1605 = vld [vmem:[#allocation12 + $0x328] sm:$0xff]
    %v1606 = vld [vmem:[#allocation12 + $0x330] sm:$0xff]
    %v1607 = vld [vmem:[#allocation12 + $0x338] sm:$0xff]
    %v1608 = vld [vmem:[#allocation12 + $0x340] sm:$0xff]
    %v1609 = vld [vmem:[#allocation12 + $0x348] sm:$0xff]
    %v1610 = vld [vmem:[#allocation12 + $0x350] sm:$0xff]
    %v1611 = vld [vmem:[#allocation12 + $0x358] sm:$0xff]
    %v1612 = vld [vmem:[#allocation12 + $0x360] sm:$0xff]
    %v1613 = vld [vmem:[#allocation12 + $0x368] sm:$0xff]
    %v1614 = vld [vmem:[#allocation12 + $0x370] sm:$0xff]
    %v1615 = vld [vmem:[#allocation12 + $0x378] sm:$0xff]
    %v1616 = vld [vmem:[#allocation12 + $0x380] sm:$0xff]
    %v1617 = vld [vmem:[#allocation12 + $0x388] sm:$0xff]
    %v1618 = vld [vmem:[#allocation12 + $0x390] sm:$0xff]
    %v1619 = vld [vmem:[#allocation12 + $0x398] sm:$0xff]
    %v1620 = vld [vmem:[#allocation12 + $0x3a0] sm:$0xff]
    %v1621 = vld [vmem:[#allocation12 + $0x3a8] sm:$0xff]
    %v1622 = vld [vmem:[#allocation12 + $0x3b0] sm:$0xff]
    %v1623 = vld [vmem:[#allocation12 + $0x3b8] sm:$0xff]
    %v1624 = vld [vmem:[#allocation12 + $0x3c0] sm:$0xff]
    %v1625 = vld [vmem:[#allocation12 + $0x3c8] sm:$0xff]
    %v1626 = vld [vmem:[#allocation12 + $0x3d0] sm:$0xff]
    %v1627 = vld [vmem:[#allocation12 + $0x3d8] sm:$0xff]
    %v1628 = vld [vmem:[#allocation12 + $0x3e0] sm:$0xff]
    %v1629 = vld [vmem:[#allocation12 + $0x3e8] sm:$0xff]
    %v1630 = vld [vmem:[#allocation12 + $0x3f0] sm:$0xff]
    %v1631 = vld [vmem:[#allocation12 + $0x3f8] sm:$0xff]
    %1632 = vmatprep.subr.mxu0 %v1565
    %1633 = vmatpush1.msra.mxu0 %v1564
    %1634 = vmatprep.subr.mxu0 %v1561
    %1635 = vmatpush1.msra.mxu0 %v1560
    %1636 = vmatprep.subr.mxu0 %v1557
    %1637 = vmatpush1.msra.mxu0 %v1556
    %1638 = vmatprep.subr.mxu0 %v1553
    %1639 = vmatpush1.msra.mxu0 %v1552
    %1640 = vmatprep.subr.mxu0 %v1549
    %1641 = vmatpush1.msra.mxu0 %v1548
    %1642 = vmatprep.subr.mxu0 %v1545
    %1643 = vmatpush1.msra.mxu0 %v1544
    %1644 = vmatprep.subr.mxu0 %v1541
    %1645 = vmatpush1.msra.mxu0 %v1540
    %1646 = vmatprep.subr.mxu0 %v1537
    %1647 = vmatpush1.msra.mxu0 %v1536
    %1648 = vmatprep.subr.mxu0 %v1533
    %1649 = vmatpush1.msra.mxu0 %v1532
    %1650 = vmatprep.subr.mxu0 %v1529
    %1651 = vmatpush1.msra.mxu0 %v1528
    %1652 = vmatprep.subr.mxu0 %v1525
    %1653 = vmatpush1.msra.mxu0 %v1524
    %1654 = vmatprep.subr.mxu0 %v1521
    %1655 = vmatpush1.msra.mxu0 %v1520
    %1656 = vmatprep.subr.mxu0 %v1517
    %1657 = vmatpush1.msra.mxu0 %v1516
    %1658 = vmatprep.subr.mxu0 %v1513
    %1659 = vmatpush1.msra.mxu0 %v1512
    %1660 = vmatprep.subr.mxu0 %v1509
    %1661 = vmatpush1.msra.mxu0 %v1508
    %1662 = vmatprep.subr.mxu0 %v1505
    %1663 = vmatpush1.msra.mxu0 %v1504
    %1664 = vmatprep.subr.mxu0 %v1629
    %1665 = vmatpush2.msra.mxu0 %v1628
    %1666 = vmatprep.subr.mxu0 %v1625
    %1667 = vmatpush2.msra.mxu0 %v1624
    %1668 = vmatprep.subr.mxu0 %v1621
    %1669 = vmatpush2.msra.mxu0 %v1620
    %1670 = vmatprep.subr.mxu0 %v1617
    %1671 = vmatpush2.msra.mxu0 %v1616
    %1672 = vmatprep.subr.mxu0 %v1613
    %1673 = vmatpush2.msra.mxu0 %v1612
    %1674 = vmatprep.subr.mxu0 %v1609
    %1675 = vmatpush2.msra.mxu0 %v1608
    %1676 = vmatprep.subr.mxu0 %v1605
    %1677 = vmatpush2.msra.mxu0 %v1604
    %1678 = vmatprep.subr.mxu0 %v1601
    %1679 = vmatpush2.msra.mxu0 %v1600
    %1680 = vmatprep.subr.mxu0 %v1597
    %1681 = vmatpush2.msra.mxu0 %v1596
    %1682 = vmatprep.subr.mxu0 %v1593
    %1683 = vmatpush2.msra.mxu0 %v1592
    %1684 = vmatprep.subr.mxu0 %v1589
    %1685 = vmatpush2.msra.mxu0 %v1588
    %1686 = vmatprep.subr.mxu0 %v1585
    %1687 = vmatpush2.msra.mxu0 %v1584
    %1688 = vmatprep.subr.mxu0 %v1581
    %1689 = vmatpush2.msra.mxu0 %v1580
    %1690 = vmatprep.subr.mxu0 %v1577
    %1691 = vmatpush2.msra.mxu0 %v1576
    %1692 = vmatprep.subr.mxu0 %v1573
    %1693 = vmatpush2.msra.mxu0 %v1572
    %1694 = vmatprep.subr.mxu0 %v1569
    %1695 = vmatpush2.msra.mxu0 %v1568
    %1696 = vmatprep.mubr.f32.mxu0 %v1234
    %1697 = vmatmul.mubr.f32.gmra.mxu0 %v1503
    %v1698 = vpop.f32.mrf.mxu0
    %v1699 = vadd.f32 %v503, %v1698
    %v1700 = vpop.f32.mrf.mxu0
    %v1701 = vadd.f32 %v507, %v1700
    %1702 = vdwg.mxu0
    %1703 = vmatprep.subr.mxu0 %v1567
    %1704 = vmatpush1.msra.mxu0 %v1566
    %1705 = vmatprep.subr.mxu0 %v1563
    %1706 = vmatpush1.msra.mxu0 %v1562
    %1707 = vmatprep.subr.mxu0 %v1559
    %1708 = vmatpush1.msra.mxu0 %v1558
    %1709 = vmatprep.subr.mxu0 %v1555
    %1710 = vmatpush1.msra.mxu0 %v1554
    %1711 = vmatprep.subr.mxu0 %v1551
    %1712 = vmatpush1.msra.mxu0 %v1550
    %1713 = vmatprep.subr.mxu0 %v1547
    %1714 = vmatpush1.msra.mxu0 %v1546
    %1715 = vmatprep.subr.mxu0 %v1543
    %1716 = vmatpush1.msra.mxu0 %v1542
    %1717 = vmatprep.subr.mxu0 %v1539
    %1718 = vmatpush1.msra.mxu0 %v1538
    %1719 = vmatprep.subr.mxu0 %v1535
    %1720 = vmatpush1.msra.mxu0 %v1534
    %1721 = vmatprep.subr.mxu0 %v1531
    %1722 = vmatpush1.msra.mxu0 %v1530
    %1723 = vmatprep.subr.mxu0 %v1527
    %1724 = vmatpush1.msra.mxu0 %v1526
    %1725 = vmatprep.subr.mxu0 %v1523
    %1726 = vmatpush1.msra.mxu0 %v1522
    %1727 = vmatprep.subr.mxu0 %v1519
    %1728 = vmatpush1.msra.mxu0 %v1518
    %1729 = vmatprep.subr.mxu0 %v1515
    %1730 = vmatpush1.msra.mxu0 %v1514
    %1731 = vmatprep.subr.mxu0 %v1511
    %1732 = vmatpush1.msra.mxu0 %v1510
    %1733 = vmatprep.subr.mxu0 %v1507
    %1734 = vmatpush1.msra.mxu0 %v1506
    %1735 = vmatprep.subr.mxu0 %v1631
    %1736 = vmatpush2.msra.mxu0 %v1630
    %1737 = vmatprep.subr.mxu0 %v1627
    %1738 = vmatpush2.msra.mxu0 %v1626
    %1739 = vmatprep.subr.mxu0 %v1623
    %1740 = vmatpush2.msra.mxu0 %v1622
    %1741 = vmatprep.subr.mxu0 %v1619
    %1742 = vmatpush2.msra.mxu0 %v1618
    %1743 = vmatprep.subr.mxu0 %v1615
    %1744 = vmatpush2.msra.mxu0 %v1614
    %1745 = vmatprep.subr.mxu0 %v1611
    %1746 = vmatpush2.msra.mxu0 %v1610
    %1747 = vmatprep.subr.mxu0 %v1607
    %1748 = vmatpush2.msra.mxu0 %v1606
    %1749 = vmatprep.subr.mxu0 %v1603
    %1750 = vmatpush2.msra.mxu0 %v1602
    %1751 = vmatprep.subr.mxu0 %v1599
    %1752 = vmatpush2.msra.mxu0 %v1598
    %1753 = vmatprep.subr.mxu0 %v1595
    %1754 = vmatpush2.msra.mxu0 %v1594
    %1755 = vmatprep.subr.mxu0 %v1591
    %1756 = vmatpush2.msra.mxu0 %v1590
    %1757 = vmatprep.subr.mxu0 %v1587
    %1758 = vmatpush2.msra.mxu0 %v1586
    %1759 = vmatprep.subr.mxu0 %v1583
    %1760 = vmatpush2.msra.mxu0 %v1582
    %1761 = vmatprep.subr.mxu0 %v1579
    %1762 = vmatpush2.msra.mxu0 %v1578
    %1763 = vmatprep.subr.mxu0 %v1575
    %1764 = vmatpush2.msra.mxu0 %v1574
    %1765 = vmatprep.subr.mxu0 %v1571
    %1766 = vmatpush2.msra.mxu0 %v1570
    %1767 = vmatprep.mubr.f32.mxu0 %v1234
    %1768 = vmatmul.mubr.f32.gmra.mxu0 %v1503
    %v1769 = vpop.f32.mrf.mxu0
    %v1770 = vadd.f32 %v511, %v1769
    %v1771 = vpop.f32.mrf.mxu0
    %v1772 = vadd.f32 %v515, %v1771
    %1773 = vdwg.mxu0
    %v1774 = vmul.f32 %v1699, 0.5
    %v1775 = vtanh.pop %v1774
    %v1776 = vmul.f32 %v1775, 0.5
    %v1777 = vadd.f32 %v1776, 0.5
    %v1778 = vmul.f32 %v1701, 0.5
    %v1779 = vtanh.pop %v1778
    %v1780 = vmul.f32 %v1779, 0.5
    %v1781 = vadd.f32 %v1780, 0.5
    %v1782 = vmul.f32 %v1770, 0.5
    %v1783 = vtanh.pop %v1782
    %v1784 = vmul.f32 %v1783, 0.5
    %v1785 = vadd.f32 %v1784, 0.5
    %v1786 = vtanh.pop %v1772
    %v1787 = vmul.f32 %v1781, %v1232
    %v1788 = vmul.f32 %v1777, %v1786
    %v1789 = vadd.f32 %v1787, %v1788
    %v1790 = vtanh.pop %v1789
    %v1791 = vmul.f32 %v1785, %v1790
    %s1792 = scalar_lea.vmem [#allocation13], 4
    %1793 = vst [vmem:[%s1792] sm:$0x3] %v1791
    %s1794 = sadd.s32 %s108, 2
    %p1795 = scmp.eq.s32.totalorder %s1794, 7
    // Predicated region
    $region58: #{tpu_custom_call.1} parent=1 // pred_check
      %p1796 = pneg %p1795
    $region59: #{tpu_custom_call.1} parent=1 // pred_check_branch
      %1798 = sbr.rel (%p1796) target = $region61
    $region60: #{tpu_custom_call.1} parent=1 // pred_region
      %1799 = vst [vmem:[#allocation14] sm:$0x3] %v1503
      %1800 = vst [vmem:[#allocation16] sm:$0x3] %v1501
      %s1801 = scalar_lea.vmem [#allocation14], 2
      %1802 = vst [vmem:[%s1801] sm:$0x3] %v1791
      %s1803 = scalar_lea.vmem [#allocation16], 2
      %1804 = vst [vmem:[%s1803] sm:$0x3] %v1789
    $region61: #{tpu_custom_call.1} parent=1 // pred_fallthru
      _
    %s1805 = scalar_lea.vmem [#allocation4], 24
    %v1806 = vld [vmem:[%s1805] sm:$0xff]
    %v1807 = vld [vmem:[#allocation10] sm:$0xff]
    %v1808 = vld [vmem:[#allocation10 + $0x8] sm:$0xff]
    %v1809 = vld [vmem:[#allocation10 + $0x10] sm:$0xff]
    %v1810 = vld [vmem:[#allocation10 + $0x18] sm:$0xff]
    %v1811 = vld [vmem:[#allocation10 + $0x20] sm:$0xff]
    %v1812 = vld [vmem:[#allocation10 + $0x28] sm:$0xff]
    %v1813 = vld [vmem:[#allocation10 + $0x30] sm:$0xff]
    %v1814 = vld [vmem:[#allocation10 + $0x38] sm:$0xff]
    %v1815 = vld [vmem:[#allocation10 + $0x40] sm:$0xff]
    %v1816 = vld [vmem:[#allocation10 + $0x48] sm:$0xff]
    %v1817 = vld [vmem:[#allocation10 + $0x50] sm:$0xff]
    %v1818 = vld [vmem:[#allocation10 + $0x58] sm:$0xff]
    %v1819 = vld [vmem:[#allocation10 + $0x60] sm:$0xff]
    %v1820 = vld [vmem:[#allocation10 + $0x68] sm:$0xff]
    %v1821 = vld [vmem:[#allocation10 + $0x70] sm:$0xff]
    %v1822 = vld [vmem:[#allocation10 + $0x78] sm:$0xff]
    %v1823 = vld [vmem:[#allocation10 + $0x80] sm:$0xff]
    %v1824 = vld [vmem:[#allocation10 + $0x88] sm:$0xff]
    %v1825 = vld [vmem:[#allocation10 + $0x90] sm:$0xff]
    %v1826 = vld [vmem:[#allocation10 + $0x98] sm:$0xff]
    %v1827 = vld [vmem:[#allocation10 + $0xa0] sm:$0xff]
    %v1828 = vld [vmem:[#allocation10 + $0xa8] sm:$0xff]
    %v1829 = vld [vmem:[#allocation10 + $0xb0] sm:$0xff]
    %v1830 = vld [vmem:[#allocation10 + $0xb8] sm:$0xff]
    %v1831 = vld [vmem:[#allocation10 + $0xc0] sm:$0xff]
    %v1832 = vld [vmem:[#allocation10 + $0xc8] sm:$0xff]
    %v1833 = vld [vmem:[#allocation10 + $0xd0] sm:$0xff]
    %v1834 = vld [vmem:[#allocation10 + $0xd8] sm:$0xff]
    %v1835 = vld [vmem:[#allocation10 + $0xe0] sm:$0xff]
    %v1836 = vld [vmem:[#allocation10 + $0xe8] sm:$0xff]
    %v1837 = vld [vmem:[#allocation10 + $0xf0] sm:$0xff]
    %v1838 = vld [vmem:[#allocation10 + $0xf8] sm:$0xff]
    %v1839 = vld [vmem:[#allocation10 + $0x100] sm:$0xff]
    %v1840 = vld [vmem:[#allocation10 + $0x108] sm:$0xff]
    %v1841 = vld [vmem:[#allocation10 + $0x110] sm:$0xff]
    %v1842 = vld [vmem:[#allocation10 + $0x118] sm:$0xff]
    %v1843 = vld [vmem:[#allocation10 + $0x120] sm:$0xff]
    %v1844 = vld [vmem:[#allocation10 + $0x128] sm:$0xff]
    %v1845 = vld [vmem:[#allocation10 + $0x130] sm:$0xff]
    %v1846 = vld [vmem:[#allocation10 + $0x138] sm:$0xff]
    %v1847 = vld [vmem:[#allocation10 + $0x140] sm:$0xff]
    %v1848 = vld [vmem:[#allocation10 + $0x148] sm:$0xff]
    %v1849 = vld [vmem:[#allocation10 + $0x150] sm:$0xff]
    %v1850 = vld [vmem:[#allocation10 + $0x158] sm:$0xff]
    %v1851 = vld [vmem:[#allocation10 + $0x160] sm:$0xff]
    %v1852 = vld [vmem:[#allocation10 + $0x168] sm:$0xff]
    %v1853 = vld [vmem:[#allocation10 + $0x170] sm:$0xff]
    %v1854 = vld [vmem:[#allocation10 + $0x178] sm:$0xff]
    %v1855 = vld [vmem:[#allocation10 + $0x180] sm:$0xff]
    %v1856 = vld [vmem:[#allocation10 + $0x188] sm:$0xff]
    %v1857 = vld [vmem:[#allocation10 + $0x190] sm:$0xff]
    %v1858 = vld [vmem:[#allocation10 + $0x198] sm:$0xff]
    %v1859 = vld [vmem:[#allocation10 + $0x1a0] sm:$0xff]
    %v1860 = vld [vmem:[#allocation10 + $0x1a8] sm:$0xff]
    %v1861 = vld [vmem:[#allocation10 + $0x1b0] sm:$0xff]
    %v1862 = vld [vmem:[#allocation10 + $0x1b8] sm:$0xff]
    %v1863 = vld [vmem:[#allocation10 + $0x1c0] sm:$0xff]
    %v1864 = vld [vmem:[#allocation10 + $0x1c8] sm:$0xff]
    %v1865 = vld [vmem:[#allocation10 + $0x1d0] sm:$0xff]
    %v1866 = vld [vmem:[#allocation10 + $0x1d8] sm:$0xff]
    %v1867 = vld [vmem:[#allocation10 + $0x1e0] sm:$0xff]
    %v1868 = vld [vmem:[#allocation10 + $0x1e8] sm:$0xff]
    %v1869 = vld [vmem:[#allocation10 + $0x1f0] sm:$0xff]
    %v1870 = vld [vmem:[#allocation10 + $0x1f8] sm:$0xff]
    %1871 = vmatprep.subr.mxu0 %v1868
    %1872 = vmatpush1.msra.mxu0 %v1867
    %1873 = vmatprep.subr.mxu0 %v1864
    %1874 = vmatpush1.msra.mxu0 %v1863
    %1875 = vmatprep.subr.mxu0 %v1860
    %1876 = vmatpush1.msra.mxu0 %v1859
    %1877 = vmatprep.subr.mxu0 %v1856
    %1878 = vmatpush1.msra.mxu0 %v1855
    %1879 = vmatprep.subr.mxu0 %v1852
    %1880 = vmatpush1.msra.mxu0 %v1851
    %1881 = vmatprep.subr.mxu0 %v1848
    %1882 = vmatpush1.msra.mxu0 %v1847
    %1883 = vmatprep.subr.mxu0 %v1844
    %1884 = vmatpush1.msra.mxu0 %v1843
    %1885 = vmatprep.subr.mxu0 %v1840
    %1886 = vmatpush1.msra.mxu0 %v1839
    %1887 = vmatprep.subr.mxu0 %v1836
    %1888 = vmatpush1.msra.mxu0 %v1835
    %1889 = vmatprep.subr.mxu0 %v1832
    %1890 = vmatpush1.msra.mxu0 %v1831
    %1891 = vmatprep.subr.mxu0 %v1828
    %1892 = vmatpush1.msra.mxu0 %v1827
    %1893 = vmatprep.subr.mxu0 %v1824
    %1894 = vmatpush1.msra.mxu0 %v1823
    %1895 = vmatprep.subr.mxu0 %v1820
    %1896 = vmatpush1.msra.mxu0 %v1819
    %1897 = vmatprep.subr.mxu0 %v1816
    %1898 = vmatpush1.msra.mxu0 %v1815
    %1899 = vmatprep.subr.mxu0 %v1812
    %1900 = vmatpush1.msra.mxu0 %v1811
    %1901 = vmatprep.subr.mxu0 %v1808
    %1902 = vmatpush1.msra.mxu0 %v1807
    %1903 = vmatprep.subr.mxu0 0.0
    %1904 = vmatpush2.msra.mxu0 0.0
    %1905 = vmatprep.subr.mxu0 0.0
    %1906 = vmatpush2.msra.mxu0 0.0
    %1907 = vmatprep.subr.mxu0 0.0
    %1908 = vmatpush2.msra.mxu0 0.0
    %1909 = vmatprep.subr.mxu0 0.0
    %1910 = vmatpush2.msra.mxu0 0.0
    %1911 = vmatprep.subr.mxu0 0.0
    %1912 = vmatpush2.msra.mxu0 0.0
    %1913 = vmatprep.subr.mxu0 0.0
    %1914 = vmatpush2.msra.mxu0 0.0
    %1915 = vmatprep.subr.mxu0 0.0
    %1916 = vmatpush2.msra.mxu0 0.0
    %1917 = vmatprep.subr.mxu0 0.0
    %1918 = vmatpush2.msra.mxu0 0.0
    %1919 = vmatprep.subr.mxu0 0.0
    %1920 = vmatpush2.msra.mxu0 0.0
    %1921 = vmatprep.subr.mxu0 0.0
    %1922 = vmatpush2.msra.mxu0 0.0
    %1923 = vmatprep.subr.mxu0 0.0
    %1924 = vmatpush2.msra.mxu0 0.0
    %1925 = vmatprep.subr.mxu0 0.0
    %1926 = vmatpush2.msra.mxu0 0.0
    %1927 = vmatprep.subr.mxu0 0.0
    %1928 = vmatpush2.msra.mxu0 0.0
    %1929 = vmatprep.subr.mxu0 0.0
    %1930 = vmatpush2.msra.mxu0 0.0
    %1931 = vmatprep.subr.mxu0 0.0
    %1932 = vmatpush2.msra.mxu0 0.0
    %1933 = vmatprep.subr.mxu0 0.0
    %1934 = vmatpush2.msra.mxu0 0.0
    %1935 = vmatprep.mubr.f32.mxu0 0.0
    %1936 = vmatmul.mubr.f32.gmra.mxu0 %v1503
    %v1937 = vpop.f32.mrf.mxu0
    %v1938 = vadd.f32 0.0, %v1937
    %v1939 = vpop.f32.mrf.mxu0
    %v1940 = vadd.f32 0.0, %v1939
    %1941 = vdwg.mxu0
    %1942 = vmatprep.subr.mxu0 %v1870
    %1943 = vmatpush1.msra.mxu0 %v1869
    %1944 = vmatprep.subr.mxu0 %v1866
    %1945 = vmatpush1.msra.mxu0 %v1865
    %1946 = vmatprep.subr.mxu0 %v1862
    %1947 = vmatpush1.msra.mxu0 %v1861
    %1948 = vmatprep.subr.mxu0 %v1858
    %1949 = vmatpush1.msra.mxu0 %v1857
    %1950 = vmatprep.subr.mxu0 %v1854
    %1951 = vmatpush1.msra.mxu0 %v1853
    %1952 = vmatprep.subr.mxu0 %v1850
    %1953 = vmatpush1.msra.mxu0 %v1849
    %1954 = vmatprep.subr.mxu0 %v1846
    %1955 = vmatpush1.msra.mxu0 %v1845
    %1956 = vmatprep.subr.mxu0 %v1842
    %1957 = vmatpush1.msra.mxu0 %v1841
    %1958 = vmatprep.subr.mxu0 %v1838
    %1959 = vmatpush1.msra.mxu0 %v1837
    %1960 = vmatprep.subr.mxu0 %v1834
    %1961 = vmatpush1.msra.mxu0 %v1833
    %1962 = vmatprep.subr.mxu0 %v1830
    %1963 = vmatpush1.msra.mxu0 %v1829
    %1964 = vmatprep.subr.mxu0 %v1826
    %1965 = vmatpush1.msra.mxu0 %v1825
    %1966 = vmatprep.subr.mxu0 %v1822
    %1967 = vmatpush1.msra.mxu0 %v1821
    %1968 = vmatprep.subr.mxu0 %v1818
    %1969 = vmatpush1.msra.mxu0 %v1817
    %1970 = vmatprep.subr.mxu0 %v1814
    %1971 = vmatpush1.msra.mxu0 %v1813
    %1972 = vmatprep.subr.mxu0 %v1810
    %1973 = vmatpush1.msra.mxu0 %v1809
    %1974 = vmatprep.subr.mxu0 0.0
    %1975 = vmatpush2.msra.mxu0 0.0
    %1976 = vmatprep.subr.mxu0 0.0
    %1977 = vmatpush2.msra.mxu0 0.0
    %1978 = vmatprep.subr.mxu0 0.0
    %1979 = vmatpush2.msra.mxu0 0.0
    %1980 = vmatprep.subr.mxu0 0.0
    %1981 = vmatpush2.msra.mxu0 0.0
    %1982 = vmatprep.subr.mxu0 0.0
    %1983 = vmatpush2.msra.mxu0 0.0
    %1984 = vmatprep.subr.mxu0 0.0
    %1985 = vmatpush2.msra.mxu0 0.0
    %1986 = vmatprep.subr.mxu0 0.0
    %1987 = vmatpush2.msra.mxu0 0.0
    %1988 = vmatprep.subr.mxu0 0.0
    %1989 = vmatpush2.msra.mxu0 0.0
    %1990 = vmatprep.subr.mxu0 0.0
    %1991 = vmatpush2.msra.mxu0 0.0
    %1992 = vmatprep.subr.mxu0 0.0
    %1993 = vmatpush2.msra.mxu0 0.0
    %1994 = vmatprep.subr.mxu0 0.0
    %1995 = vmatpush2.msra.mxu0 0.0
    %1996 = vmatprep.subr.mxu0 0.0
    %1997 = vmatpush2.msra.mxu0 0.0
    %1998 = vmatprep.subr.mxu0 0.0
    %1999 = vmatpush2.msra.mxu0 0.0
    %2000 = vmatprep.subr.mxu0 0.0
    %2001 = vmatpush2.msra.mxu0 0.0
    %2002 = vmatprep.subr.mxu0 0.0
    %2003 = vmatpush2.msra.mxu0 0.0
    %2004 = vmatprep.subr.mxu0 0.0
    %2005 = vmatpush2.msra.mxu0 0.0
    %2006 = vmatprep.mubr.f32.mxu0 0.0
    %2007 = vmatmul.mubr.f32.gmra.mxu0 %v1503
    %v2008 = vpop.f32.mrf.mxu0
    %v2009 = vadd.f32 0.0, %v2008
    %v2010 = vpop.f32.mrf.mxu0
    %v2011 = vadd.f32 0.0, %v2010
    %2012 = vdwg.mxu0
    %v2017 = vcombine.low %v1938, %v1940
    %v2018 = vcombine.low %v2009, %v2011
    %v2020 = vunpack.c.l.s4 1983009808
    %v2021 = vunpack.c.0.s8 %v2020
    %v2022 = vlaneseq
    %v2023 = vshrl.u32 %v2022, 7
    %v2024 = vsub.s32 %v2021, %v2023
    %v2025 = vrot.slane %v2017, %v2024
    %v2027 = vunpack.c.l.s4 1983009808
    %v2028 = vunpack.c.0.s8 %v2027
    %v2029 = vlaneseq
    %v2030 = vshrl.u32 %v2029, 7
    %v2031 = vsub.s32 %v2028, %v2030
    %v2032 = vrot.slane %v2018, %v2031
    %v2033 = vcombine.low %v2025, %v2032
    %v2035 = vadd.f32 %v1806, %v2033
    %v2036 = vmul.f32 %v2035, 0.5
    %v2037 = vtanh.pop %v2036
    %v2038 = vmul.f32 %v2037, 0.5
    %v2039 = vadd.f32 %v2038, 0.5
    %v2041 = vrot.slane %v2035, 2
    %v2043 = vmul.f32 %v2041, 0.5
    %v2044 = vtanh.pop %v2043
    %v2045 = vmul.f32 %v2044, 0.5
    %v2046 = vadd.f32 %v2045, 0.5
    %v2047 = vrot.slane %v2035, 4
    %v2049 = vmul.f32 %v2047, 0.5
    %v2050 = vtanh.pop %v2049
    %v2051 = vmul.f32 %v2050, 0.5
    %v2052 = vadd.f32 %v2051, 0.5
    %v2053 = vrot.slane %v2035, 6
    %v2055 = vtanh.pop %v2053
    %v2056 = vmul.f32 %v2046, %v1501
    %v2057 = vmul.f32 %v2039, %v2055
    %v2058 = vadd.f32 %v2056, %v2057
    %v2059 = vtanh.pop %v2058
    %v2060 = vmul.f32 %v2052, %v2059
    %v2061 = vld [vmem:[#allocation12] sm:$0xff]
    %v2062 = vld [vmem:[#allocation12 + $0x8] sm:$0xff]
    %v2063 = vld [vmem:[#allocation12 + $0x10] sm:$0xff]
    %v2064 = vld [vmem:[#allocation12 + $0x18] sm:$0xff]
    %v2065 = vld [vmem:[#allocation12 + $0x20] sm:$0xff]
    %v2066 = vld [vmem:[#allocation12 + $0x28] sm:$0xff]
    %v2067 = vld [vmem:[#allocation12 + $0x30] sm:$0xff]
    %v2068 = vld [vmem:[#allocation12 + $0x38] sm:$0xff]
    %v2069 = vld [vmem:[#allocation12 + $0x40] sm:$0xff]
    %v2070 = vld [vmem:[#allocation12 + $0x48] sm:$0xff]
    %v2071 = vld [vmem:[#allocation12 + $0x50] sm:$0xff]
    %v2072 = vld [vmem:[#allocation12 + $0x58] sm:$0xff]
    %v2073 = vld [vmem:[#allocation12 + $0x60] sm:$0xff]
    %v2074 = vld [vmem:[#allocation12 + $0x68] sm:$0xff]
    %v2075 = vld [vmem:[#allocation12 + $0x70] sm:$0xff]
    %v2076 = vld [vmem:[#allocation12 + $0x78] sm:$0xff]
    %v2077 = vld [vmem:[#allocation12 + $0x80] sm:$0xff]
    %v2078 = vld [vmem:[#allocation12 + $0x88] sm:$0xff]
    %v2079 = vld [vmem:[#allocation12 + $0x90] sm:$0xff]
    %v2080 = vld [vmem:[#allocation12 + $0x98] sm:$0xff]
    %v2081 = vld [vmem:[#allocation12 + $0xa0] sm:$0xff]
    %v2082 = vld [vmem:[#allocation12 + $0xa8] sm:$0xff]
    %v2083 = vld [vmem:[#allocation12 + $0xb0] sm:$0xff]
    %v2084 = vld [vmem:[#allocation12 + $0xb8] sm:$0xff]
    %v2085 = vld [vmem:[#allocation12 + $0xc0] sm:$0xff]
    %v2086 = vld [vmem:[#allocation12 + $0xc8] sm:$0xff]
    %v2087 = vld [vmem:[#allocation12 + $0xd0] sm:$0xff]
    %v2088 = vld [vmem:[#allocation12 + $0xd8] sm:$0xff]
    %v2089 = vld [vmem:[#allocation12 + $0xe0] sm:$0xff]
    %v2090 = vld [vmem:[#allocation12 + $0xe8] sm:$0xff]
    %v2091 = vld [vmem:[#allocation12 + $0xf0] sm:$0xff]
    %v2092 = vld [vmem:[#allocation12 + $0xf8] sm:$0xff]
    %v2093 = vld [vmem:[#allocation12 + $0x100] sm:$0xff]
    %v2094 = vld [vmem:[#allocation12 + $0x108] sm:$0xff]
    %v2095 = vld [vmem:[#allocation12 + $0x110] sm:$0xff]
    %v2096 = vld [vmem:[#allocation12 + $0x118] sm:$0xff]
    %v2097 = vld [vmem:[#allocation12 + $0x120] sm:$0xff]
    %v2098 = vld [vmem:[#allocation12 + $0x128] sm:$0xff]
    %v2099 = vld [vmem:[#allocation12 + $0x130] sm:$0xff]
    %v2100 = vld [vmem:[#allocation12 + $0x138] sm:$0xff]
    %v2101 = vld [vmem:[#allocation12 + $0x140] sm:$0xff]
    %v2102 = vld [vmem:[#allocation12 + $0x148] sm:$0xff]
    %v2103 = vld [vmem:[#allocation12 + $0x150] sm:$0xff]
    %v2104 = vld [vmem:[#allocation12 + $0x158] sm:$0xff]
    %v2105 = vld [vmem:[#allocation12 + $0x160] sm:$0xff]
    %v2106 = vld [vmem:[#allocation12 + $0x168] sm:$0xff]
    %v2107 = vld [vmem:[#allocation12 + $0x170] sm:$0xff]
    %v2108 = vld [vmem:[#allocation12 + $0x178] sm:$0xff]
    %v2109 = vld [vmem:[#allocation12 + $0x180] sm:$0xff]
    %v2110 = vld [vmem:[#allocation12 + $0x188] sm:$0xff]
    %v2111 = vld [vmem:[#allocation12 + $0x190] sm:$0xff]
    %v2112 = vld [vmem:[#allocation12 + $0x198] sm:$0xff]
    %v2113 = vld [vmem:[#allocation12 + $0x1a0] sm:$0xff]
    %v2114 = vld [vmem:[#allocation12 + $0x1a8] sm:$0xff]
    %v2115 = vld [vmem:[#allocation12 + $0x1b0] sm:$0xff]
    %v2116 = vld [vmem:[#allocation12 + $0x1b8] sm:$0xff]
    %v2117 = vld [vmem:[#allocation12 + $0x1c0] sm:$0xff]
    %v2118 = vld [vmem:[#allocation12 + $0x1c8] sm:$0xff]
    %v2119 = vld [vmem:[#allocation12 + $0x1d0] sm:$0xff]
    %v2120 = vld [vmem:[#allocation12 + $0x1d8] sm:$0xff]
    %v2121 = vld [vmem:[#allocation12 + $0x1e0] sm:$0xff]
    %v2122 = vld [vmem:[#allocation12 + $0x1e8] sm:$0xff]
    %v2123 = vld [vmem:[#allocation12 + $0x1f0] sm:$0xff]
    %v2124 = vld [vmem:[#allocation12 + $0x1f8] sm:$0xff]
    %v2125 = vld [vmem:[#allocation12 + $0x200] sm:$0xff]
    %v2126 = vld [vmem:[#allocation12 + $0x208] sm:$0xff]
    %v2127 = vld [vmem:[#allocation12 + $0x210] sm:$0xff]
    %v2128 = vld [vmem:[#allocation12 + $0x218] sm:$0xff]
    %v2129 = vld [vmem:[#allocation12 + $0x220] sm:$0xff]
    %v2130 = vld [vmem:[#allocation12 + $0x228] sm:$0xff]
    %v2131 = vld [vmem:[#allocation12 + $0x230] sm:$0xff]
    %v2132 = vld [vmem:[#allocation12 + $0x238] sm:$0xff]
    %v2133 = vld [vmem:[#allocation12 + $0x240] sm:$0xff]
    %v2134 = vld [vmem:[#allocation12 + $0x248] sm:$0xff]
    %v2135 = vld [vmem:[#allocation12 + $0x250] sm:$0xff]
    %v2136 = vld [vmem:[#allocation12 + $0x258] sm:$0xff]
    %v2137 = vld [vmem:[#allocation12 + $0x260] sm:$0xff]
    %v2138 = vld [vmem:[#allocation12 + $0x268] sm:$0xff]
    %v2139 = vld [vmem:[#allocation12 + $0x270] sm:$0xff]
    %v2140 = vld [vmem:[#allocation12 + $0x278] sm:$0xff]
    %v2141 = vld [vmem:[#allocation12 + $0x280] sm:$0xff]
    %v2142 = vld [vmem:[#allocation12 + $0x288] sm:$0xff]
    %v2143 = vld [vmem:[#allocation12 + $0x290] sm:$0xff]
    %v2144 = vld [vmem:[#allocation12 + $0x298] sm:$0xff]
    %v2145 = vld [vmem:[#allocation12 + $0x2a0] sm:$0xff]
    %v2146 = vld [vmem:[#allocation12 + $0x2a8] sm:$0xff]
    %v2147 = vld [vmem:[#allocation12 + $0x2b0] sm:$0xff]
    %v2148 = vld [vmem:[#allocation12 + $0x2b8] sm:$0xff]
    %v2149 = vld [vmem:[#allocation12 + $0x2c0] sm:$0xff]
    %v2150 = vld [vmem:[#allocation12 + $0x2c8] sm:$0xff]
    %v2151 = vld [vmem:[#allocation12 + $0x2d0] sm:$0xff]
    %v2152 = vld [vmem:[#allocation12 + $0x2d8] sm:$0xff]
    %v2153 = vld [vmem:[#allocation12 + $0x2e0] sm:$0xff]
    %v2154 = vld [vmem:[#allocation12 + $0x2e8] sm:$0xff]
    %v2155 = vld [vmem:[#allocation12 + $0x2f0] sm:$0xff]
    %v2156 = vld [vmem:[#allocation12 + $0x2f8] sm:$0xff]
    %v2157 = vld [vmem:[#allocation12 + $0x300] sm:$0xff]
    %v2158 = vld [vmem:[#allocation12 + $0x308] sm:$0xff]
    %v2159 = vld [vmem:[#allocation12 + $0x310] sm:$0xff]
    %v2160 = vld [vmem:[#allocation12 + $0x318] sm:$0xff]
    %v2161 = vld [vmem:[#allocation12 + $0x320] sm:$0xff]
    %v2162 = vld [vmem:[#allocation12 + $0x328] sm:$0xff]
    %v2163 = vld [vmem:[#allocation12 + $0x330] sm:$0xff]
    %v2164 = vld [vmem:[#allocation12 + $0x338] sm:$0xff]
    %v2165 = vld [vmem:[#allocation12 + $0x340] sm:$0xff]
    %v2166 = vld [vmem:[#allocation12 + $0x348] sm:$0xff]
    %v2167 = vld [vmem:[#allocation12 + $0x350] sm:$0xff]
    %v2168 = vld [vmem:[#allocation12 + $0x358] sm:$0xff]
    %v2169 = vld [vmem:[#allocation12 + $0x360] sm:$0xff]
    %v2170 = vld [vmem:[#allocation12 + $0x368] sm:$0xff]
    %v2171 = vld [vmem:[#allocation12 + $0x370] sm:$0xff]
    %v2172 = vld [vmem:[#allocation12 + $0x378] sm:$0xff]
    %v2173 = vld [vmem:[#allocation12 + $0x380] sm:$0xff]
    %v2174 = vld [vmem:[#allocation12 + $0x388] sm:$0xff]
    %v2175 = vld [vmem:[#allocation12 + $0x390] sm:$0xff]
    %v2176 = vld [vmem:[#allocation12 + $0x398] sm:$0xff]
    %v2177 = vld [vmem:[#allocation12 + $0x3a0] sm:$0xff]
    %v2178 = vld [vmem:[#allocation12 + $0x3a8] sm:$0xff]
    %v2179 = vld [vmem:[#allocation12 + $0x3b0] sm:$0xff]
    %v2180 = vld [vmem:[#allocation12 + $0x3b8] sm:$0xff]
    %v2181 = vld [vmem:[#allocation12 + $0x3c0] sm:$0xff]
    %v2182 = vld [vmem:[#allocation12 + $0x3c8] sm:$0xff]
    %v2183 = vld [vmem:[#allocation12 + $0x3d0] sm:$0xff]
    %v2184 = vld [vmem:[#allocation12 + $0x3d8] sm:$0xff]
    %v2185 = vld [vmem:[#allocation12 + $0x3e0] sm:$0xff]
    %v2186 = vld [vmem:[#allocation12 + $0x3e8] sm:$0xff]
    %v2187 = vld [vmem:[#allocation12 + $0x3f0] sm:$0xff]
    %v2188 = vld [vmem:[#allocation12 + $0x3f8] sm:$0xff]
    %2189 = vmatprep.subr.mxu0 %v2122
    %2190 = vmatpush1.msra.mxu0 %v2121
    %2191 = vmatprep.subr.mxu0 %v2118
    %2192 = vmatpush1.msra.mxu0 %v2117
    %2193 = vmatprep.subr.mxu0 %v2114
    %2194 = vmatpush1.msra.mxu0 %v2113
    %2195 = vmatprep.subr.mxu0 %v2110
    %2196 = vmatpush1.msra.mxu0 %v2109
    %2197 = vmatprep.subr.mxu0 %v2106
    %2198 = vmatpush1.msra.mxu0 %v2105
    %2199 = vmatprep.subr.mxu0 %v2102
    %2200 = vmatpush1.msra.mxu0 %v2101
    %2201 = vmatprep.subr.mxu0 %v2098
    %2202 = vmatpush1.msra.mxu0 %v2097
    %2203 = vmatprep.subr.mxu0 %v2094
    %2204 = vmatpush1.msra.mxu0 %v2093
    %2205 = vmatprep.subr.mxu0 %v2090
    %2206 = vmatpush1.msra.mxu0 %v2089
    %2207 = vmatprep.subr.mxu0 %v2086
    %2208 = vmatpush1.msra.mxu0 %v2085
    %2209 = vmatprep.subr.mxu0 %v2082
    %2210 = vmatpush1.msra.mxu0 %v2081
    %2211 = vmatprep.subr.mxu0 %v2078
    %2212 = vmatpush1.msra.mxu0 %v2077
    %2213 = vmatprep.subr.mxu0 %v2074
    %2214 = vmatpush1.msra.mxu0 %v2073
    %2215 = vmatprep.subr.mxu0 %v2070
    %2216 = vmatpush1.msra.mxu0 %v2069
    %2217 = vmatprep.subr.mxu0 %v2066
    %2218 = vmatpush1.msra.mxu0 %v2065
    %2219 = vmatprep.subr.mxu0 %v2062
    %2220 = vmatpush1.msra.mxu0 %v2061
    %2221 = vmatprep.subr.mxu0 %v2186
    %2222 = vmatpush2.msra.mxu0 %v2185
    %2223 = vmatprep.subr.mxu0 %v2182
    %2224 = vmatpush2.msra.mxu0 %v2181
    %2225 = vmatprep.subr.mxu0 %v2178
    %2226 = vmatpush2.msra.mxu0 %v2177
    %2227 = vmatprep.subr.mxu0 %v2174
    %2228 = vmatpush2.msra.mxu0 %v2173
    %2229 = vmatprep.subr.mxu0 %v2170
    %2230 = vmatpush2.msra.mxu0 %v2169
    %2231 = vmatprep.subr.mxu0 %v2166
    %2232 = vmatpush2.msra.mxu0 %v2165
    %2233 = vmatprep.subr.mxu0 %v2162
    %2234 = vmatpush2.msra.mxu0 %v2161
    %2235 = vmatprep.subr.mxu0 %v2158
    %2236 = vmatpush2.msra.mxu0 %v2157
    %2237 = vmatprep.subr.mxu0 %v2154
    %2238 = vmatpush2.msra.mxu0 %v2153
    %2239 = vmatprep.subr.mxu0 %v2150
    %2240 = vmatpush2.msra.mxu0 %v2149
    %2241 = vmatprep.subr.mxu0 %v2146
    %2242 = vmatpush2.msra.mxu0 %v2145
    %2243 = vmatprep.subr.mxu0 %v2142
    %2244 = vmatpush2.msra.mxu0 %v2141
    %2245 = vmatprep.subr.mxu0 %v2138
    %2246 = vmatpush2.msra.mxu0 %v2137
    %2247 = vmatprep.subr.mxu0 %v2134
    %2248 = vmatpush2.msra.mxu0 %v2133
    %2249 = vmatprep.subr.mxu0 %v2130
    %2250 = vmatpush2.msra.mxu0 %v2129
    %2251 = vmatprep.subr.mxu0 %v2126
    %2252 = vmatpush2.msra.mxu0 %v2125
    %2253 = vmatprep.mubr.f32.mxu0 %v1791
    %2254 = vmatmul.mubr.f32.gmra.mxu0 %v2060
    %v2255 = vpop.f32.mrf.mxu0
    %v2256 = vadd.f32 %v503, %v2255
    %v2257 = vpop.f32.mrf.mxu0
    %v2258 = vadd.f32 %v507, %v2257
    %2259 = vdwg.mxu0
    %2260 = vmatprep.subr.mxu0 %v2124
    %2261 = vmatpush1.msra.mxu0 %v2123
    %2262 = vmatprep.subr.mxu0 %v2120
    %2263 = vmatpush1.msra.mxu0 %v2119
    %2264 = vmatprep.subr.mxu0 %v2116
    %2265 = vmatpush1.msra.mxu0 %v2115
    %2266 = vmatprep.subr.mxu0 %v2112
    %2267 = vmatpush1.msra.mxu0 %v2111
    %2268 = vmatprep.subr.mxu0 %v2108
    %2269 = vmatpush1.msra.mxu0 %v2107
    %2270 = vmatprep.subr.mxu0 %v2104
    %2271 = vmatpush1.msra.mxu0 %v2103
    %2272 = vmatprep.subr.mxu0 %v2100
    %2273 = vmatpush1.msra.mxu0 %v2099
    %2274 = vmatprep.subr.mxu0 %v2096
    %2275 = vmatpush1.msra.mxu0 %v2095
    %2276 = vmatprep.subr.mxu0 %v2092
    %2277 = vmatpush1.msra.mxu0 %v2091
    %2278 = vmatprep.subr.mxu0 %v2088
    %2279 = vmatpush1.msra.mxu0 %v2087
    %2280 = vmatprep.subr.mxu0 %v2084
    %2281 = vmatpush1.msra.mxu0 %v2083
    %2282 = vmatprep.subr.mxu0 %v2080
    %2283 = vmatpush1.msra.mxu0 %v2079
    %2284 = vmatprep.subr.mxu0 %v2076
    %2285 = vmatpush1.msra.mxu0 %v2075
    %2286 = vmatprep.subr.mxu0 %v2072
    %2287 = vmatpush1.msra.mxu0 %v2071
    %2288 = vmatprep.subr.mxu0 %v2068
    %2289 = vmatpush1.msra.mxu0 %v2067
    %2290 = vmatprep.subr.mxu0 %v2064
    %2291 = vmatpush1.msra.mxu0 %v2063
    %2292 = vmatprep.subr.mxu0 %v2188
    %2293 = vmatpush2.msra.mxu0 %v2187
    %2294 = vmatprep.subr.mxu0 %v2184
    %2295 = vmatpush2.msra.mxu0 %v2183
    %2296 = vmatprep.subr.mxu0 %v2180
    %2297 = vmatpush2.msra.mxu0 %v2179
    %2298 = vmatprep.subr.mxu0 %v2176
    %2299 = vmatpush2.msra.mxu0 %v2175
    %2300 = vmatprep.subr.mxu0 %v2172
    %2301 = vmatpush2.msra.mxu0 %v2171
    %2302 = vmatprep.subr.mxu0 %v2168
    %2303 = vmatpush2.msra.mxu0 %v2167
    %2304 = vmatprep.subr.mxu0 %v2164
    %2305 = vmatpush2.msra.mxu0 %v2163
    %2306 = vmatprep.subr.mxu0 %v2160
    %2307 = vmatpush2.msra.mxu0 %v2159
    %2308 = vmatprep.subr.mxu0 %v2156
    %2309 = vmatpush2.msra.mxu0 %v2155
    %2310 = vmatprep.subr.mxu0 %v2152
    %2311 = vmatpush2.msra.mxu0 %v2151
    %2312 = vmatprep.subr.mxu0 %v2148
    %2313 = vmatpush2.msra.mxu0 %v2147
    %2314 = vmatprep.subr.mxu0 %v2144
    %2315 = vmatpush2.msra.mxu0 %v2143
    %2316 = vmatprep.subr.mxu0 %v2140
    %2317 = vmatpush2.msra.mxu0 %v2139
    %2318 = vmatprep.subr.mxu0 %v2136
    %2319 = vmatpush2.msra.mxu0 %v2135
    %2320 = vmatprep.subr.mxu0 %v2132
    %2321 = vmatpush2.msra.mxu0 %v2131
    %2322 = vmatprep.subr.mxu0 %v2128
    %2323 = vmatpush2.msra.mxu0 %v2127
    %2324 = vmatprep.mubr.f32.mxu0 %v1791
    %2325 = vmatmul.mubr.f32.gmra.mxu0 %v2060
    %v2326 = vpop.f32.mrf.mxu0
    %v2327 = vadd.f32 %v511, %v2326
    %v2328 = vpop.f32.mrf.mxu0
    %v2329 = vadd.f32 %v515, %v2328
    %2330 = vdwg.mxu0
    %v2331 = vmul.f32 %v2256, 0.5
    %v2332 = vtanh.pop %v2331
    %v2333 = vmul.f32 %v2332, 0.5
    %v2334 = vadd.f32 %v2333, 0.5
    %v2335 = vmul.f32 %v2258, 0.5
    %v2336 = vtanh.pop %v2335
    %v2337 = vmul.f32 %v2336, 0.5
    %v2338 = vadd.f32 %v2337, 0.5
    %v2339 = vmul.f32 %v2327, 0.5
    %v2340 = vtanh.pop %v2339
    %v2341 = vmul.f32 %v2340, 0.5
    %v2342 = vadd.f32 %v2341, 0.5
    %v2343 = vtanh.pop %v2329
    %v2344 = vmul.f32 %v2338, %v1789
    %v2345 = vmul.f32 %v2334, %v2343
    %v2346 = vadd.f32 %v2344, %v2345
    %v2347 = vtanh.pop %v2346
    %v2348 = vmul.f32 %v2342, %v2347
    %s2349 = scalar_lea.vmem [#allocation13], 6
    %2350 = vst [vmem:[%s2349] sm:$0x3] %v2348
    %s2351 = sadd.s32 %s108, 3
    %p2352 = scmp.eq.s32.totalorder %s2351, 7
    // Predicated region
    $region62: #{tpu_custom_call.1} parent=1 // pred_check
      %p2353 = pneg %p2352
    $region63: #{tpu_custom_call.1} parent=1 // pred_check_branch
      %2355 = sbr.rel (%p2353) target = $region65
    $region64: #{tpu_custom_call.1} parent=1 // pred_region
      %2356 = vst [vmem:[#allocation14] sm:$0x3] %v2060
      %2357 = vst [vmem:[#allocation16] sm:$0x3] %v2058
      %s2358 = scalar_lea.vmem [#allocation14], 2
      %2359 = vst [vmem:[%s2358] sm:$0x3] %v2348
      %s2360 = scalar_lea.vmem [#allocation16], 2
      %2361 = vst [vmem:[%s2360] sm:$0x3] %v2346
    $region65: #{tpu_custom_call.1} parent=1 // pred_fallthru
      _
    %s2362 = scalar_lea.vmem [#allocation4], 32
    %v2363 = vld [vmem:[%s2362] sm:$0xff]
    %v2364 = vld [vmem:[#allocation10] sm:$0xff]
    %v2365 = vld [vmem:[#allocation10 + $0x8] sm:$0xff]
    %v2366 = vld [vmem:[#allocation10 + $0x10] sm:$0xff]
    %v2367 = vld [vmem:[#allocation10 + $0x18] sm:$0xff]
    %v2368 = vld [vmem:[#allocation10 + $0x20] sm:$0xff]
    %v2369 = vld [vmem:[#allocation10 + $0x28] sm:$0xff]
    %v2370 = vld [vmem:[#allocation10 + $0x30] sm:$0xff]
    %v2371 = vld [vmem:[#allocation10 + $0x38] sm:$0xff]
    %v2372 = vld [vmem:[#allocation10 + $0x40] sm:$0xff]
    %v2373 = vld [vmem:[#allocation10 + $0x48] sm:$0xff]
    %v2374 = vld [vmem:[#allocation10 + $0x50] sm:$0xff]
    %v2375 = vld [vmem:[#allocation10 + $0x58] sm:$0xff]
    %v2376 = vld [vmem:[#allocation10 + $0x60] sm:$0xff]
    %v2377 = vld [vmem:[#allocation10 + $0x68] sm:$0xff]
    %v2378 = vld [vmem:[#allocation10 + $0x70] sm:$0xff]
    %v2379 = vld [vmem:[#allocation10 + $0x78] sm:$0xff]
    %v2380 = vld [vmem:[#allocation10 + $0x80] sm:$0xff]
    %v2381 = vld [vmem:[#allocation10 + $0x88] sm:$0xff]
    %v2382 = vld [vmem:[#allocation10 + $0x90] sm:$0xff]
    %v2383 = vld [vmem:[#allocation10 + $0x98] sm:$0xff]
    %v2384 = vld [vmem:[#allocation10 + $0xa0] sm:$0xff]
    %v2385 = vld [vmem:[#allocation10 + $0xa8] sm:$0xff]
    %v2386 = vld [vmem:[#allocation10 + $0xb0] sm:$0xff]
    %v2387 = vld [vmem:[#allocation10 + $0xb8] sm:$0xff]
    %v2388 = vld [vmem:[#allocation10 + $0xc0] sm:$0xff]
    %v2389 = vld [vmem:[#allocation10 + $0xc8] sm:$0xff]
    %v2390 = vld [vmem:[#allocation10 + $0xd0] sm:$0xff]
    %v2391 = vld [vmem:[#allocation10 + $0xd8] sm:$0xff]
    %v2392 = vld [vmem:[#allocation10 + $0xe0] sm:$0xff]
    %v2393 = vld [vmem:[#allocation10 + $0xe8] sm:$0xff]
    %v2394 = vld [vmem:[#allocation10 + $0xf0] sm:$0xff]
    %v2395 = vld [vmem:[#allocation10 + $0xf8] sm:$0xff]
    %v2396 = vld [vmem:[#allocation10 + $0x100] sm:$0xff]
    %v2397 = vld [vmem:[#allocation10 + $0x108] sm:$0xff]
    %v2398 = vld [vmem:[#allocation10 + $0x110] sm:$0xff]
    %v2399 = vld [vmem:[#allocation10 + $0x118] sm:$0xff]
    %v2400 = vld [vmem:[#allocation10 + $0x120] sm:$0xff]
    %v2401 = vld [vmem:[#allocation10 + $0x128] sm:$0xff]
    %v2402 = vld [vmem:[#allocation10 + $0x130] sm:$0xff]
    %v2403 = vld [vmem:[#allocation10 + $0x138] sm:$0xff]
    %v2404 = vld [vmem:[#allocation10 + $0x140] sm:$0xff]
    %v2405 = vld [vmem:[#allocation10 + $0x148] sm:$0xff]
    %v2406 = vld [vmem:[#allocation10 + $0x150] sm:$0xff]
    %v2407 = vld [vmem:[#allocation10 + $0x158] sm:$0xff]
    %v2408 = vld [vmem:[#allocation10 + $0x160] sm:$0xff]
    %v2409 = vld [vmem:[#allocation10 + $0x168] sm:$0xff]
    %v2410 = vld [vmem:[#allocation10 + $0x170] sm:$0xff]
    %v2411 = vld [vmem:[#allocation10 + $0x178] sm:$0xff]
    %v2412 = vld [vmem:[#allocation10 + $0x180] sm:$0xff]
    %v2413 = vld [vmem:[#allocation10 + $0x188] sm:$0xff]
    %v2414 = vld [vmem:[#allocation10 + $0x190] sm:$0xff]
    %v2415 = vld [vmem:[#allocation10 + $0x198] sm:$0xff]
    %v2416 = vld [vmem:[#allocation10 + $0x1a0] sm:$0xff]
    %v2417 = vld [vmem:[#allocation10 + $0x1a8] sm:$0xff]
    %v2418 = vld [vmem:[#allocation10 + $0x1b0] sm:$0xff]
    %v2419 = vld [vmem:[#allocation10 + $0x1b8] sm:$0xff]
    %v2420 = vld [vmem:[#allocation10 + $0x1c0] sm:$0xff]
    %v2421 = vld [vmem:[#allocation10 + $0x1c8] sm:$0xff]
    %v2422 = vld [vmem:[#allocation10 + $0x1d0] sm:$0xff]
    %v2423 = vld [vmem:[#allocation10 + $0x1d8] sm:$0xff]
    %v2424 = vld [vmem:[#allocation10 + $0x1e0] sm:$0xff]
    %v2425 = vld [vmem:[#allocation10 + $0x1e8] sm:$0xff]
    %v2426 = vld [vmem:[#allocation10 + $0x1f0] sm:$0xff]
    %v2427 = vld [vmem:[#allocation10 + $0x1f8] sm:$0xff]
    %2428 = vmatprep.subr.mxu0 %v2425
    %2429 = vmatpush1.msra.mxu0 %v2424
    %2430 = vmatprep.subr.mxu0 %v2421
    %2431 = vmatpush1.msra.mxu0 %v2420
    %2432 = vmatprep.subr.mxu0 %v2417
    %2433 = vmatpush1.msra.mxu0 %v2416
    %2434 = vmatprep.subr.mxu0 %v2413
    %2435 = vmatpush1.msra.mxu0 %v2412
    %2436 = vmatprep.subr.mxu0 %v2409
    %2437 = vmatpush1.msra.mxu0 %v2408
    %2438 = vmatprep.subr.mxu0 %v2405
    %2439 = vmatpush1.msra.mxu0 %v2404
    %2440 = vmatprep.subr.mxu0 %v2401
    %2441 = vmatpush1.msra.mxu0 %v2400
    %2442 = vmatprep.subr.mxu0 %v2397
    %2443 = vmatpush1.msra.mxu0 %v2396
    %2444 = vmatprep.subr.mxu0 %v2393
    %2445 = vmatpush1.msra.mxu0 %v2392
    %2446 = vmatprep.subr.mxu0 %v2389
    %2447 = vmatpush1.msra.mxu0 %v2388
    %2448 = vmatprep.subr.mxu0 %v2385
    %2449 = vmatpush1.msra.mxu0 %v2384
    %2450 = vmatprep.subr.mxu0 %v2381
    %2451 = vmatpush1.msra.mxu0 %v2380
    %2452 = vmatprep.subr.mxu0 %v2377
    %2453 = vmatpush1.msra.mxu0 %v2376
    %2454 = vmatprep.subr.mxu0 %v2373
    %2455 = vmatpush1.msra.mxu0 %v2372
    %2456 = vmatprep.subr.mxu0 %v2369
    %2457 = vmatpush1.msra.mxu0 %v2368
    %2458 = vmatprep.subr.mxu0 %v2365
    %2459 = vmatpush1.msra.mxu0 %v2364
    %2460 = vmatprep.subr.mxu0 0.0
    %2461 = vmatpush2.msra.mxu0 0.0
    %2462 = vmatprep.subr.mxu0 0.0
    %2463 = vmatpush2.msra.mxu0 0.0
    %2464 = vmatprep.subr.mxu0 0.0
    %2465 = vmatpush2.msra.mxu0 0.0
    %2466 = vmatprep.subr.mxu0 0.0
    %2467 = vmatpush2.msra.mxu0 0.0
    %2468 = vmatprep.subr.mxu0 0.0
    %2469 = vmatpush2.msra.mxu0 0.0
    %2470 = vmatprep.subr.mxu0 0.0
    %2471 = vmatpush2.msra.mxu0 0.0
    %2472 = vmatprep.subr.mxu0 0.0
    %2473 = vmatpush2.msra.mxu0 0.0
    %2474 = vmatprep.subr.mxu0 0.0
    %2475 = vmatpush2.msra.mxu0 0.0
    %2476 = vmatprep.subr.mxu0 0.0
    %2477 = vmatpush2.msra.mxu0 0.0
    %2478 = vmatprep.subr.mxu0 0.0
    %2479 = vmatpush2.msra.mxu0 0.0
    %2480 = vmatprep.subr.mxu0 0.0
    %2481 = vmatpush2.msra.mxu0 0.0
    %2482 = vmatprep.subr.mxu0 0.0
    %2483 = vmatpush2.msra.mxu0 0.0
    %2484 = vmatprep.subr.mxu0 0.0
    %2485 = vmatpush2.msra.mxu0 0.0
    %2486 = vmatprep.subr.mxu0 0.0
    %2487 = vmatpush2.msra.mxu0 0.0
    %2488 = vmatprep.subr.mxu0 0.0
    %2489 = vmatpush2.msra.mxu0 0.0
    %2490 = vmatprep.subr.mxu0 0.0
    %2491 = vmatpush2.msra.mxu0 0.0
    %2492 = vmatprep.mubr.f32.mxu0 0.0
    %2493 = vmatmul.mubr.f32.gmra.mxu0 %v2060
    %v2494 = vpop.f32.mrf.mxu0
    %v2495 = vadd.f32 0.0, %v2494
    %v2496 = vpop.f32.mrf.mxu0
    %v2497 = vadd.f32 0.0, %v2496
    %2498 = vdwg.mxu0
    %2499 = vmatprep.subr.mxu0 %v2427
    %2500 = vmatpush1.msra.mxu0 %v2426
    %2501 = vmatprep.subr.mxu0 %v2423
    %2502 = vmatpush1.msra.mxu0 %v2422
    %2503 = vmatprep.subr.mxu0 %v2419
    %2504 = vmatpush1.msra.mxu0 %v2418
    %2505 = vmatprep.subr.mxu0 %v2415
    %2506 = vmatpush1.msra.mxu0 %v2414
    %2507 = vmatprep.subr.mxu0 %v2411
    %2508 = vmatpush1.msra.mxu0 %v2410
    %2509 = vmatprep.subr.mxu0 %v2407
    %2510 = vmatpush1.msra.mxu0 %v2406
    %2511 = vmatprep.subr.mxu0 %v2403
    %2512 = vmatpush1.msra.mxu0 %v2402
    %2513 = vmatprep.subr.mxu0 %v2399
    %2514 = vmatpush1.msra.mxu0 %v2398
    %2515 = vmatprep.subr.mxu0 %v2395
    %2516 = vmatpush1.msra.mxu0 %v2394
    %2517 = vmatprep.subr.mxu0 %v2391
    %2518 = vmatpush1.msra.mxu0 %v2390
    %2519 = vmatprep.subr.mxu0 %v2387
    %2520 = vmatpush1.msra.mxu0 %v2386
    %2521 = vmatprep.subr.mxu0 %v2383
    %2522 = vmatpush1.msra.mxu0 %v2382
    %2523 = vmatprep.subr.mxu0 %v2379
    %2524 = vmatpush1.msra.mxu0 %v2378
    %2525 = vmatprep.subr.mxu0 %v2375
    %2526 = vmatpush1.msra.mxu0 %v2374
    %2527 = vmatprep.subr.mxu0 %v2371
    %2528 = vmatpush1.msra.mxu0 %v2370
    %2529 = vmatprep.subr.mxu0 %v2367
    %2530 = vmatpush1.msra.mxu0 %v2366
    %2531 = vmatprep.subr.mxu0 0.0
    %2532 = vmatpush2.msra.mxu0 0.0
    %2533 = vmatprep.subr.mxu0 0.0
    %2534 = vmatpush2.msra.mxu0 0.0
    %2535 = vmatprep.subr.mxu0 0.0
    %2536 = vmatpush2.msra.mxu0 0.0
    %2537 = vmatprep.subr.mxu0 0.0
    %2538 = vmatpush2.msra.mxu0 0.0
    %2539 = vmatprep.subr.mxu0 0.0
    %2540 = vmatpush2.msra.mxu0 0.0
    %2541 = vmatprep.subr.mxu0 0.0
    %2542 = vmatpush2.msra.mxu0 0.0
    %2543 = vmatprep.subr.mxu0 0.0
    %2544 = vmatpush2.msra.mxu0 0.0
    %2545 = vmatprep.subr.mxu0 0.0
    %2546 = vmatpush2.msra.mxu0 0.0
    %2547 = vmatprep.subr.mxu0 0.0
    %2548 = vmatpush2.msra.mxu0 0.0
    %2549 = vmatprep.subr.mxu0 0.0
    %2550 = vmatpush2.msra.mxu0 0.0
    %2551 = vmatprep.subr.mxu0 0.0
    %2552 = vmatpush2.msra.mxu0 0.0
    %2553 = vmatprep.subr.mxu0 0.0
    %2554 = vmatpush2.msra.mxu0 0.0
    %2555 = vmatprep.subr.mxu0 0.0
    %2556 = vmatpush2.msra.mxu0 0.0
    %2557 = vmatprep.subr.mxu0 0.0
    %2558 = vmatpush2.msra.mxu0 0.0
    %2559 = vmatprep.subr.mxu0 0.0
    %2560 = vmatpush2.msra.mxu0 0.0
    %2561 = vmatprep.subr.mxu0 0.0
    %2562 = vmatpush2.msra.mxu0 0.0
    %2563 = vmatprep.mubr.f32.mxu0 0.0
    %2564 = vmatmul.mubr.f32.gmra.mxu0 %v2060
    %v2565 = vpop.f32.mrf.mxu0
    %v2566 = vadd.f32 0.0, %v2565
    %v2567 = vpop.f32.mrf.mxu0
    %v2568 = vadd.f32 0.0, %v2567
    %2569 = vdwg.mxu0
    %v2574 = vcombine.low %v2495, %v2497
    %v2575 = vcombine.low %v2566, %v2568
    %v2577 = vunpack.c.l.s4 1983009808
    %v2578 = vunpack.c.0.s8 %v2577
    %v2579 = vlaneseq
    %v2580 = vshrl.u32 %v2579, 7
    %v2581 = vsub.s32 %v2578, %v2580
    %v2582 = vrot.slane %v2574, %v2581
    %v2584 = vunpack.c.l.s4 1983009808
    %v2585 = vunpack.c.0.s8 %v2584
    %v2586 = vlaneseq
    %v2587 = vshrl.u32 %v2586, 7
    %v2588 = vsub.s32 %v2585, %v2587
    %v2589 = vrot.slane %v2575, %v2588
    %v2590 = vcombine.low %v2582, %v2589
    %v2592 = vadd.f32 %v2363, %v2590
    %v2593 = vmul.f32 %v2592, 0.5
    %v2594 = vtanh.pop %v2593
    %v2595 = vmul.f32 %v2594, 0.5
    %v2596 = vadd.f32 %v2595, 0.5
    %v2598 = vrot.slane %v2592, 2
    %v2600 = vmul.f32 %v2598, 0.5
    %v2601 = vtanh.pop %v2600
    %v2602 = vmul.f32 %v2601, 0.5
    %v2603 = vadd.f32 %v2602, 0.5
    %v2604 = vrot.slane %v2592, 4
    %v2606 = vmul.f32 %v2604, 0.5
    %v2607 = vtanh.pop %v2606
    %v2608 = vmul.f32 %v2607, 0.5
    %v2609 = vadd.f32 %v2608, 0.5
    %v2610 = vrot.slane %v2592, 6
    %v2612 = vtanh.pop %v2610
    %v2613 = vmul.f32 %v2603, %v2058
    %v2614 = vmul.f32 %v2596, %v2612
    %v2615 = vadd.f32 %v2613, %v2614
    %v2616 = vtanh.pop %v2615
    %v2617 = vmul.f32 %v2609, %v2616
    %v2618 = vld [vmem:[#allocation12] sm:$0xff]
    %v2619 = vld [vmem:[#allocation12 + $0x8] sm:$0xff]
    %v2620 = vld [vmem:[#allocation12 + $0x10] sm:$0xff]
    %v2621 = vld [vmem:[#allocation12 + $0x18] sm:$0xff]
    %v2622 = vld [vmem:[#allocation12 + $0x20] sm:$0xff]
    %v2623 = vld [vmem:[#allocation12 + $0x28] sm:$0xff]
    %v2624 = vld [vmem:[#allocation12 + $0x30] sm:$0xff]
    %v2625 = vld [vmem:[#allocation12 + $0x38] sm:$0xff]
    %v2626 = vld [vmem:[#allocation12 + $0x40] sm:$0xff]
    %v2627 = vld [vmem:[#allocation12 + $0x48] sm:$0xff]
    %v2628 = vld [vmem:[#allocation12 + $0x50] sm:$0xff]
    %v2629 = vld [vmem:[#allocation12 + $0x58] sm:$0xff]
    %v2630 = vld [vmem:[#allocation12 + $0x60] sm:$0xff]
    %v2631 = vld [vmem:[#allocation12 + $0x68] sm:$0xff]
    %v2632 = vld [vmem:[#allocation12 + $0x70] sm:$0xff]
    %v2633 = vld [vmem:[#allocation12 + $0x78] sm:$0xff]
    %v2634 = vld [vmem:[#allocation12 + $0x80] sm:$0xff]
    %v2635 = vld [vmem:[#allocation12 + $0x88] sm:$0xff]
    %v2636 = vld [vmem:[#allocation12 + $0x90] sm:$0xff]
    %v2637 = vld [vmem:[#allocation12 + $0x98] sm:$0xff]
    %v2638 = vld [vmem:[#allocation12 + $0xa0] sm:$0xff]
    %v2639 = vld [vmem:[#allocation12 + $0xa8] sm:$0xff]
    %v2640 = vld [vmem:[#allocation12 + $0xb0] sm:$0xff]
    %v2641 = vld [vmem:[#allocation12 + $0xb8] sm:$0xff]
    %v2642 = vld [vmem:[#allocation12 + $0xc0] sm:$0xff]
    %v2643 = vld [vmem:[#allocation12 + $0xc8] sm:$0xff]
    %v2644 = vld [vmem:[#allocation12 + $0xd0] sm:$0xff]
    %v2645 = vld [vmem:[#allocation12 + $0xd8] sm:$0xff]
    %v2646 = vld [vmem:[#allocation12 + $0xe0] sm:$0xff]
    %v2647 = vld [vmem:[#allocation12 + $0xe8] sm:$0xff]
    %v2648 = vld [vmem:[#allocation12 + $0xf0] sm:$0xff]
    %v2649 = vld [vmem:[#allocation12 + $0xf8] sm:$0xff]
    %v2650 = vld [vmem:[#allocation12 + $0x100] sm:$0xff]
    %v2651 = vld [vmem:[#allocation12 + $0x108] sm:$0xff]
    %v2652 = vld [vmem:[#allocation12 + $0x110] sm:$0xff]
    %v2653 = vld [vmem:[#allocation12 + $0x118] sm:$0xff]
    %v2654 = vld [vmem:[#allocation12 + $0x120] sm:$0xff]
    %v2655 = vld [vmem:[#allocation12 + $0x128] sm:$0xff]
    %v2656 = vld [vmem:[#allocation12 + $0x130] sm:$0xff]
    %v2657 = vld [vmem:[#allocation12 + $0x138] sm:$0xff]
    %v2658 = vld [vmem:[#allocation12 + $0x140] sm:$0xff]
    %v2659 = vld [vmem:[#allocation12 + $0x148] sm:$0xff]
    %v2660 = vld [vmem:[#allocation12 + $0x150] sm:$0xff]
    %v2661 = vld [vmem:[#allocation12 + $0x158] sm:$0xff]
    %v2662 = vld [vmem:[#allocation12 + $0x160] sm:$0xff]
    %v2663 = vld [vmem:[#allocation12 + $0x168] sm:$0xff]
    %v2664 = vld [vmem:[#allocation12 + $0x170] sm:$0xff]
    %v2665 = vld [vmem:[#allocation12 + $0x178] sm:$0xff]
    %v2666 = vld [vmem:[#allocation12 + $0x180] sm:$0xff]
    %v2667 = vld [vmem:[#allocation12 + $0x188] sm:$0xff]
    %v2668 = vld [vmem:[#allocation12 + $0x190] sm:$0xff]
    %v2669 = vld [vmem:[#allocation12 + $0x198] sm:$0xff]
    %v2670 = vld [vmem:[#allocation12 + $0x1a0] sm:$0xff]
    %v2671 = vld [vmem:[#allocation12 + $0x1a8] sm:$0xff]
    %v2672 = vld [vmem:[#allocation12 + $0x1b0] sm:$0xff]
    %v2673 = vld [vmem:[#allocation12 + $0x1b8] sm:$0xff]
    %v2674 = vld [vmem:[#allocation12 + $0x1c0] sm:$0xff]
    %v2675 = vld [vmem:[#allocation12 + $0x1c8] sm:$0xff]
    %v2676 = vld [vmem:[#allocation12 + $0x1d0] sm:$0xff]
    %v2677 = vld [vmem:[#allocation12 + $0x1d8] sm:$0xff]
    %v2678 = vld [vmem:[#allocation12 + $0x1e0] sm:$0xff]
    %v2679 = vld [vmem:[#allocation12 + $0x1e8] sm:$0xff]
    %v2680 = vld [vmem:[#allocation12 + $0x1f0] sm:$0xff]
    %v2681 = vld [vmem:[#allocation12 + $0x1f8] sm:$0xff]
    %v2682 = vld [vmem:[#allocation12 + $0x200] sm:$0xff]
    %v2683 = vld [vmem:[#allocation12 + $0x208] sm:$0xff]
    %v2684 = vld [vmem:[#allocation12 + $0x210] sm:$0xff]
    %v2685 = vld [vmem:[#allocation12 + $0x218] sm:$0xff]
    %v2686 = vld [vmem:[#allocation12 + $0x220] sm:$0xff]
    %v2687 = vld [vmem:[#allocation12 + $0x228] sm:$0xff]
    %v2688 = vld [vmem:[#allocation12 + $0x230] sm:$0xff]
    %v2689 = vld [vmem:[#allocation12 + $0x238] sm:$0xff]
    %v2690 = vld [vmem:[#allocation12 + $0x240] sm:$0xff]
    %v2691 = vld [vmem:[#allocation12 + $0x248] sm:$0xff]
    %v2692 = vld [vmem:[#allocation12 + $0x250] sm:$0xff]
    %v2693 = vld [vmem:[#allocation12 + $0x258] sm:$0xff]
    %v2694 = vld [vmem:[#allocation12 + $0x260] sm:$0xff]
    %v2695 = vld [vmem:[#allocation12 + $0x268] sm:$0xff]
    %v2696 = vld [vmem:[#allocation12 + $0x270] sm:$0xff]
    %v2697 = vld [vmem:[#allocation12 + $0x278] sm:$0xff]
    %v2698 = vld [vmem:[#allocation12 + $0x280] sm:$0xff]
    %v2699 = vld [vmem:[#allocation12 + $0x288] sm:$0xff]
    %v2700 = vld [vmem:[#allocation12 + $0x290] sm:$0xff]
    %v2701 = vld [vmem:[#allocation12 + $0x298] sm:$0xff]
    %v2702 = vld [vmem:[#allocation12 + $0x2a0] sm:$0xff]
    %v2703 = vld [vmem:[#allocation12 + $0x2a8] sm:$0xff]
    %v2704 = vld [vmem:[#allocation12 + $0x2b0] sm:$0xff]
    %v2705 = vld [vmem:[#allocation12 + $0x2b8] sm:$0xff]
    %v2706 = vld [vmem:[#allocation12 + $0x2c0] sm:$0xff]
    %v2707 = vld [vmem:[#allocation12 + $0x2c8] sm:$0xff]
    %v2708 = vld [vmem:[#allocation12 + $0x2d0] sm:$0xff]
    %v2709 = vld [vmem:[#allocation12 + $0x2d8] sm:$0xff]
    %v2710 = vld [vmem:[#allocation12 + $0x2e0] sm:$0xff]
    %v2711 = vld [vmem:[#allocation12 + $0x2e8] sm:$0xff]
    %v2712 = vld [vmem:[#allocation12 + $0x2f0] sm:$0xff]
    %v2713 = vld [vmem:[#allocation12 + $0x2f8] sm:$0xff]
    %v2714 = vld [vmem:[#allocation12 + $0x300] sm:$0xff]
    %v2715 = vld [vmem:[#allocation12 + $0x308] sm:$0xff]
    %v2716 = vld [vmem:[#allocation12 + $0x310] sm:$0xff]
    %v2717 = vld [vmem:[#allocation12 + $0x318] sm:$0xff]
    %v2718 = vld [vmem:[#allocation12 + $0x320] sm:$0xff]
    %v2719 = vld [vmem:[#allocation12 + $0x328] sm:$0xff]
    %v2720 = vld [vmem:[#allocation12 + $0x330] sm:$0xff]
    %v2721 = vld [vmem:[#allocation12 + $0x338] sm:$0xff]
    %v2722 = vld [vmem:[#allocation12 + $0x340] sm:$0xff]
    %v2723 = vld [vmem:[#allocation12 + $0x348] sm:$0xff]
    %v2724 = vld [vmem:[#allocation12 + $0x350] sm:$0xff]
    %v2725 = vld [vmem:[#allocation12 + $0x358] sm:$0xff]
    %v2726 = vld [vmem:[#allocation12 + $0x360] sm:$0xff]
    %v2727 = vld [vmem:[#allocation12 + $0x368] sm:$0xff]
    %v2728 = vld [vmem:[#allocation12 + $0x370] sm:$0xff]
    %v2729 = vld [vmem:[#allocation12 + $0x378] sm:$0xff]
    %v2730 = vld [vmem:[#allocation12 + $0x380] sm:$0xff]
    %v2731 = vld [vmem:[#allocation12 + $0x388] sm:$0xff]
    %v2732 = vld [vmem:[#allocation12 + $0x390] sm:$0xff]
    %v2733 = vld [vmem:[#allocation12 + $0x398] sm:$0xff]
    %v2734 = vld [vmem:[#allocation12 + $0x3a0] sm:$0xff]
    %v2735 = vld [vmem:[#allocation12 + $0x3a8] sm:$0xff]
    %v2736 = vld [vmem:[#allocation12 + $0x3b0] sm:$0xff]
    %v2737 = vld [vmem:[#allocation12 + $0x3b8] sm:$0xff]
    %v2738 = vld [vmem:[#allocation12 + $0x3c0] sm:$0xff]
    %v2739 = vld [vmem:[#allocation12 + $0x3c8] sm:$0xff]
    %v2740 = vld [vmem:[#allocation12 + $0x3d0] sm:$0xff]
    %v2741 = vld [vmem:[#allocation12 + $0x3d8] sm:$0xff]
    %v2742 = vld [vmem:[#allocation12 + $0x3e0] sm:$0xff]
    %v2743 = vld [vmem:[#allocation12 + $0x3e8] sm:$0xff]
    %v2744 = vld [vmem:[#allocation12 + $0x3f0] sm:$0xff]
    %v2745 = vld [vmem:[#allocation12 + $0x3f8] sm:$0xff]
    %2746 = vmatprep.subr.mxu0 %v2679
    %2747 = vmatpush1.msra.mxu0 %v2678
    %2748 = vmatprep.subr.mxu0 %v2675
    %2749 = vmatpush1.msra.mxu0 %v2674
    %2750 = vmatprep.subr.mxu0 %v2671
    %2751 = vmatpush1.msra.mxu0 %v2670
    %2752 = vmatprep.subr.mxu0 %v2667
    %2753 = vmatpush1.msra.mxu0 %v2666
    %2754 = vmatprep.subr.mxu0 %v2663
    %2755 = vmatpush1.msra.mxu0 %v2662
    %2756 = vmatprep.subr.mxu0 %v2659
    %2757 = vmatpush1.msra.mxu0 %v2658
    %2758 = vmatprep.subr.mxu0 %v2655
    %2759 = vmatpush1.msra.mxu0 %v2654
    %2760 = vmatprep.subr.mxu0 %v2651
    %2761 = vmatpush1.msra.mxu0 %v2650
    %2762 = vmatprep.subr.mxu0 %v2647
    %2763 = vmatpush1.msra.mxu0 %v2646
    %2764 = vmatprep.subr.mxu0 %v2643
    %2765 = vmatpush1.msra.mxu0 %v2642
    %2766 = vmatprep.subr.mxu0 %v2639
    %2767 = vmatpush1.msra.mxu0 %v2638
    %2768 = vmatprep.subr.mxu0 %v2635
    %2769 = vmatpush1.msra.mxu0 %v2634
    %2770 = vmatprep.subr.mxu0 %v2631
    %2771 = vmatpush1.msra.mxu0 %v2630
    %2772 = vmatprep.subr.mxu0 %v2627
    %2773 = vmatpush1.msra.mxu0 %v2626
    %2774 = vmatprep.subr.mxu0 %v2623
    %2775 = vmatpush1.msra.mxu0 %v2622
    %2776 = vmatprep.subr.mxu0 %v2619
    %2777 = vmatpush1.msra.mxu0 %v2618
    %2778 = vmatprep.subr.mxu0 %v2743
    %2779 = vmatpush2.msra.mxu0 %v2742
    %2780 = vmatprep.subr.mxu0 %v2739
    %2781 = vmatpush2.msra.mxu0 %v2738
    %2782 = vmatprep.subr.mxu0 %v2735
    %2783 = vmatpush2.msra.mxu0 %v2734
    %2784 = vmatprep.subr.mxu0 %v2731
    %2785 = vmatpush2.msra.mxu0 %v2730
    %2786 = vmatprep.subr.mxu0 %v2727
    %2787 = vmatpush2.msra.mxu0 %v2726
    %2788 = vmatprep.subr.mxu0 %v2723
    %2789 = vmatpush2.msra.mxu0 %v2722
    %2790 = vmatprep.subr.mxu0 %v2719
    %2791 = vmatpush2.msra.mxu0 %v2718
    %2792 = vmatprep.subr.mxu0 %v2715
    %2793 = vmatpush2.msra.mxu0 %v2714
    %2794 = vmatprep.subr.mxu0 %v2711
    %2795 = vmatpush2.msra.mxu0 %v2710
    %2796 = vmatprep.subr.mxu0 %v2707
    %2797 = vmatpush2.msra.mxu0 %v2706
    %2798 = vmatprep.subr.mxu0 %v2703
    %2799 = vmatpush2.msra.mxu0 %v2702
    %2800 = vmatprep.subr.mxu0 %v2699
    %2801 = vmatpush2.msra.mxu0 %v2698
    %2802 = vmatprep.subr.mxu0 %v2695
    %2803 = vmatpush2.msra.mxu0 %v2694
    %2804 = vmatprep.subr.mxu0 %v2691
    %2805 = vmatpush2.msra.mxu0 %v2690
    %2806 = vmatprep.subr.mxu0 %v2687
    %2807 = vmatpush2.msra.mxu0 %v2686
    %2808 = vmatprep.subr.mxu0 %v2683
    %2809 = vmatpush2.msra.mxu0 %v2682
    %2810 = vmatprep.mubr.f32.mxu0 %v2348
    %2811 = vmatmul.mubr.f32.gmra.mxu0 %v2617
    %v2812 = vpop.f32.mrf.mxu0
    %v2813 = vadd.f32 %v503, %v2812
    %v2814 = vpop.f32.mrf.mxu0
    %v2815 = vadd.f32 %v507, %v2814
    %2816 = vdwg.mxu0
    %2817 = vmatprep.subr.mxu0 %v2681
    %2818 = vmatpush1.msra.mxu0 %v2680
    %2819 = vmatprep.subr.mxu0 %v2677
    %2820 = vmatpush1.msra.mxu0 %v2676
    %2821 = vmatprep.subr.mxu0 %v2673
    %2822 = vmatpush1.msra.mxu0 %v2672
    %2823 = vmatprep.subr.mxu0 %v2669
    %2824 = vmatpush1.msra.mxu0 %v2668
    %2825 = vmatprep.subr.mxu0 %v2665
    %2826 = vmatpush1.msra.mxu0 %v2664
    %2827 = vmatprep.subr.mxu0 %v2661
    %2828 = vmatpush1.msra.mxu0 %v2660
    %2829 = vmatprep.subr.mxu0 %v2657
    %2830 = vmatpush1.msra.mxu0 %v2656
    %2831 = vmatprep.subr.mxu0 %v2653
    %2832 = vmatpush1.msra.mxu0 %v2652
    %2833 = vmatprep.subr.mxu0 %v2649
    %2834 = vmatpush1.msra.mxu0 %v2648
    %2835 = vmatprep.subr.mxu0 %v2645
    %2836 = vmatpush1.msra.mxu0 %v2644
    %2837 = vmatprep.subr.mxu0 %v2641
    %2838 = vmatpush1.msra.mxu0 %v2640
    %2839 = vmatprep.subr.mxu0 %v2637
    %2840 = vmatpush1.msra.mxu0 %v2636
    %2841 = vmatprep.subr.mxu0 %v2633
    %2842 = vmatpush1.msra.mxu0 %v2632
    %2843 = vmatprep.subr.mxu0 %v2629
    %2844 = vmatpush1.msra.mxu0 %v2628
    %2845 = vmatprep.subr.mxu0 %v2625
    %2846 = vmatpush1.msra.mxu0 %v2624
    %2847 = vmatprep.subr.mxu0 %v2621
    %2848 = vmatpush1.msra.mxu0 %v2620
    %2849 = vmatprep.subr.mxu0 %v2745
    %2850 = vmatpush2.msra.mxu0 %v2744
    %2851 = vmatprep.subr.mxu0 %v2741
    %2852 = vmatpush2.msra.mxu0 %v2740
    %2853 = vmatprep.subr.mxu0 %v2737
    %2854 = vmatpush2.msra.mxu0 %v2736
    %2855 = vmatprep.subr.mxu0 %v2733
    %2856 = vmatpush2.msra.mxu0 %v2732
    %2857 = vmatprep.subr.mxu0 %v2729
    %2858 = vmatpush2.msra.mxu0 %v2728
    %2859 = vmatprep.subr.mxu0 %v2725
    %2860 = vmatpush2.msra.mxu0 %v2724
    %2861 = vmatprep.subr.mxu0 %v2721
    %2862 = vmatpush2.msra.mxu0 %v2720
    %2863 = vmatprep.subr.mxu0 %v2717
    %2864 = vmatpush2.msra.mxu0 %v2716
    %2865 = vmatprep.subr.mxu0 %v2713
    %2866 = vmatpush2.msra.mxu0 %v2712
    %2867 = vmatprep.subr.mxu0 %v2709
    %2868 = vmatpush2.msra.mxu0 %v2708
    %2869 = vmatprep.subr.mxu0 %v2705
    %2870 = vmatpush2.msra.mxu0 %v2704
    %2871 = vmatprep.subr.mxu0 %v2701
    %2872 = vmatpush2.msra.mxu0 %v2700
    %2873 = vmatprep.subr.mxu0 %v2697
    %2874 = vmatpush2.msra.mxu0 %v2696
    %2875 = vmatprep.subr.mxu0 %v2693
    %2876 = vmatpush2.msra.mxu0 %v2692
    %2877 = vmatprep.subr.mxu0 %v2689
    %2878 = vmatpush2.msra.mxu0 %v2688
    %2879 = vmatprep.subr.mxu0 %v2685
    %2880 = vmatpush2.msra.mxu0 %v2684
    %2881 = vmatprep.mubr.f32.mxu0 %v2348
    %2882 = vmatmul.mubr.f32.gmra.mxu0 %v2617
    %v2883 = vpop.f32.mrf.mxu0
    %v2884 = vadd.f32 %v511, %v2883
    %v2885 = vpop.f32.mrf.mxu0
    %v2886 = vadd.f32 %v515, %v2885
    %2887 = vdwg.mxu0
    %v2888 = vmul.f32 %v2813, 0.5
    %v2889 = vtanh.pop %v2888
    %v2890 = vmul.f32 %v2889, 0.5
    %v2891 = vadd.f32 %v2890, 0.5
    %v2892 = vmul.f32 %v2815, 0.5
    %v2893 = vtanh.pop %v2892
    %v2894 = vmul.f32 %v2893, 0.5
    %v2895 = vadd.f32 %v2894, 0.5
    %v2896 = vmul.f32 %v2884, 0.5
    %v2897 = vtanh.pop %v2896
    %v2898 = vmul.f32 %v2897, 0.5
    %v2899 = vadd.f32 %v2898, 0.5
    %v2900 = vtanh.pop %v2886
    %v2901 = vmul.f32 %v2895, %v2346
    %v2902 = vmul.f32 %v2891, %v2900
    %v2903 = vadd.f32 %v2901, %v2902
    %v2904 = vtanh.pop %v2903
    %v2905 = vmul.f32 %v2899, %v2904
    %s2906 = scalar_lea.vmem [#allocation13], 8
    %2907 = vst [vmem:[%s2906] sm:$0x3] %v2905
    %s2908 = sadd.s32 %s108, 4
    %p2909 = scmp.eq.s32.totalorder %s2908, 7
    // Predicated region
    $region66: #{tpu_custom_call.1} parent=1 // pred_check
      %p2910 = pneg %p2909
    $region67: #{tpu_custom_call.1} parent=1 // pred_check_branch
      %2912 = sbr.rel (%p2910) target = $region69
    $region68: #{tpu_custom_call.1} parent=1 // pred_region
      %2913 = vst [vmem:[#allocation14] sm:$0x3] %v2617
      %2914 = vst [vmem:[#allocation16] sm:$0x3] %v2615
      %s2915 = scalar_lea.vmem [#allocation14], 2
      %2916 = vst [vmem:[%s2915] sm:$0x3] %v2905
      %s2917 = scalar_lea.vmem [#allocation16], 2
      %2918 = vst [vmem:[%s2917] sm:$0x3] %v2903
    $region69: #{tpu_custom_call.1} parent=1 // pred_fallthru
      _
    %s2919 = scalar_lea.vmem [#allocation4], 40
    %v2920 = vld [vmem:[%s2919] sm:$0xff]
    %v2921 = vld [vmem:[#allocation10] sm:$0xff]
    %v2922 = vld [vmem:[#allocation10 + $0x8] sm:$0xff]
    %v2923 = vld [vmem:[#allocation10 + $0x10] sm:$0xff]
    %v2924 = vld [vmem:[#allocation10 + $0x18] sm:$0xff]
    %v2925 = vld [vmem:[#allocation10 + $0x20] sm:$0xff]
    %v2926 = vld [vmem:[#allocation10 + $0x28] sm:$0xff]
    %v2927 = vld [vmem:[#allocation10 + $0x30] sm:$0xff]
    %v2928 = vld [vmem:[#allocation10 + $0x38] sm:$0xff]
    %v2929 = vld [vmem:[#allocation10 + $0x40] sm:$0xff]
    %v2930 = vld [vmem:[#allocation10 + $0x48] sm:$0xff]
    %v2931 = vld [vmem:[#allocation10 + $0x50] sm:$0xff]
    %v2932 = vld [vmem:[#allocation10 + $0x58] sm:$0xff]
    %v2933 = vld [vmem:[#allocation10 + $0x60] sm:$0xff]
    %v2934 = vld [vmem:[#allocation10 + $0x68] sm:$0xff]
    %v2935 = vld [vmem:[#allocation10 + $0x70] sm:$0xff]
    %v2936 = vld [vmem:[#allocation10 + $0x78] sm:$0xff]
    %v2937 = vld [vmem:[#allocation10 + $0x80] sm:$0xff]
    %v2938 = vld [vmem:[#allocation10 + $0x88] sm:$0xff]
    %v2939 = vld [vmem:[#allocation10 + $0x90] sm:$0xff]
    %v2940 = vld [vmem:[#allocation10 + $0x98] sm:$0xff]
    %v2941 = vld [vmem:[#allocation10 + $0xa0] sm:$0xff]
    %v2942 = vld [vmem:[#allocation10 + $0xa8] sm:$0xff]
    %v2943 = vld [vmem:[#allocation10 + $0xb0] sm:$0xff]
    %v2944 = vld [vmem:[#allocation10 + $0xb8] sm:$0xff]
    %v2945 = vld [vmem:[#allocation10 + $0xc0] sm:$0xff]
    %v2946 = vld [vmem:[#allocation10 + $0xc8] sm:$0xff]
    %v2947 = vld [vmem:[#allocation10 + $0xd0] sm:$0xff]
    %v2948 = vld [vmem:[#allocation10 + $0xd8] sm:$0xff]
    %v2949 = vld [vmem:[#allocation10 + $0xe0] sm:$0xff]
    %v2950 = vld [vmem:[#allocation10 + $0xe8] sm:$0xff]
    %v2951 = vld [vmem:[#allocation10 + $0xf0] sm:$0xff]
    %v2952 = vld [vmem:[#allocation10 + $0xf8] sm:$0xff]
    %v2953 = vld [vmem:[#allocation10 + $0x100] sm:$0xff]
    %v2954 = vld [vmem:[#allocation10 + $0x108] sm:$0xff]
    %v2955 = vld [vmem:[#allocation10 + $0x110] sm:$0xff]
    %v2956 = vld [vmem:[#allocation10 + $0x118] sm:$0xff]
    %v2957 = vld [vmem:[#allocation10 + $0x120] sm:$0xff]
    %v2958 = vld [vmem:[#allocation10 + $0x128] sm:$0xff]
    %v2959 = vld [vmem:[#allocation10 + $0x130] sm:$0xff]
    %v2960 = vld [vmem:[#allocation10 + $0x138] sm:$0xff]
    %v2961 = vld [vmem:[#allocation10 + $0x140] sm:$0xff]
    %v2962 = vld [vmem:[#allocation10 + $0x148] sm:$0xff]
    %v2963 = vld [vmem:[#allocation10 + $0x150] sm:$0xff]
    %v2964 = vld [vmem:[#allocation10 + $0x158] sm:$0xff]
    %v2965 = vld [vmem:[#allocation10 + $0x160] sm:$0xff]
    %v2966 = vld [vmem:[#allocation10 + $0x168] sm:$0xff]
    %v2967 = vld [vmem:[#allocation10 + $0x170] sm:$0xff]
    %v2968 = vld [vmem:[#allocation10 + $0x178] sm:$0xff]
    %v2969 = vld [vmem:[#allocation10 + $0x180] sm:$0xff]
    %v2970 = vld [vmem:[#allocation10 + $0x188] sm:$0xff]
    %v2971 = vld [vmem:[#allocation10 + $0x190] sm:$0xff]
    %v2972 = vld [vmem:[#allocation10 + $0x198] sm:$0xff]
    %v2973 = vld [vmem:[#allocation10 + $0x1a0] sm:$0xff]
    %v2974 = vld [vmem:[#allocation10 + $0x1a8] sm:$0xff]
    %v2975 = vld [vmem:[#allocation10 + $0x1b0] sm:$0xff]
    %v2976 = vld [vmem:[#allocation10 + $0x1b8] sm:$0xff]
    %v2977 = vld [vmem:[#allocation10 + $0x1c0] sm:$0xff]
    %v2978 = vld [vmem:[#allocation10 + $0x1c8] sm:$0xff]
    %v2979 = vld [vmem:[#allocation10 + $0x1d0] sm:$0xff]
    %v2980 = vld [vmem:[#allocation10 + $0x1d8] sm:$0xff]
    %v2981 = vld [vmem:[#allocation10 + $0x1e0] sm:$0xff]
    %v2982 = vld [vmem:[#allocation10 + $0x1e8] sm:$0xff]
    %v2983 = vld [vmem:[#allocation10 + $0x1f0] sm:$0xff]
    %v2984 = vld [vmem:[#allocation10 + $0x1f8] sm:$0xff]
    %2985 = vmatprep.subr.mxu0 %v2982
    %2986 = vmatpush1.msra.mxu0 %v2981
    %2987 = vmatprep.subr.mxu0 %v2978
    %2988 = vmatpush1.msra.mxu0 %v2977
    %2989 = vmatprep.subr.mxu0 %v2974
    %2990 = vmatpush1.msra.mxu0 %v2973
    %2991 = vmatprep.subr.mxu0 %v2970
    %2992 = vmatpush1.msra.mxu0 %v2969
    %2993 = vmatprep.subr.mxu0 %v2966
    %2994 = vmatpush1.msra.mxu0 %v2965
    %2995 = vmatprep.subr.mxu0 %v2962
    %2996 = vmatpush1.msra.mxu0 %v2961
    %2997 = vmatprep.subr.mxu0 %v2958
    %2998 = vmatpush1.msra.mxu0 %v2957
    %2999 = vmatprep.subr.mxu0 %v2954
    %3000 = vmatpush1.msra.mxu0 %v2953
    %3001 = vmatprep.subr.mxu0 %v2950
    %3002 = vmatpush1.msra.mxu0 %v2949
    %3003 = vmatprep.subr.mxu0 %v2946
    %3004 = vmatpush1.msra.mxu0 %v2945
    %3005 = vmatprep.subr.mxu0 %v2942
    %3006 = vmatpush1.msra.mxu0 %v2941
    %3007 = vmatprep.subr.mxu0 %v2938
    %3008 = vmatpush1.msra.mxu0 %v2937
    %3009 = vmatprep.subr.mxu0 %v2934
    %3010 = vmatpush1.msra.mxu0 %v2933
    %3011 = vmatprep.subr.mxu0 %v2930
    %3012 = vmatpush1.msra.mxu0 %v2929
    %3013 = vmatprep.subr.mxu0 %v2926
    %3014 = vmatpush1.msra.mxu0 %v2925
    %3015 = vmatprep.subr.mxu0 %v2922
    %3016 = vmatpush1.msra.mxu0 %v2921
    %3017 = vmatprep.subr.mxu0 0.0
    %3018 = vmatpush2.msra.mxu0 0.0
    %3019 = vmatprep.subr.mxu0 0.0
    %3020 = vmatpush2.msra.mxu0 0.0
    %3021 = vmatprep.subr.mxu0 0.0
    %3022 = vmatpush2.msra.mxu0 0.0
    %3023 = vmatprep.subr.mxu0 0.0
    %3024 = vmatpush2.msra.mxu0 0.0
    %3025 = vmatprep.subr.mxu0 0.0
    %3026 = vmatpush2.msra.mxu0 0.0
    %3027 = vmatprep.subr.mxu0 0.0
    %3028 = vmatpush2.msra.mxu0 0.0
    %3029 = vmatprep.subr.mxu0 0.0
    %3030 = vmatpush2.msra.mxu0 0.0
    %3031 = vmatprep.subr.mxu0 0.0
    %3032 = vmatpush2.msra.mxu0 0.0
    %3033 = vmatprep.subr.mxu0 0.0
    %3034 = vmatpush2.msra.mxu0 0.0
    %3035 = vmatprep.subr.mxu0 0.0
    %3036 = vmatpush2.msra.mxu0 0.0
    %3037 = vmatprep.subr.mxu0 0.0
    %3038 = vmatpush2.msra.mxu0 0.0
    %3039 = vmatprep.subr.mxu0 0.0
    %3040 = vmatpush2.msra.mxu0 0.0
    %3041 = vmatprep.subr.mxu0 0.0
    %3042 = vmatpush2.msra.mxu0 0.0
    %3043 = vmatprep.subr.mxu0 0.0
    %3044 = vmatpush2.msra.mxu0 0.0
    %3045 = vmatprep.subr.mxu0 0.0
    %3046 = vmatpush2.msra.mxu0 0.0
    %3047 = vmatprep.subr.mxu0 0.0
    %3048 = vmatpush2.msra.mxu0 0.0
    %3049 = vmatprep.mubr.f32.mxu0 0.0
    %3050 = vmatmul.mubr.f32.gmra.mxu0 %v2617
    %v3051 = vpop.f32.mrf.mxu0
    %v3052 = vadd.f32 0.0, %v3051
    %v3053 = vpop.f32.mrf.mxu0
    %v3054 = vadd.f32 0.0, %v3053
    %3055 = vdwg.mxu0
    %3056 = vmatprep.subr.mxu0 %v2984
    %3057 = vmatpush1.msra.mxu0 %v2983
    %3058 = vmatprep.subr.mxu0 %v2980
    %3059 = vmatpush1.msra.mxu0 %v2979
    %3060 = vmatprep.subr.mxu0 %v2976
    %3061 = vmatpush1.msra.mxu0 %v2975
    %3062 = vmatprep.subr.mxu0 %v2972
    %3063 = vmatpush1.msra.mxu0 %v2971
    %3064 = vmatprep.subr.mxu0 %v2968
    %3065 = vmatpush1.msra.mxu0 %v2967
    %3066 = vmatprep.subr.mxu0 %v2964
    %3067 = vmatpush1.msra.mxu0 %v2963
    %3068 = vmatprep.subr.mxu0 %v2960
    %3069 = vmatpush1.msra.mxu0 %v2959
    %3070 = vmatprep.subr.mxu0 %v2956
    %3071 = vmatpush1.msra.mxu0 %v2955
    %3072 = vmatprep.subr.mxu0 %v2952
    %3073 = vmatpush1.msra.mxu0 %v2951
    %3074 = vmatprep.subr.mxu0 %v2948
    %3075 = vmatpush1.msra.mxu0 %v2947
    %3076 = vmatprep.subr.mxu0 %v2944
    %3077 = vmatpush1.msra.mxu0 %v2943
    %3078 = vmatprep.subr.mxu0 %v2940
    %3079 = vmatpush1.msra.mxu0 %v2939
    %3080 = vmatprep.subr.mxu0 %v2936
    %3081 = vmatpush1.msra.mxu0 %v2935
    %3082 = vmatprep.subr.mxu0 %v2932
    %3083 = vmatpush1.msra.mxu0 %v2931
    %3084 = vmatprep.subr.mxu0 %v2928
    %3085 = vmatpush1.msra.mxu0 %v2927
    %3086 = vmatprep.subr.mxu0 %v2924
    %3087 = vmatpush1.msra.mxu0 %v2923
    %3088 = vmatprep.subr.mxu0 0.0
    %3089 = vmatpush2.msra.mxu0 0.0
    %3090 = vmatprep.subr.mxu0 0.0
    %3091 = vmatpush2.msra.mxu0 0.0
    %3092 = vmatprep.subr.mxu0 0.0
    %3093 = vmatpush2.msra.mxu0 0.0
    %3094 = vmatprep.subr.mxu0 0.0
    %3095 = vmatpush2.msra.mxu0 0.0
    %3096 = vmatprep.subr.mxu0 0.0
    %3097 = vmatpush2.msra.mxu0 0.0
    %3098 = vmatprep.subr.mxu0 0.0
    %3099 = vmatpush2.msra.mxu0 0.0
    %3100 = vmatprep.subr.mxu0 0.0
    %3101 = vmatpush2.msra.mxu0 0.0
    %3102 = vmatprep.subr.mxu0 0.0
    %3103 = vmatpush2.msra.mxu0 0.0
    %3104 = vmatprep.subr.mxu0 0.0
    %3105 = vmatpush2.msra.mxu0 0.0
    %3106 = vmatprep.subr.mxu0 0.0
    %3107 = vmatpush2.msra.mxu0 0.0
    %3108 = vmatprep.subr.mxu0 0.0
    %3109 = vmatpush2.msra.mxu0 0.0
    %3110 = vmatprep.subr.mxu0 0.0
    %3111 = vmatpush2.msra.mxu0 0.0
    %3112 = vmatprep.subr.mxu0 0.0
    %3113 = vmatpush2.msra.mxu0 0.0
    %3114 = vmatprep.subr.mxu0 0.0
    %3115 = vmatpush2.msra.mxu0 0.0
    %3116 = vmatprep.subr.mxu0 0.0
    %3117 = vmatpush2.msra.mxu0 0.0
    %3118 = vmatprep.subr.mxu0 0.0
    %3119 = vmatpush2.msra.mxu0 0.0
    %3120 = vmatprep.mubr.f32.mxu0 0.0
    %3121 = vmatmul.mubr.f32.gmra.mxu0 %v2617
    %v3122 = vpop.f32.mrf.mxu0
    %v3123 = vadd.f32 0.0, %v3122
    %v3124 = vpop.f32.mrf.mxu0
    %v3125 = vadd.f32 0.0, %v3124
    %3126 = vdwg.mxu0
    %v3131 = vcombine.low %v3052, %v3054
    %v3132 = vcombine.low %v3123, %v3125
    %v3134 = vunpack.c.l.s4 1983009808
    %v3135 = vunpack.c.0.s8 %v3134
    %v3136 = vlaneseq
    %v3137 = vshrl.u32 %v3136, 7
    %v3138 = vsub.s32 %v3135, %v3137
    %v3139 = vrot.slane %v3131, %v3138
    %v3141 = vunpack.c.l.s4 1983009808
    %v3142 = vunpack.c.0.s8 %v3141
    %v3143 = vlaneseq
    %v3144 = vshrl.u32 %v3143, 7
    %v3145 = vsub.s32 %v3142, %v3144
    %v3146 = vrot.slane %v3132, %v3145
    %v3147 = vcombine.low %v3139, %v3146
    %v3149 = vadd.f32 %v2920, %v3147
    %v3150 = vmul.f32 %v3149, 0.5
    %v3151 = vtanh.pop %v3150
    %v3152 = vmul.f32 %v3151, 0.5
    %v3153 = vadd.f32 %v3152, 0.5
    %v3155 = vrot.slane %v3149, 2
    %v3157 = vmul.f32 %v3155, 0.5
    %v3158 = vtanh.pop %v3157
    %v3159 = vmul.f32 %v3158, 0.5
    %v3160 = vadd.f32 %v3159, 0.5
    %v3161 = vrot.slane %v3149, 4
    %v3163 = vmul.f32 %v3161, 0.5
    %v3164 = vtanh.pop %v3163
    %v3165 = vmul.f32 %v3164, 0.5
    %v3166 = vadd.f32 %v3165, 0.5
    %v3167 = vrot.slane %v3149, 6
    %v3169 = vtanh.pop %v3167
    %v3170 = vmul.f32 %v3160, %v2615
    %v3171 = vmul.f32 %v3153, %v3169
    %v3172 = vadd.f32 %v3170, %v3171
    %v3173 = vtanh.pop %v3172
    %v3174 = vmul.f32 %v3166, %v3173
    %v3175 = vld [vmem:[#allocation12] sm:$0xff]
    %v3176 = vld [vmem:[#allocation12 + $0x8] sm:$0xff]
    %v3177 = vld [vmem:[#allocation12 + $0x10] sm:$0xff]
    %v3178 = vld [vmem:[#allocation12 + $0x18] sm:$0xff]
    %v3179 = vld [vmem:[#allocation12 + $0x20] sm:$0xff]
    %v3180 = vld [vmem:[#allocation12 + $0x28] sm:$0xff]
    %v3181 = vld [vmem:[#allocation12 + $0x30] sm:$0xff]
    %v3182 = vld [vmem:[#allocation12 + $0x38] sm:$0xff]
    %v3183 = vld [vmem:[#allocation12 + $0x40] sm:$0xff]
    %v3184 = vld [vmem:[#allocation12 + $0x48] sm:$0xff]
    %v3185 = vld [vmem:[#allocation12 + $0x50] sm:$0xff]
    %v3186 = vld [vmem:[#allocation12 + $0x58] sm:$0xff]
    %v3187 = vld [vmem:[#allocation12 + $0x60] sm:$0xff]
    %v3188 = vld [vmem:[#allocation12 + $0x68] sm:$0xff]
    %v3189 = vld [vmem:[#allocation12 + $0x70] sm:$0xff]
    %v3190 = vld [vmem:[#allocation12 + $0x78] sm:$0xff]
    %v3191 = vld [vmem:[#allocation12 + $0x80] sm:$0xff]
    %v3192 = vld [vmem:[#allocation12 + $0x88] sm:$0xff]
    %v3193 = vld [vmem:[#allocation12 + $0x90] sm:$0xff]
    %v3194 = vld [vmem:[#allocation12 + $0x98] sm:$0xff]
    %v3195 = vld [vmem:[#allocation12 + $0xa0] sm:$0xff]
    %v3196 = vld [vmem:[#allocation12 + $0xa8] sm:$0xff]
    %v3197 = vld [vmem:[#allocation12 + $0xb0] sm:$0xff]
    %v3198 = vld [vmem:[#allocation12 + $0xb8] sm:$0xff]
    %v3199 = vld [vmem:[#allocation12 + $0xc0] sm:$0xff]
    %v3200 = vld [vmem:[#allocation12 + $0xc8] sm:$0xff]
    %v3201 = vld [vmem:[#allocation12 + $0xd0] sm:$0xff]
    %v3202 = vld [vmem:[#allocation12 + $0xd8] sm:$0xff]
    %v3203 = vld [vmem:[#allocation12 + $0xe0] sm:$0xff]
    %v3204 = vld [vmem:[#allocation12 + $0xe8] sm:$0xff]
    %v3205 = vld [vmem:[#allocation12 + $0xf0] sm:$0xff]
    %v3206 = vld [vmem:[#allocation12 + $0xf8] sm:$0xff]
    %v3207 = vld [vmem:[#allocation12 + $0x100] sm:$0xff]
    %v3208 = vld [vmem:[#allocation12 + $0x108] sm:$0xff]
    %v3209 = vld [vmem:[#allocation12 + $0x110] sm:$0xff]
    %v3210 = vld [vmem:[#allocation12 + $0x118] sm:$0xff]
    %v3211 = vld [vmem:[#allocation12 + $0x120] sm:$0xff]
    %v3212 = vld [vmem:[#allocation12 + $0x128] sm:$0xff]
    %v3213 = vld [vmem:[#allocation12 + $0x130] sm:$0xff]
    %v3214 = vld [vmem:[#allocation12 + $0x138] sm:$0xff]
    %v3215 = vld [vmem:[#allocation12 + $0x140] sm:$0xff]
    %v3216 = vld [vmem:[#allocation12 + $0x148] sm:$0xff]
    %v3217 = vld [vmem:[#allocation12 + $0x150] sm:$0xff]
    %v3218 = vld [vmem:[#allocation12 + $0x158] sm:$0xff]
    %v3219 = vld [vmem:[#allocation12 + $0x160] sm:$0xff]
    %v3220 = vld [vmem:[#allocation12 + $0x168] sm:$0xff]
    %v3221 = vld [vmem:[#allocation12 + $0x170] sm:$0xff]
    %v3222 = vld [vmem:[#allocation12 + $0x178] sm:$0xff]
    %v3223 = vld [vmem:[#allocation12 + $0x180] sm:$0xff]
    %v3224 = vld [vmem:[#allocation12 + $0x188] sm:$0xff]
    %v3225 = vld [vmem:[#allocation12 + $0x190] sm:$0xff]
    %v3226 = vld [vmem:[#allocation12 + $0x198] sm:$0xff]
    %v3227 = vld [vmem:[#allocation12 + $0x1a0] sm:$0xff]
    %v3228 = vld [vmem:[#allocation12 + $0x1a8] sm:$0xff]
    %v3229 = vld [vmem:[#allocation12 + $0x1b0] sm:$0xff]
    %v3230 = vld [vmem:[#allocation12 + $0x1b8] sm:$0xff]
    %v3231 = vld [vmem:[#allocation12 + $0x1c0] sm:$0xff]
    %v3232 = vld [vmem:[#allocation12 + $0x1c8] sm:$0xff]
    %v3233 = vld [vmem:[#allocation12 + $0x1d0] sm:$0xff]
    %v3234 = vld [vmem:[#allocation12 + $0x1d8] sm:$0xff]
    %v3235 = vld [vmem:[#allocation12 + $0x1e0] sm:$0xff]
    %v3236 = vld [vmem:[#allocation12 + $0x1e8] sm:$0xff]
    %v3237 = vld [vmem:[#allocation12 + $0x1f0] sm:$0xff]
    %v3238 = vld [vmem:[#allocation12 + $0x1f8] sm:$0xff]
    %v3239 = vld [vmem:[#allocation12 + $0x200] sm:$0xff]
    %v3240 = vld [vmem:[#allocation12 + $0x208] sm:$0xff]
    %v3241 = vld [vmem:[#allocation12 + $0x210] sm:$0xff]
    %v3242 = vld [vmem:[#allocation12 + $0x218] sm:$0xff]
    %v3243 = vld [vmem:[#allocation12 + $0x220] sm:$0xff]
    %v3244 = vld [vmem:[#allocation12 + $0x228] sm:$0xff]
    %v3245 = vld [vmem:[#allocation12 + $0x230] sm:$0xff]
    %v3246 = vld [vmem:[#allocation12 + $0x238] sm:$0xff]
    %v3247 = vld [vmem:[#allocation12 + $0x240] sm:$0xff]
    %v3248 = vld [vmem:[#allocation12 + $0x248] sm:$0xff]
    %v3249 = vld [vmem:[#allocation12 + $0x250] sm:$0xff]
    %v3250 = vld [vmem:[#allocation12 + $0x258] sm:$0xff]
    %v3251 = vld [vmem:[#allocation12 + $0x260] sm:$0xff]
    %v3252 = vld [vmem:[#allocation12 + $0x268] sm:$0xff]
    %v3253 = vld [vmem:[#allocation12 + $0x270] sm:$0xff]
    %v3254 = vld [vmem:[#allocation12 + $0x278] sm:$0xff]
    %v3255 = vld [vmem:[#allocation12 + $0x280] sm:$0xff]
    %v3256 = vld [vmem:[#allocation12 + $0x288] sm:$0xff]
    %v3257 = vld [vmem:[#allocation12 + $0x290] sm:$0xff]
    %v3258 = vld [vmem:[#allocation12 + $0x298] sm:$0xff]
    %v3259 = vld [vmem:[#allocation12 + $0x2a0] sm:$0xff]
    %v3260 = vld [vmem:[#allocation12 + $0x2a8] sm:$0xff]
    %v3261 = vld [vmem:[#allocation12 + $0x2b0] sm:$0xff]
    %v3262 = vld [vmem:[#allocation12 + $0x2b8] sm:$0xff]
    %v3263 = vld [vmem:[#allocation12 + $0x2c0] sm:$0xff]
    %v3264 = vld [vmem:[#allocation12 + $0x2c8] sm:$0xff]
    %v3265 = vld [vmem:[#allocation12 + $0x2d0] sm:$0xff]
    %v3266 = vld [vmem:[#allocation12 + $0x2d8] sm:$0xff]
    %v3267 = vld [vmem:[#allocation12 + $0x2e0] sm:$0xff]
    %v3268 = vld [vmem:[#allocation12 + $0x2e8] sm:$0xff]
    %v3269 = vld [vmem:[#allocation12 + $0x2f0] sm:$0xff]
    %v3270 = vld [vmem:[#allocation12 + $0x2f8] sm:$0xff]
    %v3271 = vld [vmem:[#allocation12 + $0x300] sm:$0xff]
    %v3272 = vld [vmem:[#allocation12 + $0x308] sm:$0xff]
    %v3273 = vld [vmem:[#allocation12 + $0x310] sm:$0xff]
    %v3274 = vld [vmem:[#allocation12 + $0x318] sm:$0xff]
    %v3275 = vld [vmem:[#allocation12 + $0x320] sm:$0xff]
    %v3276 = vld [vmem:[#allocation12 + $0x328] sm:$0xff]
    %v3277 = vld [vmem:[#allocation12 + $0x330] sm:$0xff]
    %v3278 = vld [vmem:[#allocation12 + $0x338] sm:$0xff]
    %v3279 = vld [vmem:[#allocation12 + $0x340] sm:$0xff]
    %v3280 = vld [vmem:[#allocation12 + $0x348] sm:$0xff]
    %v3281 = vld [vmem:[#allocation12 + $0x350] sm:$0xff]
    %v3282 = vld [vmem:[#allocation12 + $0x358] sm:$0xff]
    %v3283 = vld [vmem:[#allocation12 + $0x360] sm:$0xff]
    %v3284 = vld [vmem:[#allocation12 + $0x368] sm:$0xff]
    %v3285 = vld [vmem:[#allocation12 + $0x370] sm:$0xff]
    %v3286 = vld [vmem:[#allocation12 + $0x378] sm:$0xff]
    %v3287 = vld [vmem:[#allocation12 + $0x380] sm:$0xff]
    %v3288 = vld [vmem:[#allocation12 + $0x388] sm:$0xff]
    %v3289 = vld [vmem:[#allocation12 + $0x390] sm:$0xff]
    %v3290 = vld [vmem:[#allocation12 + $0x398] sm:$0xff]
    %v3291 = vld [vmem:[#allocation12 + $0x3a0] sm:$0xff]
    %v3292 = vld [vmem:[#allocation12 + $0x3a8] sm:$0xff]
    %v3293 = vld [vmem:[#allocation12 + $0x3b0] sm:$0xff]
    %v3294 = vld [vmem:[#allocation12 + $0x3b8] sm:$0xff]
    %v3295 = vld [vmem:[#allocation12 + $0x3c0] sm:$0xff]
    %v3296 = vld [vmem:[#allocation12 + $0x3c8] sm:$0xff]
    %v3297 = vld [vmem:[#allocation12 + $0x3d0] sm:$0xff]
    %v3298 = vld [vmem:[#allocation12 + $0x3d8] sm:$0xff]
    %v3299 = vld [vmem:[#allocation12 + $0x3e0] sm:$0xff]
    %v3300 = vld [vmem:[#allocation12 + $0x3e8] sm:$0xff]
    %v3301 = vld [vmem:[#allocation12 + $0x3f0] sm:$0xff]
    %v3302 = vld [vmem:[#allocation12 + $0x3f8] sm:$0xff]
    %3303 = vmatprep.subr.mxu0 %v3236
    %3304 = vmatpush1.msra.mxu0 %v3235
    %3305 = vmatprep.subr.mxu0 %v3232
    %3306 = vmatpush1.msra.mxu0 %v3231
    %3307 = vmatprep.subr.mxu0 %v3228
    %3308 = vmatpush1.msra.mxu0 %v3227
    %3309 = vmatprep.subr.mxu0 %v3224
    %3310 = vmatpush1.msra.mxu0 %v3223
    %3311 = vmatprep.subr.mxu0 %v3220
    %3312 = vmatpush1.msra.mxu0 %v3219
    %3313 = vmatprep.subr.mxu0 %v3216
    %3314 = vmatpush1.msra.mxu0 %v3215
    %3315 = vmatprep.subr.mxu0 %v3212
    %3316 = vmatpush1.msra.mxu0 %v3211
    %3317 = vmatprep.subr.mxu0 %v3208
    %3318 = vmatpush1.msra.mxu0 %v3207
    %3319 = vmatprep.subr.mxu0 %v3204
    %3320 = vmatpush1.msra.mxu0 %v3203
    %3321 = vmatprep.subr.mxu0 %v3200
    %3322 = vmatpush1.msra.mxu0 %v3199
    %3323 = vmatprep.subr.mxu0 %v3196
    %3324 = vmatpush1.msra.mxu0 %v3195
    %3325 = vmatprep.subr.mxu0 %v3192
    %3326 = vmatpush1.msra.mxu0 %v3191
    %3327 = vmatprep.subr.mxu0 %v3188
    %3328 = vmatpush1.msra.mxu0 %v3187
    %3329 = vmatprep.subr.mxu0 %v3184
    %3330 = vmatpush1.msra.mxu0 %v3183
    %3331 = vmatprep.subr.mxu0 %v3180
    %3332 = vmatpush1.msra.mxu0 %v3179
    %3333 = vmatprep.subr.mxu0 %v3176
    %3334 = vmatpush1.msra.mxu0 %v3175
    %3335 = vmatprep.subr.mxu0 %v3300
    %3336 = vmatpush2.msra.mxu0 %v3299
    %3337 = vmatprep.subr.mxu0 %v3296
    %3338 = vmatpush2.msra.mxu0 %v3295
    %3339 = vmatprep.subr.mxu0 %v3292
    %3340 = vmatpush2.msra.mxu0 %v3291
    %3341 = vmatprep.subr.mxu0 %v3288
    %3342 = vmatpush2.msra.mxu0 %v3287
    %3343 = vmatprep.subr.mxu0 %v3284
    %3344 = vmatpush2.msra.mxu0 %v3283
    %3345 = vmatprep.subr.mxu0 %v3280
    %3346 = vmatpush2.msra.mxu0 %v3279
    %3347 = vmatprep.subr.mxu0 %v3276
    %3348 = vmatpush2.msra.mxu0 %v3275
    %3349 = vmatprep.subr.mxu0 %v3272
    %3350 = vmatpush2.msra.mxu0 %v3271
    %3351 = vmatprep.subr.mxu0 %v3268
    %3352 = vmatpush2.msra.mxu0 %v3267
    %3353 = vmatprep.subr.mxu0 %v3264
    %3354 = vmatpush2.msra.mxu0 %v3263
    %3355 = vmatprep.subr.mxu0 %v3260
    %3356 = vmatpush2.msra.mxu0 %v3259
    %3357 = vmatprep.subr.mxu0 %v3256
    %3358 = vmatpush2.msra.mxu0 %v3255
    %3359 = vmatprep.subr.mxu0 %v3252
    %3360 = vmatpush2.msra.mxu0 %v3251
    %3361 = vmatprep.subr.mxu0 %v3248
    %3362 = vmatpush2.msra.mxu0 %v3247
    %3363 = vmatprep.subr.mxu0 %v3244
    %3364 = vmatpush2.msra.mxu0 %v3243
    %3365 = vmatprep.subr.mxu0 %v3240
    %3366 = vmatpush2.msra.mxu0 %v3239
    %3367 = vmatprep.mubr.f32.mxu0 %v2905
    %3368 = vmatmul.mubr.f32.gmra.mxu0 %v3174
    %v3369 = vpop.f32.mrf.mxu0
    %v3370 = vadd.f32 %v503, %v3369
    %v3371 = vpop.f32.mrf.mxu0
    %v3372 = vadd.f32 %v507, %v3371
    %3373 = vdwg.mxu0
    %3374 = vmatprep.subr.mxu0 %v3238
    %3375 = vmatpush1.msra.mxu0 %v3237
    %3376 = vmatprep.subr.mxu0 %v3234
    %3377 = vmatpush1.msra.mxu0 %v3233
    %3378 = vmatprep.subr.mxu0 %v3230
    %3379 = vmatpush1.msra.mxu0 %v3229
    %3380 = vmatprep.subr.mxu0 %v3226
    %3381 = vmatpush1.msra.mxu0 %v3225
    %3382 = vmatprep.subr.mxu0 %v3222
    %3383 = vmatpush1.msra.mxu0 %v3221
    %3384 = vmatprep.subr.mxu0 %v3218
    %3385 = vmatpush1.msra.mxu0 %v3217
    %3386 = vmatprep.subr.mxu0 %v3214
    %3387 = vmatpush1.msra.mxu0 %v3213
    %3388 = vmatprep.subr.mxu0 %v3210
    %3389 = vmatpush1.msra.mxu0 %v3209
    %3390 = vmatprep.subr.mxu0 %v3206
    %3391 = vmatpush1.msra.mxu0 %v3205
    %3392 = vmatprep.subr.mxu0 %v3202
    %3393 = vmatpush1.msra.mxu0 %v3201
    %3394 = vmatprep.subr.mxu0 %v3198
    %3395 = vmatpush1.msra.mxu0 %v3197
    %3396 = vmatprep.subr.mxu0 %v3194
    %3397 = vmatpush1.msra.mxu0 %v3193
    %3398 = vmatprep.subr.mxu0 %v3190
    %3399 = vmatpush1.msra.mxu0 %v3189
    %3400 = vmatprep.subr.mxu0 %v3186
    %3401 = vmatpush1.msra.mxu0 %v3185
    %3402 = vmatprep.subr.mxu0 %v3182
    %3403 = vmatpush1.msra.mxu0 %v3181
    %3404 = vmatprep.subr.mxu0 %v3178
    %3405 = vmatpush1.msra.mxu0 %v3177
    %3406 = vmatprep.subr.mxu0 %v3302
    %3407 = vmatpush2.msra.mxu0 %v3301
    %3408 = vmatprep.subr.mxu0 %v3298
    %3409 = vmatpush2.msra.mxu0 %v3297
    %3410 = vmatprep.subr.mxu0 %v3294
    %3411 = vmatpush2.msra.mxu0 %v3293
    %3412 = vmatprep.subr.mxu0 %v3290
    %3413 = vmatpush2.msra.mxu0 %v3289
    %3414 = vmatprep.subr.mxu0 %v3286
    %3415 = vmatpush2.msra.mxu0 %v3285
    %3416 = vmatprep.subr.mxu0 %v3282
    %3417 = vmatpush2.msra.mxu0 %v3281
    %3418 = vmatprep.subr.mxu0 %v3278
    %3419 = vmatpush2.msra.mxu0 %v3277
    %3420 = vmatprep.subr.mxu0 %v3274
    %3421 = vmatpush2.msra.mxu0 %v3273
    %3422 = vmatprep.subr.mxu0 %v3270
    %3423 = vmatpush2.msra.mxu0 %v3269
    %3424 = vmatprep.subr.mxu0 %v3266
    %3425 = vmatpush2.msra.mxu0 %v3265
    %3426 = vmatprep.subr.mxu0 %v3262
    %3427 = vmatpush2.msra.mxu0 %v3261
    %3428 = vmatprep.subr.mxu0 %v3258
    %3429 = vmatpush2.msra.mxu0 %v3257
    %3430 = vmatprep.subr.mxu0 %v3254
    %3431 = vmatpush2.msra.mxu0 %v3253
    %3432 = vmatprep.subr.mxu0 %v3250
    %3433 = vmatpush2.msra.mxu0 %v3249
    %3434 = vmatprep.subr.mxu0 %v3246
    %3435 = vmatpush2.msra.mxu0 %v3245
    %3436 = vmatprep.subr.mxu0 %v3242
    %3437 = vmatpush2.msra.mxu0 %v3241
    %3438 = vmatprep.mubr.f32.mxu0 %v2905
    %3439 = vmatmul.mubr.f32.gmra.mxu0 %v3174
    %v3440 = vpop.f32.mrf.mxu0
    %v3441 = vadd.f32 %v511, %v3440
    %v3442 = vpop.f32.mrf.mxu0
    %v3443 = vadd.f32 %v515, %v3442
    %3444 = vdwg.mxu0
    %v3445 = vmul.f32 %v3370, 0.5
    %v3446 = vtanh.pop %v3445
    %v3447 = vmul.f32 %v3446, 0.5
    %v3448 = vadd.f32 %v3447, 0.5
    %v3449 = vmul.f32 %v3372, 0.5
    %v3450 = vtanh.pop %v3449
    %v3451 = vmul.f32 %v3450, 0.5
    %v3452 = vadd.f32 %v3451, 0.5
    %v3453 = vmul.f32 %v3441, 0.5
    %v3454 = vtanh.pop %v3453
    %v3455 = vmul.f32 %v3454, 0.5
    %v3456 = vadd.f32 %v3455, 0.5
    %v3457 = vtanh.pop %v3443
    %v3458 = vmul.f32 %v3452, %v2903
    %v3459 = vmul.f32 %v3448, %v3457
    %v3460 = vadd.f32 %v3458, %v3459
    %v3461 = vtanh.pop %v3460
    %v3462 = vmul.f32 %v3456, %v3461
    %s3463 = scalar_lea.vmem [#allocation13], 10
    %3464 = vst [vmem:[%s3463] sm:$0x3] %v3462
    %s3465 = sadd.s32 %s108, 5
    %p3466 = scmp.eq.s32.totalorder %s3465, 7
    // Predicated region
    $region70: #{tpu_custom_call.1} parent=1 // pred_check
      %p3467 = pneg %p3466
    $region71: #{tpu_custom_call.1} parent=1 // pred_check_branch
      %3469 = sbr.rel (%p3467) target = $region73
    $region72: #{tpu_custom_call.1} parent=1 // pred_region
      %3470 = vst [vmem:[#allocation14] sm:$0x3] %v3174
      %3471 = vst [vmem:[#allocation16] sm:$0x3] %v3172
      %s3472 = scalar_lea.vmem [#allocation14], 2
      %3473 = vst [vmem:[%s3472] sm:$0x3] %v3462
      %s3474 = scalar_lea.vmem [#allocation16], 2
      %3475 = vst [vmem:[%s3474] sm:$0x3] %v3460
    $region73: #{tpu_custom_call.1} parent=1 // pred_fallthru
      _
    %s3476 = scalar_lea.vmem [#allocation4], 48
    %v3477 = vld [vmem:[%s3476] sm:$0xff]
    %v3478 = vld [vmem:[#allocation10] sm:$0xff]
    %v3479 = vld [vmem:[#allocation10 + $0x8] sm:$0xff]
    %v3480 = vld [vmem:[#allocation10 + $0x10] sm:$0xff]
    %v3481 = vld [vmem:[#allocation10 + $0x18] sm:$0xff]
    %v3482 = vld [vmem:[#allocation10 + $0x20] sm:$0xff]
    %v3483 = vld [vmem:[#allocation10 + $0x28] sm:$0xff]
    %v3484 = vld [vmem:[#allocation10 + $0x30] sm:$0xff]
    %v3485 = vld [vmem:[#allocation10 + $0x38] sm:$0xff]
    %v3486 = vld [vmem:[#allocation10 + $0x40] sm:$0xff]
    %v3487 = vld [vmem:[#allocation10 + $0x48] sm:$0xff]
    %v3488 = vld [vmem:[#allocation10 + $0x50] sm:$0xff]
    %v3489 = vld [vmem:[#allocation10 + $0x58] sm:$0xff]
    %v3490 = vld [vmem:[#allocation10 + $0x60] sm:$0xff]
    %v3491 = vld [vmem:[#allocation10 + $0x68] sm:$0xff]
    %v3492 = vld [vmem:[#allocation10 + $0x70] sm:$0xff]
    %v3493 = vld [vmem:[#allocation10 + $0x78] sm:$0xff]
    %v3494 = vld [vmem:[#allocation10 + $0x80] sm:$0xff]
    %v3495 = vld [vmem:[#allocation10 + $0x88] sm:$0xff]
    %v3496 = vld [vmem:[#allocation10 + $0x90] sm:$0xff]
    %v3497 = vld [vmem:[#allocation10 + $0x98] sm:$0xff]
    %v3498 = vld [vmem:[#allocation10 + $0xa0] sm:$0xff]
    %v3499 = vld [vmem:[#allocation10 + $0xa8] sm:$0xff]
    %v3500 = vld [vmem:[#allocation10 + $0xb0] sm:$0xff]
    %v3501 = vld [vmem:[#allocation10 + $0xb8] sm:$0xff]
    %v3502 = vld [vmem:[#allocation10 + $0xc0] sm:$0xff]
    %v3503 = vld [vmem:[#allocation10 + $0xc8] sm:$0xff]
    %v3504 = vld [vmem:[#allocation10 + $0xd0] sm:$0xff]
    %v3505 = vld [vmem:[#allocation10 + $0xd8] sm:$0xff]
    %v3506 = vld [vmem:[#allocation10 + $0xe0] sm:$0xff]
    %v3507 = vld [vmem:[#allocation10 + $0xe8] sm:$0xff]
    %v3508 = vld [vmem:[#allocation10 + $0xf0] sm:$0xff]
    %v3509 = vld [vmem:[#allocation10 + $0xf8] sm:$0xff]
    %v3510 = vld [vmem:[#allocation10 + $0x100] sm:$0xff]
    %v3511 = vld [vmem:[#allocation10 + $0x108] sm:$0xff]
    %v3512 = vld [vmem:[#allocation10 + $0x110] sm:$0xff]
    %v3513 = vld [vmem:[#allocation10 + $0x118] sm:$0xff]
    %v3514 = vld [vmem:[#allocation10 + $0x120] sm:$0xff]
    %v3515 = vld [vmem:[#allocation10 + $0x128] sm:$0xff]
    %v3516 = vld [vmem:[#allocation10 + $0x130] sm:$0xff]
    %v3517 = vld [vmem:[#allocation10 + $0x138] sm:$0xff]
    %v3518 = vld [vmem:[#allocation10 + $0x140] sm:$0xff]
    %v3519 = vld [vmem:[#allocation10 + $0x148] sm:$0xff]
    %v3520 = vld [vmem:[#allocation10 + $0x150] sm:$0xff]
    %v3521 = vld [vmem:[#allocation10 + $0x158] sm:$0xff]
    %v3522 = vld [vmem:[#allocation10 + $0x160] sm:$0xff]
    %v3523 = vld [vmem:[#allocation10 + $0x168] sm:$0xff]
    %v3524 = vld [vmem:[#allocation10 + $0x170] sm:$0xff]
    %v3525 = vld [vmem:[#allocation10 + $0x178] sm:$0xff]
    %v3526 = vld [vmem:[#allocation10 + $0x180] sm:$0xff]
    %v3527 = vld [vmem:[#allocation10 + $0x188] sm:$0xff]
    %v3528 = vld [vmem:[#allocation10 + $0x190] sm:$0xff]
    %v3529 = vld [vmem:[#allocation10 + $0x198] sm:$0xff]
    %v3530 = vld [vmem:[#allocation10 + $0x1a0] sm:$0xff]
    %v3531 = vld [vmem:[#allocation10 + $0x1a8] sm:$0xff]
    %v3532 = vld [vmem:[#allocation10 + $0x1b0] sm:$0xff]
    %v3533 = vld [vmem:[#allocation10 + $0x1b8] sm:$0xff]
    %v3534 = vld [vmem:[#allocation10 + $0x1c0] sm:$0xff]
    %v3535 = vld [vmem:[#allocation10 + $0x1c8] sm:$0xff]
    %v3536 = vld [vmem:[#allocation10 + $0x1d0] sm:$0xff]
    %v3537 = vld [vmem:[#allocation10 + $0x1d8] sm:$0xff]
    %v3538 = vld [vmem:[#allocation10 + $0x1e0] sm:$0xff]
    %v3539 = vld [vmem:[#allocation10 + $0x1e8] sm:$0xff]
    %v3540 = vld [vmem:[#allocation10 + $0x1f0] sm:$0xff]
    %v3541 = vld [vmem:[#allocation10 + $0x1f8] sm:$0xff]
    %3542 = vmatprep.subr.mxu0 %v3539
    %3543 = vmatpush1.msra.mxu0 %v3538
    %3544 = vmatprep.subr.mxu0 %v3535
    %3545 = vmatpush1.msra.mxu0 %v3534
    %3546 = vmatprep.subr.mxu0 %v3531
    %3547 = vmatpush1.msra.mxu0 %v3530
    %3548 = vmatprep.subr.mxu0 %v3527
    %3549 = vmatpush1.msra.mxu0 %v3526
    %3550 = vmatprep.subr.mxu0 %v3523
    %3551 = vmatpush1.msra.mxu0 %v3522
    %3552 = vmatprep.subr.mxu0 %v3519
    %3553 = vmatpush1.msra.mxu0 %v3518
    %3554 = vmatprep.subr.mxu0 %v3515
    %3555 = vmatpush1.msra.mxu0 %v3514
    %3556 = vmatprep.subr.mxu0 %v3511
    %3557 = vmatpush1.msra.mxu0 %v3510
    %3558 = vmatprep.subr.mxu0 %v3507
    %3559 = vmatpush1.msra.mxu0 %v3506
    %3560 = vmatprep.subr.mxu0 %v3503
    %3561 = vmatpush1.msra.mxu0 %v3502
    %3562 = vmatprep.subr.mxu0 %v3499
    %3563 = vmatpush1.msra.mxu0 %v3498
    %3564 = vmatprep.subr.mxu0 %v3495
    %3565 = vmatpush1.msra.mxu0 %v3494
    %3566 = vmatprep.subr.mxu0 %v3491
    %3567 = vmatpush1.msra.mxu0 %v3490
    %3568 = vmatprep.subr.mxu0 %v3487
    %3569 = vmatpush1.msra.mxu0 %v3486
    %3570 = vmatprep.subr.mxu0 %v3483
    %3571 = vmatpush1.msra.mxu0 %v3482
    %3572 = vmatprep.subr.mxu0 %v3479
    %3573 = vmatpush1.msra.mxu0 %v3478
    %3574 = vmatprep.subr.mxu0 0.0
    %3575 = vmatpush2.msra.mxu0 0.0
    %3576 = vmatprep.subr.mxu0 0.0
    %3577 = vmatpush2.msra.mxu0 0.0
    %3578 = vmatprep.subr.mxu0 0.0
    %3579 = vmatpush2.msra.mxu0 0.0
    %3580 = vmatprep.subr.mxu0 0.0
    %3581 = vmatpush2.msra.mxu0 0.0
    %3582 = vmatprep.subr.mxu0 0.0
    %3583 = vmatpush2.msra.mxu0 0.0
    %3584 = vmatprep.subr.mxu0 0.0
    %3585 = vmatpush2.msra.mxu0 0.0
    %3586 = vmatprep.subr.mxu0 0.0
    %3587 = vmatpush2.msra.mxu0 0.0
    %3588 = vmatprep.subr.mxu0 0.0
    %3589 = vmatpush2.msra.mxu0 0.0
    %3590 = vmatprep.subr.mxu0 0.0
    %3591 = vmatpush2.msra.mxu0 0.0
    %3592 = vmatprep.subr.mxu0 0.0
    %3593 = vmatpush2.msra.mxu0 0.0
    %3594 = vmatprep.subr.mxu0 0.0
    %3595 = vmatpush2.msra.mxu0 0.0
    %3596 = vmatprep.subr.mxu0 0.0
    %3597 = vmatpush2.msra.mxu0 0.0
    %3598 = vmatprep.subr.mxu0 0.0
    %3599 = vmatpush2.msra.mxu0 0.0
    %3600 = vmatprep.subr.mxu0 0.0
    %3601 = vmatpush2.msra.mxu0 0.0
    %3602 = vmatprep.subr.mxu0 0.0
    %3603 = vmatpush2.msra.mxu0 0.0
    %3604 = vmatprep.subr.mxu0 0.0
    %3605 = vmatpush2.msra.mxu0 0.0
    %3606 = vmatprep.mubr.f32.mxu0 0.0
    %3607 = vmatmul.mubr.f32.gmra.mxu0 %v3174
    %v3608 = vpop.f32.mrf.mxu0
    %v3609 = vadd.f32 0.0, %v3608
    %v3610 = vpop.f32.mrf.mxu0
    %v3611 = vadd.f32 0.0, %v3610
    %3612 = vdwg.mxu0
    %3613 = vmatprep.subr.mxu0 %v3541
    %3614 = vmatpush1.msra.mxu0 %v3540
    %3615 = vmatprep.subr.mxu0 %v3537
    %3616 = vmatpush1.msra.mxu0 %v3536
    %3617 = vmatprep.subr.mxu0 %v3533
    %3618 = vmatpush1.msra.mxu0 %v3532
    %3619 = vmatprep.subr.mxu0 %v3529
    %3620 = vmatpush1.msra.mxu0 %v3528
    %3621 = vmatprep.subr.mxu0 %v3525
    %3622 = vmatpush1.msra.mxu0 %v3524
    %3623 = vmatprep.subr.mxu0 %v3521
    %3624 = vmatpush1.msra.mxu0 %v3520
    %3625 = vmatprep.subr.mxu0 %v3517
    %3626 = vmatpush1.msra.mxu0 %v3516
    %3627 = vmatprep.subr.mxu0 %v3513
    %3628 = vmatpush1.msra.mxu0 %v3512
    %3629 = vmatprep.subr.mxu0 %v3509
    %3630 = vmatpush1.msra.mxu0 %v3508
    %3631 = vmatprep.subr.mxu0 %v3505
    %3632 = vmatpush1.msra.mxu0 %v3504
    %3633 = vmatprep.subr.mxu0 %v3501
    %3634 = vmatpush1.msra.mxu0 %v3500
    %3635 = vmatprep.subr.mxu0 %v3497
    %3636 = vmatpush1.msra.mxu0 %v3496
    %3637 = vmatprep.subr.mxu0 %v3493
    %3638 = vmatpush1.msra.mxu0 %v3492
    %3639 = vmatprep.subr.mxu0 %v3489
    %3640 = vmatpush1.msra.mxu0 %v3488
    %3641 = vmatprep.subr.mxu0 %v3485
    %3642 = vmatpush1.msra.mxu0 %v3484
    %3643 = vmatprep.subr.mxu0 %v3481
    %3644 = vmatpush1.msra.mxu0 %v3480
    %3645 = vmatprep.subr.mxu0 0.0
    %3646 = vmatpush2.msra.mxu0 0.0
    %3647 = vmatprep.subr.mxu0 0.0
    %3648 = vmatpush2.msra.mxu0 0.0
    %3649 = vmatprep.subr.mxu0 0.0
    %3650 = vmatpush2.msra.mxu0 0.0
    %3651 = vmatprep.subr.mxu0 0.0
    %3652 = vmatpush2.msra.mxu0 0.0
    %3653 = vmatprep.subr.mxu0 0.0
    %3654 = vmatpush2.msra.mxu0 0.0
    %3655 = vmatprep.subr.mxu0 0.0
    %3656 = vmatpush2.msra.mxu0 0.0
    %3657 = vmatprep.subr.mxu0 0.0
    %3658 = vmatpush2.msra.mxu0 0.0
    %3659 = vmatprep.subr.mxu0 0.0
    %3660 = vmatpush2.msra.mxu0 0.0
    %3661 = vmatprep.subr.mxu0 0.0
    %3662 = vmatpush2.msra.mxu0 0.0
    %3663 = vmatprep.subr.mxu0 0.0
    %3664 = vmatpush2.msra.mxu0 0.0
    %3665 = vmatprep.subr.mxu0 0.0
    %3666 = vmatpush2.msra.mxu0 0.0
    %3667 = vmatprep.subr.mxu0 0.0
    %3668 = vmatpush2.msra.mxu0 0.0
    %3669 = vmatprep.subr.mxu0 0.0
    %3670 = vmatpush2.msra.mxu0 0.0
    %3671 = vmatprep.subr.mxu0 0.0
    %3672 = vmatpush2.msra.mxu0 0.0
    %3673 = vmatprep.subr.mxu0 0.0
    %3674 = vmatpush2.msra.mxu0 0.0
    %3675 = vmatprep.subr.mxu0 0.0
    %3676 = vmatpush2.msra.mxu0 0.0
    %3677 = vmatprep.mubr.f32.mxu0 0.0
    %3678 = vmatmul.mubr.f32.gmra.mxu0 %v3174
    %v3679 = vpop.f32.mrf.mxu0
    %v3680 = vadd.f32 0.0, %v3679
    %v3681 = vpop.f32.mrf.mxu0
    %v3682 = vadd.f32 0.0, %v3681
    %3683 = vdwg.mxu0
    %v3688 = vcombine.low %v3609, %v3611
    %v3689 = vcombine.low %v3680, %v3682
    %v3691 = vunpack.c.l.s4 1983009808
    %v3692 = vunpack.c.0.s8 %v3691
    %v3693 = vlaneseq
    %v3694 = vshrl.u32 %v3693, 7
    %v3695 = vsub.s32 %v3692, %v3694
    %v3696 = vrot.slane %v3688, %v3695
    %v3698 = vunpack.c.l.s4 1983009808
    %v3699 = vunpack.c.0.s8 %v3698
    %v3700 = vlaneseq
    %v3701 = vshrl.u32 %v3700, 7
    %v3702 = vsub.s32 %v3699, %v3701
    %v3703 = vrot.slane %v3689, %v3702
    %v3704 = vcombine.low %v3696, %v3703
    %v3706 = vadd.f32 %v3477, %v3704
    %v3707 = vmul.f32 %v3706, 0.5
    %v3708 = vtanh.pop %v3707
    %v3709 = vmul.f32 %v3708, 0.5
    %v3710 = vadd.f32 %v3709, 0.5
    %v3712 = vrot.slane %v3706, 2
    %v3714 = vmul.f32 %v3712, 0.5
    %v3715 = vtanh.pop %v3714
    %v3716 = vmul.f32 %v3715, 0.5
    %v3717 = vadd.f32 %v3716, 0.5
    %v3718 = vrot.slane %v3706, 4
    %v3720 = vmul.f32 %v3718, 0.5
    %v3721 = vtanh.pop %v3720
    %v3722 = vmul.f32 %v3721, 0.5
    %v3723 = vadd.f32 %v3722, 0.5
    %v3724 = vrot.slane %v3706, 6
    %v3726 = vtanh.pop %v3724
    %v3727 = vmul.f32 %v3717, %v3172
    %v3728 = vmul.f32 %v3710, %v3726
    %v3729 = vadd.f32 %v3727, %v3728
    %v3730 = vtanh.pop %v3729
    %v3731 = vmul.f32 %v3723, %v3730
    %v3732 = vld [vmem:[#allocation12] sm:$0xff]
    %v3733 = vld [vmem:[#allocation12 + $0x8] sm:$0xff]
    %v3734 = vld [vmem:[#allocation12 + $0x10] sm:$0xff]
    %v3735 = vld [vmem:[#allocation12 + $0x18] sm:$0xff]
    %v3736 = vld [vmem:[#allocation12 + $0x20] sm:$0xff]
    %v3737 = vld [vmem:[#allocation12 + $0x28] sm:$0xff]
    %v3738 = vld [vmem:[#allocation12 + $0x30] sm:$0xff]
    %v3739 = vld [vmem:[#allocation12 + $0x38] sm:$0xff]
    %v3740 = vld [vmem:[#allocation12 + $0x40] sm:$0xff]
    %v3741 = vld [vmem:[#allocation12 + $0x48] sm:$0xff]
    %v3742 = vld [vmem:[#allocation12 + $0x50] sm:$0xff]
    %v3743 = vld [vmem:[#allocation12 + $0x58] sm:$0xff]
    %v3744 = vld [vmem:[#allocation12 + $0x60] sm:$0xff]
    %v3745 = vld [vmem:[#allocation12 + $0x68] sm:$0xff]
    %v3746 = vld [vmem:[#allocation12 + $0x70] sm:$0xff]
    %v3747 = vld [vmem:[#allocation12 + $0x78] sm:$0xff]
    %v3748 = vld [vmem:[#allocation12 + $0x80] sm:$0xff]
    %v3749 = vld [vmem:[#allocation12 + $0x88] sm:$0xff]
    %v3750 = vld [vmem:[#allocation12 + $0x90] sm:$0xff]
    %v3751 = vld [vmem:[#allocation12 + $0x98] sm:$0xff]
    %v3752 = vld [vmem:[#allocation12 + $0xa0] sm:$0xff]
    %v3753 = vld [vmem:[#allocation12 + $0xa8] sm:$0xff]
    %v3754 = vld [vmem:[#allocation12 + $0xb0] sm:$0xff]
    %v3755 = vld [vmem:[#allocation12 + $0xb8] sm:$0xff]
    %v3756 = vld [vmem:[#allocation12 + $0xc0] sm:$0xff]
    %v3757 = vld [vmem:[#allocation12 + $0xc8] sm:$0xff]
    %v3758 = vld [vmem:[#allocation12 + $0xd0] sm:$0xff]
    %v3759 = vld [vmem:[#allocation12 + $0xd8] sm:$0xff]
    %v3760 = vld [vmem:[#allocation12 + $0xe0] sm:$0xff]
    %v3761 = vld [vmem:[#allocation12 + $0xe8] sm:$0xff]
    %v3762 = vld [vmem:[#allocation12 + $0xf0] sm:$0xff]
    %v3763 = vld [vmem:[#allocation12 + $0xf8] sm:$0xff]
    %v3764 = vld [vmem:[#allocation12 + $0x100] sm:$0xff]
    %v3765 = vld [vmem:[#allocation12 + $0x108] sm:$0xff]
    %v3766 = vld [vmem:[#allocation12 + $0x110] sm:$0xff]
    %v3767 = vld [vmem:[#allocation12 + $0x118] sm:$0xff]
    %v3768 = vld [vmem:[#allocation12 + $0x120] sm:$0xff]
    %v3769 = vld [vmem:[#allocation12 + $0x128] sm:$0xff]
    %v3770 = vld [vmem:[#allocation12 + $0x130] sm:$0xff]
    %v3771 = vld [vmem:[#allocation12 + $0x138] sm:$0xff]
    %v3772 = vld [vmem:[#allocation12 + $0x140] sm:$0xff]
    %v3773 = vld [vmem:[#allocation12 + $0x148] sm:$0xff]
    %v3774 = vld [vmem:[#allocation12 + $0x150] sm:$0xff]
    %v3775 = vld [vmem:[#allocation12 + $0x158] sm:$0xff]
    %v3776 = vld [vmem:[#allocation12 + $0x160] sm:$0xff]
    %v3777 = vld [vmem:[#allocation12 + $0x168] sm:$0xff]
    %v3778 = vld [vmem:[#allocation12 + $0x170] sm:$0xff]
    %v3779 = vld [vmem:[#allocation12 + $0x178] sm:$0xff]
    %v3780 = vld [vmem:[#allocation12 + $0x180] sm:$0xff]
    %v3781 = vld [vmem:[#allocation12 + $0x188] sm:$0xff]
    %v3782 = vld [vmem:[#allocation12 + $0x190] sm:$0xff]
    %v3783 = vld [vmem:[#allocation12 + $0x198] sm:$0xff]
    %v3784 = vld [vmem:[#allocation12 + $0x1a0] sm:$0xff]
    %v3785 = vld [vmem:[#allocation12 + $0x1a8] sm:$0xff]
    %v3786 = vld [vmem:[#allocation12 + $0x1b0] sm:$0xff]
    %v3787 = vld [vmem:[#allocation12 + $0x1b8] sm:$0xff]
    %v3788 = vld [vmem:[#allocation12 + $0x1c0] sm:$0xff]
    %v3789 = vld [vmem:[#allocation12 + $0x1c8] sm:$0xff]
    %v3790 = vld [vmem:[#allocation12 + $0x1d0] sm:$0xff]
    %v3791 = vld [vmem:[#allocation12 + $0x1d8] sm:$0xff]
    %v3792 = vld [vmem:[#allocation12 + $0x1e0] sm:$0xff]
    %v3793 = vld [vmem:[#allocation12 + $0x1e8] sm:$0xff]
    %v3794 = vld [vmem:[#allocation12 + $0x1f0] sm:$0xff]
    %v3795 = vld [vmem:[#allocation12 + $0x1f8] sm:$0xff]
    %v3796 = vld [vmem:[#allocation12 + $0x200] sm:$0xff]
    %v3797 = vld [vmem:[#allocation12 + $0x208] sm:$0xff]
    %v3798 = vld [vmem:[#allocation12 + $0x210] sm:$0xff]
    %v3799 = vld [vmem:[#allocation12 + $0x218] sm:$0xff]
    %v3800 = vld [vmem:[#allocation12 + $0x220] sm:$0xff]
    %v3801 = vld [vmem:[#allocation12 + $0x228] sm:$0xff]
    %v3802 = vld [vmem:[#allocation12 + $0x230] sm:$0xff]
    %v3803 = vld [vmem:[#allocation12 + $0x238] sm:$0xff]
    %v3804 = vld [vmem:[#allocation12 + $0x240] sm:$0xff]
    %v3805 = vld [vmem:[#allocation12 + $0x248] sm:$0xff]
    %v3806 = vld [vmem:[#allocation12 + $0x250] sm:$0xff]
    %v3807 = vld [vmem:[#allocation12 + $0x258] sm:$0xff]
    %v3808 = vld [vmem:[#allocation12 + $0x260] sm:$0xff]
    %v3809 = vld [vmem:[#allocation12 + $0x268] sm:$0xff]
    %v3810 = vld [vmem:[#allocation12 + $0x270] sm:$0xff]
    %v3811 = vld [vmem:[#allocation12 + $0x278] sm:$0xff]
    %v3812 = vld [vmem:[#allocation12 + $0x280] sm:$0xff]
    %v3813 = vld [vmem:[#allocation12 + $0x288] sm:$0xff]
    %v3814 = vld [vmem:[#allocation12 + $0x290] sm:$0xff]
    %v3815 = vld [vmem:[#allocation12 + $0x298] sm:$0xff]
    %v3816 = vld [vmem:[#allocation12 + $0x2a0] sm:$0xff]
    %v3817 = vld [vmem:[#allocation12 + $0x2a8] sm:$0xff]
    %v3818 = vld [vmem:[#allocation12 + $0x2b0] sm:$0xff]
    %v3819 = vld [vmem:[#allocation12 + $0x2b8] sm:$0xff]
    %v3820 = vld [vmem:[#allocation12 + $0x2c0] sm:$0xff]
    %v3821 = vld [vmem:[#allocation12 + $0x2c8] sm:$0xff]
    %v3822 = vld [vmem:[#allocation12 + $0x2d0] sm:$0xff]
    %v3823 = vld [vmem:[#allocation12 + $0x2d8] sm:$0xff]
    %v3824 = vld [vmem:[#allocation12 + $0x2e0] sm:$0xff]
    %v3825 = vld [vmem:[#allocation12 + $0x2e8] sm:$0xff]
    %v3826 = vld [vmem:[#allocation12 + $0x2f0] sm:$0xff]
    %v3827 = vld [vmem:[#allocation12 + $0x2f8] sm:$0xff]
    %v3828 = vld [vmem:[#allocation12 + $0x300] sm:$0xff]
    %v3829 = vld [vmem:[#allocation12 + $0x308] sm:$0xff]
    %v3830 = vld [vmem:[#allocation12 + $0x310] sm:$0xff]
    %v3831 = vld [vmem:[#allocation12 + $0x318] sm:$0xff]
    %v3832 = vld [vmem:[#allocation12 + $0x320] sm:$0xff]
    %v3833 = vld [vmem:[#allocation12 + $0x328] sm:$0xff]
    %v3834 = vld [vmem:[#allocation12 + $0x330] sm:$0xff]
    %v3835 = vld [vmem:[#allocation12 + $0x338] sm:$0xff]
    %v3836 = vld [vmem:[#allocation12 + $0x340] sm:$0xff]
    %v3837 = vld [vmem:[#allocation12 + $0x348] sm:$0xff]
    %v3838 = vld [vmem:[#allocation12 + $0x350] sm:$0xff]
    %v3839 = vld [vmem:[#allocation12 + $0x358] sm:$0xff]
    %v3840 = vld [vmem:[#allocation12 + $0x360] sm:$0xff]
    %v3841 = vld [vmem:[#allocation12 + $0x368] sm:$0xff]
    %v3842 = vld [vmem:[#allocation12 + $0x370] sm:$0xff]
    %v3843 = vld [vmem:[#allocation12 + $0x378] sm:$0xff]
    %v3844 = vld [vmem:[#allocation12 + $0x380] sm:$0xff]
    %v3845 = vld [vmem:[#allocation12 + $0x388] sm:$0xff]
    %v3846 = vld [vmem:[#allocation12 + $0x390] sm:$0xff]
    %v3847 = vld [vmem:[#allocation12 + $0x398] sm:$0xff]
    %v3848 = vld [vmem:[#allocation12 + $0x3a0] sm:$0xff]
    %v3849 = vld [vmem:[#allocation12 + $0x3a8] sm:$0xff]
    %v3850 = vld [vmem:[#allocation12 + $0x3b0] sm:$0xff]
    %v3851 = vld [vmem:[#allocation12 + $0x3b8] sm:$0xff]
    %v3852 = vld [vmem:[#allocation12 + $0x3c0] sm:$0xff]
    %v3853 = vld [vmem:[#allocation12 + $0x3c8] sm:$0xff]
    %v3854 = vld [vmem:[#allocation12 + $0x3d0] sm:$0xff]
    %v3855 = vld [vmem:[#allocation12 + $0x3d8] sm:$0xff]
    %v3856 = vld [vmem:[#allocation12 + $0x3e0] sm:$0xff]
    %v3857 = vld [vmem:[#allocation12 + $0x3e8] sm:$0xff]
    %v3858 = vld [vmem:[#allocation12 + $0x3f0] sm:$0xff]
    %v3859 = vld [vmem:[#allocation12 + $0x3f8] sm:$0xff]
    %3860 = vmatprep.subr.mxu0 %v3793
    %3861 = vmatpush1.msra.mxu0 %v3792
    %3862 = vmatprep.subr.mxu0 %v3789
    %3863 = vmatpush1.msra.mxu0 %v3788
    %3864 = vmatprep.subr.mxu0 %v3785
    %3865 = vmatpush1.msra.mxu0 %v3784
    %3866 = vmatprep.subr.mxu0 %v3781
    %3867 = vmatpush1.msra.mxu0 %v3780
    %3868 = vmatprep.subr.mxu0 %v3777
    %3869 = vmatpush1.msra.mxu0 %v3776
    %3870 = vmatprep.subr.mxu0 %v3773
    %3871 = vmatpush1.msra.mxu0 %v3772
    %3872 = vmatprep.subr.mxu0 %v3769
    %3873 = vmatpush1.msra.mxu0 %v3768
    %3874 = vmatprep.subr.mxu0 %v3765
    %3875 = vmatpush1.msra.mxu0 %v3764
    %3876 = vmatprep.subr.mxu0 %v3761
    %3877 = vmatpush1.msra.mxu0 %v3760
    %3878 = vmatprep.subr.mxu0 %v3757
    %3879 = vmatpush1.msra.mxu0 %v3756
    %3880 = vmatprep.subr.mxu0 %v3753
    %3881 = vmatpush1.msra.mxu0 %v3752
    %3882 = vmatprep.subr.mxu0 %v3749
    %3883 = vmatpush1.msra.mxu0 %v3748
    %3884 = vmatprep.subr.mxu0 %v3745
    %3885 = vmatpush1.msra.mxu0 %v3744
    %3886 = vmatprep.subr.mxu0 %v3741
    %3887 = vmatpush1.msra.mxu0 %v3740
    %3888 = vmatprep.subr.mxu0 %v3737
    %3889 = vmatpush1.msra.mxu0 %v3736
    %3890 = vmatprep.subr.mxu0 %v3733
    %3891 = vmatpush1.msra.mxu0 %v3732
    %3892 = vmatprep.subr.mxu0 %v3857
    %3893 = vmatpush2.msra.mxu0 %v3856
    %3894 = vmatprep.subr.mxu0 %v3853
    %3895 = vmatpush2.msra.mxu0 %v3852
    %3896 = vmatprep.subr.mxu0 %v3849
    %3897 = vmatpush2.msra.mxu0 %v3848
    %3898 = vmatprep.subr.mxu0 %v3845
    %3899 = vmatpush2.msra.mxu0 %v3844
    %3900 = vmatprep.subr.mxu0 %v3841
    %3901 = vmatpush2.msra.mxu0 %v3840
    %3902 = vmatprep.subr.mxu0 %v3837
    %3903 = vmatpush2.msra.mxu0 %v3836
    %3904 = vmatprep.subr.mxu0 %v3833
    %3905 = vmatpush2.msra.mxu0 %v3832
    %3906 = vmatprep.subr.mxu0 %v3829
    %3907 = vmatpush2.msra.mxu0 %v3828
    %3908 = vmatprep.subr.mxu0 %v3825
    %3909 = vmatpush2.msra.mxu0 %v3824
    %3910 = vmatprep.subr.mxu0 %v3821
    %3911 = vmatpush2.msra.mxu0 %v3820
    %3912 = vmatprep.subr.mxu0 %v3817
    %3913 = vmatpush2.msra.mxu0 %v3816
    %3914 = vmatprep.subr.mxu0 %v3813
    %3915 = vmatpush2.msra.mxu0 %v3812
    %3916 = vmatprep.subr.mxu0 %v3809
    %3917 = vmatpush2.msra.mxu0 %v3808
    %3918 = vmatprep.subr.mxu0 %v3805
    %3919 = vmatpush2.msra.mxu0 %v3804
    %3920 = vmatprep.subr.mxu0 %v3801
    %3921 = vmatpush2.msra.mxu0 %v3800
    %3922 = vmatprep.subr.mxu0 %v3797
    %3923 = vmatpush2.msra.mxu0 %v3796
    %3924 = vmatprep.mubr.f32.mxu0 %v3462
    %3925 = vmatmul.mubr.f32.gmra.mxu0 %v3731
    %v3926 = vpop.f32.mrf.mxu0
    %v3927 = vadd.f32 %v503, %v3926
    %v3928 = vpop.f32.mrf.mxu0
    %v3929 = vadd.f32 %v507, %v3928
    %3930 = vdwg.mxu0
    %3931 = vmatprep.subr.mxu0 %v3795
    %3932 = vmatpush1.msra.mxu0 %v3794
    %3933 = vmatprep.subr.mxu0 %v3791
    %3934 = vmatpush1.msra.mxu0 %v3790
    %3935 = vmatprep.subr.mxu0 %v3787
    %3936 = vmatpush1.msra.mxu0 %v3786
    %3937 = vmatprep.subr.mxu0 %v3783
    %3938 = vmatpush1.msra.mxu0 %v3782
    %3939 = vmatprep.subr.mxu0 %v3779
    %3940 = vmatpush1.msra.mxu0 %v3778
    %3941 = vmatprep.subr.mxu0 %v3775
    %3942 = vmatpush1.msra.mxu0 %v3774
    %3943 = vmatprep.subr.mxu0 %v3771
    %3944 = vmatpush1.msra.mxu0 %v3770
    %3945 = vmatprep.subr.mxu0 %v3767
    %3946 = vmatpush1.msra.mxu0 %v3766
    %3947 = vmatprep.subr.mxu0 %v3763
    %3948 = vmatpush1.msra.mxu0 %v3762
    %3949 = vmatprep.subr.mxu0 %v3759
    %3950 = vmatpush1.msra.mxu0 %v3758
    %3951 = vmatprep.subr.mxu0 %v3755
    %3952 = vmatpush1.msra.mxu0 %v3754
    %3953 = vmatprep.subr.mxu0 %v3751
    %3954 = vmatpush1.msra.mxu0 %v3750
    %3955 = vmatprep.subr.mxu0 %v3747
    %3956 = vmatpush1.msra.mxu0 %v3746
    %3957 = vmatprep.subr.mxu0 %v3743
    %3958 = vmatpush1.msra.mxu0 %v3742
    %3959 = vmatprep.subr.mxu0 %v3739
    %3960 = vmatpush1.msra.mxu0 %v3738
    %3961 = vmatprep.subr.mxu0 %v3735
    %3962 = vmatpush1.msra.mxu0 %v3734
    %3963 = vmatprep.subr.mxu0 %v3859
    %3964 = vmatpush2.msra.mxu0 %v3858
    %3965 = vmatprep.subr.mxu0 %v3855
    %3966 = vmatpush2.msra.mxu0 %v3854
    %3967 = vmatprep.subr.mxu0 %v3851
    %3968 = vmatpush2.msra.mxu0 %v3850
    %3969 = vmatprep.subr.mxu0 %v3847
    %3970 = vmatpush2.msra.mxu0 %v3846
    %3971 = vmatprep.subr.mxu0 %v3843
    %3972 = vmatpush2.msra.mxu0 %v3842
    %3973 = vmatprep.subr.mxu0 %v3839
    %3974 = vmatpush2.msra.mxu0 %v3838
    %3975 = vmatprep.subr.mxu0 %v3835
    %3976 = vmatpush2.msra.mxu0 %v3834
    %3977 = vmatprep.subr.mxu0 %v3831
    %3978 = vmatpush2.msra.mxu0 %v3830
    %3979 = vmatprep.subr.mxu0 %v3827
    %3980 = vmatpush2.msra.mxu0 %v3826
    %3981 = vmatprep.subr.mxu0 %v3823
    %3982 = vmatpush2.msra.mxu0 %v3822
    %3983 = vmatprep.subr.mxu0 %v3819
    %3984 = vmatpush2.msra.mxu0 %v3818
    %3985 = vmatprep.subr.mxu0 %v3815
    %3986 = vmatpush2.msra.mxu0 %v3814
    %3987 = vmatprep.subr.mxu0 %v3811
    %3988 = vmatpush2.msra.mxu0 %v3810
    %3989 = vmatprep.subr.mxu0 %v3807
    %3990 = vmatpush2.msra.mxu0 %v3806
    %3991 = vmatprep.subr.mxu0 %v3803
    %3992 = vmatpush2.msra.mxu0 %v3802
    %3993 = vmatprep.subr.mxu0 %v3799
    %3994 = vmatpush2.msra.mxu0 %v3798
    %3995 = vmatprep.mubr.f32.mxu0 %v3462
    %3996 = vmatmul.mubr.f32.gmra.mxu0 %v3731
    %v3997 = vpop.f32.mrf.mxu0
    %v3998 = vadd.f32 %v511, %v3997
    %v3999 = vpop.f32.mrf.mxu0
    %v4000 = vadd.f32 %v515, %v3999
    %4001 = vdwg.mxu0
    %v4002 = vmul.f32 %v3927, 0.5
    %v4003 = vtanh.pop %v4002
    %v4004 = vmul.f32 %v4003, 0.5
    %v4005 = vadd.f32 %v4004, 0.5
    %v4006 = vmul.f32 %v3929, 0.5
    %v4007 = vtanh.pop %v4006
    %v4008 = vmul.f32 %v4007, 0.5
    %v4009 = vadd.f32 %v4008, 0.5
    %v4010 = vmul.f32 %v3998, 0.5
    %v4011 = vtanh.pop %v4010
    %v4012 = vmul.f32 %v4011, 0.5
    %v4013 = vadd.f32 %v4012, 0.5
    %v4014 = vtanh.pop %v4000
    %v4015 = vmul.f32 %v4009, %v3460
    %v4016 = vmul.f32 %v4005, %v4014
    %v4017 = vadd.f32 %v4015, %v4016
    %v4018 = vtanh.pop %v4017
    %v4019 = vmul.f32 %v4013, %v4018
    %s4020 = scalar_lea.vmem [#allocation13], 12
    %4021 = vst [vmem:[%s4020] sm:$0x3] %v4019
    %s4022 = sadd.s32 %s108, 6
    %p4023 = scmp.eq.s32.totalorder %s4022, 7
    // Predicated region
    $region74: #{tpu_custom_call.1} parent=1 // pred_check
      %p4024 = pneg %p4023
    $region75: #{tpu_custom_call.1} parent=1 // pred_check_branch
      %4026 = sbr.rel (%p4024) target = $region77
    $region76: #{tpu_custom_call.1} parent=1 // pred_region
      %4027 = vst [vmem:[#allocation14] sm:$0x3] %v3731
      %4028 = vst [vmem:[#allocation16] sm:$0x3] %v3729
      %s4029 = scalar_lea.vmem [#allocation14], 2
      %4030 = vst [vmem:[%s4029] sm:$0x3] %v4019
      %s4031 = scalar_lea.vmem [#allocation16], 2
      %4032 = vst [vmem:[%s4031] sm:$0x3] %v4017
    $region77: #{tpu_custom_call.1} parent=1 // pred_fallthru
      _
    %s4033 = scalar_lea.vmem [#allocation4], 56
    %v4034 = vld [vmem:[%s4033] sm:$0xff]
    %v4035 = vld [vmem:[#allocation10] sm:$0xff]
    %v4036 = vld [vmem:[#allocation10 + $0x8] sm:$0xff]
    %v4037 = vld [vmem:[#allocation10 + $0x10] sm:$0xff]
    %v4038 = vld [vmem:[#allocation10 + $0x18] sm:$0xff]
    %v4039 = vld [vmem:[#allocation10 + $0x20] sm:$0xff]
    %v4040 = vld [vmem:[#allocation10 + $0x28] sm:$0xff]
    %v4041 = vld [vmem:[#allocation10 + $0x30] sm:$0xff]
    %v4042 = vld [vmem:[#allocation10 + $0x38] sm:$0xff]
    %v4043 = vld [vmem:[#allocation10 + $0x40] sm:$0xff]
    %v4044 = vld [vmem:[#allocation10 + $0x48] sm:$0xff]
    %v4045 = vld [vmem:[#allocation10 + $0x50] sm:$0xff]
    %v4046 = vld [vmem:[#allocation10 + $0x58] sm:$0xff]
    %v4047 = vld [vmem:[#allocation10 + $0x60] sm:$0xff]
    %v4048 = vld [vmem:[#allocation10 + $0x68] sm:$0xff]
    %v4049 = vld [vmem:[#allocation10 + $0x70] sm:$0xff]
    %v4050 = vld [vmem:[#allocation10 + $0x78] sm:$0xff]
    %v4051 = vld [vmem:[#allocation10 + $0x80] sm:$0xff]
    %v4052 = vld [vmem:[#allocation10 + $0x88] sm:$0xff]
    %v4053 = vld [vmem:[#allocation10 + $0x90] sm:$0xff]
    %v4054 = vld [vmem:[#allocation10 + $0x98] sm:$0xff]
    %v4055 = vld [vmem:[#allocation10 + $0xa0] sm:$0xff]
    %v4056 = vld [vmem:[#allocation10 + $0xa8] sm:$0xff]
    %v4057 = vld [vmem:[#allocation10 + $0xb0] sm:$0xff]
    %v4058 = vld [vmem:[#allocation10 + $0xb8] sm:$0xff]
    %v4059 = vld [vmem:[#allocation10 + $0xc0] sm:$0xff]
    %v4060 = vld [vmem:[#allocation10 + $0xc8] sm:$0xff]
    %v4061 = vld [vmem:[#allocation10 + $0xd0] sm:$0xff]
    %v4062 = vld [vmem:[#allocation10 + $0xd8] sm:$0xff]
    %v4063 = vld [vmem:[#allocation10 + $0xe0] sm:$0xff]
    %v4064 = vld [vmem:[#allocation10 + $0xe8] sm:$0xff]
    %v4065 = vld [vmem:[#allocation10 + $0xf0] sm:$0xff]
    %v4066 = vld [vmem:[#allocation10 + $0xf8] sm:$0xff]
    %v4067 = vld [vmem:[#allocation10 + $0x100] sm:$0xff]
    %v4068 = vld [vmem:[#allocation10 + $0x108] sm:$0xff]
    %v4069 = vld [vmem:[#allocation10 + $0x110] sm:$0xff]
    %v4070 = vld [vmem:[#allocation10 + $0x118] sm:$0xff]
    %v4071 = vld [vmem:[#allocation10 + $0x120] sm:$0xff]
    %v4072 = vld [vmem:[#allocation10 + $0x128] sm:$0xff]
    %v4073 = vld [vmem:[#allocation10 + $0x130] sm:$0xff]
    %v4074 = vld [vmem:[#allocation10 + $0x138] sm:$0xff]
    %v4075 = vld [vmem:[#allocation10 + $0x140] sm:$0xff]
    %v4076 = vld [vmem:[#allocation10 + $0x148] sm:$0xff]
    %v4077 = vld [vmem:[#allocation10 + $0x150] sm:$0xff]
    %v4078 = vld [vmem:[#allocation10 + $0x158] sm:$0xff]
    %v4079 = vld [vmem:[#allocation10 + $0x160] sm:$0xff]
    %v4080 = vld [vmem:[#allocation10 + $0x168] sm:$0xff]
    %v4081 = vld [vmem:[#allocation10 + $0x170] sm:$0xff]
    %v4082 = vld [vmem:[#allocation10 + $0x178] sm:$0xff]
    %v4083 = vld [vmem:[#allocation10 + $0x180] sm:$0xff]
    %v4084 = vld [vmem:[#allocation10 + $0x188] sm:$0xff]
    %v4085 = vld [vmem:[#allocation10 + $0x190] sm:$0xff]
    %v4086 = vld [vmem:[#allocation10 + $0x198] sm:$0xff]
    %v4087 = vld [vmem:[#allocation10 + $0x1a0] sm:$0xff]
    %v4088 = vld [vmem:[#allocation10 + $0x1a8] sm:$0xff]
    %v4089 = vld [vmem:[#allocation10 + $0x1b0] sm:$0xff]
    %v4090 = vld [vmem:[#allocation10 + $0x1b8] sm:$0xff]
    %v4091 = vld [vmem:[#allocation10 + $0x1c0] sm:$0xff]
    %v4092 = vld [vmem:[#allocation10 + $0x1c8] sm:$0xff]
    %v4093 = vld [vmem:[#allocation10 + $0x1d0] sm:$0xff]
    %v4094 = vld [vmem:[#allocation10 + $0x1d8] sm:$0xff]
    %v4095 = vld [vmem:[#allocation10 + $0x1e0] sm:$0xff]
    %v4096 = vld [vmem:[#allocation10 + $0x1e8] sm:$0xff]
    %v4097 = vld [vmem:[#allocation10 + $0x1f0] sm:$0xff]
    %v4098 = vld [vmem:[#allocation10 + $0x1f8] sm:$0xff]
    %4099 = vmatprep.subr.mxu0 %v4096
    %4100 = vmatpush1.msra.mxu0 %v4095
    %4101 = vmatprep.subr.mxu0 %v4092
    %4102 = vmatpush1.msra.mxu0 %v4091
    %4103 = vmatprep.subr.mxu0 %v4088
    %4104 = vmatpush1.msra.mxu0 %v4087
    %4105 = vmatprep.subr.mxu0 %v4084
    %4106 = vmatpush1.msra.mxu0 %v4083
    %4107 = vmatprep.subr.mxu0 %v4080
    %4108 = vmatpush1.msra.mxu0 %v4079
    %4109 = vmatprep.subr.mxu0 %v4076
    %4110 = vmatpush1.msra.mxu0 %v4075
    %4111 = vmatprep.subr.mxu0 %v4072
    %4112 = vmatpush1.msra.mxu0 %v4071
    %4113 = vmatprep.subr.mxu0 %v4068
    %4114 = vmatpush1.msra.mxu0 %v4067
    %4115 = vmatprep.subr.mxu0 %v4064
    %4116 = vmatpush1.msra.mxu0 %v4063
    %4117 = vmatprep.subr.mxu0 %v4060
    %4118 = vmatpush1.msra.mxu0 %v4059
    %4119 = vmatprep.subr.mxu0 %v4056
    %4120 = vmatpush1.msra.mxu0 %v4055
    %4121 = vmatprep.subr.mxu0 %v4052
    %4122 = vmatpush1.msra.mxu0 %v4051
    %4123 = vmatprep.subr.mxu0 %v4048
    %4124 = vmatpush1.msra.mxu0 %v4047
    %4125 = vmatprep.subr.mxu0 %v4044
    %4126 = vmatpush1.msra.mxu0 %v4043
    %4127 = vmatprep.subr.mxu0 %v4040
    %4128 = vmatpush1.msra.mxu0 %v4039
    %4129 = vmatprep.subr.mxu0 %v4036
    %4130 = vmatpush1.msra.mxu0 %v4035
    %4131 = vmatprep.subr.mxu0 0.0
    %4132 = vmatpush2.msra.mxu0 0.0
    %4133 = vmatprep.subr.mxu0 0.0
    %4134 = vmatpush2.msra.mxu0 0.0
    %4135 = vmatprep.subr.mxu0 0.0
    %4136 = vmatpush2.msra.mxu0 0.0
    %4137 = vmatprep.subr.mxu0 0.0
    %4138 = vmatpush2.msra.mxu0 0.0
    %4139 = vmatprep.subr.mxu0 0.0
    %4140 = vmatpush2.msra.mxu0 0.0
    %4141 = vmatprep.subr.mxu0 0.0
    %4142 = vmatpush2.msra.mxu0 0.0
    %4143 = vmatprep.subr.mxu0 0.0
    %4144 = vmatpush2.msra.mxu0 0.0
    %4145 = vmatprep.subr.mxu0 0.0
    %4146 = vmatpush2.msra.mxu0 0.0
    %4147 = vmatprep.subr.mxu0 0.0
    %4148 = vmatpush2.msra.mxu0 0.0
    %4149 = vmatprep.subr.mxu0 0.0
    %4150 = vmatpush2.msra.mxu0 0.0
    %4151 = vmatprep.subr.mxu0 0.0
    %4152 = vmatpush2.msra.mxu0 0.0
    %4153 = vmatprep.subr.mxu0 0.0
    %4154 = vmatpush2.msra.mxu0 0.0
    %4155 = vmatprep.subr.mxu0 0.0
    %4156 = vmatpush2.msra.mxu0 0.0
    %4157 = vmatprep.subr.mxu0 0.0
    %4158 = vmatpush2.msra.mxu0 0.0
    %4159 = vmatprep.subr.mxu0 0.0
    %4160 = vmatpush2.msra.mxu0 0.0
    %4161 = vmatprep.subr.mxu0 0.0
    %4162 = vmatpush2.msra.mxu0 0.0
    %4163 = vmatprep.mubr.f32.mxu0 0.0
    %4164 = vmatmul.mubr.f32.gmra.mxu0 %v3731
    %v4165 = vpop.f32.mrf.mxu0
    %v4166 = vadd.f32 0.0, %v4165
    %v4167 = vpop.f32.mrf.mxu0
    %v4168 = vadd.f32 0.0, %v4167
    %4169 = vdwg.mxu0
    %4170 = vmatprep.subr.mxu0 %v4098
    %4171 = vmatpush1.msra.mxu0 %v4097
    %4172 = vmatprep.subr.mxu0 %v4094
    %4173 = vmatpush1.msra.mxu0 %v4093
    %4174 = vmatprep.subr.mxu0 %v4090
    %4175 = vmatpush1.msra.mxu0 %v4089
    %4176 = vmatprep.subr.mxu0 %v4086
    %4177 = vmatpush1.msra.mxu0 %v4085
    %4178 = vmatprep.subr.mxu0 %v4082
    %4179 = vmatpush1.msra.mxu0 %v4081
    %4180 = vmatprep.subr.mxu0 %v4078
    %4181 = vmatpush1.msra.mxu0 %v4077
    %4182 = vmatprep.subr.mxu0 %v4074
    %4183 = vmatpush1.msra.mxu0 %v4073
    %4184 = vmatprep.subr.mxu0 %v4070
    %4185 = vmatpush1.msra.mxu0 %v4069
    %4186 = vmatprep.subr.mxu0 %v4066
    %4187 = vmatpush1.msra.mxu0 %v4065
    %4188 = vmatprep.subr.mxu0 %v4062
    %4189 = vmatpush1.msra.mxu0 %v4061
    %4190 = vmatprep.subr.mxu0 %v4058
    %4191 = vmatpush1.msra.mxu0 %v4057
    %4192 = vmatprep.subr.mxu0 %v4054
    %4193 = vmatpush1.msra.mxu0 %v4053
    %4194 = vmatprep.subr.mxu0 %v4050
    %4195 = vmatpush1.msra.mxu0 %v4049
    %4196 = vmatprep.subr.mxu0 %v4046
    %4197 = vmatpush1.msra.mxu0 %v4045
    %4198 = vmatprep.subr.mxu0 %v4042
    %4199 = vmatpush1.msra.mxu0 %v4041
    %4200 = vmatprep.subr.mxu0 %v4038
    %4201 = vmatpush1.msra.mxu0 %v4037
    %4202 = vmatprep.subr.mxu0 0.0
    %4203 = vmatpush2.msra.mxu0 0.0
    %4204 = vmatprep.subr.mxu0 0.0
    %4205 = vmatpush2.msra.mxu0 0.0
    %4206 = vmatprep.subr.mxu0 0.0
    %4207 = vmatpush2.msra.mxu0 0.0
    %4208 = vmatprep.subr.mxu0 0.0
    %4209 = vmatpush2.msra.mxu0 0.0
    %4210 = vmatprep.subr.mxu0 0.0
    %4211 = vmatpush2.msra.mxu0 0.0
    %4212 = vmatprep.subr.mxu0 0.0
    %4213 = vmatpush2.msra.mxu0 0.0
    %4214 = vmatprep.subr.mxu0 0.0
    %4215 = vmatpush2.msra.mxu0 0.0
    %4216 = vmatprep.subr.mxu0 0.0
    %4217 = vmatpush2.msra.mxu0 0.0
    %4218 = vmatprep.subr.mxu0 0.0
    %4219 = vmatpush2.msra.mxu0 0.0
    %4220 = vmatprep.subr.mxu0 0.0
    %4221 = vmatpush2.msra.mxu0 0.0
    %4222 = vmatprep.subr.mxu0 0.0
    %4223 = vmatpush2.msra.mxu0 0.0
    %4224 = vmatprep.subr.mxu0 0.0
    %4225 = vmatpush2.msra.mxu0 0.0
    %4226 = vmatprep.subr.mxu0 0.0
    %4227 = vmatpush2.msra.mxu0 0.0
    %4228 = vmatprep.subr.mxu0 0.0
    %4229 = vmatpush2.msra.mxu0 0.0
    %4230 = vmatprep.subr.mxu0 0.0
    %4231 = vmatpush2.msra.mxu0 0.0
    %4232 = vmatprep.subr.mxu0 0.0
    %4233 = vmatpush2.msra.mxu0 0.0
    %4234 = vmatprep.mubr.f32.mxu0 0.0
    %4235 = vmatmul.mubr.f32.gmra.mxu0 %v3731
    %v4236 = vpop.f32.mrf.mxu0
    %v4237 = vadd.f32 0.0, %v4236
    %v4238 = vpop.f32.mrf.mxu0
    %v4239 = vadd.f32 0.0, %v4238
    %4240 = vdwg.mxu0
    %v4245 = vcombine.low %v4166, %v4168
    %v4246 = vcombine.low %v4237, %v4239
    %v4248 = vunpack.c.l.s4 1983009808
    %v4249 = vunpack.c.0.s8 %v4248
    %v4250 = vlaneseq
    %v4251 = vshrl.u32 %v4250, 7
    %v4252 = vsub.s32 %v4249, %v4251
    %v4253 = vrot.slane %v4245, %v4252
    %v4255 = vunpack.c.l.s4 1983009808
    %v4256 = vunpack.c.0.s8 %v4255
    %v4257 = vlaneseq
    %v4258 = vshrl.u32 %v4257, 7
    %v4259 = vsub.s32 %v4256, %v4258
    %v4260 = vrot.slane %v4246, %v4259
    %v4261 = vcombine.low %v4253, %v4260
    %v4263 = vadd.f32 %v4034, %v4261
    %v4264 = vmul.f32 %v4263, 0.5
    %v4265 = vtanh.pop %v4264
    %v4266 = vmul.f32 %v4265, 0.5
    %v4267 = vadd.f32 %v4266, 0.5
    %v4269 = vrot.slane %v4263, 2
    %v4271 = vmul.f32 %v4269, 0.5
    %v4272 = vtanh.pop %v4271
    %v4273 = vmul.f32 %v4272, 0.5
    %v4274 = vadd.f32 %v4273, 0.5
    %v4275 = vrot.slane %v4263, 4
    %v4277 = vmul.f32 %v4275, 0.5
    %v4278 = vtanh.pop %v4277
    %v4279 = vmul.f32 %v4278, 0.5
    %v4280 = vadd.f32 %v4279, 0.5
    %v4281 = vrot.slane %v4263, 6
    %v4283 = vtanh.pop %v4281
    %v4284 = vmul.f32 %v4274, %v3729
    %v4285 = vmul.f32 %v4267, %v4283
    %v4286 = vadd.f32 %v4284, %v4285
    %v4287 = vtanh.pop %v4286
    %v4288 = vmul.f32 %v4280, %v4287
    %v4289 = vld [vmem:[#allocation12] sm:$0xff]
    %v4290 = vld [vmem:[#allocation12 + $0x8] sm:$0xff]
    %v4291 = vld [vmem:[#allocation12 + $0x10] sm:$0xff]
    %v4292 = vld [vmem:[#allocation12 + $0x18] sm:$0xff]
    %v4293 = vld [vmem:[#allocation12 + $0x20] sm:$0xff]
    %v4294 = vld [vmem:[#allocation12 + $0x28] sm:$0xff]
    %v4295 = vld [vmem:[#allocation12 + $0x30] sm:$0xff]
    %v4296 = vld [vmem:[#allocation12 + $0x38] sm:$0xff]
    %v4297 = vld [vmem:[#allocation12 + $0x40] sm:$0xff]
    %v4298 = vld [vmem:[#allocation12 + $0x48] sm:$0xff]
    %v4299 = vld [vmem:[#allocation12 + $0x50] sm:$0xff]
    %v4300 = vld [vmem:[#allocation12 + $0x58] sm:$0xff]
    %v4301 = vld [vmem:[#allocation12 + $0x60] sm:$0xff]
    %v4302 = vld [vmem:[#allocation12 + $0x68] sm:$0xff]
    %v4303 = vld [vmem:[#allocation12 + $0x70] sm:$0xff]
    %v4304 = vld [vmem:[#allocation12 + $0x78] sm:$0xff]
    %v4305 = vld [vmem:[#allocation12 + $0x80] sm:$0xff]
    %v4306 = vld [vmem:[#allocation12 + $0x88] sm:$0xff]
    %v4307 = vld [vmem:[#allocation12 + $0x90] sm:$0xff]
    %v4308 = vld [vmem:[#allocation12 + $0x98] sm:$0xff]
    %v4309 = vld [vmem:[#allocation12 + $0xa0] sm:$0xff]
    %v4310 = vld [vmem:[#allocation12 + $0xa8] sm:$0xff]
    %v4311 = vld [vmem:[#allocation12 + $0xb0] sm:$0xff]
    %v4312 = vld [vmem:[#allocation12 + $0xb8] sm:$0xff]
    %v4313 = vld [vmem:[#allocation12 + $0xc0] sm:$0xff]
    %v4314 = vld [vmem:[#allocation12 + $0xc8] sm:$0xff]
    %v4315 = vld [vmem:[#allocation12 + $0xd0] sm:$0xff]
    %v4316 = vld [vmem:[#allocation12 + $0xd8] sm:$0xff]
    %v4317 = vld [vmem:[#allocation12 + $0xe0] sm:$0xff]
    %v4318 = vld [vmem:[#allocation12 + $0xe8] sm:$0xff]
    %v4319 = vld [vmem:[#allocation12 + $0xf0] sm:$0xff]
    %v4320 = vld [vmem:[#allocation12 + $0xf8] sm:$0xff]
    %v4321 = vld [vmem:[#allocation12 + $0x100] sm:$0xff]
    %v4322 = vld [vmem:[#allocation12 + $0x108] sm:$0xff]
    %v4323 = vld [vmem:[#allocation12 + $0x110] sm:$0xff]
    %v4324 = vld [vmem:[#allocation12 + $0x118] sm:$0xff]
    %v4325 = vld [vmem:[#allocation12 + $0x120] sm:$0xff]
    %v4326 = vld [vmem:[#allocation12 + $0x128] sm:$0xff]
    %v4327 = vld [vmem:[#allocation12 + $0x130] sm:$0xff]
    %v4328 = vld [vmem:[#allocation12 + $0x138] sm:$0xff]
    %v4329 = vld [vmem:[#allocation12 + $0x140] sm:$0xff]
    %v4330 = vld [vmem:[#allocation12 + $0x148] sm:$0xff]
    %v4331 = vld [vmem:[#allocation12 + $0x150] sm:$0xff]
    %v4332 = vld [vmem:[#allocation12 + $0x158] sm:$0xff]
    %v4333 = vld [vmem:[#allocation12 + $0x160] sm:$0xff]
    %v4334 = vld [vmem:[#allocation12 + $0x168] sm:$0xff]
    %v4335 = vld [vmem:[#allocation12 + $0x170] sm:$0xff]
    %v4336 = vld [vmem:[#allocation12 + $0x178] sm:$0xff]
    %v4337 = vld [vmem:[#allocation12 + $0x180] sm:$0xff]
    %v4338 = vld [vmem:[#allocation12 + $0x188] sm:$0xff]
    %v4339 = vld [vmem:[#allocation12 + $0x190] sm:$0xff]
    %v4340 = vld [vmem:[#allocation12 + $0x198] sm:$0xff]
    %v4341 = vld [vmem:[#allocation12 + $0x1a0] sm:$0xff]
    %v4342 = vld [vmem:[#allocation12 + $0x1a8] sm:$0xff]
    %v4343 = vld [vmem:[#allocation12 + $0x1b0] sm:$0xff]
    %v4344 = vld [vmem:[#allocation12 + $0x1b8] sm:$0xff]
    %v4345 = vld [vmem:[#allocation12 + $0x1c0] sm:$0xff]
    %v4346 = vld [vmem:[#allocation12 + $0x1c8] sm:$0xff]
    %v4347 = vld [vmem:[#allocation12 + $0x1d0] sm:$0xff]
    %v4348 = vld [vmem:[#allocation12 + $0x1d8] sm:$0xff]
    %v4349 = vld [vmem:[#allocation12 + $0x1e0] sm:$0xff]
    %v4350 = vld [vmem:[#allocation12 + $0x1e8] sm:$0xff]
    %v4351 = vld [vmem:[#allocation12 + $0x1f0] sm:$0xff]
    %v4352 = vld [vmem:[#allocation12 + $0x1f8] sm:$0xff]
    %v4353 = vld [vmem:[#allocation12 + $0x200] sm:$0xff]
    %v4354 = vld [vmem:[#allocation12 + $0x208] sm:$0xff]
    %v4355 = vld [vmem:[#allocation12 + $0x210] sm:$0xff]
    %v4356 = vld [vmem:[#allocation12 + $0x218] sm:$0xff]
    %v4357 = vld [vmem:[#allocation12 + $0x220] sm:$0xff]
    %v4358 = vld [vmem:[#allocation12 + $0x228] sm:$0xff]
    %v4359 = vld [vmem:[#allocation12 + $0x230] sm:$0xff]
    %v4360 = vld [vmem:[#allocation12 + $0x238] sm:$0xff]
    %v4361 = vld [vmem:[#allocation12 + $0x240] sm:$0xff]
    %v4362 = vld [vmem:[#allocation12 + $0x248] sm:$0xff]
    %v4363 = vld [vmem:[#allocation12 + $0x250] sm:$0xff]
    %v4364 = vld [vmem:[#allocation12 + $0x258] sm:$0xff]
    %v4365 = vld [vmem:[#allocation12 + $0x260] sm:$0xff]
    %v4366 = vld [vmem:[#allocation12 + $0x268] sm:$0xff]
    %v4367 = vld [vmem:[#allocation12 + $0x270] sm:$0xff]
    %v4368 = vld [vmem:[#allocation12 + $0x278] sm:$0xff]
    %v4369 = vld [vmem:[#allocation12 + $0x280] sm:$0xff]
    %v4370 = vld [vmem:[#allocation12 + $0x288] sm:$0xff]
    %v4371 = vld [vmem:[#allocation12 + $0x290] sm:$0xff]
    %v4372 = vld [vmem:[#allocation12 + $0x298] sm:$0xff]
    %v4373 = vld [vmem:[#allocation12 + $0x2a0] sm:$0xff]
    %v4374 = vld [vmem:[#allocation12 + $0x2a8] sm:$0xff]
    %v4375 = vld [vmem:[#allocation12 + $0x2b0] sm:$0xff]
    %v4376 = vld [vmem:[#allocation12 + $0x2b8] sm:$0xff]
    %v4377 = vld [vmem:[#allocation12 + $0x2c0] sm:$0xff]
    %v4378 = vld [vmem:[#allocation12 + $0x2c8] sm:$0xff]
    %v4379 = vld [vmem:[#allocation12 + $0x2d0] sm:$0xff]
    %v4380 = vld [vmem:[#allocation12 + $0x2d8] sm:$0xff]
    %v4381 = vld [vmem:[#allocation12 + $0x2e0] sm:$0xff]
    %v4382 = vld [vmem:[#allocation12 + $0x2e8] sm:$0xff]
    %v4383 = vld [vmem:[#allocation12 + $0x2f0] sm:$0xff]
    %v4384 = vld [vmem:[#allocation12 + $0x2f8] sm:$0xff]
    %v4385 = vld [vmem:[#allocation12 + $0x300] sm:$0xff]
    %v4386 = vld [vmem:[#allocation12 + $0x308] sm:$0xff]
    %v4387 = vld [vmem:[#allocation12 + $0x310] sm:$0xff]
    %v4388 = vld [vmem:[#allocation12 + $0x318] sm:$0xff]
    %v4389 = vld [vmem:[#allocation12 + $0x320] sm:$0xff]
    %v4390 = vld [vmem:[#allocation12 + $0x328] sm:$0xff]
    %v4391 = vld [vmem:[#allocation12 + $0x330] sm:$0xff]
    %v4392 = vld [vmem:[#allocation12 + $0x338] sm:$0xff]
    %v4393 = vld [vmem:[#allocation12 + $0x340] sm:$0xff]
    %v4394 = vld [vmem:[#allocation12 + $0x348] sm:$0xff]
    %v4395 = vld [vmem:[#allocation12 + $0x350] sm:$0xff]
    %v4396 = vld [vmem:[#allocation12 + $0x358] sm:$0xff]
    %v4397 = vld [vmem:[#allocation12 + $0x360] sm:$0xff]
    %v4398 = vld [vmem:[#allocation12 + $0x368] sm:$0xff]
    %v4399 = vld [vmem:[#allocation12 + $0x370] sm:$0xff]
    %v4400 = vld [vmem:[#allocation12 + $0x378] sm:$0xff]
    %v4401 = vld [vmem:[#allocation12 + $0x380] sm:$0xff]
    %v4402 = vld [vmem:[#allocation12 + $0x388] sm:$0xff]
    %v4403 = vld [vmem:[#allocation12 + $0x390] sm:$0xff]
    %v4404 = vld [vmem:[#allocation12 + $0x398] sm:$0xff]
    %v4405 = vld [vmem:[#allocation12 + $0x3a0] sm:$0xff]
    %v4406 = vld [vmem:[#allocation12 + $0x3a8] sm:$0xff]
    %v4407 = vld [vmem:[#allocation12 + $0x3b0] sm:$0xff]
    %v4408 = vld [vmem:[#allocation12 + $0x3b8] sm:$0xff]
    %v4409 = vld [vmem:[#allocation12 + $0x3c0] sm:$0xff]
    %v4410 = vld [vmem:[#allocation12 + $0x3c8] sm:$0xff]
    %v4411 = vld [vmem:[#allocation12 + $0x3d0] sm:$0xff]
    %v4412 = vld [vmem:[#allocation12 + $0x3d8] sm:$0xff]
    %v4413 = vld [vmem:[#allocation12 + $0x3e0] sm:$0xff]
    %v4414 = vld [vmem:[#allocation12 + $0x3e8] sm:$0xff]
    %v4415 = vld [vmem:[#allocation12 + $0x3f0] sm:$0xff]
    %v4416 = vld [vmem:[#allocation12 + $0x3f8] sm:$0xff]
    %4417 = vmatprep.subr.mxu0 %v4350
    %4418 = vmatpush1.msra.mxu0 %v4349
    %4419 = vmatprep.subr.mxu0 %v4346
    %4420 = vmatpush1.msra.mxu0 %v4345
    %4421 = vmatprep.subr.mxu0 %v4342
    %4422 = vmatpush1.msra.mxu0 %v4341
    %4423 = vmatprep.subr.mxu0 %v4338
    %4424 = vmatpush1.msra.mxu0 %v4337
    %4425 = vmatprep.subr.mxu0 %v4334
    %4426 = vmatpush1.msra.mxu0 %v4333
    %4427 = vmatprep.subr.mxu0 %v4330
    %4428 = vmatpush1.msra.mxu0 %v4329
    %4429 = vmatprep.subr.mxu0 %v4326
    %4430 = vmatpush1.msra.mxu0 %v4325
    %4431 = vmatprep.subr.mxu0 %v4322
    %4432 = vmatpush1.msra.mxu0 %v4321
    %4433 = vmatprep.subr.mxu0 %v4318
    %4434 = vmatpush1.msra.mxu0 %v4317
    %4435 = vmatprep.subr.mxu0 %v4314
    %4436 = vmatpush1.msra.mxu0 %v4313
    %4437 = vmatprep.subr.mxu0 %v4310
    %4438 = vmatpush1.msra.mxu0 %v4309
    %4439 = vmatprep.subr.mxu0 %v4306
    %4440 = vmatpush1.msra.mxu0 %v4305
    %4441 = vmatprep.subr.mxu0 %v4302
    %4442 = vmatpush1.msra.mxu0 %v4301
    %4443 = vmatprep.subr.mxu0 %v4298
    %4444 = vmatpush1.msra.mxu0 %v4297
    %4445 = vmatprep.subr.mxu0 %v4294
    %4446 = vmatpush1.msra.mxu0 %v4293
    %4447 = vmatprep.subr.mxu0 %v4290
    %4448 = vmatpush1.msra.mxu0 %v4289
    %4449 = vmatprep.subr.mxu0 %v4414
    %4450 = vmatpush2.msra.mxu0 %v4413
    %4451 = vmatprep.subr.mxu0 %v4410
    %4452 = vmatpush2.msra.mxu0 %v4409
    %4453 = vmatprep.subr.mxu0 %v4406
    %4454 = vmatpush2.msra.mxu0 %v4405
    %4455 = vmatprep.subr.mxu0 %v4402
    %4456 = vmatpush2.msra.mxu0 %v4401
    %4457 = vmatprep.subr.mxu0 %v4398
    %4458 = vmatpush2.msra.mxu0 %v4397
    %4459 = vmatprep.subr.mxu0 %v4394
    %4460 = vmatpush2.msra.mxu0 %v4393
    %4461 = vmatprep.subr.mxu0 %v4390
    %4462 = vmatpush2.msra.mxu0 %v4389
    %4463 = vmatprep.subr.mxu0 %v4386
    %4464 = vmatpush2.msra.mxu0 %v4385
    %4465 = vmatprep.subr.mxu0 %v4382
    %4466 = vmatpush2.msra.mxu0 %v4381
    %4467 = vmatprep.subr.mxu0 %v4378
    %4468 = vmatpush2.msra.mxu0 %v4377
    %4469 = vmatprep.subr.mxu0 %v4374
    %4470 = vmatpush2.msra.mxu0 %v4373
    %4471 = vmatprep.subr.mxu0 %v4370
    %4472 = vmatpush2.msra.mxu0 %v4369
    %4473 = vmatprep.subr.mxu0 %v4366
    %4474 = vmatpush2.msra.mxu0 %v4365
    %4475 = vmatprep.subr.mxu0 %v4362
    %4476 = vmatpush2.msra.mxu0 %v4361
    %4477 = vmatprep.subr.mxu0 %v4358
    %4478 = vmatpush2.msra.mxu0 %v4357
    %4479 = vmatprep.subr.mxu0 %v4354
    %4480 = vmatpush2.msra.mxu0 %v4353
    %4481 = vmatprep.mubr.f32.mxu0 %v4019
    %4482 = vmatmul.mubr.f32.gmra.mxu0 %v4288
    %v4483 = vpop.f32.mrf.mxu0
    %v4484 = vadd.f32 %v503, %v4483
    %v4485 = vpop.f32.mrf.mxu0
    %v4486 = vadd.f32 %v507, %v4485
    %4487 = vdwg.mxu0
    %4488 = vmatprep.subr.mxu0 %v4352
    %4489 = vmatpush1.msra.mxu0 %v4351
    %4490 = vmatprep.subr.mxu0 %v4348
    %4491 = vmatpush1.msra.mxu0 %v4347
    %4492 = vmatprep.subr.mxu0 %v4344
    %4493 = vmatpush1.msra.mxu0 %v4343
    %4494 = vmatprep.subr.mxu0 %v4340
    %4495 = vmatpush1.msra.mxu0 %v4339
    %4496 = vmatprep.subr.mxu0 %v4336
    %4497 = vmatpush1.msra.mxu0 %v4335
    %4498 = vmatprep.subr.mxu0 %v4332
    %4499 = vmatpush1.msra.mxu0 %v4331
    %4500 = vmatprep.subr.mxu0 %v4328
    %4501 = vmatpush1.msra.mxu0 %v4327
    %4502 = vmatprep.subr.mxu0 %v4324
    %4503 = vmatpush1.msra.mxu0 %v4323
    %4504 = vmatprep.subr.mxu0 %v4320
    %4505 = vmatpush1.msra.mxu0 %v4319
    %4506 = vmatprep.subr.mxu0 %v4316
    %4507 = vmatpush1.msra.mxu0 %v4315
    %4508 = vmatprep.subr.mxu0 %v4312
    %4509 = vmatpush1.msra.mxu0 %v4311
    %4510 = vmatprep.subr.mxu0 %v4308
    %4511 = vmatpush1.msra.mxu0 %v4307
    %4512 = vmatprep.subr.mxu0 %v4304
    %4513 = vmatpush1.msra.mxu0 %v4303
    %4514 = vmatprep.subr.mxu0 %v4300
    %4515 = vmatpush1.msra.mxu0 %v4299
    %4516 = vmatprep.subr.mxu0 %v4296
    %4517 = vmatpush1.msra.mxu0 %v4295
    %4518 = vmatprep.subr.mxu0 %v4292
    %4519 = vmatpush1.msra.mxu0 %v4291
    %4520 = vmatprep.subr.mxu0 %v4416
    %4521 = vmatpush2.msra.mxu0 %v4415
    %4522 = vmatprep.subr.mxu0 %v4412
    %4523 = vmatpush2.msra.mxu0 %v4411
    %4524 = vmatprep.subr.mxu0 %v4408
    %4525 = vmatpush2.msra.mxu0 %v4407
    %4526 = vmatprep.subr.mxu0 %v4404
    %4527 = vmatpush2.msra.mxu0 %v4403
    %4528 = vmatprep.subr.mxu0 %v4400
    %4529 = vmatpush2.msra.mxu0 %v4399
    %4530 = vmatprep.subr.mxu0 %v4396
    %4531 = vmatpush2.msra.mxu0 %v4395
    %4532 = vmatprep.subr.mxu0 %v4392
    %4533 = vmatpush2.msra.mxu0 %v4391
    %4534 = vmatprep.subr.mxu0 %v4388
    %4535 = vmatpush2.msra.mxu0 %v4387
    %4536 = vmatprep.subr.mxu0 %v4384
    %4537 = vmatpush2.msra.mxu0 %v4383
    %4538 = vmatprep.subr.mxu0 %v4380
    %4539 = vmatpush2.msra.mxu0 %v4379
    %4540 = vmatprep.subr.mxu0 %v4376
    %4541 = vmatpush2.msra.mxu0 %v4375
    %4542 = vmatprep.subr.mxu0 %v4372
    %4543 = vmatpush2.msra.mxu0 %v4371
    %4544 = vmatprep.subr.mxu0 %v4368
    %4545 = vmatpush2.msra.mxu0 %v4367
    %4546 = vmatprep.subr.mxu0 %v4364
    %4547 = vmatpush2.msra.mxu0 %v4363
    %4548 = vmatprep.subr.mxu0 %v4360
    %4549 = vmatpush2.msra.mxu0 %v4359
    %4550 = vmatprep.subr.mxu0 %v4356
    %4551 = vmatpush2.msra.mxu0 %v4355
    %4552 = vmatprep.mubr.f32.mxu0 %v4019
    %4553 = vmatmul.mubr.f32.gmra.mxu0 %v4288
    %v4554 = vpop.f32.mrf.mxu0
    %v4555 = vadd.f32 %v511, %v4554
    %v4556 = vpop.f32.mrf.mxu0
    %v4557 = vadd.f32 %v515, %v4556
    %4558 = vdwg.mxu0
    %v4559 = vmul.f32 %v4484, 0.5
    %v4560 = vtanh.pop %v4559
    %v4561 = vmul.f32 %v4560, 0.5
    %v4562 = vadd.f32 %v4561, 0.5
    %v4563 = vmul.f32 %v4486, 0.5
    %v4564 = vtanh.pop %v4563
    %v4565 = vmul.f32 %v4564, 0.5
    %v4566 = vadd.f32 %v4565, 0.5
    %v4567 = vmul.f32 %v4555, 0.5
    %v4568 = vtanh.pop %v4567
    %v4569 = vmul.f32 %v4568, 0.5
    %v4570 = vadd.f32 %v4569, 0.5
    %v4571 = vtanh.pop %v4557
    %v4572 = vmul.f32 %v4566, %v4017
    %v4573 = vmul.f32 %v4562, %v4571
    %v4574 = vadd.f32 %v4572, %v4573
    %v4575 = vtanh.pop %v4574
    %v4576 = vmul.f32 %v4570, %v4575
    %s4577 = scalar_lea.vmem [#allocation13], 14
    %4578 = vst [vmem:[%s4577] sm:$0x3] %v4576
    %s4579 = sadd.s32 %s108, 7
    %p4580 = scmp.eq.s32.totalorder %s4579, 7
    // Predicated region
    $region78: #{tpu_custom_call.1} parent=1 // pred_check
      %p4581 = pneg %p4580
    $region79: #{tpu_custom_call.1} parent=1 // pred_check_branch
      %4583 = sbr.rel (%p4581) target = $region81
    $region80: #{tpu_custom_call.1} parent=1 // pred_region
      %4584 = vst [vmem:[#allocation14] sm:$0x3] %v4288
      %4585 = vst [vmem:[#allocation16] sm:$0x3] %v4286
      %s4586 = scalar_lea.vmem [#allocation14], 2
      %4587 = vst [vmem:[%s4586] sm:$0x3] %v4576
      %s4588 = scalar_lea.vmem [#allocation16], 2
      %4589 = vst [vmem:[%s4588] sm:$0x3] %v4574
    $region81: #{tpu_custom_call.1} parent=1 // pred_fallthru
      _
    %4590 = vst [vmem:[#allocation2] sm:$0x3] %v4288
    %4591 = vst [vmem:[#allocation3] sm:$0x3] %v4286
    %4592 = vst [vmem:[%s110] sm:$0x3] %v4576
    %4593 = vst [vmem:[%s113] sm:$0x3] %v4574
    // Predicated region
    $region82: #{tpu_custom_call.1} parent=1 // pred_check
      _
    $region83: #{tpu_custom_call.1} parent=1 // pred_check_branch
      %4595 = sbr.rel (0) target = $region85
    $region84: #{tpu_custom_call.1} parent=1 // pred_region
      %s4597 = ssub.s32 256, 256
      %4598 = vsyncadd [#allocation6], %s4597
      %s4599 = sshll.u32 [#allocation13], 4
      %s4600 = int_to_ptr.vmem [resolvable:$true] %s4599
      %4605 = dma.vmem_to_hbm [thread:$0]  %s4600, 256, %s6, [#allocation6], 32, 32, 2
    $region85: #{tpu_custom_call.1} parent=1 // pred_fallthru
      _
    // Predicated region
    $region86: #{tpu_custom_call.1} parent=1 // pred_check
      _
    $region87: #{tpu_custom_call.1} parent=1 // pred_check_branch
      %4607 = sbr.rel (0) target = $region89
    $region88: #{tpu_custom_call.1} parent=1 // pred_region
      %s4609 = ssub.s32 64, 64
      %4610 = vsyncadd [#allocation15], %s4609
      %s4611 = sshll.u32 [#allocation14], 4
      %s4612 = int_to_ptr.vmem [resolvable:$true] %s4611
      %4617 = dma.vmem_to_hbm [thread:$0]  %s4612, 64, %s7, [#allocation15], 32, 32, 2
    $region89: #{tpu_custom_call.1} parent=1 // pred_fallthru
      _
    // Predicated region
    $region90: #{tpu_custom_call.1} parent=1 // pred_check
      _
    $region91: #{tpu_custom_call.1} parent=1 // pred_check_branch
      %4619 = sbr.rel (0) target = $region93
    $region92: #{tpu_custom_call.1} parent=1 // pred_region
      %s4621 = ssub.s32 64, 64
      %4622 = vsyncadd [#allocation15], %s4621
      %s4623 = sshll.u32 [#allocation16], 4
      %s4624 = int_to_ptr.vmem [resolvable:$true] %s4623
      %4629 = dma.vmem_to_hbm [thread:$0]  %s4624, 64, %s8, [#allocation15], 32, 32, 2
    $region93: #{tpu_custom_call.1} parent=1 // pred_fallthru
      _
    // Predicated region
    $region94: #{tpu_custom_call.1} parent=1 // pred_check
      _
    $region95: #{tpu_custom_call.1} parent=1 // pred_check_branch
      %4631 = sbr.rel (0) target = $region97
    $region96: #{tpu_custom_call.1} parent=1 // pred_region
      %4632 = dma.done [#allocation6], 256
    $region97: #{tpu_custom_call.1} parent=1 // pred_fallthru
      _
    // Predicated region
    $region98: #{tpu_custom_call.1} parent=1 // pred_check
      _
    $region99: #{tpu_custom_call.1} parent=1 // pred_check_branch
      %4634 = sbr.rel (0) target = $region101
    $region100: #{tpu_custom_call.1} parent=1 // pred_region
      %4635 = dma.done [#allocation15], 64
    $region101: #{tpu_custom_call.1} parent=1 // pred_fallthru
      _
    // Predicated region
    $region102: #{tpu_custom_call.1} parent=1 // pred_check
      _
    $region103: #{tpu_custom_call.1} parent=1 // pred_check_branch
      %4637 = sbr.rel (0) target = $region105
    $region104: #{tpu_custom_call.1} parent=1 // pred_region
      %4638 = dma.done [#allocation15], 64
    $region105: #{tpu_custom_call.1} parent=1 // pred_fallthru
      _
    %4639 = vsyncpa [#allocation5], 1
    %4640 = vsyncpa [#allocation8], 1
    %4641 = vsyncpa [#allocation11], 1
    %4642 = vsyncpa [#allocation6], 1
    %4643 = vsyncpa [#allocation15], 1

</llo_original>
